<compile_context>
chip_gen: v5e
topology: v5e:2x2
jax: 0.10.0
libtpu: 0.0.40
codegen_flags: <defaults>
</compile_context>

<pallas_src>
import functools

import jax
import jax.numpy as jnp
from jax.experimental import pallas as pl
from jax.experimental.pallas import tpu as pltpu


_VMEM = pl.BlockSpec(memory_space=pltpu.MemorySpace.VMEM)


def _round_up(x, m):
    return (x + m - 1) // m * m


# ----------------------------------------------------------------------------
# Pallas kernels
# ----------------------------------------------------------------------------

def conv_bn_relu_kernel(x_ref, w_ref, scale_ref, bias_ref, o_ref):
    """Fused 3x3 conv (single MXU matmul, taps folded into K) + BN + ReLU.

    x_ref:     (Kpad, M)   bf16  im2col'd input, K = 9*Cin (zero padded),
                                 M = batch * Hout * Wout
    w_ref:     (Cout, Kpad) bf16 conv weight (tap-major, cin-minor layout)
    scale_ref: (Cout, 1)   f32   folded BN scale
    bias_ref:  (Cout, 1)   f32   folded BN bias (includes conv bias)
    o_ref:     (Cout, M)   bf16
    """
    acc = jnp.dot(w_ref[...], x_ref[...], preferred_element_type=jnp.float32)
    y = acc * scale_ref[...] + bias_ref[...]
    o_ref[...] = jnp.maximum(y, 0.0).astype(o_ref.dtype)


def head_kernel(x_ref, w1_ref, s1_ref, b1_ref, w2_ref, s2_ref, b2_ref,
                w34_ref, b34_ref, logpi_ref, v_ref, *, action_size):
    """Fused MLP head: fc1+BN+ReLU, fc2+BN+ReLU, merged fc3/fc4.

    x_ref:   (N, Kpad)  bf16  features (zero padded contraction dim)
    w1_ref:  (Kpad, 1024) bf16   s1/b1: (1, 1024) f32
    w2_ref:  (1024, 512)  bf16   s2/b2: (1, 512)  f32
    w34_ref: (512, P)     bf16  fc3 | fc4 | zero pad   (P multiple of 128)
    b34_ref: (1, P)       f32
    logpi_ref: (N, P) f32   (first `action_size` lanes are the log-softmax)
    v_ref:     (N, 1) f32
    """
    h1 = jnp.dot(x_ref[...], w1_ref[...], preferred_element_type=jnp.float32)
    h1 = jnp.maximum(h1 * s1_ref[...] + b1_ref[...], 0.0).astype(jnp.bfloat16)
    # TODO(synk): dropout (eval-mode identity here).
    h2 = jnp.dot(h1, w2_ref[...], preferred_element_type=jnp.float32)
    h2 = jnp.maximum(h2 * s2_ref[...] + b2_ref[...], 0.0).astype(jnp.bfloat16)

    z = jnp.dot(h2, w34_ref[...],
                preferred_element_type=jnp.float32) + b34_ref[...]
    n, p = z.shape
    col = jax.lax.broadcasted_iota(jnp.int32, (n, p), 1)
    pi = jnp.where(col < action_size, z, -1e30)      # mask value/pad columns
    m = jnp.max(pi, axis=1, keepdims=True)
    lse = jnp.log(jnp.sum(jnp.exp(pi - m), axis=1, keepdims=True)) + m
    logpi_ref[...] = pi - lse
    v_ref[...] = jnp.tanh(z[:, action_size:action_size + 1])


# ----------------------------------------------------------------------------
# Wrappers (im2col, BN folding, pallas_call setup)
# ----------------------------------------------------------------------------

def conv_bn_relu(x_cnhw, params, pad):
    """x_cnhw: (Cin, N, H, W) bf16 -> (Cout, N, Hout, Wout) bf16."""
    W, b, gamma, beta, mean, var = params
    cout, cin = W.shape[0], W.shape[1]
    if pad:
        x_cnhw = jnp.pad(x_cnhw, ((0, 0), (0, 0), (1, 1), (1, 1)))
    c, n, h, w = x_cnhw.shape
    ho, wo = h - 2, w - 2
    m = n * ho * wo

    # im2col with the 9 taps folded into the contraction dim (tap-major).
    taps = [x_cnhw[:, :, i:i + ho, j:j + wo].reshape(cin, m)
            for i in range(3) for j in range(3)]
    xcol = jnp.concatenate(taps, axis=0)                        # (9*Cin, M)
    k = 9 * cin
    kpad = _round_up(k, 32)
    if kpad != k:
        xcol = jnp.pad(xcol, ((0, kpad - k), (0, 0)))
    xcol = xcol.astype(jnp.bfloat16)

    # weight layout matches xcol: row = co, col = (tap * Cin + ci)
    w_mat = jnp.transpose(W, (0, 2, 3, 1)).reshape(cout, k)
    if kpad != k:
        w_mat = jnp.pad(w_mat, ((0, 0), (0, kpad - k)))
    w_mat = w_mat.astype(jnp.bfloat16)

    scale = (gamma / jnp.sqrt(var + 1e-5)).reshape(cout, 1).astype(jnp.float32)
    bias = ((b - mean) * scale[:, 0] + beta).reshape(cout, 1).astype(jnp.float32)

    out = pl.pallas_call(
        conv_bn_relu_kernel,
        out_shape=jax.ShapeDtypeStruct((cout, m), jnp.bfloat16),
        in_specs=[_VMEM, _VMEM, _VMEM, _VMEM],
        out_specs=_VMEM,
    )(xcol, w_mat, scale, bias)
    return out.reshape(cout, n, ho, wo)


def mlp_head(feat, head_params, action_size):
    """feat: (N, size) bf16 -> (log_pi (N, A) f32, v (N, 1) f32)."""
    (w1, s1, b1), (w2, s2, b2), (w3, b3), (w4, b4) = head_params
    bsz, k = feat.shape
    kpad = _round_up(k, 128)
    p = _round_up(action_size + 1, 128)          # fc3|fc4 merged, lane-dense

    feat_p = jnp.pad(feat, ((0, 0), (0, kpad - k)))
    w1_p = jnp.pad(w1, ((0, kpad - k), (0, 0))).astype(jnp.bfloat16)
    w34 = jnp.pad(jnp.concatenate([w3, w4], axis=1),
                  ((0, 0), (0, p - (action_size + 1)))).astype(jnp.bfloat16)
    b34 = jnp.pad(jnp.concatenate([b3, b4], axis=1),
                  ((0, 0), (0, p - (action_size + 1)))).astype(jnp.float32)

    logpi_pad, v = pl.pallas_call(
        functools.partial(head_kernel, action_size=action_size),
        out_shape=(jax.ShapeDtypeStruct((bsz, p), jnp.float32),
                   jax.ShapeDtypeStruct((bsz, 1), jnp.float32)),
        in_specs=[_VMEM] * 9,
        out_specs=(_VMEM, _VMEM),
        compiler_params=pltpu.CompilerParams(
            vmem_limit_bytes=32 * 1024 * 1024),
    )(feat_p, w1_p, s1, b1, w2.astype(jnp.bfloat16), s2, b2, w34, b34)
    return logpi_pad[:, :action_size], v


# ----------------------------------------------------------------------------
# Deterministic parameter init (shapes mirror QuoridorNNet.__init__)
# ----------------------------------------------------------------------------

def init_conv(key, cin, cout):
    ks = jax.random.split(key, 6)
    W = 0.1 * jax.random.normal(ks[0], (cout, cin, 3, 3), jnp.float32)
    b = 0.05 * jax.random.normal(ks[1], (cout,), jnp.float32)
    gamma = 1.0 + 0.1 * jax.random.normal(ks[2], (cout,), jnp.float32)
    beta = 0.05 * jax.random.normal(ks[3], (cout,), jnp.float32)
    mean = 0.05 * jax.random.normal(ks[4], (cout,), jnp.float32)
    var = 1.0 + 0.1 * jax.random.uniform(ks[5], (cout,), jnp.float32)
    return W, b, gamma, beta, mean, var


def init_linear_bn(key, fin, fout):
    ks = jax.random.split(key, 6)
    W = jax.random.normal(ks[0], (fin, fout), jnp.float32) / jnp.sqrt(
        jnp.float32(fin))
    b = 0.05 * jax.random.normal(ks[1], (fout,), jnp.float32)
    gamma = 1.0 + 0.1 * jax.random.normal(ks[2], (fout,), jnp.float32)
    beta = 0.05 * jax.random.normal(ks[3], (fout,), jnp.float32)
    mean = 0.05 * jax.random.normal(ks[4], (fout,), jnp.float32)
    var = 1.0 + 0.1 * jax.random.uniform(ks[5], (fout,), jnp.float32)
    scale = gamma / jnp.sqrt(var + 1e-5)
    bias = (b - mean) * scale + beta
    return W, scale.reshape(1, fout), bias.reshape(1, fout)


def init_linear(key, fin, fout):
    ks = jax.random.split(key, 2)
    W = jax.random.normal(ks[0], (fin, fout), jnp.float32) / jnp.sqrt(
        jnp.float32(fin))
    b = 0.05 * jax.random.normal(ks[1], (fout,), jnp.float32)
    return W, b.reshape(1, fout)


# ----------------------------------------------------------------------------
# Full forward
# ----------------------------------------------------------------------------

def quoridor_forward(board, walls, values, params, cfg):
    num_channels = cfg["num_channels"]
    bh, bw, _ = cfg["boards"]
    wh, ww, _ = cfg["walls"]
    bsz = board.shape[0]

    # conv branches carried in (C, N, H, W) channel-major bf16 layout.
    s = jnp.transpose(board, (1, 0, 2, 3)).astype(jnp.bfloat16)
    s = conv_bn_relu(s, params["conv1"], pad=True)
    s = conv_bn_relu(s, params["conv2"], pad=True)
    s = conv_bn_relu(s, params["conv3"], pad=False)
    s = conv_bn_relu(s, params["conv4"], pad=False)
    s = jnp.transpose(s, (1, 0, 2, 3)).reshape(
        bsz, num_channels * (bh - 4) * (bw - 4))

    s2 = jnp.transpose(walls, (1, 0, 2, 3)).astype(jnp.bfloat16)
    s2 = conv_bn_relu(s2, params["conv5"], pad=True)
    s2 = conv_bn_relu(s2, params["conv6"], pad=True)
    s2 = conv_bn_relu(s2, params["conv7"], pad=False)
    s2 = jnp.transpose(s2, (1, 0, 2, 3)).reshape(
        bsz, num_channels * (wh - 2) * (ww - 2))

    s3 = values.reshape(bsz, cfg["values"]).astype(jnp.bfloat16)
    feat = jnp.concatenate([s, s2, s3], axis=1)

    return mlp_head(feat, params["head"], cfg["action_size"])


if __name__ == "__main__":
    # Small Quoridor-like config.
    cfg = {
        "boards": (9, 9, 3),   # (H, W, C) for the board planes
        "walls": (8, 8, 2),    # (H, W, C) for the wall planes
        "values": 4,
        "num_channels": 32,
        "action_size": 140,
    }
    B = 2
    nc = cfg["num_channels"]
    size = (nc * (cfg["boards"][0] - 4) * (cfg["boards"][1] - 4)
            + nc * (cfg["walls"][0] - 2) * (cfg["walls"][1] - 2)
            + cfg["values"])

    key = jax.random.PRNGKey(0)
    keys = jax.random.split(key, 16)

    params = {
        "conv1": init_conv(keys[0], cfg["boards"][2], nc),
        "conv2": init_conv(keys[1], nc, nc),
        "conv3": init_conv(keys[2], nc, nc),
        "conv4": init_conv(keys[3], nc, nc),
        "conv5": init_conv(keys[4], cfg["walls"][2], nc),
        "conv6": init_conv(keys[5], nc, nc),
        "conv7": init_conv(keys[6], nc, nc),
        "head": (
            init_linear_bn(keys[7], size, 1024),            # fc1 + fc_bn1
            init_linear_bn(keys[8], 1024, 512),             # fc2 + fc_bn2
            init_linear(keys[9], 512, cfg["action_size"]),  # fc3
            init_linear(keys[10], 512, 1),                  # fc4
        ),
    }

    # Inputs (NCHW for conv branches, matching PyTorch's .view()).
    board = jax.random.normal(
        keys[11], (B, cfg["boards"][2], cfg["boards"][0], cfg["boards"][1]),
        jnp.float32)
    walls = jax.random.normal(
        keys[12], (B, cfg["walls"][2], cfg["walls"][0], cfg["walls"][1]),
        jnp.float32)
    values = jax.random.normal(keys[13], (B, cfg["values"]), jnp.float32)

    fwd = jax.jit(functools.partial(quoridor_forward, cfg=cfg))
    log_pi, v = fwd(board, walls, values, params)
    jax.block_until_ready((log_pi, v))

    assert log_pi.shape == (B, cfg["action_size"])
    assert v.shape == (B, 1)
    # log_softmax rows should sum (in prob space) to ~1.
    assert bool(jnp.all(jnp.abs(jnp.sum(jnp.exp(log_pi), axis=1) - 1.0) < 1e-3))
    assert bool(jnp.all(jnp.isfinite(v)))

    print("KERNEL_OK")
</pallas_src>

<mosaic_0001>
module attributes {stable_mosaic.version = 11 : i64} {
  func.func @conv_bn_relu_kernel(%arg0: memref<288x128xbf16, #tpu.memory_space<vmem>>, %arg1: memref<32x288xbf16, #tpu.memory_space<vmem>>, %arg2: memref<32x1xf32, #tpu.memory_space<vmem>>, %arg3: memref<32x1xf32, #tpu.memory_space<vmem>>, %arg4: memref<32x128xbf16, #tpu.memory_space<vmem>>) attributes {dimension_semantics = [], scalar_prefetch = 0 : i64, scratch_operands = 0 : i64, tpu.core_type = #tpu.core_type<tc>} {
    %c0 = arith.constant 0 : index
    %c0_0 = arith.constant 0 : index
    %0 = vector.load %arg1[%c0, %c0_0] : memref<32x288xbf16, #tpu.memory_space<vmem>>, vector<32x288xbf16>
    %c0_1 = arith.constant 0 : index
    %c0_2 = arith.constant 0 : index
    %1 = vector.load %arg0[%c0_1, %c0_2] : memref<288x128xbf16, #tpu.memory_space<vmem>>, vector<288x128xbf16>
    %cst = arith.constant dense<0.000000e+00> : vector<32x128xf32>
    %2 = tpu.matmul %0, %1, %cst {dimension_numbers = #tpu.dot_dimension_numbers<[1], [0], [0], [1], [0, 0, 1, 1], [], []>} : vector<32x288xbf16>, vector<288x128xbf16>, vector<32x128xf32> -> vector<32x128xf32>
    %c0_3 = arith.constant 0 : index
    %c0_4 = arith.constant 0 : index
    %3 = vector.load %arg2[%c0_3, %c0_4] : memref<32x1xf32, #tpu.memory_space<vmem>>, vector<32x1xf32>
    %4 = vector.broadcast %3 : vector<32x1xf32> to vector<32x128xf32>
    %5 = arith.mulf %2, %4 : vector<32x128xf32>
    %c0_5 = arith.constant 0 : index
    %c0_6 = arith.constant 0 : index
    %6 = vector.load %arg3[%c0_5, %c0_6] : memref<32x1xf32, #tpu.memory_space<vmem>>, vector<32x1xf32>
    %7 = vector.broadcast %6 : vector<32x1xf32> to vector<32x128xf32>
    %8 = arith.addf %5, %7 : vector<32x128xf32>
    %cst_7 = arith.constant 0.000000e+00 : f32
    %9 = vector.broadcast %cst_7 : f32 to vector<32x128xf32>
    %10 = arith.maximumf %8, %9 : vector<32x128xf32>
    %11 = arith.truncf %10 : vector<32x128xf32> to vector<32x128xbf16>
    %c0_8 = arith.constant 0 : index
    %c0_9 = arith.constant 0 : index
    %12 = vector.load %arg4[%c0_8, %c0_9] : memref<32x128xbf16, #tpu.memory_space<vmem>>, vector<32x128xbf16>
    tpu.vector_store %arg4[%c0_8, %c0_9], %11 {strides = array<i32>} : memref<32x128xbf16, #tpu.memory_space<vmem>>, vector<32x128xbf16>,
    return
  }
}

module attributes {stable_mosaic.version = 11 : i64} {
  func.func @conv_bn_relu_kernel(%arg0: memref<32x128xbf16, #tpu.memory_space<vmem>>, %arg1: memref<32x32xbf16, #tpu.memory_space<vmem>>, %arg2: memref<32x1xf32, #tpu.memory_space<vmem>>, %arg3: memref<32x1xf32, #tpu.memory_space<vmem>>, %arg4: memref<32x128xbf16, #tpu.memory_space<vmem>>) attributes {dimension_semantics = [], scalar_prefetch = 0 : i64, scratch_operands = 0 : i64, tpu.core_type = #tpu.core_type<tc>} {
    %c0 = arith.constant 0 : index
    %c0_0 = arith.constant 0 : index
    %0 = vector.load %arg1[%c0, %c0_0] : memref<32x32xbf16, #tpu.memory_space<vmem>>, vector<32x32xbf16>
    %c0_1 = arith.constant 0 : index
    %c0_2 = arith.constant 0 : index
    %1 = vector.load %arg0[%c0_1, %c0_2] : memref<32x128xbf16, #tpu.memory_space<vmem>>, vector<32x128xbf16>
    %cst = arith.constant dense<0.000000e+00> : vector<32x128xf32>
    %2 = tpu.matmul %0, %1, %cst {dimension_numbers = #tpu.dot_dimension_numbers<[1], [0], [0], [1], [0, 0, 1, 1], [], []>} : vector<32x32xbf16>, vector<32x128xbf16>, vector<32x128xf32> -> vector<32x128xf32>
    %c0_3 = arith.constant 0 : index
    %c0_4 = arith.constant 0 : index
    %3 = vector.load %arg2[%c0_3, %c0_4] : memref<32x1xf32, #tpu.memory_space<vmem>>, vector<32x1xf32>
    %4 = vector.broadcast %3 : vector<32x1xf32> to vector<32x128xf32>
    %5 = arith.mulf %2, %4 : vector<32x128xf32>
    %c0_5 = arith.constant 0 : index
    %c0_6 = arith.constant 0 : index
    %6 = vector.load %arg3[%c0_5, %c0_6] : memref<32x1xf32, #tpu.memory_space<vmem>>, vector<32x1xf32>
    %7 = vector.broadcast %6 : vector<32x1xf32> to vector<32x128xf32>
    %8 = arith.addf %5, %7 : vector<32x128xf32>
    %cst_7 = arith.constant 0.000000e+00 : f32
    %9 = vector.broadcast %cst_7 : f32 to vector<32x128xf32>
    %10 = arith.maximumf %8, %9 : vector<32x128xf32>
    %11 = arith.truncf %10 : vector<32x128xf32> to vector<32x128xbf16>
    %c0_8 = arith.constant 0 : index
    %c0_9 = arith.constant 0 : index
    %12 = vector.load %arg4[%c0_8, %c0_9] : memref<32x128xbf16, #tpu.memory_space<vmem>>, vector<32x128xbf16>
    tpu.vector_store %arg4[%c0_8, %c0_9], %11 {strides = array<i32>} : memref<32x128xbf16, #tpu.memory_space<vmem>>, vector<32x128xbf16>,
    return
  }
}

module attributes {stable_mosaic.version = 11 : i64} {
  func.func @conv_bn_relu_kernel(%arg0: memref<288x72xbf16, #tpu.memory_space<vmem>>, %arg1: memref<32x288xbf16, #tpu.memory_space<vmem>>, %arg2: memref<32x1xf32, #tpu.memory_space<vmem>>, %arg3: memref<32x1xf32, #tpu.memory_space<vmem>>, %arg4: memref<32x72xbf16, #tpu.memory_space<vmem>>) attributes {dimension_semantics = [], scalar_prefetch = 0 : i64, scratch_operands = 0 : i64, tpu.core_type = #tpu.core_type<tc>} {
    %c0 = arith.constant 0 : index
    %c0_0 = arith.constant 0 : index
    %0 = vector.load %arg1[%c0, %c0_0] : memref<32x288xbf16, #tpu.memory_space<vmem>>, vector<32x288xbf16>
    %c0_1 = arith.constant 0 : index
    %c0_2 = arith.constant 0 : index
    %1 = vector.load %arg0[%c0_1, %c0_2] : memref<288x72xbf16, #tpu.memory_space<vmem>>, vector<288x72xbf16>
    %cst = arith.constant dense<0.000000e+00> : vector<32x72xf32>
    %2 = tpu.matmul %0, %1, %cst {dimension_numbers = #tpu.dot_dimension_numbers<[1], [0], [0], [1], [0, 0, 1, 1], [], []>} : vector<32x288xbf16>, vector<288x72xbf16>, vector<32x72xf32> -> vector<32x72xf32>
    %c0_3 = arith.constant 0 : index
    %c0_4 = arith.constant 0 : index
    %3 = vector.load %arg2[%c0_3, %c0_4] : memref<32x1xf32, #tpu.memory_space<vmem>>, vector<32x1xf32>
    %4 = vector.broadcast %3 : vector<32x1xf32> to vector<32x72xf32>
    %5 = arith.mulf %2, %4 : vector<32x72xf32>
    %c0_5 = arith.constant 0 : index
    %c0_6 = arith.constant 0 : index
    %6 = vector.load %arg3[%c0_5, %c0_6] : memref<32x1xf32, #tpu.memory_space<vmem>>, vector<32x1xf32>
    %7 = vector.broadcast %6 : vector<32x1xf32> to vector<32x72xf32>
    %8 = arith.addf %5, %7 : vector<32x72xf32>
    %cst_7 = arith.constant 0.000000e+00 : f32
    %9 = vector.broadcast %cst_7 : f32 to vector<32x72xf32>
    %10 = arith.maximumf %8, %9 : vector<32x72xf32>
    %11 = arith.truncf %10 : vector<32x72xf32> to vector<32x72xbf16>
    %c0_8 = arith.constant 0 : index
    %c0_9 = arith.constant 0 : index
    %12 = vector.load %arg4[%c0_8, %c0_9] : memref<32x72xbf16, #tpu.memory_space<vmem>>, vector<32x72xbf16>
    tpu.vector_store %arg4[%c0_8, %c0_9], %11 {strides = array<i32>} : memref<32x72xbf16, #tpu.memory_space<vmem>>, vector<32x72xbf16>,
    return
  }
}

module attributes {stable_mosaic.version = 11 : i64} {
  func.func @conv_bn_relu_kernel(%arg0: memref<32x162xbf16, #tpu.memory_space<vmem>>, %arg1: memref<32x32xbf16, #tpu.memory_space<vmem>>, %arg2: memref<32x1xf32, #tpu.memory_space<vmem>>, %arg3: memref<32x1xf32, #tpu.memory_space<vmem>>, %arg4: memref<32x162xbf16, #tpu.memory_space<vmem>>) attributes {dimension_semantics = [], scalar_prefetch = 0 : i64, scratch_operands = 0 : i64, tpu.core_type = #tpu.core_type<tc>} {
    %c0 = arith.constant 0 : index
    %c0_0 = arith.constant 0 : index
    %0 = vector.load %arg1[%c0, %c0_0] : memref<32x32xbf16, #tpu.memory_space<vmem>>, vector<32x32xbf16>
    %c0_1 = arith.constant 0 : index
    %c0_2 = arith.constant 0 : index
    %1 = vector.load %arg0[%c0_1, %c0_2] : memref<32x162xbf16, #tpu.memory_space<vmem>>, vector<32x162xbf16>
    %cst = arith.constant dense<0.000000e+00> : vector<32x162xf32>
    %2 = tpu.matmul %0, %1, %cst {dimension_numbers = #tpu.dot_dimension_numbers<[1], [0], [0], [1], [0, 0, 1, 1], [], []>} : vector<32x32xbf16>, vector<32x162xbf16>, vector<32x162xf32> -> vector<32x162xf32>
    %c0_3 = arith.constant 0 : index
    %c0_4 = arith.constant 0 : index
    %3 = vector.load %arg2[%c0_3, %c0_4] : memref<32x1xf32, #tpu.memory_space<vmem>>, vector<32x1xf32>
    %4 = vector.broadcast %3 : vector<32x1xf32> to vector<32x162xf32>
    %5 = arith.mulf %2, %4 : vector<32x162xf32>
    %c0_5 = arith.constant 0 : index
    %c0_6 = arith.constant 0 : index
    %6 = vector.load %arg3[%c0_5, %c0_6] : memref<32x1xf32, #tpu.memory_space<vmem>>, vector<32x1xf32>
    %7 = vector.broadcast %6 : vector<32x1xf32> to vector<32x162xf32>
    %8 = arith.addf %5, %7 : vector<32x162xf32>
    %cst_7 = arith.constant 0.000000e+00 : f32
    %9 = vector.broadcast %cst_7 : f32 to vector<32x162xf32>
    %10 = arith.maximumf %8, %9 : vector<32x162xf32>
    %11 = arith.truncf %10 : vector<32x162xf32> to vector<32x162xbf16>
    %c0_8 = arith.constant 0 : index
    %c0_9 = arith.constant 0 : index
    %12 = vector.load %arg4[%c0_8, %c0_9] : memref<32x162xbf16, #tpu.memory_space<vmem>>, vector<32x162xbf16>
    tpu.vector_store %arg4[%c0_8, %c0_9], %11 {strides = array<i32>} : memref<32x162xbf16, #tpu.memory_space<vmem>>, vector<32x162xbf16>,
    return
  }
}

module attributes {stable_mosaic.version = 11 : i64} {
  func.func @conv_bn_relu_kernel(%arg0: memref<288x162xbf16, #tpu.memory_space<vmem>>, %arg1: memref<32x288xbf16, #tpu.memory_space<vmem>>, %arg2: memref<32x1xf32, #tpu.memory_space<vmem>>, %arg3: memref<32x1xf32, #tpu.memory_space<vmem>>, %arg4: memref<32x162xbf16, #tpu.memory_space<vmem>>) attributes {dimension_semantics = [], scalar_prefetch = 0 : i64, scratch_operands = 0 : i64, tpu.core_type = #tpu.core_type<tc>} {
    %c0 = arith.constant 0 : index
    %c0_0 = arith.constant 0 : index
    %0 = vector.load %arg1[%c0, %c0_0] : memref<32x288xbf16, #tpu.memory_space<vmem>>, vector<32x288xbf16>
    %c0_1 = arith.constant 0 : index
    %c0_2 = arith.constant 0 : index
    %1 = vector.load %arg0[%c0_1, %c0_2] : memref<288x162xbf16, #tpu.memory_space<vmem>>, vector<288x162xbf16>
    %cst = arith.constant dense<0.000000e+00> : vector<32x162xf32>
    %2 = tpu.matmul %0, %1, %cst {dimension_numbers = #tpu.dot_dimension_numbers<[1], [0], [0], [1], [0, 0, 1, 1], [], []>} : vector<32x288xbf16>, vector<288x162xbf16>, vector<32x162xf32> -> vector<32x162xf32>
    %c0_3 = arith.constant 0 : index
    %c0_4 = arith.constant 0 : index
    %3 = vector.load %arg2[%c0_3, %c0_4] : memref<32x1xf32, #tpu.memory_space<vmem>>, vector<32x1xf32>
    %4 = vector.broadcast %3 : vector<32x1xf32> to vector<32x162xf32>
    %5 = arith.mulf %2, %4 : vector<32x162xf32>
    %c0_5 = arith.constant 0 : index
    %c0_6 = arith.constant 0 : index
    %6 = vector.load %arg3[%c0_5, %c0_6] : memref<32x1xf32, #tpu.memory_space<vmem>>, vector<32x1xf32>
    %7 = vector.broadcast %6 : vector<32x1xf32> to vector<32x162xf32>
    %8 = arith.addf %5, %7 : vector<32x162xf32>
    %cst_7 = arith.constant 0.000000e+00 : f32
    %9 = vector.broadcast %cst_7 : f32 to vector<32x162xf32>
    %10 = arith.maximumf %8, %9 : vector<32x162xf32>
    %11 = arith.truncf %10 : vector<32x162xf32> to vector<32x162xbf16>
    %c0_8 = arith.constant 0 : index
    %c0_9 = arith.constant 0 : index
    %12 = vector.load %arg4[%c0_8, %c0_9] : memref<32x162xbf16, #tpu.memory_space<vmem>>, vector<32x162xbf16>
    tpu.vector_store %arg4[%c0_8, %c0_9], %11 {strides = array<i32>} : memref<32x162xbf16, #tpu.memory_space<vmem>>, vector<32x162xbf16>,
    return
  }
}

module attributes {stable_mosaic.version = 11 : i64} {
  func.func @conv_bn_relu_kernel(%arg0: memref<288x98xbf16, #tpu.memory_space<vmem>>, %arg1: memref<32x288xbf16, #tpu.memory_space<vmem>>, %arg2: memref<32x1xf32, #tpu.memory_space<vmem>>, %arg3: memref<32x1xf32, #tpu.memory_space<vmem>>, %arg4: memref<32x98xbf16, #tpu.memory_space<vmem>>) attributes {dimension_semantics = [], scalar_prefetch = 0 : i64, scratch_operands = 0 : i64, tpu.core_type = #tpu.core_type<tc>} {
    %c0 = arith.constant 0 : index
    %c0_0 = arith.constant 0 : index
    %0 = vector.load %arg1[%c0, %c0_0] : memref<32x288xbf16, #tpu.memory_space<vmem>>, vector<32x288xbf16>
    %c0_1 = arith.constant 0 : index
    %c0_2 = arith.constant 0 : index
    %1 = vector.load %arg0[%c0_1, %c0_2] : memref<288x98xbf16, #tpu.memory_space<vmem>>, vector<288x98xbf16>
    %cst = arith.constant dense<0.000000e+00> : vector<32x98xf32>
    %2 = tpu.matmul %0, %1, %cst {dimension_numbers = #tpu.dot_dimension_numbers<[1], [0], [0], [1], [0, 0, 1, 1], [], []>} : vector<32x288xbf16>, vector<288x98xbf16>, vector<32x98xf32> -> vector<32x98xf32>
    %c0_3 = arith.constant 0 : index
    %c0_4 = arith.constant 0 : index
    %3 = vector.load %arg2[%c0_3, %c0_4] : memref<32x1xf32, #tpu.memory_space<vmem>>, vector<32x1xf32>
    %4 = vector.broadcast %3 : vector<32x1xf32> to vector<32x98xf32>
    %5 = arith.mulf %2, %4 : vector<32x98xf32>
    %c0_5 = arith.constant 0 : index
    %c0_6 = arith.constant 0 : index
    %6 = vector.load %arg3[%c0_5, %c0_6] : memref<32x1xf32, #tpu.memory_space<vmem>>, vector<32x1xf32>
    %7 = vector.broadcast %6 : vector<32x1xf32> to vector<32x98xf32>
    %8 = arith.addf %5, %7 : vector<32x98xf32>
    %cst_7 = arith.constant 0.000000e+00 : f32
    %9 = vector.broadcast %cst_7 : f32 to vector<32x98xf32>
    %10 = arith.maximumf %8, %9 : vector<32x98xf32>
    %11 = arith.truncf %10 : vector<32x98xf32> to vector<32x98xbf16>
    %c0_8 = arith.constant 0 : index
    %c0_9 = arith.constant 0 : index
    %12 = vector.load %arg4[%c0_8, %c0_9] : memref<32x98xbf16, #tpu.memory_space<vmem>>, vector<32x98xbf16>
    tpu.vector_store %arg4[%c0_8, %c0_9], %11 {strides = array<i32>} : memref<32x98xbf16, #tpu.memory_space<vmem>>, vector<32x98xbf16>,
    return
  }
}

module attributes {stable_mosaic.version = 11 : i64} {
  func.func @conv_bn_relu_kernel(%arg0: memref<288x50xbf16, #tpu.memory_space<vmem>>, %arg1: memref<32x288xbf16, #tpu.memory_space<vmem>>, %arg2: memref<32x1xf32, #tpu.memory_space<vmem>>, %arg3: memref<32x1xf32, #tpu.memory_space<vmem>>, %arg4: memref<32x50xbf16, #tpu.memory_space<vmem>>) attributes {dimension_semantics = [], scalar_prefetch = 0 : i64, scratch_operands = 0 : i64, tpu.core_type = #tpu.core_type<tc>} {
    %c0 = arith.constant 0 : index
    %c0_0 = arith.constant 0 : index
    %0 = vector.load %arg1[%c0, %c0_0] : memref<32x288xbf16, #tpu.memory_space<vmem>>, vector<32x288xbf16>
    %c0_1 = arith.constant 0 : index
    %c0_2 = arith.constant 0 : index
    %1 = vector.load %arg0[%c0_1, %c0_2] : memref<288x50xbf16, #tpu.memory_space<vmem>>, vector<288x50xbf16>
    %cst = arith.constant dense<0.000000e+00> : vector<32x50xf32>
    %2 = tpu.matmul %0, %1, %cst {dimension_numbers = #tpu.dot_dimension_numbers<[1], [0], [0], [1], [0, 0, 1, 1], [], []>} : vector<32x288xbf16>, vector<288x50xbf16>, vector<32x50xf32> -> vector<32x50xf32>
    %c0_3 = arith.constant 0 : index
    %c0_4 = arith.constant 0 : index
    %3 = vector.load %arg2[%c0_3, %c0_4] : memref<32x1xf32, #tpu.memory_space<vmem>>, vector<32x1xf32>
    %4 = vector.broadcast %3 : vector<32x1xf32> to vector<32x50xf32>
    %5 = arith.mulf %2, %4 : vector<32x50xf32>
    %c0_5 = arith.constant 0 : index
    %c0_6 = arith.constant 0 : index
    %6 = vector.load %arg3[%c0_5, %c0_6] : memref<32x1xf32, #tpu.memory_space<vmem>>, vector<32x1xf32>
    %7 = vector.broadcast %6 : vector<32x1xf32> to vector<32x50xf32>
    %8 = arith.addf %5, %7 : vector<32x50xf32>
    %cst_7 = arith.constant 0.000000e+00 : f32
    %9 = vector.broadcast %cst_7 : f32 to vector<32x50xf32>
    %10 = arith.maximumf %8, %9 : vector<32x50xf32>
    %11 = arith.truncf %10 : vector<32x50xf32> to vector<32x50xbf16>
    %c0_8 = arith.constant 0 : index
    %c0_9 = arith.constant 0 : index
    %12 = vector.load %arg4[%c0_8, %c0_9] : memref<32x50xbf16, #tpu.memory_space<vmem>>, vector<32x50xbf16>
    tpu.vector_store %arg4[%c0_8, %c0_9], %11 {strides = array<i32>} : memref<32x50xbf16, #tpu.memory_space<vmem>>, vector<32x50xbf16>,
    return
  }
}

module attributes {stable_mosaic.version = 11 : i64} {
  func.func @head_kernel(%arg0: memref<2x2048xbf16, #tpu.memory_space<vmem>>, %arg1: memref<2048x1024xbf16, #tpu.memory_space<vmem>>, %arg2: memref<1x1024xf32, #tpu.memory_space<vmem>>, %arg3: memref<1x1024xf32, #tpu.memory_space<vmem>>, %arg4: memref<1024x512xbf16, #tpu.memory_space<vmem>>, %arg5: memref<1x512xf32, #tpu.memory_space<vmem>>, %arg6: memref<1x512xf32, #tpu.memory_space<vmem>>, %arg7: memref<512x256xbf16, #tpu.memory_space<vmem>>, %arg8: memref<1x256xf32, #tpu.memory_space<vmem>>, %arg9: memref<2x256xf32, #tpu.memory_space<vmem>>, %arg10: memref<2x1xf32, #tpu.memory_space<vmem>>) attributes {dimension_semantics = [], scalar_prefetch = 0 : i64, scratch_operands = 0 : i64, tpu.core_type = #tpu.core_type<tc>} {
    %c0 = arith.constant 0 : index
    %c0_0 = arith.constant 0 : index
    %0 = vector.load %arg0[%c0, %c0_0] : memref<2x2048xbf16, #tpu.memory_space<vmem>>, vector<2x2048xbf16>
    %c0_1 = arith.constant 0 : index
    %c0_2 = arith.constant 0 : index
    %1 = vector.load %arg1[%c0_1, %c0_2] : memref<2048x1024xbf16, #tpu.memory_space<vmem>>, vector<2048x1024xbf16>
    %cst = arith.constant dense<0.000000e+00> : vector<2x1024xf32>
    %2 = tpu.matmul %0, %1, %cst {dimension_numbers = #tpu.dot_dimension_numbers<[1], [0], [0], [1], [0, 0, 1, 1], [], []>} : vector<2x2048xbf16>, vector<2048x1024xbf16>, vector<2x1024xf32> -> vector<2x1024xf32>
    %c0_3 = arith.constant 0 : index
    %c0_4 = arith.constant 0 : index
    %3 = vector.load %arg2[%c0_3, %c0_4] : memref<1x1024xf32, #tpu.memory_space<vmem>>, vector<1x1024xf32>
    %4 = vector.broadcast %3 : vector<1x1024xf32> to vector<2x1024xf32>
    %5 = arith.mulf %2, %4 : vector<2x1024xf32>
    %c0_5 = arith.constant 0 : index
    %c0_6 = arith.constant 0 : index
    %6 = vector.load %arg3[%c0_5, %c0_6] : memref<1x1024xf32, #tpu.memory_space<vmem>>, vector<1x1024xf32>
    %7 = vector.broadcast %6 : vector<1x1024xf32> to vector<2x1024xf32>
    %8 = arith.addf %5, %7 : vector<2x1024xf32>
    %cst_7 = arith.constant 0.000000e+00 : f32
    %9 = vector.broadcast %cst_7 : f32 to vector<2x1024xf32>
    %10 = arith.maximumf %8, %9 : vector<2x1024xf32>
    %11 = arith.truncf %10 : vector<2x1024xf32> to vector<2x1024xbf16>
    %c0_8 = arith.constant 0 : index
    %c0_9 = arith.constant 0 : index
    %12 = vector.load %arg4[%c0_8, %c0_9] : memref<1024x512xbf16, #tpu.memory_space<vmem>>, vector<1024x512xbf16>
    %cst_10 = arith.constant dense<0.000000e+00> : vector<2x512xf32>
    %13 = tpu.matmul %11, %12, %cst_10 {dimension_numbers = #tpu.dot_dimension_numbers<[1], [0], [0], [1], [0, 0, 1, 1], [], []>} : vector<2x1024xbf16>, vector<1024x512xbf16>, vector<2x512xf32> -> vector<2x512xf32>
    %c0_11 = arith.constant 0 : index
    %c0_12 = arith.constant 0 : index
    %14 = vector.load %arg5[%c0_11, %c0_12] : memref<1x512xf32, #tpu.memory_space<vmem>>, vector<1x512xf32>
    %15 = vector.broadcast %14 : vector<1x512xf32> to vector<2x512xf32>
    %16 = arith.mulf %13, %15 : vector<2x512xf32>
    %c0_13 = arith.constant 0 : index
    %c0_14 = arith.constant 0 : index
    %17 = vector.load %arg6[%c0_13, %c0_14] : memref<1x512xf32, #tpu.memory_space<vmem>>, vector<1x512xf32>
    %18 = vector.broadcast %17 : vector<1x512xf32> to vector<2x512xf32>
    %19 = arith.addf %16, %18 : vector<2x512xf32>
    %cst_15 = arith.constant 0.000000e+00 : f32
    %20 = vector.broadcast %cst_15 : f32 to vector<2x512xf32>
    %21 = arith.maximumf %19, %20 : vector<2x512xf32>
    %22 = arith.truncf %21 : vector<2x512xf32> to vector<2x512xbf16>
    %c0_16 = arith.constant 0 : index
    %c0_17 = arith.constant 0 : index
    %23 = vector.load %arg7[%c0_16, %c0_17] : memref<512x256xbf16, #tpu.memory_space<vmem>>, vector<512x256xbf16>
    %cst_18 = arith.constant dense<0.000000e+00> : vector<2x256xf32>
    %24 = tpu.matmul %22, %23, %cst_18 {dimension_numbers = #tpu.dot_dimension_numbers<[1], [0], [0], [1], [0, 0, 1, 1], [], []>} : vector<2x512xbf16>, vector<512x256xbf16>, vector<2x256xf32> -> vector<2x256xf32>
    %c0_19 = arith.constant 0 : index
    %c0_20 = arith.constant 0 : index
    %25 = vector.load %arg8[%c0_19, %c0_20] : memref<1x256xf32, #tpu.memory_space<vmem>>, vector<1x256xf32>
    %26 = vector.broadcast %25 : vector<1x256xf32> to vector<2x256xf32>
    %27 = arith.addf %24, %26 : vector<2x256xf32>
    %28 = tpu.iota {dimensions = array<i32: 1>} : vector<2x256xi32>
    %c140_i32 = arith.constant 140 : i32
    %29 = vector.broadcast %c140_i32 : i32 to vector<2x256xi32>
    %30 = arith.cmpi slt, %28, %29 : vector<2x256xi32>
    %cst_21 = arith.constant -1.000000e+30 : f32
    %31 = vector.broadcast %cst_21 : f32 to vector<2x256xf32>
    %32 = arith.select %30, %27, %31 : vector<2x256xi1>, vector<2x256xf32>
    %cst_22 = arith.constant dense<0xFF800000> : vector<2xf32>
    %33 = vector.multi_reduction <maximumf>, %32, %cst_22 [1] : vector<2x256xf32> to vector<2xf32>
    %34 = vector.shape_cast %33 : vector<2xf32> to vector<2x1xf32>
    %35 = vector.broadcast %34 : vector<2x1xf32> to vector<2x256xf32>
    %36 = arith.subf %32, %35 : vector<2x256xf32>
    %37 = math.exp %36 : vector<2x256xf32>
    %cst_23 = arith.constant dense<0.000000e+00> : vector<2xf32>
    %38 = vector.multi_reduction <add>, %37, %cst_23 [1] : vector<2x256xf32> to vector<2xf32>
    %39 = vector.shape_cast %38 : vector<2xf32> to vector<2x1xf32>
    %40 = math.log %39 : vector<2x1xf32>
    %41 = arith.addf %40, %34 : vector<2x1xf32>
    %42 = vector.broadcast %41 : vector<2x1xf32> to vector<2x256xf32>
    %43 = arith.subf %32, %42 : vector<2x256xf32>
    %c0_24 = arith.constant 0 : index
    %c0_25 = arith.constant 0 : index
    %44 = vector.load %arg9[%c0_24, %c0_25] : memref<2x256xf32, #tpu.memory_space<vmem>>, vector<2x256xf32>
    tpu.vector_store %arg9[%c0_24, %c0_25], %43 {strides = array<i32>} : memref<2x256xf32, #tpu.memory_space<vmem>>, vector<2x256xf32>,
    %45 = vector.extract_strided_slice %27 {offsets = [0, 140], sizes = [2, 1], strides = [1, 1]} : vector<2x256xf32> to vector<2x1xf32>
    %46 = math.tanh %45 : vector<2x1xf32>
    %c0_26 = arith.constant 0 : index
    %c0_27 = arith.constant 0 : index
    %47 = vector.load %arg10[%c0_26, %c0_27] : memref<2x1xf32, #tpu.memory_space<vmem>>, vector<2x1xf32>
    tpu.vector_store %arg10[%c0_26, %c0_27], %46 {strides = array<i32>} : memref<2x1xf32, #tpu.memory_space<vmem>>, vector<2x1xf32>,
    return
  }
}

</mosaic_0001>

<llo_original>
// kernel: quoridor_forward.12
$region0: #{quoridor_forward.12}
  #allocation0 [shape = 'u32[]', space=smem, size = 0x4, offset = 0x4, fixed_abs, tag = 'smem constant byte address 0x4 - core index']
  #allocation1 [shape = 'u32[72,128]{1,0:T(1,128)}', space=vmem, size = 0x9000, scoped, tag = 'internal scratch']
  %s0 = inlined_call_operand.vmem [shape: bf16[32,128], index: 0, kind: input, shape index: {}]
  %s1 = inlined_call_operand.vmem [shape: bf16[32,32], index: 1, kind: input, shape index: {}]
  %s2 = inlined_call_operand.vmem [shape: f32[32,1], index: 2, kind: input, shape index: {}]
  %s3 = inlined_call_operand.vmem [shape: f32[32,1], index: 3, kind: input, shape index: {}]
  %s4 = inlined_call_operand.vmem [shape: bf16[32,128], index: 4, kind: output, shape index: {}]
  %s5 = sld [smem:[#allocation0]]
  $region26: #{quoridor_forward.12} parent=0
    _
  %s7 = ssub.s32 1, %s5
  %s8 = scalar_select 0, %s7, %s5
  // Predicated region
  $region2: #{quoridor_forward.12} parent=0 // pred_check
    _
  $region3: #{quoridor_forward.12} parent=0 // pred_check_branch
    %10 = sbr.rel (0) target = $region5
  $region4: #{quoridor_forward.12} parent=0 // pred_region
    _
  $region5: #{quoridor_forward.12} parent=0 // pred_fallthru
    _
  // Predicated region
  $region6: #{quoridor_forward.12} parent=0 // pred_check
    _
  $region7: #{quoridor_forward.12} parent=0 // pred_check_branch
    %12 = sbr.rel (0) target = $region9
  $region8: #{quoridor_forward.12} parent=0 // pred_region
    _
  $region9: #{quoridor_forward.12} parent=0 // pred_fallthru
    _
  // Predicated region
  $region10: #{quoridor_forward.12} parent=0 // pred_check
    _
  $region11: #{quoridor_forward.12} parent=0 // pred_check_branch
    %14 = sbr.rel (0) target = $region13
  $region12: #{quoridor_forward.12} parent=0 // pred_region
    _
  $region13: #{quoridor_forward.12} parent=0 // pred_fallthru
    _
  // Predicated region
  $region14: #{quoridor_forward.12} parent=0 // pred_check
    _
  $region15: #{quoridor_forward.12} parent=0 // pred_check_branch
    %16 = sbr.rel (0) target = $region17
  $region16: #{quoridor_forward.12} parent=0 // pred_region
    _
  $region17: #{quoridor_forward.12} parent=0 // pred_fallthru
    _
  %v18 = vld [vmem:[%s1] sm:$0xf]
  %v19 = vld [vmem:[%s1 + $0x4] sm:$0xf]
  %v20 = vld [vmem:[%s1 + $0x8] sm:$0xf]
  %v21 = vld [vmem:[%s1 + $0xc] sm:$0xf]
  %v22 = vld [vmem:[%s0] sm:$0xf]
  %v23 = vld [vmem:[%s0 + $0x4] sm:$0xf]
  %v24 = vld [vmem:[%s0 + $0x8] sm:$0xf]
  %v25 = vld [vmem:[%s0 + $0xc] sm:$0xf]
  %v30 = vunpack.c.l.b16 %v18
  %v31 = vunpack.c.l.b16 %v19
  %v32 = vunpack.c.l.b16 %v20
  %v33 = vunpack.c.l.b16 %v21
  %v34 = vpack.c.b16 %v31, %v30
  %v35 = vpack.c.b16 %v33, %v32
  %v40 = vunpack.c.l.b16 %v22
  %v41 = vunpack.c.l.b16 %v23
  %v42 = vunpack.c.l.b16 %v24
  %v43 = vunpack.c.l.b16 %v25
  %v44 = vpack.c.b16 %v41, %v40
  %v45 = vpack.c.b16 %v43, %v42
  %vm48 = vcmask 261120
  %v50 = vsel %vm48, %v34, 0
  %v53 = vsel %vm48, %v35, 0
  %55 = vmatpush.bf16.msra.mxu0 0
  %56 = vmatpush.bf16.msra.mxu0 0
  %57 = vmatpush.bf16.msra.mxu0 0
  %58 = vmatpush.bf16.msra.mxu0 0
  %59 = vmatpush.bf16.msra.mxu0 0
  %60 = vmatpush.bf16.msra.mxu0 0
  %61 = vmatpush.bf16.msra.mxu0 %v45
  %62 = vmatpush.bf16.msra.mxu0 %v44
  %63 = vmatmul.bf16.gmra.mxu0 %v50
  %v64 = vpop.f32.mrf.mxu0
  %v65 = vadd.f32 0.0, %v64
  %v66 = vpop.f32.mrf.mxu0
  %v67 = vadd.f32 0.0, %v66
  %68 = vmatmul.bf16.gmra.mxu0 %v53
  %v69 = vpop.f32.mrf.mxu0
  %v70 = vadd.f32 0.0, %v69
  %v71 = vpop.f32.mrf.mxu0
  %v72 = vadd.f32 0.0, %v71
  %73 = vdwg.mxu0
  %v74 = vld [vmem:[%s2] sm:$0xff]
  %v75 = vld [vmem:[%s2 + $0x8] sm:$0xff]
  %v76 = vld [vmem:[%s2 + $0x10] sm:$0xff]
  %v77 = vld [vmem:[%s2 + $0x18] sm:$0xff]
  %79 = vset.pattern.permute.xlu0 0
  %80 = vperm.xlu0 %79, %v74
  %v81 = vpop.permute.xlu0 %80
  %84 = vset.pattern.permute.xlu0 0
  %85 = vperm.xlu0 %84, %v75
  %v86 = vpop.permute.xlu0 %85
  %89 = vset.pattern.permute.xlu0 0
  %90 = vperm.xlu0 %89, %v76
  %v91 = vpop.permute.xlu0 %90
  %94 = vset.pattern.permute.xlu0 0
  %95 = vperm.xlu0 %94, %v77
  %v96 = vpop.permute.xlu0 %95
  %v98 = vmul.f32 %v65, %v81
  %v99 = vmul.f32 %v67, %v86
  %v100 = vmul.f32 %v70, %v91
  %v101 = vmul.f32 %v72, %v96
  %v102 = vld [vmem:[%s3] sm:$0xff]
  %v103 = vld [vmem:[%s3 + $0x8] sm:$0xff]
  %v104 = vld [vmem:[%s3 + $0x10] sm:$0xff]
  %v105 = vld [vmem:[%s3 + $0x18] sm:$0xff]
  %107 = vset.pattern.permute.xlu0 0
  %108 = vperm.xlu0 %107, %v102
  %v109 = vpop.permute.xlu0 %108
  %112 = vset.pattern.permute.xlu0 0
  %113 = vperm.xlu0 %112, %v103
  %v114 = vpop.permute.xlu0 %113
  %117 = vset.pattern.permute.xlu0 0
  %118 = vperm.xlu0 %117, %v104
  %v119 = vpop.permute.xlu0 %118
  %122 = vset.pattern.permute.xlu0 0
  %123 = vperm.xlu0 %122, %v105
  %v124 = vpop.permute.xlu0 %123
  %v126 = vadd.f32 %v98, %v109
  %v127 = vadd.f32 %v99, %v114
  %v128 = vadd.f32 %v100, %v119
  %v129 = vadd.f32 %v101, %v124
  %v130 = vmax.f32 %v126, 0.0
  %v131 = vmax.f32 %v127, 0.0
  %v132 = vmax.f32 %v128, 0.0
  %v133 = vmax.f32 %v129, 0.0
  %v134 = vpack.c.bf16 %v130, %v130
  %v135 = vpack.c.bf16 %v131, %v131
  %v136 = vpack.c.bf16 %v132, %v132
  %v137 = vpack.c.bf16 %v133, %v133
  %138 = vst [vmem:[%s4] sm:$0xf] %v134
  %139 = vst [vmem:[%s4 + $0x4] sm:$0xf] %v135
  %140 = vst [vmem:[%s4 + $0x8] sm:$0xf] %v136
  %141 = vst [vmem:[%s4 + $0xc] sm:$0xf] %v137
  // Predicated region
  $region18: #{quoridor_forward.12} parent=0 // pred_check
    _
  $region19: #{quoridor_forward.12} parent=0 // pred_check_branch
    %143 = sbr.rel (0) target = $region21
  $region20: #{quoridor_forward.12} parent=0 // pred_region
    _
  $region21: #{quoridor_forward.12} parent=0 // pred_fallthru
    _
  // Predicated region
  $region22: #{quoridor_forward.12} parent=0 // pred_check
    _
  $region23: #{quoridor_forward.12} parent=0 // pred_check_branch
    %145 = sbr.rel (0) target = $region25
  $region24: #{quoridor_forward.12} parent=0 // pred_region
    _
  $region25: #{quoridor_forward.12} parent=0 // pred_fallthru
    _

// kernel: quoridor_forward.13
$region0: #{quoridor_forward.13}
  #allocation0 [shape = 'u32[]', space=smem, size = 0x4, offset = 0x4, fixed_abs, tag = 'smem constant byte address 0x4 - core index']
  #allocation1 [shape = 'u32[72,128]{1,0:T(1,128)}', space=vmem, size = 0x9000, scoped, tag = 'internal scratch']
  %s0 = inlined_call_operand.vmem [shape: bf16[288,128], index: 0, kind: input, shape index: {}]
  %s1 = inlined_call_operand.vmem [shape: bf16[32,288], index: 1, kind: input, shape index: {}]
  %s2 = inlined_call_operand.vmem [shape: f32[32,1], index: 2, kind: input, shape index: {}]
  %s3 = inlined_call_operand.vmem [shape: f32[32,1], index: 3, kind: input, shape index: {}]
  %s4 = inlined_call_operand.vmem [shape: bf16[32,128], index: 4, kind: output, shape index: {}]
  %s5 = sld [smem:[#allocation0]]
  $region26: #{quoridor_forward.13} parent=0
    _
  %s7 = ssub.s32 1, %s5
  %s8 = scalar_select 0, %s7, %s5
  // Predicated region
  $region2: #{quoridor_forward.13} parent=0 // pred_check
    _
  $region3: #{quoridor_forward.13} parent=0 // pred_check_branch
    %10 = sbr.rel (0) target = $region5
  $region4: #{quoridor_forward.13} parent=0 // pred_region
    _
  $region5: #{quoridor_forward.13} parent=0 // pred_fallthru
    _
  // Predicated region
  $region6: #{quoridor_forward.13} parent=0 // pred_check
    _
  $region7: #{quoridor_forward.13} parent=0 // pred_check_branch
    %12 = sbr.rel (0) target = $region9
  $region8: #{quoridor_forward.13} parent=0 // pred_region
    _
  $region9: #{quoridor_forward.13} parent=0 // pred_fallthru
    _
  // Predicated region
  $region10: #{quoridor_forward.13} parent=0 // pred_check
    _
  $region11: #{quoridor_forward.13} parent=0 // pred_check_branch
    %14 = sbr.rel (0) target = $region13
  $region12: #{quoridor_forward.13} parent=0 // pred_region
    _
  $region13: #{quoridor_forward.13} parent=0 // pred_fallthru
    _
  // Predicated region
  $region14: #{quoridor_forward.13} parent=0 // pred_check
    _
  $region15: #{quoridor_forward.13} parent=0 // pred_check_branch
    %16 = sbr.rel (0) target = $region17
  $region16: #{quoridor_forward.13} parent=0 // pred_region
    _
  $region17: #{quoridor_forward.13} parent=0 // pred_fallthru
    _
  %v18 = vld [vmem:[%s1] sm:$0xff]
  %v19 = vld [vmem:[%s1 + $0x8] sm:$0xf]
  %v20 = vld [vmem:[%s1 + $0xc] sm:$0xff]
  %v21 = vld [vmem:[%s1 + $0x14] sm:$0xf]
  %v22 = vld [vmem:[%s1 + $0x18] sm:$0xff]
  %v23 = vld [vmem:[%s1 + $0x20] sm:$0xf]
  %v24 = vld [vmem:[%s1 + $0x24] sm:$0xff]
  %v25 = vld [vmem:[%s1 + $0x2c] sm:$0xf]
  %v26 = vld [vmem:[%s0] sm:$0xf]
  %v27 = vld [vmem:[%s0 + $0x4] sm:$0xf]
  %v28 = vld [vmem:[%s0 + $0x8] sm:$0xf]
  %v29 = vld [vmem:[%s0 + $0xc] sm:$0xf]
  %v30 = vld [vmem:[%s0 + $0x10] sm:$0xf]
  %v31 = vld [vmem:[%s0 + $0x14] sm:$0xf]
  %v32 = vld [vmem:[%s0 + $0x18] sm:$0xf]
  %v33 = vld [vmem:[%s0 + $0x1c] sm:$0xf]
  %v34 = vld [vmem:[%s0 + $0x20] sm:$0xf]
  %v35 = vld [vmem:[%s0 + $0x24] sm:$0xf]
  %v36 = vld [vmem:[%s0 + $0x28] sm:$0xf]
  %v37 = vld [vmem:[%s0 + $0x2c] sm:$0xf]
  %v38 = vld [vmem:[%s0 + $0x30] sm:$0xf]
  %v39 = vld [vmem:[%s0 + $0x34] sm:$0xf]
  %v40 = vld [vmem:[%s0 + $0x38] sm:$0xf]
  %v41 = vld [vmem:[%s0 + $0x3c] sm:$0xf]
  %v42 = vld [vmem:[%s0 + $0x40] sm:$0xf]
  %v43 = vld [vmem:[%s0 + $0x44] sm:$0xf]
  %v44 = vld [vmem:[%s0 + $0x48] sm:$0xf]
  %v45 = vld [vmem:[%s0 + $0x4c] sm:$0xf]
  %v46 = vld [vmem:[%s0 + $0x50] sm:$0xf]
  %v47 = vld [vmem:[%s0 + $0x54] sm:$0xf]
  %v48 = vld [vmem:[%s0 + $0x58] sm:$0xf]
  %v49 = vld [vmem:[%s0 + $0x5c] sm:$0xf]
  %v50 = vld [vmem:[%s0 + $0x60] sm:$0xf]
  %v51 = vld [vmem:[%s0 + $0x64] sm:$0xf]
  %v52 = vld [vmem:[%s0 + $0x68] sm:$0xf]
  %v53 = vld [vmem:[%s0 + $0x6c] sm:$0xf]
  %v54 = vld [vmem:[%s0 + $0x70] sm:$0xf]
  %v55 = vld [vmem:[%s0 + $0x74] sm:$0xf]
  %v56 = vld [vmem:[%s0 + $0x78] sm:$0xf]
  %v57 = vld [vmem:[%s0 + $0x7c] sm:$0xf]
  %v58 = vld [vmem:[%s0 + $0x80] sm:$0xf]
  %v59 = vld [vmem:[%s0 + $0x84] sm:$0xf]
  %v60 = vld [vmem:[%s0 + $0x88] sm:$0xf]
  %v61 = vld [vmem:[%s0 + $0x8c] sm:$0xf]
  %v70 = vunpack.c.l.b16 %v18
  %v71 = vunpack.c.h.b16 %v18
  %v72 = vunpack.c.l.b16 %v19
  %v73 = vunpack.c.l.b16 %v20
  %v74 = vunpack.c.h.b16 %v20
  %v75 = vunpack.c.l.b16 %v21
  %v76 = vunpack.c.l.b16 %v22
  %v77 = vunpack.c.h.b16 %v22
  %v78 = vunpack.c.l.b16 %v23
  %v79 = vunpack.c.l.b16 %v24
  %v80 = vunpack.c.h.b16 %v24
  %v81 = vunpack.c.l.b16 %v25
  %v82 = vpack.c.b16 %v73, %v70
  %v83 = vpack.c.b16 %v74, %v71
  %v84 = vpack.c.b16 %v75, %v72
  %v85 = vpack.c.b16 %v79, %v76
  %v86 = vpack.c.b16 %v80, %v77
  %v87 = vpack.c.b16 %v81, %v78
  %v128 = vunpack.c.l.b16 %v26
  %v129 = vunpack.c.l.b16 %v27
  %v130 = vunpack.c.l.b16 %v28
  %v131 = vunpack.c.l.b16 %v29
  %v132 = vunpack.c.l.b16 %v30
  %v133 = vunpack.c.l.b16 %v31
  %v134 = vunpack.c.l.b16 %v32
  %v135 = vunpack.c.l.b16 %v33
  %v136 = vunpack.c.l.b16 %v34
  %v137 = vunpack.c.l.b16 %v35
  %v138 = vunpack.c.l.b16 %v36
  %v139 = vunpack.c.l.b16 %v37
  %v140 = vunpack.c.l.b16 %v38
  %v141 = vunpack.c.l.b16 %v39
  %v142 = vunpack.c.l.b16 %v40
  %v143 = vunpack.c.l.b16 %v41
  %v144 = vunpack.c.l.b16 %v42
  %v145 = vunpack.c.l.b16 %v43
  %v146 = vunpack.c.l.b16 %v44
  %v147 = vunpack.c.l.b16 %v45
  %v148 = vunpack.c.l.b16 %v46
  %v149 = vunpack.c.l.b16 %v47
  %v150 = vunpack.c.l.b16 %v48
  %v151 = vunpack.c.l.b16 %v49
  %v152 = vunpack.c.l.b16 %v50
  %v153 = vunpack.c.l.b16 %v51
  %v154 = vunpack.c.l.b16 %v52
  %v155 = vunpack.c.l.b16 %v53
  %v156 = vunpack.c.l.b16 %v54
  %v157 = vunpack.c.l.b16 %v55
  %v158 = vunpack.c.l.b16 %v56
  %v159 = vunpack.c.l.b16 %v57
  %v160 = vunpack.c.l.b16 %v58
  %v161 = vunpack.c.l.b16 %v59
  %v162 = vunpack.c.l.b16 %v60
  %v163 = vunpack.c.l.b16 %v61
  %v164 = vpack.c.b16 %v129, %v128
  %v165 = vpack.c.b16 %v131, %v130
  %v166 = vpack.c.b16 %v133, %v132
  %v167 = vpack.c.b16 %v135, %v134
  %v168 = vpack.c.b16 %v137, %v136
  %v169 = vpack.c.b16 %v139, %v138
  %v170 = vpack.c.b16 %v141, %v140
  %v171 = vpack.c.b16 %v143, %v142
  %v172 = vpack.c.b16 %v145, %v144
  %v173 = vpack.c.b16 %v147, %v146
  %v174 = vpack.c.b16 %v149, %v148
  %v175 = vpack.c.b16 %v151, %v150
  %v176 = vpack.c.b16 %v153, %v152
  %v177 = vpack.c.b16 %v155, %v154
  %v178 = vpack.c.b16 %v157, %v156
  %v179 = vpack.c.b16 %v159, %v158
  %v180 = vpack.c.b16 %v161, %v160
  %v181 = vpack.c.b16 %v163, %v162
  %vm200 = vcmask 261120
  %v202 = vsel %vm200, %v84, 0
  %v205 = vsel %vm200, %v87, 0
  %207 = vmatpush.bf16.msra.mxu0 %v171
  %208 = vmatpush.bf16.msra.mxu0 %v170
  %209 = vmatpush.bf16.msra.mxu0 %v169
  %210 = vmatpush.bf16.msra.mxu0 %v168
  %211 = vmatpush.bf16.msra.mxu0 %v167
  %212 = vmatpush.bf16.msra.mxu0 %v166
  %213 = vmatpush.bf16.msra.mxu0 %v165
  %214 = vmatpush.bf16.msra.mxu0 %v164
  %215 = vmatmul.bf16.gmra.mxu0 %v82
  %v216 = vpop.f32.mrf.mxu0
  %v217 = vadd.f32 0.0, %v216
  %v218 = vpop.f32.mrf.mxu0
  %v219 = vadd.f32 0.0, %v218
  %220 = vmatmul.bf16.gmra.mxu0 %v85
  %v221 = vpop.f32.mrf.mxu0
  %v222 = vadd.f32 0.0, %v221
  %v223 = vpop.f32.mrf.mxu0
  %v224 = vadd.f32 0.0, %v223
  %225 = vdwg.mxu0
  %226 = vmatpush.bf16.msra.mxu0 %v179
  %227 = vmatpush.bf16.msra.mxu0 %v178
  %228 = vmatpush.bf16.msra.mxu0 %v177
  %229 = vmatpush.bf16.msra.mxu0 %v176
  %230 = vmatpush.bf16.msra.mxu0 %v175
  %231 = vmatpush.bf16.msra.mxu0 %v174
  %232 = vmatpush.bf16.msra.mxu0 %v173
  %233 = vmatpush.bf16.msra.mxu0 %v172
  %234 = vmatmul.bf16.gmra.mxu0 %v83
  %v235 = vpop.f32.mrf.mxu0
  %v236 = vadd.f32 %v217, %v235
  %v237 = vpop.f32.mrf.mxu0
  %v238 = vadd.f32 %v219, %v237
  %239 = vmatmul.bf16.gmra.mxu0 %v86
  %v240 = vpop.f32.mrf.mxu0
  %v241 = vadd.f32 %v222, %v240
  %v242 = vpop.f32.mrf.mxu0
  %v243 = vadd.f32 %v224, %v242
  %244 = vdwg.mxu0
  %245 = vmatpush.bf16.msra.mxu0 0
  %246 = vmatpush.bf16.msra.mxu0 0
  %247 = vmatpush.bf16.msra.mxu0 0
  %248 = vmatpush.bf16.msra.mxu0 0
  %249 = vmatpush.bf16.msra.mxu0 0
  %250 = vmatpush.bf16.msra.mxu0 0
  %251 = vmatpush.bf16.msra.mxu0 %v181
  %252 = vmatpush.bf16.msra.mxu0 %v180
  %253 = vmatmul.bf16.gmra.mxu0 %v202
  %v254 = vpop.f32.mrf.mxu0
  %v255 = vadd.f32 %v236, %v254
  %v256 = vpop.f32.mrf.mxu0
  %v257 = vadd.f32 %v238, %v256
  %258 = vmatmul.bf16.gmra.mxu0 %v205
  %v259 = vpop.f32.mrf.mxu0
  %v260 = vadd.f32 %v241, %v259
  %v261 = vpop.f32.mrf.mxu0
  %v262 = vadd.f32 %v243, %v261
  %263 = vdwg.mxu0
  %v264 = vld [vmem:[%s2] sm:$0xff]
  %v265 = vld [vmem:[%s2 + $0x8] sm:$0xff]
  %v266 = vld [vmem:[%s2 + $0x10] sm:$0xff]
  %v267 = vld [vmem:[%s2 + $0x18] sm:$0xff]
  %269 = vset.pattern.permute.xlu0 0
  %270 = vperm.xlu0 %269, %v264
  %v271 = vpop.permute.xlu0 %270
  %274 = vset.pattern.permute.xlu0 0
  %275 = vperm.xlu0 %274, %v265
  %v276 = vpop.permute.xlu0 %275
  %279 = vset.pattern.permute.xlu0 0
  %280 = vperm.xlu0 %279, %v266
  %v281 = vpop.permute.xlu0 %280
  %284 = vset.pattern.permute.xlu0 0
  %285 = vperm.xlu0 %284, %v267
  %v286 = vpop.permute.xlu0 %285
  %v288 = vmul.f32 %v255, %v271
  %v289 = vmul.f32 %v257, %v276
  %v290 = vmul.f32 %v260, %v281
  %v291 = vmul.f32 %v262, %v286
  %v292 = vld [vmem:[%s3] sm:$0xff]
  %v293 = vld [vmem:[%s3 + $0x8] sm:$0xff]
  %v294 = vld [vmem:[%s3 + $0x10] sm:$0xff]
  %v295 = vld [vmem:[%s3 + $0x18] sm:$0xff]
  %297 = vset.pattern.permute.xlu0 0
  %298 = vperm.xlu0 %297, %v292
  %v299 = vpop.permute.xlu0 %298
  %302 = vset.pattern.permute.xlu0 0
  %303 = vperm.xlu0 %302, %v293
  %v304 = vpop.permute.xlu0 %303
  %307 = vset.pattern.permute.xlu0 0
  %308 = vperm.xlu0 %307, %v294
  %v309 = vpop.permute.xlu0 %308
  %312 = vset.pattern.permute.xlu0 0
  %313 = vperm.xlu0 %312, %v295
  %v314 = vpop.permute.xlu0 %313
  %v316 = vadd.f32 %v288, %v299
  %v317 = vadd.f32 %v289, %v304
  %v318 = vadd.f32 %v290, %v309
  %v319 = vadd.f32 %v291, %v314
  %v320 = vmax.f32 %v316, 0.0
  %v321 = vmax.f32 %v317, 0.0
  %v322 = vmax.f32 %v318, 0.0
  %v323 = vmax.f32 %v319, 0.0
  %v324 = vpack.c.bf16 %v320, %v320
  %v325 = vpack.c.bf16 %v321, %v321
  %v326 = vpack.c.bf16 %v322, %v322
  %v327 = vpack.c.bf16 %v323, %v323
  %328 = vst [vmem:[%s4] sm:$0xf] %v324
  %329 = vst [vmem:[%s4 + $0x4] sm:$0xf] %v325
  %330 = vst [vmem:[%s4 + $0x8] sm:$0xf] %v326
  %331 = vst [vmem:[%s4 + $0xc] sm:$0xf] %v327
  // Predicated region
  $region18: #{quoridor_forward.13} parent=0 // pred_check
    _
  $region19: #{quoridor_forward.13} parent=0 // pred_check_branch
    %333 = sbr.rel (0) target = $region21
  $region20: #{quoridor_forward.13} parent=0 // pred_region
    _
  $region21: #{quoridor_forward.13} parent=0 // pred_fallthru
    _
  // Predicated region
  $region22: #{quoridor_forward.13} parent=0 // pred_check
    _
  $region23: #{quoridor_forward.13} parent=0 // pred_check_branch
    %335 = sbr.rel (0) target = $region25
  $region24: #{quoridor_forward.13} parent=0 // pred_region
    _
  $region25: #{quoridor_forward.13} parent=0 // pred_fallthru
    _

// kernel: quoridor_forward.14
$region0: #{quoridor_forward.14}
  #allocation0 [shape = 'u32[]', space=smem, size = 0x4, offset = 0x4, fixed_abs, tag = 'smem constant byte address 0x4 - core index']
  #allocation1 [shape = 'u32[72,128]{1,0:T(1,128)}', space=vmem, size = 0x9000, scoped, tag = 'internal scratch']
  %s0 = inlined_call_operand.vmem [shape: bf16[288,72], index: 0, kind: input, shape index: {}]
  %s1 = inlined_call_operand.vmem [shape: bf16[32,288], index: 1, kind: input, shape index: {}]
  %s2 = inlined_call_operand.vmem [shape: f32[32,1], index: 2, kind: input, shape index: {}]
  %s3 = inlined_call_operand.vmem [shape: f32[32,1], index: 3, kind: input, shape index: {}]
  %s4 = inlined_call_operand.vmem [shape: bf16[32,72], index: 4, kind: output, shape index: {}]
  %s5 = sld [smem:[#allocation0]]
  $region26: #{quoridor_forward.14} parent=0
    _
  %s7 = ssub.s32 1, %s5
  %s8 = scalar_select 0, %s7, %s5
  // Predicated region
  $region2: #{quoridor_forward.14} parent=0 // pred_check
    _
  $region3: #{quoridor_forward.14} parent=0 // pred_check_branch
    %10 = sbr.rel (0) target = $region5
  $region4: #{quoridor_forward.14} parent=0 // pred_region
    _
  $region5: #{quoridor_forward.14} parent=0 // pred_fallthru
    _
  // Predicated region
  $region6: #{quoridor_forward.14} parent=0 // pred_check
    _
  $region7: #{quoridor_forward.14} parent=0 // pred_check_branch
    %12 = sbr.rel (0) target = $region9
  $region8: #{quoridor_forward.14} parent=0 // pred_region
    _
  $region9: #{quoridor_forward.14} parent=0 // pred_fallthru
    _
  // Predicated region
  $region10: #{quoridor_forward.14} parent=0 // pred_check
    _
  $region11: #{quoridor_forward.14} parent=0 // pred_check_branch
    %14 = sbr.rel (0) target = $region13
  $region12: #{quoridor_forward.14} parent=0 // pred_region
    _
  $region13: #{quoridor_forward.14} parent=0 // pred_fallthru
    _
  // Predicated region
  $region14: #{quoridor_forward.14} parent=0 // pred_check
    _
  $region15: #{quoridor_forward.14} parent=0 // pred_check_branch
    %16 = sbr.rel (0) target = $region17
  $region16: #{quoridor_forward.14} parent=0 // pred_region
    _
  $region17: #{quoridor_forward.14} parent=0 // pred_fallthru
    _
  %v18 = vld [vmem:[%s1] sm:$0xff]
  %v19 = vld [vmem:[%s1 + $0x8] sm:$0xf]
  %v20 = vld [vmem:[%s1 + $0xc] sm:$0xff]
  %v21 = vld [vmem:[%s1 + $0x14] sm:$0xf]
  %v22 = vld [vmem:[%s1 + $0x18] sm:$0xff]
  %v23 = vld [vmem:[%s1 + $0x20] sm:$0xf]
  %v24 = vld [vmem:[%s1 + $0x24] sm:$0xff]
  %v25 = vld [vmem:[%s1 + $0x2c] sm:$0xf]
  %v26 = vld [vmem:[%s0] sm:$0xf]
  %v27 = vld [vmem:[%s0 + $0x4] sm:$0xf]
  %v28 = vld [vmem:[%s0 + $0x8] sm:$0xf]
  %v29 = vld [vmem:[%s0 + $0xc] sm:$0xf]
  %v30 = vld [vmem:[%s0 + $0x10] sm:$0xf]
  %v31 = vld [vmem:[%s0 + $0x14] sm:$0xf]
  %v32 = vld [vmem:[%s0 + $0x18] sm:$0xf]
  %v33 = vld [vmem:[%s0 + $0x1c] sm:$0xf]
  %v34 = vld [vmem:[%s0 + $0x20] sm:$0xf]
  %v35 = vld [vmem:[%s0 + $0x24] sm:$0xf]
  %v36 = vld [vmem:[%s0 + $0x28] sm:$0xf]
  %v37 = vld [vmem:[%s0 + $0x2c] sm:$0xf]
  %v38 = vld [vmem:[%s0 + $0x30] sm:$0xf]
  %v39 = vld [vmem:[%s0 + $0x34] sm:$0xf]
  %v40 = vld [vmem:[%s0 + $0x38] sm:$0xf]
  %v41 = vld [vmem:[%s0 + $0x3c] sm:$0xf]
  %v42 = vld [vmem:[%s0 + $0x40] sm:$0xf]
  %v43 = vld [vmem:[%s0 + $0x44] sm:$0xf]
  %v44 = vld [vmem:[%s0 + $0x48] sm:$0xf]
  %v45 = vld [vmem:[%s0 + $0x4c] sm:$0xf]
  %v46 = vld [vmem:[%s0 + $0x50] sm:$0xf]
  %v47 = vld [vmem:[%s0 + $0x54] sm:$0xf]
  %v48 = vld [vmem:[%s0 + $0x58] sm:$0xf]
  %v49 = vld [vmem:[%s0 + $0x5c] sm:$0xf]
  %v50 = vld [vmem:[%s0 + $0x60] sm:$0xf]
  %v51 = vld [vmem:[%s0 + $0x64] sm:$0xf]
  %v52 = vld [vmem:[%s0 + $0x68] sm:$0xf]
  %v53 = vld [vmem:[%s0 + $0x6c] sm:$0xf]
  %v54 = vld [vmem:[%s0 + $0x70] sm:$0xf]
  %v55 = vld [vmem:[%s0 + $0x74] sm:$0xf]
  %v56 = vld [vmem:[%s0 + $0x78] sm:$0xf]
  %v57 = vld [vmem:[%s0 + $0x7c] sm:$0xf]
  %v58 = vld [vmem:[%s0 + $0x80] sm:$0xf]
  %v59 = vld [vmem:[%s0 + $0x84] sm:$0xf]
  %v60 = vld [vmem:[%s0 + $0x88] sm:$0xf]
  %v61 = vld [vmem:[%s0 + $0x8c] sm:$0xf]
  %v70 = vunpack.c.l.b16 %v18
  %v71 = vunpack.c.h.b16 %v18
  %v72 = vunpack.c.l.b16 %v19
  %v73 = vunpack.c.l.b16 %v20
  %v74 = vunpack.c.h.b16 %v20
  %v75 = vunpack.c.l.b16 %v21
  %v76 = vunpack.c.l.b16 %v22
  %v77 = vunpack.c.h.b16 %v22
  %v78 = vunpack.c.l.b16 %v23
  %v79 = vunpack.c.l.b16 %v24
  %v80 = vunpack.c.h.b16 %v24
  %v81 = vunpack.c.l.b16 %v25
  %v82 = vpack.c.b16 %v73, %v70
  %v83 = vpack.c.b16 %v74, %v71
  %v84 = vpack.c.b16 %v75, %v72
  %v85 = vpack.c.b16 %v79, %v76
  %v86 = vpack.c.b16 %v80, %v77
  %v87 = vpack.c.b16 %v81, %v78
  %v128 = vunpack.c.l.b16 %v26
  %v129 = vunpack.c.l.b16 %v27
  %v130 = vunpack.c.l.b16 %v28
  %v131 = vunpack.c.l.b16 %v29
  %v132 = vunpack.c.l.b16 %v30
  %v133 = vunpack.c.l.b16 %v31
  %v134 = vunpack.c.l.b16 %v32
  %v135 = vunpack.c.l.b16 %v33
  %v136 = vunpack.c.l.b16 %v34
  %v137 = vunpack.c.l.b16 %v35
  %v138 = vunpack.c.l.b16 %v36
  %v139 = vunpack.c.l.b16 %v37
  %v140 = vunpack.c.l.b16 %v38
  %v141 = vunpack.c.l.b16 %v39
  %v142 = vunpack.c.l.b16 %v40
  %v143 = vunpack.c.l.b16 %v41
  %v144 = vunpack.c.l.b16 %v42
  %v145 = vunpack.c.l.b16 %v43
  %v146 = vunpack.c.l.b16 %v44
  %v147 = vunpack.c.l.b16 %v45
  %v148 = vunpack.c.l.b16 %v46
  %v149 = vunpack.c.l.b16 %v47
  %v150 = vunpack.c.l.b16 %v48
  %v151 = vunpack.c.l.b16 %v49
  %v152 = vunpack.c.l.b16 %v50
  %v153 = vunpack.c.l.b16 %v51
  %v154 = vunpack.c.l.b16 %v52
  %v155 = vunpack.c.l.b16 %v53
  %v156 = vunpack.c.l.b16 %v54
  %v157 = vunpack.c.l.b16 %v55
  %v158 = vunpack.c.l.b16 %v56
  %v159 = vunpack.c.l.b16 %v57
  %v160 = vunpack.c.l.b16 %v58
  %v161 = vunpack.c.l.b16 %v59
  %v162 = vunpack.c.l.b16 %v60
  %v163 = vunpack.c.l.b16 %v61
  %v164 = vpack.c.b16 %v129, %v128
  %v165 = vpack.c.b16 %v131, %v130
  %v166 = vpack.c.b16 %v133, %v132
  %v167 = vpack.c.b16 %v135, %v134
  %v168 = vpack.c.b16 %v137, %v136
  %v169 = vpack.c.b16 %v139, %v138
  %v170 = vpack.c.b16 %v141, %v140
  %v171 = vpack.c.b16 %v143, %v142
  %v172 = vpack.c.b16 %v145, %v144
  %v173 = vpack.c.b16 %v147, %v146
  %v174 = vpack.c.b16 %v149, %v148
  %v175 = vpack.c.b16 %v151, %v150
  %v176 = vpack.c.b16 %v153, %v152
  %v177 = vpack.c.b16 %v155, %v154
  %v178 = vpack.c.b16 %v157, %v156
  %v179 = vpack.c.b16 %v159, %v158
  %v180 = vpack.c.b16 %v161, %v160
  %v181 = vpack.c.b16 %v163, %v162
  %vm200 = vcmask 261120
  %v202 = vsel %vm200, %v84, 0
  %v205 = vsel %vm200, %v87, 0
  %207 = vmatpush.bf16.msra.mxu0 %v171
  %208 = vmatpush.bf16.msra.mxu0 %v170
  %209 = vmatpush.bf16.msra.mxu0 %v169
  %210 = vmatpush.bf16.msra.mxu0 %v168
  %211 = vmatpush.bf16.msra.mxu0 %v167
  %212 = vmatpush.bf16.msra.mxu0 %v166
  %213 = vmatpush.bf16.msra.mxu0 %v165
  %214 = vmatpush.bf16.msra.mxu0 %v164
  %215 = vmatmul.bf16.gmra.mxu0 %v82
  %v216 = vpop.f32.mrf.mxu0
  %v217 = vadd.f32 0.0, %v216
  %v218 = vpop.f32.mrf.mxu0
  %v219 = vadd.f32 0.0, %v218
  %220 = vmatmul.bf16.gmra.mxu0 %v85
  %v221 = vpop.f32.mrf.mxu0
  %v222 = vadd.f32 0.0, %v221
  %v223 = vpop.f32.mrf.mxu0
  %v224 = vadd.f32 0.0, %v223
  %225 = vdwg.mxu0
  %226 = vmatpush.bf16.msra.mxu0 %v179
  %227 = vmatpush.bf16.msra.mxu0 %v178
  %228 = vmatpush.bf16.msra.mxu0 %v177
  %229 = vmatpush.bf16.msra.mxu0 %v176
  %230 = vmatpush.bf16.msra.mxu0 %v175
  %231 = vmatpush.bf16.msra.mxu0 %v174
  %232 = vmatpush.bf16.msra.mxu0 %v173
  %233 = vmatpush.bf16.msra.mxu0 %v172
  %234 = vmatmul.bf16.gmra.mxu0 %v83
  %v235 = vpop.f32.mrf.mxu0
  %v236 = vadd.f32 %v217, %v235
  %v237 = vpop.f32.mrf.mxu0
  %v238 = vadd.f32 %v219, %v237
  %239 = vmatmul.bf16.gmra.mxu0 %v86
  %v240 = vpop.f32.mrf.mxu0
  %v241 = vadd.f32 %v222, %v240
  %v242 = vpop.f32.mrf.mxu0
  %v243 = vadd.f32 %v224, %v242
  %244 = vdwg.mxu0
  %245 = vmatpush.bf16.msra.mxu0 0
  %246 = vmatpush.bf16.msra.mxu0 0
  %247 = vmatpush.bf16.msra.mxu0 0
  %248 = vmatpush.bf16.msra.mxu0 0
  %249 = vmatpush.bf16.msra.mxu0 0
  %250 = vmatpush.bf16.msra.mxu0 0
  %251 = vmatpush.bf16.msra.mxu0 %v181
  %252 = vmatpush.bf16.msra.mxu0 %v180
  %253 = vmatmul.bf16.gmra.mxu0 %v202
  %v254 = vpop.f32.mrf.mxu0
  %v255 = vadd.f32 %v236, %v254
  %v256 = vpop.f32.mrf.mxu0
  %v257 = vadd.f32 %v238, %v256
  %258 = vmatmul.bf16.gmra.mxu0 %v205
  %v259 = vpop.f32.mrf.mxu0
  %v260 = vadd.f32 %v241, %v259
  %v261 = vpop.f32.mrf.mxu0
  %v262 = vadd.f32 %v243, %v261
  %263 = vdwg.mxu0
  %v264 = vld [vmem:[%s2] sm:$0xff]
  %v265 = vld [vmem:[%s2 + $0x8] sm:$0xff]
  %v266 = vld [vmem:[%s2 + $0x10] sm:$0xff]
  %v267 = vld [vmem:[%s2 + $0x18] sm:$0xff]
  %269 = vset.pattern.permute.xlu0 0
  %270 = vperm.xlu0 %269, %v264
  %v271 = vpop.permute.xlu0 %270
  %274 = vset.pattern.permute.xlu0 0
  %275 = vperm.xlu0 %274, %v265
  %v276 = vpop.permute.xlu0 %275
  %279 = vset.pattern.permute.xlu0 0
  %280 = vperm.xlu0 %279, %v266
  %v281 = vpop.permute.xlu0 %280
  %284 = vset.pattern.permute.xlu0 0
  %285 = vperm.xlu0 %284, %v267
  %v286 = vpop.permute.xlu0 %285
  %v288 = vmul.f32 %v255, %v271
  %v289 = vmul.f32 %v257, %v276
  %v290 = vmul.f32 %v260, %v281
  %v291 = vmul.f32 %v262, %v286
  %v292 = vld [vmem:[%s3] sm:$0xff]
  %v293 = vld [vmem:[%s3 + $0x8] sm:$0xff]
  %v294 = vld [vmem:[%s3 + $0x10] sm:$0xff]
  %v295 = vld [vmem:[%s3 + $0x18] sm:$0xff]
  %297 = vset.pattern.permute.xlu0 0
  %298 = vperm.xlu0 %297, %v292
  %v299 = vpop.permute.xlu0 %298
  %302 = vset.pattern.permute.xlu0 0
  %303 = vperm.xlu0 %302, %v293
  %v304 = vpop.permute.xlu0 %303
  %307 = vset.pattern.permute.xlu0 0
  %308 = vperm.xlu0 %307, %v294
  %v309 = vpop.permute.xlu0 %308
  %312 = vset.pattern.permute.xlu0 0
  %313 = vperm.xlu0 %312, %v295
  %v314 = vpop.permute.xlu0 %313
  %v316 = vadd.f32 %v288, %v299
  %v317 = vadd.f32 %v289, %v304
  %v318 = vadd.f32 %v290, %v309
  %v319 = vadd.f32 %v291, %v314
  %v320 = vmax.f32 %v316, 0.0
  %v321 = vmax.f32 %v317, 0.0
  %v322 = vmax.f32 %v318, 0.0
  %v323 = vmax.f32 %v319, 0.0
  %v324 = vpack.c.bf16 %v320, %v320
  %v325 = vpack.c.bf16 %v321, %v321
  %v326 = vpack.c.bf16 %v322, %v322
  %v327 = vpack.c.bf16 %v323, %v323
  %vm328 = vcmask 584704
  %329 = vst.msk [vmem:[%s4] sm:$0xf] %vm328, %v324
  %330 = vst.msk [vmem:[%s4 + $0x4] sm:$0xf] %vm328, %v325
  %331 = vst.msk [vmem:[%s4 + $0x8] sm:$0xf] %vm328, %v326
  %332 = vst.msk [vmem:[%s4 + $0xc] sm:$0xf] %vm328, %v327
  // Predicated region
  $region18: #{quoridor_forward.14} parent=0 // pred_check
    _
  $region19: #{quoridor_forward.14} parent=0 // pred_check_branch
    %334 = sbr.rel (0) target = $region21
  $region20: #{quoridor_forward.14} parent=0 // pred_region
    _
  $region21: #{quoridor_forward.14} parent=0 // pred_fallthru
    _
  // Predicated region
  $region22: #{quoridor_forward.14} parent=0 // pred_check
    _
  $region23: #{quoridor_forward.14} parent=0 // pred_check_branch
    %336 = sbr.rel (0) target = $region25
  $region24: #{quoridor_forward.14} parent=0 // pred_region
    _
  $region25: #{quoridor_forward.14} parent=0 // pred_fallthru
    _

// kernel: quoridor_forward.8
$region0: #{quoridor_forward.8}
  #allocation0 [shape = 'u32[]', space=smem, size = 0x4, offset = 0x4, fixed_abs, tag = 'smem constant byte address 0x4 - core index']
  #allocation1 [shape = 'u32[72,128]{1,0:T(1,128)}', space=vmem, size = 0x9000, scoped, tag = 'internal scratch']
  %s0 = inlined_call_operand.vmem [shape: bf16[32,162], index: 0, kind: input, shape index: {}]
  %s1 = inlined_call_operand.vmem [shape: bf16[32,32], index: 1, kind: input, shape index: {}]
  %s2 = inlined_call_operand.vmem [shape: f32[32,1], index: 2, kind: input, shape index: {}]
  %s3 = inlined_call_operand.vmem [shape: f32[32,1], index: 3, kind: input, shape index: {}]
  %s4 = inlined_call_operand.vmem [shape: bf16[32,162], index: 4, kind: output, shape index: {}]
  %s5 = sld [smem:[#allocation0]]
  $region26: #{quoridor_forward.8} parent=0
    _
  %s7 = ssub.s32 1, %s5
  %s8 = scalar_select 0, %s7, %s5
  // Predicated region
  $region2: #{quoridor_forward.8} parent=0 // pred_check
    _
  $region3: #{quoridor_forward.8} parent=0 // pred_check_branch
    %10 = sbr.rel (0) target = $region5
  $region4: #{quoridor_forward.8} parent=0 // pred_region
    _
  $region5: #{quoridor_forward.8} parent=0 // pred_fallthru
    _
  // Predicated region
  $region6: #{quoridor_forward.8} parent=0 // pred_check
    _
  $region7: #{quoridor_forward.8} parent=0 // pred_check_branch
    %12 = sbr.rel (0) target = $region9
  $region8: #{quoridor_forward.8} parent=0 // pred_region
    _
  $region9: #{quoridor_forward.8} parent=0 // pred_fallthru
    _
  // Predicated region
  $region10: #{quoridor_forward.8} parent=0 // pred_check
    _
  $region11: #{quoridor_forward.8} parent=0 // pred_check_branch
    %14 = sbr.rel (0) target = $region13
  $region12: #{quoridor_forward.8} parent=0 // pred_region
    _
  $region13: #{quoridor_forward.8} parent=0 // pred_fallthru
    _
  // Predicated region
  $region14: #{quoridor_forward.8} parent=0 // pred_check
    _
  $region15: #{quoridor_forward.8} parent=0 // pred_check_branch
    %16 = sbr.rel (0) target = $region17
  $region16: #{quoridor_forward.8} parent=0 // pred_region
    _
  $region17: #{quoridor_forward.8} parent=0 // pred_fallthru
    _
  %v18 = vld [vmem:[%s1] sm:$0xf]
  %v19 = vld [vmem:[%s1 + $0x4] sm:$0xf]
  %v20 = vld [vmem:[%s1 + $0x8] sm:$0xf]
  %v21 = vld [vmem:[%s1 + $0xc] sm:$0xf]
  %v22 = vld [vmem:[%s0] sm:$0xff]
  %v23 = vld [vmem:[%s0 + $0x8] sm:$0xff]
  %v24 = vld [vmem:[%s0 + $0x10] sm:$0xff]
  %v25 = vld [vmem:[%s0 + $0x18] sm:$0xff]
  %v30 = vunpack.c.l.b16 %v18
  %v31 = vunpack.c.l.b16 %v19
  %v32 = vunpack.c.l.b16 %v20
  %v33 = vunpack.c.l.b16 %v21
  %v34 = vpack.c.b16 %v31, %v30
  %v35 = vpack.c.b16 %v33, %v32
  %v40 = vunpack.c.l.b16 %v22
  %v41 = vunpack.c.h.b16 %v22
  %v42 = vunpack.c.l.b16 %v23
  %v43 = vunpack.c.h.b16 %v23
  %v44 = vunpack.c.l.b16 %v24
  %v45 = vunpack.c.h.b16 %v24
  %v46 = vunpack.c.l.b16 %v25
  %v47 = vunpack.c.h.b16 %v25
  %v48 = vpack.c.b16 %v42, %v40
  %v49 = vpack.c.b16 %v43, %v41
  %v50 = vpack.c.b16 %v46, %v44
  %v51 = vpack.c.b16 %v47, %v45
  %vm56 = vcmask 261120
  %v58 = vsel %vm56, %v34, 0
  %v61 = vsel %vm56, %v35, 0
  %63 = vmatpush.bf16.msra.mxu0 0
  %64 = vmatpush.bf16.msra.mxu0 0
  %65 = vmatpush.bf16.msra.mxu0 0
  %66 = vmatpush.bf16.msra.mxu0 0
  %67 = vmatpush.bf16.msra.mxu0 0
  %68 = vmatpush.bf16.msra.mxu0 0
  %69 = vmatpush.bf16.msra.mxu0 %v50
  %70 = vmatpush.bf16.msra.mxu0 %v48
  %71 = vmatmul.bf16.gmra.mxu0 %v58
  %v72 = vpop.f32.mrf.mxu0
  %v73 = vadd.f32 0.0, %v72
  %v74 = vpop.f32.mrf.mxu0
  %v75 = vadd.f32 0.0, %v74
  %76 = vmatmul.bf16.gmra.mxu0 %v61
  %v77 = vpop.f32.mrf.mxu0
  %v78 = vadd.f32 0.0, %v77
  %v79 = vpop.f32.mrf.mxu0
  %v80 = vadd.f32 0.0, %v79
  %81 = vdwg.mxu0
  %82 = vmatpush.bf16.msra.mxu0 0
  %83 = vmatpush.bf16.msra.mxu0 0
  %84 = vmatpush.bf16.msra.mxu0 0
  %85 = vmatpush.bf16.msra.mxu0 0
  %86 = vmatpush.bf16.msra.mxu0 0
  %87 = vmatpush.bf16.msra.mxu0 0
  %88 = vmatpush.bf16.msra.mxu0 %v51
  %89 = vmatpush.bf16.msra.mxu0 %v49
  %90 = vmatmul.bf16.gmra.mxu0 %v58
  %v91 = vpop.f32.mrf.mxu0
  %v92 = vadd.f32 0.0, %v91
  %v93 = vpop.f32.mrf.mxu0
  %v94 = vadd.f32 0.0, %v93
  %95 = vmatmul.bf16.gmra.mxu0 %v61
  %v96 = vpop.f32.mrf.mxu0
  %v97 = vadd.f32 0.0, %v96
  %v98 = vpop.f32.mrf.mxu0
  %v99 = vadd.f32 0.0, %v98
  %100 = vdwg.mxu0
  %v101 = vld [vmem:[%s2] sm:$0xff]
  %v102 = vld [vmem:[%s2 + $0x8] sm:$0xff]
  %v103 = vld [vmem:[%s2 + $0x10] sm:$0xff]
  %v104 = vld [vmem:[%s2 + $0x18] sm:$0xff]
  %106 = vset.pattern.permute.xlu0 0
  %107 = vperm.xlu0 %106, %v101
  %v108 = vpop.permute.xlu0 %107
  %111 = vset.pattern.permute.xlu0 0
  %112 = vperm.xlu0 %111, %v102
  %v113 = vpop.permute.xlu0 %112
  %116 = vset.pattern.permute.xlu0 0
  %117 = vperm.xlu0 %116, %v103
  %v118 = vpop.permute.xlu0 %117
  %121 = vset.pattern.permute.xlu0 0
  %122 = vperm.xlu0 %121, %v104
  %v123 = vpop.permute.xlu0 %122
  %v125 = vmul.f32 %v73, %v108
  %v126 = vmul.f32 %v92, %v108
  %v127 = vmul.f32 %v75, %v113
  %v128 = vmul.f32 %v94, %v113
  %v129 = vmul.f32 %v78, %v118
  %v130 = vmul.f32 %v97, %v118
  %v131 = vmul.f32 %v80, %v123
  %v132 = vmul.f32 %v99, %v123
  %v133 = vld [vmem:[%s3] sm:$0xff]
  %v134 = vld [vmem:[%s3 + $0x8] sm:$0xff]
  %v135 = vld [vmem:[%s3 + $0x10] sm:$0xff]
  %v136 = vld [vmem:[%s3 + $0x18] sm:$0xff]
  %138 = vset.pattern.permute.xlu0 0
  %139 = vperm.xlu0 %138, %v133
  %v140 = vpop.permute.xlu0 %139
  %143 = vset.pattern.permute.xlu0 0
  %144 = vperm.xlu0 %143, %v134
  %v145 = vpop.permute.xlu0 %144
  %148 = vset.pattern.permute.xlu0 0
  %149 = vperm.xlu0 %148, %v135
  %v150 = vpop.permute.xlu0 %149
  %153 = vset.pattern.permute.xlu0 0
  %154 = vperm.xlu0 %153, %v136
  %v155 = vpop.permute.xlu0 %154
  %v157 = vadd.f32 %v125, %v140
  %v158 = vadd.f32 %v126, %v140
  %v159 = vadd.f32 %v127, %v145
  %v160 = vadd.f32 %v128, %v145
  %v161 = vadd.f32 %v129, %v150
  %v162 = vadd.f32 %v130, %v150
  %v163 = vadd.f32 %v131, %v155
  %v164 = vadd.f32 %v132, %v155
  %v165 = vmax.f32 %v157, 0.0
  %v166 = vmax.f32 %v158, 0.0
  %v167 = vmax.f32 %v159, 0.0
  %v168 = vmax.f32 %v160, 0.0
  %v169 = vmax.f32 %v161, 0.0
  %v170 = vmax.f32 %v162, 0.0
  %v171 = vmax.f32 %v163, 0.0
  %v172 = vmax.f32 %v164, 0.0
  %v173 = vpack.c.bf16 %v166, %v165
  %v174 = vpack.c.bf16 %v168, %v167
  %v175 = vpack.c.bf16 %v170, %v169
  %v176 = vpack.c.bf16 %v172, %v171
  %vm177 = vcmask 1043456
  %vm178 = vcmask 277508
  %vm179 = vmor %vm178, %vm177
  %180 = vst.msk [vmem:[%s4] sm:$0xff] %vm179, %v173
  %181 = vst.msk [vmem:[%s4 + $0x8] sm:$0xff] %vm179, %v174
  %182 = vst.msk [vmem:[%s4 + $0x10] sm:$0xff] %vm179, %v175
  %183 = vst.msk [vmem:[%s4 + $0x18] sm:$0xff] %vm179, %v176
  // Predicated region
  $region18: #{quoridor_forward.8} parent=0 // pred_check
    _
  $region19: #{quoridor_forward.8} parent=0 // pred_check_branch
    %185 = sbr.rel (0) target = $region21
  $region20: #{quoridor_forward.8} parent=0 // pred_region
    _
  $region21: #{quoridor_forward.8} parent=0 // pred_fallthru
    _
  // Predicated region
  $region22: #{quoridor_forward.8} parent=0 // pred_check
    _
  $region23: #{quoridor_forward.8} parent=0 // pred_check_branch
    %187 = sbr.rel (0) target = $region25
  $region24: #{quoridor_forward.8} parent=0 // pred_region
    _
  $region25: #{quoridor_forward.8} parent=0 // pred_fallthru
    _

// kernel: quoridor_forward.9
$region0: #{quoridor_forward.9}
  #allocation0 [shape = 'u32[]', space=smem, size = 0x4, offset = 0x4, fixed_abs, tag = 'smem constant byte address 0x4 - core index']
  #allocation1 [shape = 'u32[72,128]{1,0:T(1,128)}', space=vmem, size = 0x9000, scoped, tag = 'internal scratch']
  %s0 = inlined_call_operand.vmem [shape: bf16[288,162], index: 0, kind: input, shape index: {}]
  %s1 = inlined_call_operand.vmem [shape: bf16[32,288], index: 1, kind: input, shape index: {}]
  %s2 = inlined_call_operand.vmem [shape: f32[32,1], index: 2, kind: input, shape index: {}]
  %s3 = inlined_call_operand.vmem [shape: f32[32,1], index: 3, kind: input, shape index: {}]
  %s4 = inlined_call_operand.vmem [shape: bf16[32,162], index: 4, kind: output, shape index: {}]
  %s5 = sld [smem:[#allocation0]]
  $region26: #{quoridor_forward.9} parent=0
    _
  %s7 = ssub.s32 1, %s5
  %s8 = scalar_select 0, %s7, %s5
  // Predicated region
  $region2: #{quoridor_forward.9} parent=0 // pred_check
    _
  $region3: #{quoridor_forward.9} parent=0 // pred_check_branch
    %10 = sbr.rel (0) target = $region5
  $region4: #{quoridor_forward.9} parent=0 // pred_region
    _
  $region5: #{quoridor_forward.9} parent=0 // pred_fallthru
    _
  // Predicated region
  $region6: #{quoridor_forward.9} parent=0 // pred_check
    _
  $region7: #{quoridor_forward.9} parent=0 // pred_check_branch
    %12 = sbr.rel (0) target = $region9
  $region8: #{quoridor_forward.9} parent=0 // pred_region
    _
  $region9: #{quoridor_forward.9} parent=0 // pred_fallthru
    _
  // Predicated region
  $region10: #{quoridor_forward.9} parent=0 // pred_check
    _
  $region11: #{quoridor_forward.9} parent=0 // pred_check_branch
    %14 = sbr.rel (0) target = $region13
  $region12: #{quoridor_forward.9} parent=0 // pred_region
    _
  $region13: #{quoridor_forward.9} parent=0 // pred_fallthru
    _
  // Predicated region
  $region14: #{quoridor_forward.9} parent=0 // pred_check
    _
  $region15: #{quoridor_forward.9} parent=0 // pred_check_branch
    %16 = sbr.rel (0) target = $region17
  $region16: #{quoridor_forward.9} parent=0 // pred_region
    _
  $region17: #{quoridor_forward.9} parent=0 // pred_fallthru
    _
  %v18 = vld [vmem:[%s1] sm:$0xff]
  %v19 = vld [vmem:[%s1 + $0x8] sm:$0xf]
  %v20 = vld [vmem:[%s1 + $0xc] sm:$0xff]
  %v21 = vld [vmem:[%s1 + $0x14] sm:$0xf]
  %v22 = vld [vmem:[%s1 + $0x18] sm:$0xff]
  %v23 = vld [vmem:[%s1 + $0x20] sm:$0xf]
  %v24 = vld [vmem:[%s1 + $0x24] sm:$0xff]
  %v25 = vld [vmem:[%s1 + $0x2c] sm:$0xf]
  %v26 = vld [vmem:[%s0] sm:$0xff]
  %v27 = vld [vmem:[%s0 + $0x8] sm:$0xff]
  %v28 = vld [vmem:[%s0 + $0x10] sm:$0xff]
  %v29 = vld [vmem:[%s0 + $0x18] sm:$0xff]
  %v30 = vld [vmem:[%s0 + $0x20] sm:$0xff]
  %v31 = vld [vmem:[%s0 + $0x28] sm:$0xff]
  %v32 = vld [vmem:[%s0 + $0x30] sm:$0xff]
  %v33 = vld [vmem:[%s0 + $0x38] sm:$0xff]
  %v34 = vld [vmem:[%s0 + $0x40] sm:$0xff]
  %v35 = vld [vmem:[%s0 + $0x48] sm:$0xff]
  %v36 = vld [vmem:[%s0 + $0x50] sm:$0xff]
  %v37 = vld [vmem:[%s0 + $0x58] sm:$0xff]
  %v38 = vld [vmem:[%s0 + $0x60] sm:$0xff]
  %v39 = vld [vmem:[%s0 + $0x68] sm:$0xff]
  %v40 = vld [vmem:[%s0 + $0x70] sm:$0xff]
  %v41 = vld [vmem:[%s0 + $0x78] sm:$0xff]
  %v42 = vld [vmem:[%s0 + $0x80] sm:$0xff]
  %v43 = vld [vmem:[%s0 + $0x88] sm:$0xff]
  %v44 = vld [vmem:[%s0 + $0x90] sm:$0xff]
  %v45 = vld [vmem:[%s0 + $0x98] sm:$0xff]
  %v46 = vld [vmem:[%s0 + $0xa0] sm:$0xff]
  %v47 = vld [vmem:[%s0 + $0xa8] sm:$0xff]
  %v48 = vld [vmem:[%s0 + $0xb0] sm:$0xff]
  %v49 = vld [vmem:[%s0 + $0xb8] sm:$0xff]
  %v50 = vld [vmem:[%s0 + $0xc0] sm:$0xff]
  %v51 = vld [vmem:[%s0 + $0xc8] sm:$0xff]
  %v52 = vld [vmem:[%s0 + $0xd0] sm:$0xff]
  %v53 = vld [vmem:[%s0 + $0xd8] sm:$0xff]
  %v54 = vld [vmem:[%s0 + $0xe0] sm:$0xff]
  %v55 = vld [vmem:[%s0 + $0xe8] sm:$0xff]
  %v56 = vld [vmem:[%s0 + $0xf0] sm:$0xff]
  %v57 = vld [vmem:[%s0 + $0xf8] sm:$0xff]
  %v58 = vld [vmem:[%s0 + $0x100] sm:$0xff]
  %v59 = vld [vmem:[%s0 + $0x108] sm:$0xff]
  %v60 = vld [vmem:[%s0 + $0x110] sm:$0xff]
  %v61 = vld [vmem:[%s0 + $0x118] sm:$0xff]
  %v70 = vunpack.c.l.b16 %v18
  %v71 = vunpack.c.h.b16 %v18
  %v72 = vunpack.c.l.b16 %v19
  %v73 = vunpack.c.l.b16 %v20
  %v74 = vunpack.c.h.b16 %v20
  %v75 = vunpack.c.l.b16 %v21
  %v76 = vunpack.c.l.b16 %v22
  %v77 = vunpack.c.h.b16 %v22
  %v78 = vunpack.c.l.b16 %v23
  %v79 = vunpack.c.l.b16 %v24
  %v80 = vunpack.c.h.b16 %v24
  %v81 = vunpack.c.l.b16 %v25
  %v82 = vpack.c.b16 %v73, %v70
  %v83 = vpack.c.b16 %v74, %v71
  %v84 = vpack.c.b16 %v75, %v72
  %v85 = vpack.c.b16 %v79, %v76
  %v86 = vpack.c.b16 %v80, %v77
  %v87 = vpack.c.b16 %v81, %v78
  %v128 = vunpack.c.l.b16 %v26
  %v129 = vunpack.c.h.b16 %v26
  %v130 = vunpack.c.l.b16 %v27
  %v131 = vunpack.c.h.b16 %v27
  %v132 = vunpack.c.l.b16 %v28
  %v133 = vunpack.c.h.b16 %v28
  %v134 = vunpack.c.l.b16 %v29
  %v135 = vunpack.c.h.b16 %v29
  %v136 = vunpack.c.l.b16 %v30
  %v137 = vunpack.c.h.b16 %v30
  %v138 = vunpack.c.l.b16 %v31
  %v139 = vunpack.c.h.b16 %v31
  %v140 = vunpack.c.l.b16 %v32
  %v141 = vunpack.c.h.b16 %v32
  %v142 = vunpack.c.l.b16 %v33
  %v143 = vunpack.c.h.b16 %v33
  %v144 = vunpack.c.l.b16 %v34
  %v145 = vunpack.c.h.b16 %v34
  %v146 = vunpack.c.l.b16 %v35
  %v147 = vunpack.c.h.b16 %v35
  %v148 = vunpack.c.l.b16 %v36
  %v149 = vunpack.c.h.b16 %v36
  %v150 = vunpack.c.l.b16 %v37
  %v151 = vunpack.c.h.b16 %v37
  %v152 = vunpack.c.l.b16 %v38
  %v153 = vunpack.c.h.b16 %v38
  %v154 = vunpack.c.l.b16 %v39
  %v155 = vunpack.c.h.b16 %v39
  %v156 = vunpack.c.l.b16 %v40
  %v157 = vunpack.c.h.b16 %v40
  %v158 = vunpack.c.l.b16 %v41
  %v159 = vunpack.c.h.b16 %v41
  %v160 = vunpack.c.l.b16 %v42
  %v161 = vunpack.c.h.b16 %v42
  %v162 = vunpack.c.l.b16 %v43
  %v163 = vunpack.c.h.b16 %v43
  %v164 = vunpack.c.l.b16 %v44
  %v165 = vunpack.c.h.b16 %v44
  %v166 = vunpack.c.l.b16 %v45
  %v167 = vunpack.c.h.b16 %v45
  %v168 = vunpack.c.l.b16 %v46
  %v169 = vunpack.c.h.b16 %v46
  %v170 = vunpack.c.l.b16 %v47
  %v171 = vunpack.c.h.b16 %v47
  %v172 = vunpack.c.l.b16 %v48
  %v173 = vunpack.c.h.b16 %v48
  %v174 = vunpack.c.l.b16 %v49
  %v175 = vunpack.c.h.b16 %v49
  %v176 = vunpack.c.l.b16 %v50
  %v177 = vunpack.c.h.b16 %v50
  %v178 = vunpack.c.l.b16 %v51
  %v179 = vunpack.c.h.b16 %v51
  %v180 = vunpack.c.l.b16 %v52
  %v181 = vunpack.c.h.b16 %v52
  %v182 = vunpack.c.l.b16 %v53
  %v183 = vunpack.c.h.b16 %v53
  %v184 = vunpack.c.l.b16 %v54
  %v185 = vunpack.c.h.b16 %v54
  %v186 = vunpack.c.l.b16 %v55
  %v187 = vunpack.c.h.b16 %v55
  %v188 = vunpack.c.l.b16 %v56
  %v189 = vunpack.c.h.b16 %v56
  %v190 = vunpack.c.l.b16 %v57
  %v191 = vunpack.c.h.b16 %v57
  %v192 = vunpack.c.l.b16 %v58
  %v193 = vunpack.c.h.b16 %v58
  %v194 = vunpack.c.l.b16 %v59
  %v195 = vunpack.c.h.b16 %v59
  %v196 = vunpack.c.l.b16 %v60
  %v197 = vunpack.c.h.b16 %v60
  %v198 = vunpack.c.l.b16 %v61
  %v199 = vunpack.c.h.b16 %v61
  %v200 = vpack.c.b16 %v130, %v128
  %v201 = vpack.c.b16 %v131, %v129
  %v202 = vpack.c.b16 %v134, %v132
  %v203 = vpack.c.b16 %v135, %v133
  %v204 = vpack.c.b16 %v138, %v136
  %v205 = vpack.c.b16 %v139, %v137
  %v206 = vpack.c.b16 %v142, %v140
  %v207 = vpack.c.b16 %v143, %v141
  %v208 = vpack.c.b16 %v146, %v144
  %v209 = vpack.c.b16 %v147, %v145
  %v210 = vpack.c.b16 %v150, %v148
  %v211 = vpack.c.b16 %v151, %v149
  %v212 = vpack.c.b16 %v154, %v152
  %v213 = vpack.c.b16 %v155, %v153
  %v214 = vpack.c.b16 %v158, %v156
  %v215 = vpack.c.b16 %v159, %v157
  %v216 = vpack.c.b16 %v162, %v160
  %v217 = vpack.c.b16 %v163, %v161
  %v218 = vpack.c.b16 %v166, %v164
  %v219 = vpack.c.b16 %v167, %v165
  %v220 = vpack.c.b16 %v170, %v168
  %v221 = vpack.c.b16 %v171, %v169
  %v222 = vpack.c.b16 %v174, %v172
  %v223 = vpack.c.b16 %v175, %v173
  %v224 = vpack.c.b16 %v178, %v176
  %v225 = vpack.c.b16 %v179, %v177
  %v226 = vpack.c.b16 %v182, %v180
  %v227 = vpack.c.b16 %v183, %v181
  %v228 = vpack.c.b16 %v186, %v184
  %v229 = vpack.c.b16 %v187, %v185
  %v230 = vpack.c.b16 %v190, %v188
  %v231 = vpack.c.b16 %v191, %v189
  %v232 = vpack.c.b16 %v194, %v192
  %v233 = vpack.c.b16 %v195, %v193
  %v234 = vpack.c.b16 %v198, %v196
  %v235 = vpack.c.b16 %v199, %v197
  %vm272 = vcmask 261120
  %v274 = vsel %vm272, %v84, 0
  %v277 = vsel %vm272, %v87, 0
  %279 = vmatpush.bf16.msra.mxu0 %v214
  %280 = vmatpush.bf16.msra.mxu0 %v212
  %281 = vmatpush.bf16.msra.mxu0 %v210
  %282 = vmatpush.bf16.msra.mxu0 %v208
  %283 = vmatpush.bf16.msra.mxu0 %v206
  %284 = vmatpush.bf16.msra.mxu0 %v204
  %285 = vmatpush.bf16.msra.mxu0 %v202
  %286 = vmatpush.bf16.msra.mxu0 %v200
  %287 = vmatmul.bf16.gmra.mxu0 %v82
  %v288 = vpop.f32.mrf.mxu0
  %v289 = vadd.f32 0.0, %v288
  %v290 = vpop.f32.mrf.mxu0
  %v291 = vadd.f32 0.0, %v290
  %292 = vmatmul.bf16.gmra.mxu0 %v85
  %v293 = vpop.f32.mrf.mxu0
  %v294 = vadd.f32 0.0, %v293
  %v295 = vpop.f32.mrf.mxu0
  %v296 = vadd.f32 0.0, %v295
  %297 = vdwg.mxu0
  %298 = vmatpush.bf16.msra.mxu0 %v230
  %299 = vmatpush.bf16.msra.mxu0 %v228
  %300 = vmatpush.bf16.msra.mxu0 %v226
  %301 = vmatpush.bf16.msra.mxu0 %v224
  %302 = vmatpush.bf16.msra.mxu0 %v222
  %303 = vmatpush.bf16.msra.mxu0 %v220
  %304 = vmatpush.bf16.msra.mxu0 %v218
  %305 = vmatpush.bf16.msra.mxu0 %v216
  %306 = vmatmul.bf16.gmra.mxu0 %v83
  %v307 = vpop.f32.mrf.mxu0
  %v308 = vadd.f32 %v289, %v307
  %v309 = vpop.f32.mrf.mxu0
  %v310 = vadd.f32 %v291, %v309
  %311 = vmatmul.bf16.gmra.mxu0 %v86
  %v312 = vpop.f32.mrf.mxu0
  %v313 = vadd.f32 %v294, %v312
  %v314 = vpop.f32.mrf.mxu0
  %v315 = vadd.f32 %v296, %v314
  %316 = vdwg.mxu0
  %317 = vmatpush.bf16.msra.mxu0 0
  %318 = vmatpush.bf16.msra.mxu0 0
  %319 = vmatpush.bf16.msra.mxu0 0
  %320 = vmatpush.bf16.msra.mxu0 0
  %321 = vmatpush.bf16.msra.mxu0 0
  %322 = vmatpush.bf16.msra.mxu0 0
  %323 = vmatpush.bf16.msra.mxu0 %v234
  %324 = vmatpush.bf16.msra.mxu0 %v232
  %325 = vmatmul.bf16.gmra.mxu0 %v274
  %v326 = vpop.f32.mrf.mxu0
  %v327 = vadd.f32 %v308, %v326
  %v328 = vpop.f32.mrf.mxu0
  %v329 = vadd.f32 %v310, %v328
  %330 = vmatmul.bf16.gmra.mxu0 %v277
  %v331 = vpop.f32.mrf.mxu0
  %v332 = vadd.f32 %v313, %v331
  %v333 = vpop.f32.mrf.mxu0
  %v334 = vadd.f32 %v315, %v333
  %335 = vdwg.mxu0
  %336 = vmatpush.bf16.msra.mxu0 %v215
  %337 = vmatpush.bf16.msra.mxu0 %v213
  %338 = vmatpush.bf16.msra.mxu0 %v211
  %339 = vmatpush.bf16.msra.mxu0 %v209
  %340 = vmatpush.bf16.msra.mxu0 %v207
  %341 = vmatpush.bf16.msra.mxu0 %v205
  %342 = vmatpush.bf16.msra.mxu0 %v203
  %343 = vmatpush.bf16.msra.mxu0 %v201
  %344 = vmatmul.bf16.gmra.mxu0 %v82
  %v345 = vpop.f32.mrf.mxu0
  %v346 = vadd.f32 0.0, %v345
  %v347 = vpop.f32.mrf.mxu0
  %v348 = vadd.f32 0.0, %v347
  %349 = vmatmul.bf16.gmra.mxu0 %v85
  %v350 = vpop.f32.mrf.mxu0
  %v351 = vadd.f32 0.0, %v350
  %v352 = vpop.f32.mrf.mxu0
  %v353 = vadd.f32 0.0, %v352
  %354 = vdwg.mxu0
  %355 = vmatpush.bf16.msra.mxu0 %v231
  %356 = vmatpush.bf16.msra.mxu0 %v229
  %357 = vmatpush.bf16.msra.mxu0 %v227
  %358 = vmatpush.bf16.msra.mxu0 %v225
  %359 = vmatpush.bf16.msra.mxu0 %v223
  %360 = vmatpush.bf16.msra.mxu0 %v221
  %361 = vmatpush.bf16.msra.mxu0 %v219
  %362 = vmatpush.bf16.msra.mxu0 %v217
  %363 = vmatmul.bf16.gmra.mxu0 %v83
  %v364 = vpop.f32.mrf.mxu0
  %v365 = vadd.f32 %v346, %v364
  %v366 = vpop.f32.mrf.mxu0
  %v367 = vadd.f32 %v348, %v366
  %368 = vmatmul.bf16.gmra.mxu0 %v86
  %v369 = vpop.f32.mrf.mxu0
  %v370 = vadd.f32 %v351, %v369
  %v371 = vpop.f32.mrf.mxu0
  %v372 = vadd.f32 %v353, %v371
  %373 = vdwg.mxu0
  %374 = vmatpush.bf16.msra.mxu0 0
  %375 = vmatpush.bf16.msra.mxu0 0
  %376 = vmatpush.bf16.msra.mxu0 0
  %377 = vmatpush.bf16.msra.mxu0 0
  %378 = vmatpush.bf16.msra.mxu0 0
  %379 = vmatpush.bf16.msra.mxu0 0
  %380 = vmatpush.bf16.msra.mxu0 %v235
  %381 = vmatpush.bf16.msra.mxu0 %v233
  %382 = vmatmul.bf16.gmra.mxu0 %v274
  %v383 = vpop.f32.mrf.mxu0
  %v384 = vadd.f32 %v365, %v383
  %v385 = vpop.f32.mrf.mxu0
  %v386 = vadd.f32 %v367, %v385
  %387 = vmatmul.bf16.gmra.mxu0 %v277
  %v388 = vpop.f32.mrf.mxu0
  %v389 = vadd.f32 %v370, %v388
  %v390 = vpop.f32.mrf.mxu0
  %v391 = vadd.f32 %v372, %v390
  %392 = vdwg.mxu0
  %v393 = vld [vmem:[%s2] sm:$0xff]
  %v394 = vld [vmem:[%s2 + $0x8] sm:$0xff]
  %v395 = vld [vmem:[%s2 + $0x10] sm:$0xff]
  %v396 = vld [vmem:[%s2 + $0x18] sm:$0xff]
  %398 = vset.pattern.permute.xlu0 0
  %399 = vperm.xlu0 %398, %v393
  %v400 = vpop.permute.xlu0 %399
  %403 = vset.pattern.permute.xlu0 0
  %404 = vperm.xlu0 %403, %v394
  %v405 = vpop.permute.xlu0 %404
  %408 = vset.pattern.permute.xlu0 0
  %409 = vperm.xlu0 %408, %v395
  %v410 = vpop.permute.xlu0 %409
  %413 = vset.pattern.permute.xlu0 0
  %414 = vperm.xlu0 %413, %v396
  %v415 = vpop.permute.xlu0 %414
  %v417 = vmul.f32 %v327, %v400
  %v418 = vmul.f32 %v384, %v400
  %v419 = vmul.f32 %v329, %v405
  %v420 = vmul.f32 %v386, %v405
  %v421 = vmul.f32 %v332, %v410
  %v422 = vmul.f32 %v389, %v410
  %v423 = vmul.f32 %v334, %v415
  %v424 = vmul.f32 %v391, %v415
  %v425 = vld [vmem:[%s3] sm:$0xff]
  %v426 = vld [vmem:[%s3 + $0x8] sm:$0xff]
  %v427 = vld [vmem:[%s3 + $0x10] sm:$0xff]
  %v428 = vld [vmem:[%s3 + $0x18] sm:$0xff]
  %430 = vset.pattern.permute.xlu0 0
  %431 = vperm.xlu0 %430, %v425
  %v432 = vpop.permute.xlu0 %431
  %435 = vset.pattern.permute.xlu0 0
  %436 = vperm.xlu0 %435, %v426
  %v437 = vpop.permute.xlu0 %436
  %440 = vset.pattern.permute.xlu0 0
  %441 = vperm.xlu0 %440, %v427
  %v442 = vpop.permute.xlu0 %441
  %445 = vset.pattern.permute.xlu0 0
  %446 = vperm.xlu0 %445, %v428
  %v447 = vpop.permute.xlu0 %446
  %v449 = vadd.f32 %v417, %v432
  %v450 = vadd.f32 %v418, %v432
  %v451 = vadd.f32 %v419, %v437
  %v452 = vadd.f32 %v420, %v437
  %v453 = vadd.f32 %v421, %v442
  %v454 = vadd.f32 %v422, %v442
  %v455 = vadd.f32 %v423, %v447
  %v456 = vadd.f32 %v424, %v447
  %v457 = vmax.f32 %v449, 0.0
  %v458 = vmax.f32 %v450, 0.0
  %v459 = vmax.f32 %v451, 0.0
  %v460 = vmax.f32 %v452, 0.0
  %v461 = vmax.f32 %v453, 0.0
  %v462 = vmax.f32 %v454, 0.0
  %v463 = vmax.f32 %v455, 0.0
  %v464 = vmax.f32 %v456, 0.0
  %v465 = vpack.c.bf16 %v458, %v457
  %v466 = vpack.c.bf16 %v460, %v459
  %v467 = vpack.c.bf16 %v462, %v461
  %v468 = vpack.c.bf16 %v464, %v463
  %vm469 = vcmask 1043456
  %vm470 = vcmask 277508
  %vm471 = vmor %vm470, %vm469
  %472 = vst.msk [vmem:[%s4] sm:$0xff] %vm471, %v465
  %473 = vst.msk [vmem:[%s4 + $0x8] sm:$0xff] %vm471, %v466
  %474 = vst.msk [vmem:[%s4 + $0x10] sm:$0xff] %vm471, %v467
  %475 = vst.msk [vmem:[%s4 + $0x18] sm:$0xff] %vm471, %v468
  // Predicated region
  $region18: #{quoridor_forward.9} parent=0 // pred_check
    _
  $region19: #{quoridor_forward.9} parent=0 // pred_check_branch
    %477 = sbr.rel (0) target = $region21
  $region20: #{quoridor_forward.9} parent=0 // pred_region
    _
  $region21: #{quoridor_forward.9} parent=0 // pred_fallthru
    _
  // Predicated region
  $region22: #{quoridor_forward.9} parent=0 // pred_check
    _
  $region23: #{quoridor_forward.9} parent=0 // pred_check_branch
    %479 = sbr.rel (0) target = $region25
  $region24: #{quoridor_forward.9} parent=0 // pred_region
    _
  $region25: #{quoridor_forward.9} parent=0 // pred_fallthru
    _

// kernel: quoridor_forward.10
$region0: #{quoridor_forward.10}
  #allocation0 [shape = 'u32[]', space=smem, size = 0x4, offset = 0x4, fixed_abs, tag = 'smem constant byte address 0x4 - core index']
  #allocation1 [shape = 'u32[72,128]{1,0:T(1,128)}', space=vmem, size = 0x9000, scoped, tag = 'internal scratch']
  %s0 = inlined_call_operand.vmem [shape: bf16[288,98], index: 0, kind: input, shape index: {}]
  %s1 = inlined_call_operand.vmem [shape: bf16[32,288], index: 1, kind: input, shape index: {}]
  %s2 = inlined_call_operand.vmem [shape: f32[32,1], index: 2, kind: input, shape index: {}]
  %s3 = inlined_call_operand.vmem [shape: f32[32,1], index: 3, kind: input, shape index: {}]
  %s4 = inlined_call_operand.vmem [shape: bf16[32,98], index: 4, kind: output, shape index: {}]
  %s5 = sld [smem:[#allocation0]]
  $region26: #{quoridor_forward.10} parent=0
    _
  %s7 = ssub.s32 1, %s5
  %s8 = scalar_select 0, %s7, %s5
  // Predicated region
  $region2: #{quoridor_forward.10} parent=0 // pred_check
    _
  $region3: #{quoridor_forward.10} parent=0 // pred_check_branch
    %10 = sbr.rel (0) target = $region5
  $region4: #{quoridor_forward.10} parent=0 // pred_region
    _
  $region5: #{quoridor_forward.10} parent=0 // pred_fallthru
    _
  // Predicated region
  $region6: #{quoridor_forward.10} parent=0 // pred_check
    _
  $region7: #{quoridor_forward.10} parent=0 // pred_check_branch
    %12 = sbr.rel (0) target = $region9
  $region8: #{quoridor_forward.10} parent=0 // pred_region
    _
  $region9: #{quoridor_forward.10} parent=0 // pred_fallthru
    _
  // Predicated region
  $region10: #{quoridor_forward.10} parent=0 // pred_check
    _
  $region11: #{quoridor_forward.10} parent=0 // pred_check_branch
    %14 = sbr.rel (0) target = $region13
  $region12: #{quoridor_forward.10} parent=0 // pred_region
    _
  $region13: #{quoridor_forward.10} parent=0 // pred_fallthru
    _
  // Predicated region
  $region14: #{quoridor_forward.10} parent=0 // pred_check
    _
  $region15: #{quoridor_forward.10} parent=0 // pred_check_branch
    %16 = sbr.rel (0) target = $region17
  $region16: #{quoridor_forward.10} parent=0 // pred_region
    _
  $region17: #{quoridor_forward.10} parent=0 // pred_fallthru
    _
  %v18 = vld [vmem:[%s1] sm:$0xff]
  %v19 = vld [vmem:[%s1 + $0x8] sm:$0xf]
  %v20 = vld [vmem:[%s1 + $0xc] sm:$0xff]
  %v21 = vld [vmem:[%s1 + $0x14] sm:$0xf]
  %v22 = vld [vmem:[%s1 + $0x18] sm:$0xff]
  %v23 = vld [vmem:[%s1 + $0x20] sm:$0xf]
  %v24 = vld [vmem:[%s1 + $0x24] sm:$0xff]
  %v25 = vld [vmem:[%s1 + $0x2c] sm:$0xf]
  %v26 = vld [vmem:[%s0] sm:$0xf]
  %v27 = vld [vmem:[%s0 + $0x4] sm:$0xf]
  %v28 = vld [vmem:[%s0 + $0x8] sm:$0xf]
  %v29 = vld [vmem:[%s0 + $0xc] sm:$0xf]
  %v30 = vld [vmem:[%s0 + $0x10] sm:$0xf]
  %v31 = vld [vmem:[%s0 + $0x14] sm:$0xf]
  %v32 = vld [vmem:[%s0 + $0x18] sm:$0xf]
  %v33 = vld [vmem:[%s0 + $0x1c] sm:$0xf]
  %v34 = vld [vmem:[%s0 + $0x20] sm:$0xf]
  %v35 = vld [vmem:[%s0 + $0x24] sm:$0xf]
  %v36 = vld [vmem:[%s0 + $0x28] sm:$0xf]
  %v37 = vld [vmem:[%s0 + $0x2c] sm:$0xf]
  %v38 = vld [vmem:[%s0 + $0x30] sm:$0xf]
  %v39 = vld [vmem:[%s0 + $0x34] sm:$0xf]
  %v40 = vld [vmem:[%s0 + $0x38] sm:$0xf]
  %v41 = vld [vmem:[%s0 + $0x3c] sm:$0xf]
  %v42 = vld [vmem:[%s0 + $0x40] sm:$0xf]
  %v43 = vld [vmem:[%s0 + $0x44] sm:$0xf]
  %v44 = vld [vmem:[%s0 + $0x48] sm:$0xf]
  %v45 = vld [vmem:[%s0 + $0x4c] sm:$0xf]
  %v46 = vld [vmem:[%s0 + $0x50] sm:$0xf]
  %v47 = vld [vmem:[%s0 + $0x54] sm:$0xf]
  %v48 = vld [vmem:[%s0 + $0x58] sm:$0xf]
  %v49 = vld [vmem:[%s0 + $0x5c] sm:$0xf]
  %v50 = vld [vmem:[%s0 + $0x60] sm:$0xf]
  %v51 = vld [vmem:[%s0 + $0x64] sm:$0xf]
  %v52 = vld [vmem:[%s0 + $0x68] sm:$0xf]
  %v53 = vld [vmem:[%s0 + $0x6c] sm:$0xf]
  %v54 = vld [vmem:[%s0 + $0x70] sm:$0xf]
  %v55 = vld [vmem:[%s0 + $0x74] sm:$0xf]
  %v56 = vld [vmem:[%s0 + $0x78] sm:$0xf]
  %v57 = vld [vmem:[%s0 + $0x7c] sm:$0xf]
  %v58 = vld [vmem:[%s0 + $0x80] sm:$0xf]
  %v59 = vld [vmem:[%s0 + $0x84] sm:$0xf]
  %v60 = vld [vmem:[%s0 + $0x88] sm:$0xf]
  %v61 = vld [vmem:[%s0 + $0x8c] sm:$0xf]
  %v70 = vunpack.c.l.b16 %v18
  %v71 = vunpack.c.h.b16 %v18
  %v72 = vunpack.c.l.b16 %v19
  %v73 = vunpack.c.l.b16 %v20
  %v74 = vunpack.c.h.b16 %v20
  %v75 = vunpack.c.l.b16 %v21
  %v76 = vunpack.c.l.b16 %v22
  %v77 = vunpack.c.h.b16 %v22
  %v78 = vunpack.c.l.b16 %v23
  %v79 = vunpack.c.l.b16 %v24
  %v80 = vunpack.c.h.b16 %v24
  %v81 = vunpack.c.l.b16 %v25
  %v82 = vpack.c.b16 %v73, %v70
  %v83 = vpack.c.b16 %v74, %v71
  %v84 = vpack.c.b16 %v75, %v72
  %v85 = vpack.c.b16 %v79, %v76
  %v86 = vpack.c.b16 %v80, %v77
  %v87 = vpack.c.b16 %v81, %v78
  %v128 = vunpack.c.l.b16 %v26
  %v129 = vunpack.c.l.b16 %v27
  %v130 = vunpack.c.l.b16 %v28
  %v131 = vunpack.c.l.b16 %v29
  %v132 = vunpack.c.l.b16 %v30
  %v133 = vunpack.c.l.b16 %v31
  %v134 = vunpack.c.l.b16 %v32
  %v135 = vunpack.c.l.b16 %v33
  %v136 = vunpack.c.l.b16 %v34
  %v137 = vunpack.c.l.b16 %v35
  %v138 = vunpack.c.l.b16 %v36
  %v139 = vunpack.c.l.b16 %v37
  %v140 = vunpack.c.l.b16 %v38
  %v141 = vunpack.c.l.b16 %v39
  %v142 = vunpack.c.l.b16 %v40
  %v143 = vunpack.c.l.b16 %v41
  %v144 = vunpack.c.l.b16 %v42
  %v145 = vunpack.c.l.b16 %v43
  %v146 = vunpack.c.l.b16 %v44
  %v147 = vunpack.c.l.b16 %v45
  %v148 = vunpack.c.l.b16 %v46
  %v149 = vunpack.c.l.b16 %v47
  %v150 = vunpack.c.l.b16 %v48
  %v151 = vunpack.c.l.b16 %v49
  %v152 = vunpack.c.l.b16 %v50
  %v153 = vunpack.c.l.b16 %v51
  %v154 = vunpack.c.l.b16 %v52
  %v155 = vunpack.c.l.b16 %v53
  %v156 = vunpack.c.l.b16 %v54
  %v157 = vunpack.c.l.b16 %v55
  %v158 = vunpack.c.l.b16 %v56
  %v159 = vunpack.c.l.b16 %v57
  %v160 = vunpack.c.l.b16 %v58
  %v161 = vunpack.c.l.b16 %v59
  %v162 = vunpack.c.l.b16 %v60
  %v163 = vunpack.c.l.b16 %v61
  %v164 = vpack.c.b16 %v129, %v128
  %v165 = vpack.c.b16 %v131, %v130
  %v166 = vpack.c.b16 %v133, %v132
  %v167 = vpack.c.b16 %v135, %v134
  %v168 = vpack.c.b16 %v137, %v136
  %v169 = vpack.c.b16 %v139, %v138
  %v170 = vpack.c.b16 %v141, %v140
  %v171 = vpack.c.b16 %v143, %v142
  %v172 = vpack.c.b16 %v145, %v144
  %v173 = vpack.c.b16 %v147, %v146
  %v174 = vpack.c.b16 %v149, %v148
  %v175 = vpack.c.b16 %v151, %v150
  %v176 = vpack.c.b16 %v153, %v152
  %v177 = vpack.c.b16 %v155, %v154
  %v178 = vpack.c.b16 %v157, %v156
  %v179 = vpack.c.b16 %v159, %v158
  %v180 = vpack.c.b16 %v161, %v160
  %v181 = vpack.c.b16 %v163, %v162
  %vm200 = vcmask 261120
  %v202 = vsel %vm200, %v84, 0
  %v205 = vsel %vm200, %v87, 0
  %207 = vmatpush.bf16.msra.mxu0 %v171
  %208 = vmatpush.bf16.msra.mxu0 %v170
  %209 = vmatpush.bf16.msra.mxu0 %v169
  %210 = vmatpush.bf16.msra.mxu0 %v168
  %211 = vmatpush.bf16.msra.mxu0 %v167
  %212 = vmatpush.bf16.msra.mxu0 %v166
  %213 = vmatpush.bf16.msra.mxu0 %v165
  %214 = vmatpush.bf16.msra.mxu0 %v164
  %215 = vmatmul.bf16.gmra.mxu0 %v82
  %v216 = vpop.f32.mrf.mxu0
  %v217 = vadd.f32 0.0, %v216
  %v218 = vpop.f32.mrf.mxu0
  %v219 = vadd.f32 0.0, %v218
  %220 = vmatmul.bf16.gmra.mxu0 %v85
  %v221 = vpop.f32.mrf.mxu0
  %v222 = vadd.f32 0.0, %v221
  %v223 = vpop.f32.mrf.mxu0
  %v224 = vadd.f32 0.0, %v223
  %225 = vdwg.mxu0
  %226 = vmatpush.bf16.msra.mxu0 %v179
  %227 = vmatpush.bf16.msra.mxu0 %v178
  %228 = vmatpush.bf16.msra.mxu0 %v177
  %229 = vmatpush.bf16.msra.mxu0 %v176
  %230 = vmatpush.bf16.msra.mxu0 %v175
  %231 = vmatpush.bf16.msra.mxu0 %v174
  %232 = vmatpush.bf16.msra.mxu0 %v173
  %233 = vmatpush.bf16.msra.mxu0 %v172
  %234 = vmatmul.bf16.gmra.mxu0 %v83
  %v235 = vpop.f32.mrf.mxu0
  %v236 = vadd.f32 %v217, %v235
  %v237 = vpop.f32.mrf.mxu0
  %v238 = vadd.f32 %v219, %v237
  %239 = vmatmul.bf16.gmra.mxu0 %v86
  %v240 = vpop.f32.mrf.mxu0
  %v241 = vadd.f32 %v222, %v240
  %v242 = vpop.f32.mrf.mxu0
  %v243 = vadd.f32 %v224, %v242
  %244 = vdwg.mxu0
  %245 = vmatpush.bf16.msra.mxu0 0
  %246 = vmatpush.bf16.msra.mxu0 0
  %247 = vmatpush.bf16.msra.mxu0 0
  %248 = vmatpush.bf16.msra.mxu0 0
  %249 = vmatpush.bf16.msra.mxu0 0
  %250 = vmatpush.bf16.msra.mxu0 0
  %251 = vmatpush.bf16.msra.mxu0 %v181
  %252 = vmatpush.bf16.msra.mxu0 %v180
  %253 = vmatmul.bf16.gmra.mxu0 %v202
  %v254 = vpop.f32.mrf.mxu0
  %v255 = vadd.f32 %v236, %v254
  %v256 = vpop.f32.mrf.mxu0
  %v257 = vadd.f32 %v238, %v256
  %258 = vmatmul.bf16.gmra.mxu0 %v205
  %v259 = vpop.f32.mrf.mxu0
  %v260 = vadd.f32 %v241, %v259
  %v261 = vpop.f32.mrf.mxu0
  %v262 = vadd.f32 %v243, %v261
  %263 = vdwg.mxu0
  %v264 = vld [vmem:[%s2] sm:$0xff]
  %v265 = vld [vmem:[%s2 + $0x8] sm:$0xff]
  %v266 = vld [vmem:[%s2 + $0x10] sm:$0xff]
  %v267 = vld [vmem:[%s2 + $0x18] sm:$0xff]
  %269 = vset.pattern.permute.xlu0 0
  %270 = vperm.xlu0 %269, %v264
  %v271 = vpop.permute.xlu0 %270
  %274 = vset.pattern.permute.xlu0 0
  %275 = vperm.xlu0 %274, %v265
  %v276 = vpop.permute.xlu0 %275
  %279 = vset.pattern.permute.xlu0 0
  %280 = vperm.xlu0 %279, %v266
  %v281 = vpop.permute.xlu0 %280
  %284 = vset.pattern.permute.xlu0 0
  %285 = vperm.xlu0 %284, %v267
  %v286 = vpop.permute.xlu0 %285
  %v288 = vmul.f32 %v255, %v271
  %v289 = vmul.f32 %v257, %v276
  %v290 = vmul.f32 %v260, %v281
  %v291 = vmul.f32 %v262, %v286
  %v292 = vld [vmem:[%s3] sm:$0xff]
  %v293 = vld [vmem:[%s3 + $0x8] sm:$0xff]
  %v294 = vld [vmem:[%s3 + $0x10] sm:$0xff]
  %v295 = vld [vmem:[%s3 + $0x18] sm:$0xff]
  %297 = vset.pattern.permute.xlu0 0
  %298 = vperm.xlu0 %297, %v292
  %v299 = vpop.permute.xlu0 %298
  %302 = vset.pattern.permute.xlu0 0
  %303 = vperm.xlu0 %302, %v293
  %v304 = vpop.permute.xlu0 %303
  %307 = vset.pattern.permute.xlu0 0
  %308 = vperm.xlu0 %307, %v294
  %v309 = vpop.permute.xlu0 %308
  %312 = vset.pattern.permute.xlu0 0
  %313 = vperm.xlu0 %312, %v295
  %v314 = vpop.permute.xlu0 %313
  %v316 = vadd.f32 %v288, %v299
  %v317 = vadd.f32 %v289, %v304
  %v318 = vadd.f32 %v290, %v309
  %v319 = vadd.f32 %v291, %v314
  %v320 = vmax.f32 %v316, 0.0
  %v321 = vmax.f32 %v317, 0.0
  %v322 = vmax.f32 %v318, 0.0
  %v323 = vmax.f32 %v319, 0.0
  %v324 = vpack.c.bf16 %v320, %v320
  %v325 = vpack.c.bf16 %v321, %v321
  %v326 = vpack.c.bf16 %v322, %v322
  %v327 = vpack.c.bf16 %v323, %v323
  %vm328 = vcmask 797696
  %329 = vst.msk [vmem:[%s4] sm:$0xf] %vm328, %v324
  %330 = vst.msk [vmem:[%s4 + $0x4] sm:$0xf] %vm328, %v325
  %331 = vst.msk [vmem:[%s4 + $0x8] sm:$0xf] %vm328, %v326
  %332 = vst.msk [vmem:[%s4 + $0xc] sm:$0xf] %vm328, %v327
  // Predicated region
  $region18: #{quoridor_forward.10} parent=0 // pred_check
    _
  $region19: #{quoridor_forward.10} parent=0 // pred_check_branch
    %334 = sbr.rel (0) target = $region21
  $region20: #{quoridor_forward.10} parent=0 // pred_region
    _
  $region21: #{quoridor_forward.10} parent=0 // pred_fallthru
    _
  // Predicated region
  $region22: #{quoridor_forward.10} parent=0 // pred_check
    _
  $region23: #{quoridor_forward.10} parent=0 // pred_check_branch
    %336 = sbr.rel (0) target = $region25
  $region24: #{quoridor_forward.10} parent=0 // pred_region
    _
  $region25: #{quoridor_forward.10} parent=0 // pred_fallthru
    _

// kernel: quoridor_forward.11
$region0: #{quoridor_forward.11}
  #allocation0 [shape = 'u32[]', space=smem, size = 0x4, offset = 0x4, fixed_abs, tag = 'smem constant byte address 0x4 - core index']
  #allocation1 [shape = 'u32[72,128]{1,0:T(1,128)}', space=vmem, size = 0x9000, scoped, tag = 'internal scratch']
  %s0 = inlined_call_operand.vmem [shape: bf16[288,50], index: 0, kind: input, shape index: {}]
  %s1 = inlined_call_operand.vmem [shape: bf16[32,288], index: 1, kind: input, shape index: {}]
  %s2 = inlined_call_operand.vmem [shape: f32[32,1], index: 2, kind: input, shape index: {}]
  %s3 = inlined_call_operand.vmem [shape: f32[32,1], index: 3, kind: input, shape index: {}]
  %s4 = inlined_call_operand.vmem [shape: bf16[32,50], index: 4, kind: output, shape index: {}]
  %s5 = sld [smem:[#allocation0]]
  $region26: #{quoridor_forward.11} parent=0
    _
  %s7 = ssub.s32 1, %s5
  %s8 = scalar_select 0, %s7, %s5
  // Predicated region
  $region2: #{quoridor_forward.11} parent=0 // pred_check
    _
  $region3: #{quoridor_forward.11} parent=0 // pred_check_branch
    %10 = sbr.rel (0) target = $region5
  $region4: #{quoridor_forward.11} parent=0 // pred_region
    _
  $region5: #{quoridor_forward.11} parent=0 // pred_fallthru
    _
  // Predicated region
  $region6: #{quoridor_forward.11} parent=0 // pred_check
    _
  $region7: #{quoridor_forward.11} parent=0 // pred_check_branch
    %12 = sbr.rel (0) target = $region9
  $region8: #{quoridor_forward.11} parent=0 // pred_region
    _
  $region9: #{quoridor_forward.11} parent=0 // pred_fallthru
    _
  // Predicated region
  $region10: #{quoridor_forward.11} parent=0 // pred_check
    _
  $region11: #{quoridor_forward.11} parent=0 // pred_check_branch
    %14 = sbr.rel (0) target = $region13
  $region12: #{quoridor_forward.11} parent=0 // pred_region
    _
  $region13: #{quoridor_forward.11} parent=0 // pred_fallthru
    _
  // Predicated region
  $region14: #{quoridor_forward.11} parent=0 // pred_check
    _
  $region15: #{quoridor_forward.11} parent=0 // pred_check_branch
    %16 = sbr.rel (0) target = $region17
  $region16: #{quoridor_forward.11} parent=0 // pred_region
    _
  $region17: #{quoridor_forward.11} parent=0 // pred_fallthru
    _
  %v18 = vld [vmem:[%s1] sm:$0xff]
  %v19 = vld [vmem:[%s1 + $0x8] sm:$0xf]
  %v20 = vld [vmem:[%s1 + $0xc] sm:$0xff]
  %v21 = vld [vmem:[%s1 + $0x14] sm:$0xf]
  %v22 = vld [vmem:[%s1 + $0x18] sm:$0xff]
  %v23 = vld [vmem:[%s1 + $0x20] sm:$0xf]
  %v24 = vld [vmem:[%s1 + $0x24] sm:$0xff]
  %v25 = vld [vmem:[%s1 + $0x2c] sm:$0xf]
  %v26 = vld [vmem:[%s0] sm:$0xf]
  %v27 = vld [vmem:[%s0 + $0x4] sm:$0xf]
  %v28 = vld [vmem:[%s0 + $0x8] sm:$0xf]
  %v29 = vld [vmem:[%s0 + $0xc] sm:$0xf]
  %v30 = vld [vmem:[%s0 + $0x10] sm:$0xf]
  %v31 = vld [vmem:[%s0 + $0x14] sm:$0xf]
  %v32 = vld [vmem:[%s0 + $0x18] sm:$0xf]
  %v33 = vld [vmem:[%s0 + $0x1c] sm:$0xf]
  %v34 = vld [vmem:[%s0 + $0x20] sm:$0xf]
  %v35 = vld [vmem:[%s0 + $0x24] sm:$0xf]
  %v36 = vld [vmem:[%s0 + $0x28] sm:$0xf]
  %v37 = vld [vmem:[%s0 + $0x2c] sm:$0xf]
  %v38 = vld [vmem:[%s0 + $0x30] sm:$0xf]
  %v39 = vld [vmem:[%s0 + $0x34] sm:$0xf]
  %v40 = vld [vmem:[%s0 + $0x38] sm:$0xf]
  %v41 = vld [vmem:[%s0 + $0x3c] sm:$0xf]
  %v42 = vld [vmem:[%s0 + $0x40] sm:$0xf]
  %v43 = vld [vmem:[%s0 + $0x44] sm:$0xf]
  %v44 = vld [vmem:[%s0 + $0x48] sm:$0xf]
  %v45 = vld [vmem:[%s0 + $0x4c] sm:$0xf]
  %v46 = vld [vmem:[%s0 + $0x50] sm:$0xf]
  %v47 = vld [vmem:[%s0 + $0x54] sm:$0xf]
  %v48 = vld [vmem:[%s0 + $0x58] sm:$0xf]
  %v49 = vld [vmem:[%s0 + $0x5c] sm:$0xf]
  %v50 = vld [vmem:[%s0 + $0x60] sm:$0xf]
  %v51 = vld [vmem:[%s0 + $0x64] sm:$0xf]
  %v52 = vld [vmem:[%s0 + $0x68] sm:$0xf]
  %v53 = vld [vmem:[%s0 + $0x6c] sm:$0xf]
  %v54 = vld [vmem:[%s0 + $0x70] sm:$0xf]
  %v55 = vld [vmem:[%s0 + $0x74] sm:$0xf]
  %v56 = vld [vmem:[%s0 + $0x78] sm:$0xf]
  %v57 = vld [vmem:[%s0 + $0x7c] sm:$0xf]
  %v58 = vld [vmem:[%s0 + $0x80] sm:$0xf]
  %v59 = vld [vmem:[%s0 + $0x84] sm:$0xf]
  %v60 = vld [vmem:[%s0 + $0x88] sm:$0xf]
  %v61 = vld [vmem:[%s0 + $0x8c] sm:$0xf]
  %v70 = vunpack.c.l.b16 %v18
  %v71 = vunpack.c.h.b16 %v18
  %v72 = vunpack.c.l.b16 %v19
  %v73 = vunpack.c.l.b16 %v20
  %v74 = vunpack.c.h.b16 %v20
  %v75 = vunpack.c.l.b16 %v21
  %v76 = vunpack.c.l.b16 %v22
  %v77 = vunpack.c.h.b16 %v22
  %v78 = vunpack.c.l.b16 %v23
  %v79 = vunpack.c.l.b16 %v24
  %v80 = vunpack.c.h.b16 %v24
  %v81 = vunpack.c.l.b16 %v25
  %v82 = vpack.c.b16 %v73, %v70
  %v83 = vpack.c.b16 %v74, %v71
  %v84 = vpack.c.b16 %v75, %v72
  %v85 = vpack.c.b16 %v79, %v76
  %v86 = vpack.c.b16 %v80, %v77
  %v87 = vpack.c.b16 %v81, %v78
  %v128 = vunpack.c.l.b16 %v26
  %v129 = vunpack.c.l.b16 %v27
  %v130 = vunpack.c.l.b16 %v28
  %v131 = vunpack.c.l.b16 %v29
  %v132 = vunpack.c.l.b16 %v30
  %v133 = vunpack.c.l.b16 %v31
  %v134 = vunpack.c.l.b16 %v32
  %v135 = vunpack.c.l.b16 %v33
  %v136 = vunpack.c.l.b16 %v34
  %v137 = vunpack.c.l.b16 %v35
  %v138 = vunpack.c.l.b16 %v36
  %v139 = vunpack.c.l.b16 %v37
  %v140 = vunpack.c.l.b16 %v38
  %v141 = vunpack.c.l.b16 %v39
  %v142 = vunpack.c.l.b16 %v40
  %v143 = vunpack.c.l.b16 %v41
  %v144 = vunpack.c.l.b16 %v42
  %v145 = vunpack.c.l.b16 %v43
  %v146 = vunpack.c.l.b16 %v44
  %v147 = vunpack.c.l.b16 %v45
  %v148 = vunpack.c.l.b16 %v46
  %v149 = vunpack.c.l.b16 %v47
  %v150 = vunpack.c.l.b16 %v48
  %v151 = vunpack.c.l.b16 %v49
  %v152 = vunpack.c.l.b16 %v50
  %v153 = vunpack.c.l.b16 %v51
  %v154 = vunpack.c.l.b16 %v52
  %v155 = vunpack.c.l.b16 %v53
  %v156 = vunpack.c.l.b16 %v54
  %v157 = vunpack.c.l.b16 %v55
  %v158 = vunpack.c.l.b16 %v56
  %v159 = vunpack.c.l.b16 %v57
  %v160 = vunpack.c.l.b16 %v58
  %v161 = vunpack.c.l.b16 %v59
  %v162 = vunpack.c.l.b16 %v60
  %v163 = vunpack.c.l.b16 %v61
  %v164 = vpack.c.b16 %v129, %v128
  %v165 = vpack.c.b16 %v131, %v130
  %v166 = vpack.c.b16 %v133, %v132
  %v167 = vpack.c.b16 %v135, %v134
  %v168 = vpack.c.b16 %v137, %v136
  %v169 = vpack.c.b16 %v139, %v138
  %v170 = vpack.c.b16 %v141, %v140
  %v171 = vpack.c.b16 %v143, %v142
  %v172 = vpack.c.b16 %v145, %v144
  %v173 = vpack.c.b16 %v147, %v146
  %v174 = vpack.c.b16 %v149, %v148
  %v175 = vpack.c.b16 %v151, %v150
  %v176 = vpack.c.b16 %v153, %v152
  %v177 = vpack.c.b16 %v155, %v154
  %v178 = vpack.c.b16 %v157, %v156
  %v179 = vpack.c.b16 %v159, %v158
  %v180 = vpack.c.b16 %v161, %v160
  %v181 = vpack.c.b16 %v163, %v162
  %vm200 = vcmask 261120
  %v202 = vsel %vm200, %v84, 0
  %v205 = vsel %vm200, %v87, 0
  %207 = vmatpush.bf16.msra.mxu0 %v171
  %208 = vmatpush.bf16.msra.mxu0 %v170
  %209 = vmatpush.bf16.msra.mxu0 %v169
  %210 = vmatpush.bf16.msra.mxu0 %v168
  %211 = vmatpush.bf16.msra.mxu0 %v167
  %212 = vmatpush.bf16.msra.mxu0 %v166
  %213 = vmatpush.bf16.msra.mxu0 %v165
  %214 = vmatpush.bf16.msra.mxu0 %v164
  %215 = vmatmul.bf16.gmra.mxu0 %v82
  %v216 = vpop.f32.mrf.mxu0
  %v217 = vadd.f32 0.0, %v216
  %v218 = vpop.f32.mrf.mxu0
  %v219 = vadd.f32 0.0, %v218
  %220 = vmatmul.bf16.gmra.mxu0 %v85
  %v221 = vpop.f32.mrf.mxu0
  %v222 = vadd.f32 0.0, %v221
  %v223 = vpop.f32.mrf.mxu0
  %v224 = vadd.f32 0.0, %v223
  %225 = vdwg.mxu0
  %226 = vmatpush.bf16.msra.mxu0 %v179
  %227 = vmatpush.bf16.msra.mxu0 %v178
  %228 = vmatpush.bf16.msra.mxu0 %v177
  %229 = vmatpush.bf16.msra.mxu0 %v176
  %230 = vmatpush.bf16.msra.mxu0 %v175
  %231 = vmatpush.bf16.msra.mxu0 %v174
  %232 = vmatpush.bf16.msra.mxu0 %v173
  %233 = vmatpush.bf16.msra.mxu0 %v172
  %234 = vmatmul.bf16.gmra.mxu0 %v83
  %v235 = vpop.f32.mrf.mxu0
  %v236 = vadd.f32 %v217, %v235
  %v237 = vpop.f32.mrf.mxu0
  %v238 = vadd.f32 %v219, %v237
  %239 = vmatmul.bf16.gmra.mxu0 %v86
  %v240 = vpop.f32.mrf.mxu0
  %v241 = vadd.f32 %v222, %v240
  %v242 = vpop.f32.mrf.mxu0
  %v243 = vadd.f32 %v224, %v242
  %244 = vdwg.mxu0
  %245 = vmatpush.bf16.msra.mxu0 0
  %246 = vmatpush.bf16.msra.mxu0 0
  %247 = vmatpush.bf16.msra.mxu0 0
  %248 = vmatpush.bf16.msra.mxu0 0
  %249 = vmatpush.bf16.msra.mxu0 0
  %250 = vmatpush.bf16.msra.mxu0 0
  %251 = vmatpush.bf16.msra.mxu0 %v181
  %252 = vmatpush.bf16.msra.mxu0 %v180
  %253 = vmatmul.bf16.gmra.mxu0 %v202
  %v254 = vpop.f32.mrf.mxu0
  %v255 = vadd.f32 %v236, %v254
  %v256 = vpop.f32.mrf.mxu0
  %v257 = vadd.f32 %v238, %v256
  %258 = vmatmul.bf16.gmra.mxu0 %v205
  %v259 = vpop.f32.mrf.mxu0
  %v260 = vadd.f32 %v241, %v259
  %v261 = vpop.f32.mrf.mxu0
  %v262 = vadd.f32 %v243, %v261
  %263 = vdwg.mxu0
  %v264 = vld [vmem:[%s2] sm:$0xff]
  %v265 = vld [vmem:[%s2 + $0x8] sm:$0xff]
  %v266 = vld [vmem:[%s2 + $0x10] sm:$0xff]
  %v267 = vld [vmem:[%s2 + $0x18] sm:$0xff]
  %269 = vset.pattern.permute.xlu0 0
  %270 = vperm.xlu0 %269, %v264
  %v271 = vpop.permute.xlu0 %270
  %274 = vset.pattern.permute.xlu0 0
  %275 = vperm.xlu0 %274, %v265
  %v276 = vpop.permute.xlu0 %275
  %279 = vset.pattern.permute.xlu0 0
  %280 = vperm.xlu0 %279, %v266
  %v281 = vpop.permute.xlu0 %280
  %284 = vset.pattern.permute.xlu0 0
  %285 = vperm.xlu0 %284, %v267
  %v286 = vpop.permute.xlu0 %285
  %v288 = vmul.f32 %v255, %v271
  %v289 = vmul.f32 %v257, %v276
  %v290 = vmul.f32 %v260, %v281
  %v291 = vmul.f32 %v262, %v286
  %v292 = vld [vmem:[%s3] sm:$0xff]
  %v293 = vld [vmem:[%s3 + $0x8] sm:$0xff]
  %v294 = vld [vmem:[%s3 + $0x10] sm:$0xff]
  %v295 = vld [vmem:[%s3 + $0x18] sm:$0xff]
  %297 = vset.pattern.permute.xlu0 0
  %298 = vperm.xlu0 %297, %v292
  %v299 = vpop.permute.xlu0 %298
  %302 = vset.pattern.permute.xlu0 0
  %303 = vperm.xlu0 %302, %v293
  %v304 = vpop.permute.xlu0 %303
  %307 = vset.pattern.permute.xlu0 0
  %308 = vperm.xlu0 %307, %v294
  %v309 = vpop.permute.xlu0 %308
  %312 = vset.pattern.permute.xlu0 0
  %313 = vperm.xlu0 %312, %v295
  %v314 = vpop.permute.xlu0 %313
  %v316 = vadd.f32 %v288, %v299
  %v317 = vadd.f32 %v289, %v304
  %v318 = vadd.f32 %v290, %v309
  %v319 = vadd.f32 %v291, %v314
  %v320 = vmax.f32 %v316, 0.0
  %v321 = vmax.f32 %v317, 0.0
  %v322 = vmax.f32 %v318, 0.0
  %v323 = vmax.f32 %v319, 0.0
  %v324 = vpack.c.bf16 %v320, %v320
  %v325 = vpack.c.bf16 %v321, %v321
  %v326 = vpack.c.bf16 %v322, %v322
  %v327 = vpack.c.bf16 %v323, %v323
  %vm328 = vcmask 404480
  %329 = vst.msk [vmem:[%s4] sm:$0xf] %vm328, %v324
  %330 = vst.msk [vmem:[%s4 + $0x4] sm:$0xf] %vm328, %v325
  %331 = vst.msk [vmem:[%s4 + $0x8] sm:$0xf] %vm328, %v326
  %332 = vst.msk [vmem:[%s4 + $0xc] sm:$0xf] %vm328, %v327
  // Predicated region
  $region18: #{quoridor_forward.11} parent=0 // pred_check
    _
  $region19: #{quoridor_forward.11} parent=0 // pred_check_branch
    %334 = sbr.rel (0) target = $region21
  $region20: #{quoridor_forward.11} parent=0 // pred_region
    _
  $region21: #{quoridor_forward.11} parent=0 // pred_fallthru
    _
  // Predicated region
  $region22: #{quoridor_forward.11} parent=0 // pred_check
    _
  $region23: #{quoridor_forward.11} parent=0 // pred_check_branch
    %336 = sbr.rel (0) target = $region25
  $region24: #{quoridor_forward.11} parent=0 // pred_region
    _
  $region25: #{quoridor_forward.11} parent=0 // pred_fallthru
    _

// kernel: quoridor_forward.15
$region0: #{quoridor_forward.15}
  #allocation0 [shape = 'u32[]', space=smem, size = 0x4, offset = 0x4, fixed_abs, tag = 'smem constant byte address 0x4 - core index']
  #allocation1 [shape = 'u32[72,128]{1,0:T(1,128)}', space=vmem, size = 0x9000, scoped, tag = 'internal scratch']
  %s0 = inlined_call_operand.vmem [shape: bf16[2,2048], index: 0, kind: input, shape index: {}]
  %s1 = inlined_call_operand.vmem [shape: bf16[2048,1024], index: 1, kind: input, shape index: {}]
  %s2 = inlined_call_operand.vmem [shape: f32[1,1024], index: 2, kind: input, shape index: {}]
  %s3 = inlined_call_operand.vmem [shape: f32[1,1024], index: 3, kind: input, shape index: {}]
  %s4 = inlined_call_operand.vmem [shape: bf16[1024,512], index: 4, kind: input, shape index: {}]
  %s5 = inlined_call_operand.vmem [shape: f32[1,512], index: 5, kind: input, shape index: {}]
  %s6 = inlined_call_operand.vmem [shape: f32[1,512], index: 6, kind: input, shape index: {}]
  %s7 = inlined_call_operand.vmem [shape: bf16[512,256], index: 7, kind: input, shape index: {}]
  %s8 = inlined_call_operand.vmem [shape: f32[1,256], index: 8, kind: input, shape index: {}]
  %s9 = inlined_call_operand.hbm [shape: f32[2,256], index: 9, kind: output, shape index: {0}]
  %s10 = inlined_call_operand.vmem [shape: f32[2,1], index: 10, kind: output, shape index: {1}]
  %11 = xla_tuple %s9, %s10
  %s12 = sld [smem:[#allocation0]]
  $region54: #{quoridor_forward.15} parent=0
    _
  %s14 = ssub.s32 1, %s12
  %s15 = scalar_select 0, %s14, %s12
  $region1: #{quoridor_forward.15} parent=0
    #allocation2 [shape = 'u8[2048]{0}', space=vmem, size = 0x800, scoped, tag = 'output window, operand 0, single buffered']
    #allocation3 [shape = 's32[1]{0}', space=sflag, size = 0x4, scoped, tag = 'scoped memory for quoridor_forward.15']
    %16 = vsyncpa [#allocation3], 0
    // Predicated region
    $region2: #{quoridor_forward.15} parent=1 // pred_check
      _
    $region3: #{quoridor_forward.15} parent=1 // pred_check_branch
      %18 = sbr.rel (0) target = $region5
    $region4: #{quoridor_forward.15} parent=1 // pred_region
      _
    $region5: #{quoridor_forward.15} parent=1 // pred_fallthru
      _
    // Predicated region
    $region6: #{quoridor_forward.15} parent=1 // pred_check
      _
    $region7: #{quoridor_forward.15} parent=1 // pred_check_branch
      %20 = sbr.rel (0) target = $region9
    $region8: #{quoridor_forward.15} parent=1 // pred_region
      _
    $region9: #{quoridor_forward.15} parent=1 // pred_fallthru
      _
    // Predicated region
    $region10: #{quoridor_forward.15} parent=1 // pred_check
      _
    $region11: #{quoridor_forward.15} parent=1 // pred_check_branch
      %22 = sbr.rel (0) target = $region13
    $region12: #{quoridor_forward.15} parent=1 // pred_region
      _
    $region13: #{quoridor_forward.15} parent=1 // pred_fallthru
      _
    // Predicated region
    $region14: #{quoridor_forward.15} parent=1 // pred_check
      _
    $region15: #{quoridor_forward.15} parent=1 // pred_check_branch
      %24 = sbr.rel (0) target = $region17
    $region16: #{quoridor_forward.15} parent=1 // pred_region
      _
    $region17: #{quoridor_forward.15} parent=1 // pred_fallthru
      _
    // Predicated region
    $region18: #{quoridor_forward.15} parent=1 // pred_check
      _
    $region19: #{quoridor_forward.15} parent=1 // pred_check_branch
      %26 = sbr.rel (0) target = $region21
    $region20: #{quoridor_forward.15} parent=1 // pred_region
      _
    $region21: #{quoridor_forward.15} parent=1 // pred_fallthru
      _
    // Predicated region
    $region22: #{quoridor_forward.15} parent=1 // pred_check
      _
    $region23: #{quoridor_forward.15} parent=1 // pred_check_branch
      %28 = sbr.rel (0) target = $region25
    $region24: #{quoridor_forward.15} parent=1 // pred_region
      _
    $region25: #{quoridor_forward.15} parent=1 // pred_fallthru
      _
    // Predicated region
    $region26: #{quoridor_forward.15} parent=1 // pred_check
      _
    $region27: #{quoridor_forward.15} parent=1 // pred_check_branch
      %30 = sbr.rel (0) target = $region29
    $region28: #{quoridor_forward.15} parent=1 // pred_region
      _
    $region29: #{quoridor_forward.15} parent=1 // pred_fallthru
      _
    // Predicated region
    $region30: #{quoridor_forward.15} parent=1 // pred_check
      _
    $region31: #{quoridor_forward.15} parent=1 // pred_check_branch
      %32 = sbr.rel (0) target = $region33
    $region32: #{quoridor_forward.15} parent=1 // pred_region
      _
    $region33: #{quoridor_forward.15} parent=1 // pred_fallthru
      _
    // Predicated region
    $region34: #{quoridor_forward.15} parent=1 // pred_check
      _
    $region35: #{quoridor_forward.15} parent=1 // pred_check_branch
      %34 = sbr.rel (0) target = $region37
    $region36: #{quoridor_forward.15} parent=1 // pred_region
      _
    $region37: #{quoridor_forward.15} parent=1 // pred_fallthru
      _
    %v35 = vld [vmem:[%s0] sm:$0xff]
    %v36 = vld [vmem:[%s0 + $0x8] sm:$0xff]
    %v37 = vld [vmem:[%s1] sm:$0xff]
    %v38 = vld [vmem:[%s1 + $0x8] sm:$0xff]
    %v39 = vld [vmem:[%s1 + $0x10] sm:$0xff]
    %v40 = vld [vmem:[%s1 + $0x18] sm:$0xff]
    %v41 = vld [vmem:[%s1 + $0x20] sm:$0xff]
    %v42 = vld [vmem:[%s1 + $0x28] sm:$0xff]
    %v43 = vld [vmem:[%s1 + $0x30] sm:$0xff]
    %v44 = vld [vmem:[%s1 + $0x38] sm:$0xff]
    %v45 = vld [vmem:[%s1 + $0x40] sm:$0xff]
    %v46 = vld [vmem:[%s1 + $0x48] sm:$0xff]
    %v47 = vld [vmem:[%s1 + $0x50] sm:$0xff]
    %v48 = vld [vmem:[%s1 + $0x58] sm:$0xff]
    %v49 = vld [vmem:[%s1 + $0x60] sm:$0xff]
    %v50 = vld [vmem:[%s1 + $0x68] sm:$0xff]
    %v51 = vld [vmem:[%s1 + $0x70] sm:$0xff]
    %v52 = vld [vmem:[%s1 + $0x78] sm:$0xff]
    %v53 = vld [vmem:[%s1 + $0x80] sm:$0xff]
    %v54 = vld [vmem:[%s1 + $0x88] sm:$0xff]
    %v55 = vld [vmem:[%s1 + $0x90] sm:$0xff]
    %v56 = vld [vmem:[%s1 + $0x98] sm:$0xff]
    %v57 = vld [vmem:[%s1 + $0xa0] sm:$0xff]
    %v58 = vld [vmem:[%s1 + $0xa8] sm:$0xff]
    %v59 = vld [vmem:[%s1 + $0xb0] sm:$0xff]
    %v60 = vld [vmem:[%s1 + $0xb8] sm:$0xff]
    %v61 = vld [vmem:[%s1 + $0xc0] sm:$0xff]
    %v62 = vld [vmem:[%s1 + $0xc8] sm:$0xff]
    %v63 = vld [vmem:[%s1 + $0xd0] sm:$0xff]
    %v64 = vld [vmem:[%s1 + $0xd8] sm:$0xff]
    %v65 = vld [vmem:[%s1 + $0xe0] sm:$0xff]
    %v66 = vld [vmem:[%s1 + $0xe8] sm:$0xff]
    %v67 = vld [vmem:[%s1 + $0xf0] sm:$0xff]
    %v68 = vld [vmem:[%s1 + $0xf8] sm:$0xff]
    %v69 = vld [vmem:[%s1 + $0x100] sm:$0xff]
    %v70 = vld [vmem:[%s1 + $0x108] sm:$0xff]
    %v71 = vld [vmem:[%s1 + $0x110] sm:$0xff]
    %v72 = vld [vmem:[%s1 + $0x118] sm:$0xff]
    %v73 = vld [vmem:[%s1 + $0x120] sm:$0xff]
    %v74 = vld [vmem:[%s1 + $0x128] sm:$0xff]
    %v75 = vld [vmem:[%s1 + $0x130] sm:$0xff]
    %v76 = vld [vmem:[%s1 + $0x138] sm:$0xff]
    %v77 = vld [vmem:[%s1 + $0x140] sm:$0xff]
    %v78 = vld [vmem:[%s1 + $0x148] sm:$0xff]
    %v79 = vld [vmem:[%s1 + $0x150] sm:$0xff]
    %v80 = vld [vmem:[%s1 + $0x158] sm:$0xff]
    %v81 = vld [vmem:[%s1 + $0x160] sm:$0xff]
    %v82 = vld [vmem:[%s1 + $0x168] sm:$0xff]
    %v83 = vld [vmem:[%s1 + $0x170] sm:$0xff]
    %v84 = vld [vmem:[%s1 + $0x178] sm:$0xff]
    %v85 = vld [vmem:[%s1 + $0x180] sm:$0xff]
    %v86 = vld [vmem:[%s1 + $0x188] sm:$0xff]
    %v87 = vld [vmem:[%s1 + $0x190] sm:$0xff]
    %v88 = vld [vmem:[%s1 + $0x198] sm:$0xff]
    %v89 = vld [vmem:[%s1 + $0x1a0] sm:$0xff]
    %v90 = vld [vmem:[%s1 + $0x1a8] sm:$0xff]
    %v91 = vld [vmem:[%s1 + $0x1b0] sm:$0xff]
    %v92 = vld [vmem:[%s1 + $0x1b8] sm:$0xff]
    %v93 = vld [vmem:[%s1 + $0x1c0] sm:$0xff]
    %v94 = vld [vmem:[%s1 + $0x1c8] sm:$0xff]
    %v95 = vld [vmem:[%s1 + $0x1d0] sm:$0xff]
    %v96 = vld [vmem:[%s1 + $0x1d8] sm:$0xff]
    %v97 = vld [vmem:[%s1 + $0x1e0] sm:$0xff]
    %v98 = vld [vmem:[%s1 + $0x1e8] sm:$0xff]
    %v99 = vld [vmem:[%s1 + $0x1f0] sm:$0xff]
    %v100 = vld [vmem:[%s1 + $0x1f8] sm:$0xff]
    %v101 = vld [vmem:[%s1 + $0x200] sm:$0xff]
    %v102 = vld [vmem:[%s1 + $0x208] sm:$0xff]
    %v103 = vld [vmem:[%s1 + $0x210] sm:$0xff]
    %v104 = vld [vmem:[%s1 + $0x218] sm:$0xff]
    %v105 = vld [vmem:[%s1 + $0x220] sm:$0xff]
    %v106 = vld [vmem:[%s1 + $0x228] sm:$0xff]
    %v107 = vld [vmem:[%s1 + $0x230] sm:$0xff]
    %v108 = vld [vmem:[%s1 + $0x238] sm:$0xff]
    %v109 = vld [vmem:[%s1 + $0x240] sm:$0xff]
    %v110 = vld [vmem:[%s1 + $0x248] sm:$0xff]
    %v111 = vld [vmem:[%s1 + $0x250] sm:$0xff]
    %v112 = vld [vmem:[%s1 + $0x258] sm:$0xff]
    %v113 = vld [vmem:[%s1 + $0x260] sm:$0xff]
    %v114 = vld [vmem:[%s1 + $0x268] sm:$0xff]
    %v115 = vld [vmem:[%s1 + $0x270] sm:$0xff]
    %v116 = vld [vmem:[%s1 + $0x278] sm:$0xff]
    %v117 = vld [vmem:[%s1 + $0x280] sm:$0xff]
    %v118 = vld [vmem:[%s1 + $0x288] sm:$0xff]
    %v119 = vld [vmem:[%s1 + $0x290] sm:$0xff]
    %v120 = vld [vmem:[%s1 + $0x298] sm:$0xff]
    %v121 = vld [vmem:[%s1 + $0x2a0] sm:$0xff]
    %v122 = vld [vmem:[%s1 + $0x2a8] sm:$0xff]
    %v123 = vld [vmem:[%s1 + $0x2b0] sm:$0xff]
    %v124 = vld [vmem:[%s1 + $0x2b8] sm:$0xff]
    %v125 = vld [vmem:[%s1 + $0x2c0] sm:$0xff]
    %v126 = vld [vmem:[%s1 + $0x2c8] sm:$0xff]
    %v127 = vld [vmem:[%s1 + $0x2d0] sm:$0xff]
    %v128 = vld [vmem:[%s1 + $0x2d8] sm:$0xff]
    %v129 = vld [vmem:[%s1 + $0x2e0] sm:$0xff]
    %v130 = vld [vmem:[%s1 + $0x2e8] sm:$0xff]
    %v131 = vld [vmem:[%s1 + $0x2f0] sm:$0xff]
    %v132 = vld [vmem:[%s1 + $0x2f8] sm:$0xff]
    %v133 = vld [vmem:[%s1 + $0x300] sm:$0xff]
    %v134 = vld [vmem:[%s1 + $0x308] sm:$0xff]
    %v135 = vld [vmem:[%s1 + $0x310] sm:$0xff]
    %v136 = vld [vmem:[%s1 + $0x318] sm:$0xff]
    %v137 = vld [vmem:[%s1 + $0x320] sm:$0xff]
    %v138 = vld [vmem:[%s1 + $0x328] sm:$0xff]
    %v139 = vld [vmem:[%s1 + $0x330] sm:$0xff]
    %v140 = vld [vmem:[%s1 + $0x338] sm:$0xff]
    %v141 = vld [vmem:[%s1 + $0x340] sm:$0xff]
    %v142 = vld [vmem:[%s1 + $0x348] sm:$0xff]
    %v143 = vld [vmem:[%s1 + $0x350] sm:$0xff]
    %v144 = vld [vmem:[%s1 + $0x358] sm:$0xff]
    %v145 = vld [vmem:[%s1 + $0x360] sm:$0xff]
    %v146 = vld [vmem:[%s1 + $0x368] sm:$0xff]
    %v147 = vld [vmem:[%s1 + $0x370] sm:$0xff]
    %v148 = vld [vmem:[%s1 + $0x378] sm:$0xff]
    %v149 = vld [vmem:[%s1 + $0x380] sm:$0xff]
    %v150 = vld [vmem:[%s1 + $0x388] sm:$0xff]
    %v151 = vld [vmem:[%s1 + $0x390] sm:$0xff]
    %v152 = vld [vmem:[%s1 + $0x398] sm:$0xff]
    %v153 = vld [vmem:[%s1 + $0x3a0] sm:$0xff]
    %v154 = vld [vmem:[%s1 + $0x3a8] sm:$0xff]
    %v155 = vld [vmem:[%s1 + $0x3b0] sm:$0xff]
    %v156 = vld [vmem:[%s1 + $0x3b8] sm:$0xff]
    %v157 = vld [vmem:[%s1 + $0x3c0] sm:$0xff]
    %v158 = vld [vmem:[%s1 + $0x3c8] sm:$0xff]
    %v159 = vld [vmem:[%s1 + $0x3d0] sm:$0xff]
    %v160 = vld [vmem:[%s1 + $0x3d8] sm:$0xff]
    %v161 = vld [vmem:[%s1 + $0x3e0] sm:$0xff]
    %v162 = vld [vmem:[%s1 + $0x3e8] sm:$0xff]
    %v163 = vld [vmem:[%s1 + $0x3f0] sm:$0xff]
    %v164 = vld [vmem:[%s1 + $0x3f8] sm:$0xff]
    %v165 = vld [vmem:[%s1 + $0x400] sm:$0xff]
    %v166 = vld [vmem:[%s1 + $0x408] sm:$0xff]
    %v167 = vld [vmem:[%s1 + $0x410] sm:$0xff]
    %v168 = vld [vmem:[%s1 + $0x418] sm:$0xff]
    %v169 = vld [vmem:[%s1 + $0x420] sm:$0xff]
    %v170 = vld [vmem:[%s1 + $0x428] sm:$0xff]
    %v171 = vld [vmem:[%s1 + $0x430] sm:$0xff]
    %v172 = vld [vmem:[%s1 + $0x438] sm:$0xff]
    %v173 = vld [vmem:[%s1 + $0x440] sm:$0xff]
    %v174 = vld [vmem:[%s1 + $0x448] sm:$0xff]
    %v175 = vld [vmem:[%s1 + $0x450] sm:$0xff]
    %v176 = vld [vmem:[%s1 + $0x458] sm:$0xff]
    %v177 = vld [vmem:[%s1 + $0x460] sm:$0xff]
    %v178 = vld [vmem:[%s1 + $0x468] sm:$0xff]
    %v179 = vld [vmem:[%s1 + $0x470] sm:$0xff]
    %v180 = vld [vmem:[%s1 + $0x478] sm:$0xff]
    %v181 = vld [vmem:[%s1 + $0x480] sm:$0xff]
    %v182 = vld [vmem:[%s1 + $0x488] sm:$0xff]
    %v183 = vld [vmem:[%s1 + $0x490] sm:$0xff]
    %v184 = vld [vmem:[%s1 + $0x498] sm:$0xff]
    %v185 = vld [vmem:[%s1 + $0x4a0] sm:$0xff]
    %v186 = vld [vmem:[%s1 + $0x4a8] sm:$0xff]
    %v187 = vld [vmem:[%s1 + $0x4b0] sm:$0xff]
    %v188 = vld [vmem:[%s1 + $0x4b8] sm:$0xff]
    %v189 = vld [vmem:[%s1 + $0x4c0] sm:$0xff]
    %v190 = vld [vmem:[%s1 + $0x4c8] sm:$0xff]
    %v191 = vld [vmem:[%s1 + $0x4d0] sm:$0xff]
    %v192 = vld [vmem:[%s1 + $0x4d8] sm:$0xff]
    %v193 = vld [vmem:[%s1 + $0x4e0] sm:$0xff]
    %v194 = vld [vmem:[%s1 + $0x4e8] sm:$0xff]
    %v195 = vld [vmem:[%s1 + $0x4f0] sm:$0xff]
    %v196 = vld [vmem:[%s1 + $0x4f8] sm:$0xff]
    %v197 = vld [vmem:[%s1 + $0x500] sm:$0xff]
    %v198 = vld [vmem:[%s1 + $0x508] sm:$0xff]
    %v199 = vld [vmem:[%s1 + $0x510] sm:$0xff]
    %v200 = vld [vmem:[%s1 + $0x518] sm:$0xff]
    %v201 = vld [vmem:[%s1 + $0x520] sm:$0xff]
    %v202 = vld [vmem:[%s1 + $0x528] sm:$0xff]
    %v203 = vld [vmem:[%s1 + $0x530] sm:$0xff]
    %v204 = vld [vmem:[%s1 + $0x538] sm:$0xff]
    %v205 = vld [vmem:[%s1 + $0x540] sm:$0xff]
    %v206 = vld [vmem:[%s1 + $0x548] sm:$0xff]
    %v207 = vld [vmem:[%s1 + $0x550] sm:$0xff]
    %v208 = vld [vmem:[%s1 + $0x558] sm:$0xff]
    %v209 = vld [vmem:[%s1 + $0x560] sm:$0xff]
    %v210 = vld [vmem:[%s1 + $0x568] sm:$0xff]
    %v211 = vld [vmem:[%s1 + $0x570] sm:$0xff]
    %v212 = vld [vmem:[%s1 + $0x578] sm:$0xff]
    %v213 = vld [vmem:[%s1 + $0x580] sm:$0xff]
    %v214 = vld [vmem:[%s1 + $0x588] sm:$0xff]
    %v215 = vld [vmem:[%s1 + $0x590] sm:$0xff]
    %v216 = vld [vmem:[%s1 + $0x598] sm:$0xff]
    %v217 = vld [vmem:[%s1 + $0x5a0] sm:$0xff]
    %v218 = vld [vmem:[%s1 + $0x5a8] sm:$0xff]
    %v219 = vld [vmem:[%s1 + $0x5b0] sm:$0xff]
    %v220 = vld [vmem:[%s1 + $0x5b8] sm:$0xff]
    %v221 = vld [vmem:[%s1 + $0x5c0] sm:$0xff]
    %v222 = vld [vmem:[%s1 + $0x5c8] sm:$0xff]
    %v223 = vld [vmem:[%s1 + $0x5d0] sm:$0xff]
    %v224 = vld [vmem:[%s1 + $0x5d8] sm:$0xff]
    %v225 = vld [vmem:[%s1 + $0x5e0] sm:$0xff]
    %v226 = vld [vmem:[%s1 + $0x5e8] sm:$0xff]
    %v227 = vld [vmem:[%s1 + $0x5f0] sm:$0xff]
    %v228 = vld [vmem:[%s1 + $0x5f8] sm:$0xff]
    %v229 = vld [vmem:[%s1 + $0x600] sm:$0xff]
    %v230 = vld [vmem:[%s1 + $0x608] sm:$0xff]
    %v231 = vld [vmem:[%s1 + $0x610] sm:$0xff]
    %v232 = vld [vmem:[%s1 + $0x618] sm:$0xff]
    %v233 = vld [vmem:[%s1 + $0x620] sm:$0xff]
    %v234 = vld [vmem:[%s1 + $0x628] sm:$0xff]
    %v235 = vld [vmem:[%s1 + $0x630] sm:$0xff]
    %v236 = vld [vmem:[%s1 + $0x638] sm:$0xff]
    %v237 = vld [vmem:[%s1 + $0x640] sm:$0xff]
    %v238 = vld [vmem:[%s1 + $0x648] sm:$0xff]
    %v239 = vld [vmem:[%s1 + $0x650] sm:$0xff]
    %v240 = vld [vmem:[%s1 + $0x658] sm:$0xff]
    %v241 = vld [vmem:[%s1 + $0x660] sm:$0xff]
    %v242 = vld [vmem:[%s1 + $0x668] sm:$0xff]
    %v243 = vld [vmem:[%s1 + $0x670] sm:$0xff]
    %v244 = vld [vmem:[%s1 + $0x678] sm:$0xff]
    %v245 = vld [vmem:[%s1 + $0x680] sm:$0xff]
    %v246 = vld [vmem:[%s1 + $0x688] sm:$0xff]
    %v247 = vld [vmem:[%s1 + $0x690] sm:$0xff]
    %v248 = vld [vmem:[%s1 + $0x698] sm:$0xff]
    %v249 = vld [vmem:[%s1 + $0x6a0] sm:$0xff]
    %v250 = vld [vmem:[%s1 + $0x6a8] sm:$0xff]
    %v251 = vld [vmem:[%s1 + $0x6b0] sm:$0xff]
    %v252 = vld [vmem:[%s1 + $0x6b8] sm:$0xff]
    %v253 = vld [vmem:[%s1 + $0x6c0] sm:$0xff]
    %v254 = vld [vmem:[%s1 + $0x6c8] sm:$0xff]
    %v255 = vld [vmem:[%s1 + $0x6d0] sm:$0xff]
    %v256 = vld [vmem:[%s1 + $0x6d8] sm:$0xff]
    %v257 = vld [vmem:[%s1 + $0x6e0] sm:$0xff]
    %v258 = vld [vmem:[%s1 + $0x6e8] sm:$0xff]
    %v259 = vld [vmem:[%s1 + $0x6f0] sm:$0xff]
    %v260 = vld [vmem:[%s1 + $0x6f8] sm:$0xff]
    %v261 = vld [vmem:[%s1 + $0x700] sm:$0xff]
    %v262 = vld [vmem:[%s1 + $0x708] sm:$0xff]
    %v263 = vld [vmem:[%s1 + $0x710] sm:$0xff]
    %v264 = vld [vmem:[%s1 + $0x718] sm:$0xff]
    %v265 = vld [vmem:[%s1 + $0x720] sm:$0xff]
    %v266 = vld [vmem:[%s1 + $0x728] sm:$0xff]
    %v267 = vld [vmem:[%s1 + $0x730] sm:$0xff]
    %v268 = vld [vmem:[%s1 + $0x738] sm:$0xff]
    %v269 = vld [vmem:[%s1 + $0x740] sm:$0xff]
    %v270 = vld [vmem:[%s1 + $0x748] sm:$0xff]
    %v271 = vld [vmem:[%s1 + $0x750] sm:$0xff]
    %v272 = vld [vmem:[%s1 + $0x758] sm:$0xff]
    %v273 = vld [vmem:[%s1 + $0x760] sm:$0xff]
    %v274 = vld [vmem:[%s1 + $0x768] sm:$0xff]
    %v275 = vld [vmem:[%s1 + $0x770] sm:$0xff]
    %v276 = vld [vmem:[%s1 + $0x778] sm:$0xff]
    %v277 = vld [vmem:[%s1 + $0x780] sm:$0xff]
    %v278 = vld [vmem:[%s1 + $0x788] sm:$0xff]
    %v279 = vld [vmem:[%s1 + $0x790] sm:$0xff]
    %v280 = vld [vmem:[%s1 + $0x798] sm:$0xff]
    %v281 = vld [vmem:[%s1 + $0x7a0] sm:$0xff]
    %v282 = vld [vmem:[%s1 + $0x7a8] sm:$0xff]
    %v283 = vld [vmem:[%s1 + $0x7b0] sm:$0xff]
    %v284 = vld [vmem:[%s1 + $0x7b8] sm:$0xff]
    %v285 = vld [vmem:[%s1 + $0x7c0] sm:$0xff]
    %v286 = vld [vmem:[%s1 + $0x7c8] sm:$0xff]
    %v287 = vld [vmem:[%s1 + $0x7d0] sm:$0xff]
    %v288 = vld [vmem:[%s1 + $0x7d8] sm:$0xff]
    %v289 = vld [vmem:[%s1 + $0x7e0] sm:$0xff]
    %v290 = vld [vmem:[%s1 + $0x7e8] sm:$0xff]
    %v291 = vld [vmem:[%s1 + $0x7f0] sm:$0xff]
    %v292 = vld [vmem:[%s1 + $0x7f8] sm:$0xff]
    %v293 = vld [vmem:[%s1 + $0x800] sm:$0xff]
    %v294 = vld [vmem:[%s1 + $0x808] sm:$0xff]
    %v295 = vld [vmem:[%s1 + $0x810] sm:$0xff]
    %v296 = vld [vmem:[%s1 + $0x818] sm:$0xff]
    %v297 = vld [vmem:[%s1 + $0x820] sm:$0xff]
    %v298 = vld [vmem:[%s1 + $0x828] sm:$0xff]
    %v299 = vld [vmem:[%s1 + $0x830] sm:$0xff]
    %v300 = vld [vmem:[%s1 + $0x838] sm:$0xff]
    %v301 = vld [vmem:[%s1 + $0x840] sm:$0xff]
    %v302 = vld [vmem:[%s1 + $0x848] sm:$0xff]
    %v303 = vld [vmem:[%s1 + $0x850] sm:$0xff]
    %v304 = vld [vmem:[%s1 + $0x858] sm:$0xff]
    %v305 = vld [vmem:[%s1 + $0x860] sm:$0xff]
    %v306 = vld [vmem:[%s1 + $0x868] sm:$0xff]
    %v307 = vld [vmem:[%s1 + $0x870] sm:$0xff]
    %v308 = vld [vmem:[%s1 + $0x878] sm:$0xff]
    %v309 = vld [vmem:[%s1 + $0x880] sm:$0xff]
    %v310 = vld [vmem:[%s1 + $0x888] sm:$0xff]
    %v311 = vld [vmem:[%s1 + $0x890] sm:$0xff]
    %v312 = vld [vmem:[%s1 + $0x898] sm:$0xff]
    %v313 = vld [vmem:[%s1 + $0x8a0] sm:$0xff]
    %v314 = vld [vmem:[%s1 + $0x8a8] sm:$0xff]
    %v315 = vld [vmem:[%s1 + $0x8b0] sm:$0xff]
    %v316 = vld [vmem:[%s1 + $0x8b8] sm:$0xff]
    %v317 = vld [vmem:[%s1 + $0x8c0] sm:$0xff]
    %v318 = vld [vmem:[%s1 + $0x8c8] sm:$0xff]
    %v319 = vld [vmem:[%s1 + $0x8d0] sm:$0xff]
    %v320 = vld [vmem:[%s1 + $0x8d8] sm:$0xff]
    %v321 = vld [vmem:[%s1 + $0x8e0] sm:$0xff]
    %v322 = vld [vmem:[%s1 + $0x8e8] sm:$0xff]
    %v323 = vld [vmem:[%s1 + $0x8f0] sm:$0xff]
    %v324 = vld [vmem:[%s1 + $0x8f8] sm:$0xff]
    %v325 = vld [vmem:[%s1 + $0x900] sm:$0xff]
    %v326 = vld [vmem:[%s1 + $0x908] sm:$0xff]
    %v327 = vld [vmem:[%s1 + $0x910] sm:$0xff]
    %v328 = vld [vmem:[%s1 + $0x918] sm:$0xff]
    %v329 = vld [vmem:[%s1 + $0x920] sm:$0xff]
    %v330 = vld [vmem:[%s1 + $0x928] sm:$0xff]
    %v331 = vld [vmem:[%s1 + $0x930] sm:$0xff]
    %v332 = vld [vmem:[%s1 + $0x938] sm:$0xff]
    %v333 = vld [vmem:[%s1 + $0x940] sm:$0xff]
    %v334 = vld [vmem:[%s1 + $0x948] sm:$0xff]
    %v335 = vld [vmem:[%s1 + $0x950] sm:$0xff]
    %v336 = vld [vmem:[%s1 + $0x958] sm:$0xff]
    %v337 = vld [vmem:[%s1 + $0x960] sm:$0xff]
    %v338 = vld [vmem:[%s1 + $0x968] sm:$0xff]
    %v339 = vld [vmem:[%s1 + $0x970] sm:$0xff]
    %v340 = vld [vmem:[%s1 + $0x978] sm:$0xff]
    %v341 = vld [vmem:[%s1 + $0x980] sm:$0xff]
    %v342 = vld [vmem:[%s1 + $0x988] sm:$0xff]
    %v343 = vld [vmem:[%s1 + $0x990] sm:$0xff]
    %v344 = vld [vmem:[%s1 + $0x998] sm:$0xff]
    %v345 = vld [vmem:[%s1 + $0x9a0] sm:$0xff]
    %v346 = vld [vmem:[%s1 + $0x9a8] sm:$0xff]
    %v347 = vld [vmem:[%s1 + $0x9b0] sm:$0xff]
    %v348 = vld [vmem:[%s1 + $0x9b8] sm:$0xff]
    %v349 = vld [vmem:[%s1 + $0x9c0] sm:$0xff]
    %v350 = vld [vmem:[%s1 + $0x9c8] sm:$0xff]
    %v351 = vld [vmem:[%s1 + $0x9d0] sm:$0xff]
    %v352 = vld [vmem:[%s1 + $0x9d8] sm:$0xff]
    %v353 = vld [vmem:[%s1 + $0x9e0] sm:$0xff]
    %v354 = vld [vmem:[%s1 + $0x9e8] sm:$0xff]
    %v355 = vld [vmem:[%s1 + $0x9f0] sm:$0xff]
    %v356 = vld [vmem:[%s1 + $0x9f8] sm:$0xff]
    %v357 = vld [vmem:[%s1 + $0xa00] sm:$0xff]
    %v358 = vld [vmem:[%s1 + $0xa08] sm:$0xff]
    %v359 = vld [vmem:[%s1 + $0xa10] sm:$0xff]
    %v360 = vld [vmem:[%s1 + $0xa18] sm:$0xff]
    %v361 = vld [vmem:[%s1 + $0xa20] sm:$0xff]
    %v362 = vld [vmem:[%s1 + $0xa28] sm:$0xff]
    %v363 = vld [vmem:[%s1 + $0xa30] sm:$0xff]
    %v364 = vld [vmem:[%s1 + $0xa38] sm:$0xff]
    %v365 = vld [vmem:[%s1 + $0xa40] sm:$0xff]
    %v366 = vld [vmem:[%s1 + $0xa48] sm:$0xff]
    %v367 = vld [vmem:[%s1 + $0xa50] sm:$0xff]
    %v368 = vld [vmem:[%s1 + $0xa58] sm:$0xff]
    %v369 = vld [vmem:[%s1 + $0xa60] sm:$0xff]
    %v370 = vld [vmem:[%s1 + $0xa68] sm:$0xff]
    %v371 = vld [vmem:[%s1 + $0xa70] sm:$0xff]
    %v372 = vld [vmem:[%s1 + $0xa78] sm:$0xff]
    %v373 = vld [vmem:[%s1 + $0xa80] sm:$0xff]
    %v374 = vld [vmem:[%s1 + $0xa88] sm:$0xff]
    %v375 = vld [vmem:[%s1 + $0xa90] sm:$0xff]
    %v376 = vld [vmem:[%s1 + $0xa98] sm:$0xff]
    %v377 = vld [vmem:[%s1 + $0xaa0] sm:$0xff]
    %v378 = vld [vmem:[%s1 + $0xaa8] sm:$0xff]
    %v379 = vld [vmem:[%s1 + $0xab0] sm:$0xff]
    %v380 = vld [vmem:[%s1 + $0xab8] sm:$0xff]
    %v381 = vld [vmem:[%s1 + $0xac0] sm:$0xff]
    %v382 = vld [vmem:[%s1 + $0xac8] sm:$0xff]
    %v383 = vld [vmem:[%s1 + $0xad0] sm:$0xff]
    %v384 = vld [vmem:[%s1 + $0xad8] sm:$0xff]
    %v385 = vld [vmem:[%s1 + $0xae0] sm:$0xff]
    %v386 = vld [vmem:[%s1 + $0xae8] sm:$0xff]
    %v387 = vld [vmem:[%s1 + $0xaf0] sm:$0xff]
    %v388 = vld [vmem:[%s1 + $0xaf8] sm:$0xff]
    %v389 = vld [vmem:[%s1 + $0xb00] sm:$0xff]
    %v390 = vld [vmem:[%s1 + $0xb08] sm:$0xff]
    %v391 = vld [vmem:[%s1 + $0xb10] sm:$0xff]
    %v392 = vld [vmem:[%s1 + $0xb18] sm:$0xff]
    %v393 = vld [vmem:[%s1 + $0xb20] sm:$0xff]
    %v394 = vld [vmem:[%s1 + $0xb28] sm:$0xff]
    %v395 = vld [vmem:[%s1 + $0xb30] sm:$0xff]
    %v396 = vld [vmem:[%s1 + $0xb38] sm:$0xff]
    %v397 = vld [vmem:[%s1 + $0xb40] sm:$0xff]
    %v398 = vld [vmem:[%s1 + $0xb48] sm:$0xff]
    %v399 = vld [vmem:[%s1 + $0xb50] sm:$0xff]
    %v400 = vld [vmem:[%s1 + $0xb58] sm:$0xff]
    %v401 = vld [vmem:[%s1 + $0xb60] sm:$0xff]
    %v402 = vld [vmem:[%s1 + $0xb68] sm:$0xff]
    %v403 = vld [vmem:[%s1 + $0xb70] sm:$0xff]
    %v404 = vld [vmem:[%s1 + $0xb78] sm:$0xff]
    %v405 = vld [vmem:[%s1 + $0xb80] sm:$0xff]
    %v406 = vld [vmem:[%s1 + $0xb88] sm:$0xff]
    %v407 = vld [vmem:[%s1 + $0xb90] sm:$0xff]
    %v408 = vld [vmem:[%s1 + $0xb98] sm:$0xff]
    %v409 = vld [vmem:[%s1 + $0xba0] sm:$0xff]
    %v410 = vld [vmem:[%s1 + $0xba8] sm:$0xff]
    %v411 = vld [vmem:[%s1 + $0xbb0] sm:$0xff]
    %v412 = vld [vmem:[%s1 + $0xbb8] sm:$0xff]
    %v413 = vld [vmem:[%s1 + $0xbc0] sm:$0xff]
    %v414 = vld [vmem:[%s1 + $0xbc8] sm:$0xff]
    %v415 = vld [vmem:[%s1 + $0xbd0] sm:$0xff]
    %v416 = vld [vmem:[%s1 + $0xbd8] sm:$0xff]
    %v417 = vld [vmem:[%s1 + $0xbe0] sm:$0xff]
    %v418 = vld [vmem:[%s1 + $0xbe8] sm:$0xff]
    %v419 = vld [vmem:[%s1 + $0xbf0] sm:$0xff]
    %v420 = vld [vmem:[%s1 + $0xbf8] sm:$0xff]
    %v421 = vld [vmem:[%s1 + $0xc00] sm:$0xff]
    %v422 = vld [vmem:[%s1 + $0xc08] sm:$0xff]
    %v423 = vld [vmem:[%s1 + $0xc10] sm:$0xff]
    %v424 = vld [vmem:[%s1 + $0xc18] sm:$0xff]
    %v425 = vld [vmem:[%s1 + $0xc20] sm:$0xff]
    %v426 = vld [vmem:[%s1 + $0xc28] sm:$0xff]
    %v427 = vld [vmem:[%s1 + $0xc30] sm:$0xff]
    %v428 = vld [vmem:[%s1 + $0xc38] sm:$0xff]
    %v429 = vld [vmem:[%s1 + $0xc40] sm:$0xff]
    %v430 = vld [vmem:[%s1 + $0xc48] sm:$0xff]
    %v431 = vld [vmem:[%s1 + $0xc50] sm:$0xff]
    %v432 = vld [vmem:[%s1 + $0xc58] sm:$0xff]
    %v433 = vld [vmem:[%s1 + $0xc60] sm:$0xff]
    %v434 = vld [vmem:[%s1 + $0xc68] sm:$0xff]
    %v435 = vld [vmem:[%s1 + $0xc70] sm:$0xff]
    %v436 = vld [vmem:[%s1 + $0xc78] sm:$0xff]
    %v437 = vld [vmem:[%s1 + $0xc80] sm:$0xff]
    %v438 = vld [vmem:[%s1 + $0xc88] sm:$0xff]
    %v439 = vld [vmem:[%s1 + $0xc90] sm:$0xff]
    %v440 = vld [vmem:[%s1 + $0xc98] sm:$0xff]
    %v441 = vld [vmem:[%s1 + $0xca0] sm:$0xff]
    %v442 = vld [vmem:[%s1 + $0xca8] sm:$0xff]
    %v443 = vld [vmem:[%s1 + $0xcb0] sm:$0xff]
    %v444 = vld [vmem:[%s1 + $0xcb8] sm:$0xff]
    %v445 = vld [vmem:[%s1 + $0xcc0] sm:$0xff]
    %v446 = vld [vmem:[%s1 + $0xcc8] sm:$0xff]
    %v447 = vld [vmem:[%s1 + $0xcd0] sm:$0xff]
    %v448 = vld [vmem:[%s1 + $0xcd8] sm:$0xff]
    %v449 = vld [vmem:[%s1 + $0xce0] sm:$0xff]
    %v450 = vld [vmem:[%s1 + $0xce8] sm:$0xff]
    %v451 = vld [vmem:[%s1 + $0xcf0] sm:$0xff]
    %v452 = vld [vmem:[%s1 + $0xcf8] sm:$0xff]
    %v453 = vld [vmem:[%s1 + $0xd00] sm:$0xff]
    %v454 = vld [vmem:[%s1 + $0xd08] sm:$0xff]
    %v455 = vld [vmem:[%s1 + $0xd10] sm:$0xff]
    %v456 = vld [vmem:[%s1 + $0xd18] sm:$0xff]
    %v457 = vld [vmem:[%s1 + $0xd20] sm:$0xff]
    %v458 = vld [vmem:[%s1 + $0xd28] sm:$0xff]
    %v459 = vld [vmem:[%s1 + $0xd30] sm:$0xff]
    %v460 = vld [vmem:[%s1 + $0xd38] sm:$0xff]
    %v461 = vld [vmem:[%s1 + $0xd40] sm:$0xff]
    %v462 = vld [vmem:[%s1 + $0xd48] sm:$0xff]
    %v463 = vld [vmem:[%s1 + $0xd50] sm:$0xff]
    %v464 = vld [vmem:[%s1 + $0xd58] sm:$0xff]
    %v465 = vld [vmem:[%s1 + $0xd60] sm:$0xff]
    %v466 = vld [vmem:[%s1 + $0xd68] sm:$0xff]
    %v467 = vld [vmem:[%s1 + $0xd70] sm:$0xff]
    %v468 = vld [vmem:[%s1 + $0xd78] sm:$0xff]
    %v469 = vld [vmem:[%s1 + $0xd80] sm:$0xff]
    %v470 = vld [vmem:[%s1 + $0xd88] sm:$0xff]
    %v471 = vld [vmem:[%s1 + $0xd90] sm:$0xff]
    %v472 = vld [vmem:[%s1 + $0xd98] sm:$0xff]
    %v473 = vld [vmem:[%s1 + $0xda0] sm:$0xff]
    %v474 = vld [vmem:[%s1 + $0xda8] sm:$0xff]
    %v475 = vld [vmem:[%s1 + $0xdb0] sm:$0xff]
    %v476 = vld [vmem:[%s1 + $0xdb8] sm:$0xff]
    %v477 = vld [vmem:[%s1 + $0xdc0] sm:$0xff]
    %v478 = vld [vmem:[%s1 + $0xdc8] sm:$0xff]
    %v479 = vld [vmem:[%s1 + $0xdd0] sm:$0xff]
    %v480 = vld [vmem:[%s1 + $0xdd8] sm:$0xff]
    %v481 = vld [vmem:[%s1 + $0xde0] sm:$0xff]
    %v482 = vld [vmem:[%s1 + $0xde8] sm:$0xff]
    %v483 = vld [vmem:[%s1 + $0xdf0] sm:$0xff]
    %v484 = vld [vmem:[%s1 + $0xdf8] sm:$0xff]
    %v485 = vld [vmem:[%s1 + $0xe00] sm:$0xff]
    %v486 = vld [vmem:[%s1 + $0xe08] sm:$0xff]
    %v487 = vld [vmem:[%s1 + $0xe10] sm:$0xff]
    %v488 = vld [vmem:[%s1 + $0xe18] sm:$0xff]
    %v489 = vld [vmem:[%s1 + $0xe20] sm:$0xff]
    %v490 = vld [vmem:[%s1 + $0xe28] sm:$0xff]
    %v491 = vld [vmem:[%s1 + $0xe30] sm:$0xff]
    %v492 = vld [vmem:[%s1 + $0xe38] sm:$0xff]
    %v493 = vld [vmem:[%s1 + $0xe40] sm:$0xff]
    %v494 = vld [vmem:[%s1 + $0xe48] sm:$0xff]
    %v495 = vld [vmem:[%s1 + $0xe50] sm:$0xff]
    %v496 = vld [vmem:[%s1 + $0xe58] sm:$0xff]
    %v497 = vld [vmem:[%s1 + $0xe60] sm:$0xff]
    %v498 = vld [vmem:[%s1 + $0xe68] sm:$0xff]
    %v499 = vld [vmem:[%s1 + $0xe70] sm:$0xff]
    %v500 = vld [vmem:[%s1 + $0xe78] sm:$0xff]
    %v501 = vld [vmem:[%s1 + $0xe80] sm:$0xff]
    %v502 = vld [vmem:[%s1 + $0xe88] sm:$0xff]
    %v503 = vld [vmem:[%s1 + $0xe90] sm:$0xff]
    %v504 = vld [vmem:[%s1 + $0xe98] sm:$0xff]
    %v505 = vld [vmem:[%s1 + $0xea0] sm:$0xff]
    %v506 = vld [vmem:[%s1 + $0xea8] sm:$0xff]
    %v507 = vld [vmem:[%s1 + $0xeb0] sm:$0xff]
    %v508 = vld [vmem:[%s1 + $0xeb8] sm:$0xff]
    %v509 = vld [vmem:[%s1 + $0xec0] sm:$0xff]
    %v510 = vld [vmem:[%s1 + $0xec8] sm:$0xff]
    %v511 = vld [vmem:[%s1 + $0xed0] sm:$0xff]
    %v512 = vld [vmem:[%s1 + $0xed8] sm:$0xff]
    %v513 = vld [vmem:[%s1 + $0xee0] sm:$0xff]
    %v514 = vld [vmem:[%s1 + $0xee8] sm:$0xff]
    %v515 = vld [vmem:[%s1 + $0xef0] sm:$0xff]
    %v516 = vld [vmem:[%s1 + $0xef8] sm:$0xff]
    %v517 = vld [vmem:[%s1 + $0xf00] sm:$0xff]
    %v518 = vld [vmem:[%s1 + $0xf08] sm:$0xff]
    %v519 = vld [vmem:[%s1 + $0xf10] sm:$0xff]
    %v520 = vld [vmem:[%s1 + $0xf18] sm:$0xff]
    %v521 = vld [vmem:[%s1 + $0xf20] sm:$0xff]
    %v522 = vld [vmem:[%s1 + $0xf28] sm:$0xff]
    %v523 = vld [vmem:[%s1 + $0xf30] sm:$0xff]
    %v524 = vld [vmem:[%s1 + $0xf38] sm:$0xff]
    %v525 = vld [vmem:[%s1 + $0xf40] sm:$0xff]
    %v526 = vld [vmem:[%s1 + $0xf48] sm:$0xff]
    %v527 = vld [vmem:[%s1 + $0xf50] sm:$0xff]
    %v528 = vld [vmem:[%s1 + $0xf58] sm:$0xff]
    %v529 = vld [vmem:[%s1 + $0xf60] sm:$0xff]
    %v530 = vld [vmem:[%s1 + $0xf68] sm:$0xff]
    %v531 = vld [vmem:[%s1 + $0xf70] sm:$0xff]
    %v532 = vld [vmem:[%s1 + $0xf78] sm:$0xff]
    %v533 = vld [vmem:[%s1 + $0xf80] sm:$0xff]
    %v534 = vld [vmem:[%s1 + $0xf88] sm:$0xff]
    %v535 = vld [vmem:[%s1 + $0xf90] sm:$0xff]
    %v536 = vld [vmem:[%s1 + $0xf98] sm:$0xff]
    %v537 = vld [vmem:[%s1 + $0xfa0] sm:$0xff]
    %v538 = vld [vmem:[%s1 + $0xfa8] sm:$0xff]
    %v539 = vld [vmem:[%s1 + $0xfb0] sm:$0xff]
    %v540 = vld [vmem:[%s1 + $0xfb8] sm:$0xff]
    %v541 = vld [vmem:[%s1 + $0xfc0] sm:$0xff]
    %v542 = vld [vmem:[%s1 + $0xfc8] sm:$0xff]
    %v543 = vld [vmem:[%s1 + $0xfd0] sm:$0xff]
    %v544 = vld [vmem:[%s1 + $0xfd8] sm:$0xff]
    %v545 = vld [vmem:[%s1 + $0xfe0] sm:$0xff]
    %v546 = vld [vmem:[%s1 + $0xfe8] sm:$0xff]
    %v547 = vld [vmem:[%s1 + $0xff0] sm:$0xff]
    %v548 = vld [vmem:[%s1 + $0xff8] sm:$0xff]
    %v549 = vld [vmem:[%s1 + $0x1000] sm:$0xff]
    %v550 = vld [vmem:[%s1 + $0x1008] sm:$0xff]
    %v551 = vld [vmem:[%s1 + $0x1010] sm:$0xff]
    %v552 = vld [vmem:[%s1 + $0x1018] sm:$0xff]
    %v553 = vld [vmem:[%s1 + $0x1020] sm:$0xff]
    %v554 = vld [vmem:[%s1 + $0x1028] sm:$0xff]
    %v555 = vld [vmem:[%s1 + $0x1030] sm:$0xff]
    %v556 = vld [vmem:[%s1 + $0x1038] sm:$0xff]
    %v557 = vld [vmem:[%s1 + $0x1040] sm:$0xff]
    %v558 = vld [vmem:[%s1 + $0x1048] sm:$0xff]
    %v559 = vld [vmem:[%s1 + $0x1050] sm:$0xff]
    %v560 = vld [vmem:[%s1 + $0x1058] sm:$0xff]
    %v561 = vld [vmem:[%s1 + $0x1060] sm:$0xff]
    %v562 = vld [vmem:[%s1 + $0x1068] sm:$0xff]
    %v563 = vld [vmem:[%s1 + $0x1070] sm:$0xff]
    %v564 = vld [vmem:[%s1 + $0x1078] sm:$0xff]
    %v565 = vld [vmem:[%s1 + $0x1080] sm:$0xff]
    %v566 = vld [vmem:[%s1 + $0x1088] sm:$0xff]
    %v567 = vld [vmem:[%s1 + $0x1090] sm:$0xff]
    %v568 = vld [vmem:[%s1 + $0x1098] sm:$0xff]
    %v569 = vld [vmem:[%s1 + $0x10a0] sm:$0xff]
    %v570 = vld [vmem:[%s1 + $0x10a8] sm:$0xff]
    %v571 = vld [vmem:[%s1 + $0x10b0] sm:$0xff]
    %v572 = vld [vmem:[%s1 + $0x10b8] sm:$0xff]
    %v573 = vld [vmem:[%s1 + $0x10c0] sm:$0xff]
    %v574 = vld [vmem:[%s1 + $0x10c8] sm:$0xff]
    %v575 = vld [vmem:[%s1 + $0x10d0] sm:$0xff]
    %v576 = vld [vmem:[%s1 + $0x10d8] sm:$0xff]
    %v577 = vld [vmem:[%s1 + $0x10e0] sm:$0xff]
    %v578 = vld [vmem:[%s1 + $0x10e8] sm:$0xff]
    %v579 = vld [vmem:[%s1 + $0x10f0] sm:$0xff]
    %v580 = vld [vmem:[%s1 + $0x10f8] sm:$0xff]
    %v581 = vld [vmem:[%s1 + $0x1100] sm:$0xff]
    %v582 = vld [vmem:[%s1 + $0x1108] sm:$0xff]
    %v583 = vld [vmem:[%s1 + $0x1110] sm:$0xff]
    %v584 = vld [vmem:[%s1 + $0x1118] sm:$0xff]
    %v585 = vld [vmem:[%s1 + $0x1120] sm:$0xff]
    %v586 = vld [vmem:[%s1 + $0x1128] sm:$0xff]
    %v587 = vld [vmem:[%s1 + $0x1130] sm:$0xff]
    %v588 = vld [vmem:[%s1 + $0x1138] sm:$0xff]
    %v589 = vld [vmem:[%s1 + $0x1140] sm:$0xff]
    %v590 = vld [vmem:[%s1 + $0x1148] sm:$0xff]
    %v591 = vld [vmem:[%s1 + $0x1150] sm:$0xff]
    %v592 = vld [vmem:[%s1 + $0x1158] sm:$0xff]
    %v593 = vld [vmem:[%s1 + $0x1160] sm:$0xff]
    %v594 = vld [vmem:[%s1 + $0x1168] sm:$0xff]
    %v595 = vld [vmem:[%s1 + $0x1170] sm:$0xff]
    %v596 = vld [vmem:[%s1 + $0x1178] sm:$0xff]
    %v597 = vld [vmem:[%s1 + $0x1180] sm:$0xff]
    %v598 = vld [vmem:[%s1 + $0x1188] sm:$0xff]
    %v599 = vld [vmem:[%s1 + $0x1190] sm:$0xff]
    %v600 = vld [vmem:[%s1 + $0x1198] sm:$0xff]
    %v601 = vld [vmem:[%s1 + $0x11a0] sm:$0xff]
    %v602 = vld [vmem:[%s1 + $0x11a8] sm:$0xff]
    %v603 = vld [vmem:[%s1 + $0x11b0] sm:$0xff]
    %v604 = vld [vmem:[%s1 + $0x11b8] sm:$0xff]
    %v605 = vld [vmem:[%s1 + $0x11c0] sm:$0xff]
    %v606 = vld [vmem:[%s1 + $0x11c8] sm:$0xff]
    %v607 = vld [vmem:[%s1 + $0x11d0] sm:$0xff]
    %v608 = vld [vmem:[%s1 + $0x11d8] sm:$0xff]
    %v609 = vld [vmem:[%s1 + $0x11e0] sm:$0xff]
    %v610 = vld [vmem:[%s1 + $0x11e8] sm:$0xff]
    %v611 = vld [vmem:[%s1 + $0x11f0] sm:$0xff]
    %v612 = vld [vmem:[%s1 + $0x11f8] sm:$0xff]
    %v613 = vld [vmem:[%s1 + $0x1200] sm:$0xff]
    %v614 = vld [vmem:[%s1 + $0x1208] sm:$0xff]
    %v615 = vld [vmem:[%s1 + $0x1210] sm:$0xff]
    %v616 = vld [vmem:[%s1 + $0x1218] sm:$0xff]
    %v617 = vld [vmem:[%s1 + $0x1220] sm:$0xff]
    %v618 = vld [vmem:[%s1 + $0x1228] sm:$0xff]
    %v619 = vld [vmem:[%s1 + $0x1230] sm:$0xff]
    %v620 = vld [vmem:[%s1 + $0x1238] sm:$0xff]
    %v621 = vld [vmem:[%s1 + $0x1240] sm:$0xff]
    %v622 = vld [vmem:[%s1 + $0x1248] sm:$0xff]
    %v623 = vld [vmem:[%s1 + $0x1250] sm:$0xff]
    %v624 = vld [vmem:[%s1 + $0x1258] sm:$0xff]
    %v625 = vld [vmem:[%s1 + $0x1260] sm:$0xff]
    %v626 = vld [vmem:[%s1 + $0x1268] sm:$0xff]
    %v627 = vld [vmem:[%s1 + $0x1270] sm:$0xff]
    %v628 = vld [vmem:[%s1 + $0x1278] sm:$0xff]
    %v629 = vld [vmem:[%s1 + $0x1280] sm:$0xff]
    %v630 = vld [vmem:[%s1 + $0x1288] sm:$0xff]
    %v631 = vld [vmem:[%s1 + $0x1290] sm:$0xff]
    %v632 = vld [vmem:[%s1 + $0x1298] sm:$0xff]
    %v633 = vld [vmem:[%s1 + $0x12a0] sm:$0xff]
    %v634 = vld [vmem:[%s1 + $0x12a8] sm:$0xff]
    %v635 = vld [vmem:[%s1 + $0x12b0] sm:$0xff]
    %v636 = vld [vmem:[%s1 + $0x12b8] sm:$0xff]
    %v637 = vld [vmem:[%s1 + $0x12c0] sm:$0xff]
    %v638 = vld [vmem:[%s1 + $0x12c8] sm:$0xff]
    %v639 = vld [vmem:[%s1 + $0x12d0] sm:$0xff]
    %v640 = vld [vmem:[%s1 + $0x12d8] sm:$0xff]
    %v641 = vld [vmem:[%s1 + $0x12e0] sm:$0xff]
    %v642 = vld [vmem:[%s1 + $0x12e8] sm:$0xff]
    %v643 = vld [vmem:[%s1 + $0x12f0] sm:$0xff]
    %v644 = vld [vmem:[%s1 + $0x12f8] sm:$0xff]
    %v645 = vld [vmem:[%s1 + $0x1300] sm:$0xff]
    %v646 = vld [vmem:[%s1 + $0x1308] sm:$0xff]
    %v647 = vld [vmem:[%s1 + $0x1310] sm:$0xff]
    %v648 = vld [vmem:[%s1 + $0x1318] sm:$0xff]
    %v649 = vld [vmem:[%s1 + $0x1320] sm:$0xff]
    %v650 = vld [vmem:[%s1 + $0x1328] sm:$0xff]
    %v651 = vld [vmem:[%s1 + $0x1330] sm:$0xff]
    %v652 = vld [vmem:[%s1 + $0x1338] sm:$0xff]
    %v653 = vld [vmem:[%s1 + $0x1340] sm:$0xff]
    %v654 = vld [vmem:[%s1 + $0x1348] sm:$0xff]
    %v655 = vld [vmem:[%s1 + $0x1350] sm:$0xff]
    %v656 = vld [vmem:[%s1 + $0x1358] sm:$0xff]
    %v657 = vld [vmem:[%s1 + $0x1360] sm:$0xff]
    %v658 = vld [vmem:[%s1 + $0x1368] sm:$0xff]
    %v659 = vld [vmem:[%s1 + $0x1370] sm:$0xff]
    %v660 = vld [vmem:[%s1 + $0x1378] sm:$0xff]
    %v661 = vld [vmem:[%s1 + $0x1380] sm:$0xff]
    %v662 = vld [vmem:[%s1 + $0x1388] sm:$0xff]
    %v663 = vld [vmem:[%s1 + $0x1390] sm:$0xff]
    %v664 = vld [vmem:[%s1 + $0x1398] sm:$0xff]
    %v665 = vld [vmem:[%s1 + $0x13a0] sm:$0xff]
    %v666 = vld [vmem:[%s1 + $0x13a8] sm:$0xff]
    %v667 = vld [vmem:[%s1 + $0x13b0] sm:$0xff]
    %v668 = vld [vmem:[%s1 + $0x13b8] sm:$0xff]
    %v669 = vld [vmem:[%s1 + $0x13c0] sm:$0xff]
    %v670 = vld [vmem:[%s1 + $0x13c8] sm:$0xff]
    %v671 = vld [vmem:[%s1 + $0x13d0] sm:$0xff]
    %v672 = vld [vmem:[%s1 + $0x13d8] sm:$0xff]
    %v673 = vld [vmem:[%s1 + $0x13e0] sm:$0xff]
    %v674 = vld [vmem:[%s1 + $0x13e8] sm:$0xff]
    %v675 = vld [vmem:[%s1 + $0x13f0] sm:$0xff]
    %v676 = vld [vmem:[%s1 + $0x13f8] sm:$0xff]
    %v677 = vld [vmem:[%s1 + $0x1400] sm:$0xff]
    %v678 = vld [vmem:[%s1 + $0x1408] sm:$0xff]
    %v679 = vld [vmem:[%s1 + $0x1410] sm:$0xff]
    %v680 = vld [vmem:[%s1 + $0x1418] sm:$0xff]
    %v681 = vld [vmem:[%s1 + $0x1420] sm:$0xff]
    %v682 = vld [vmem:[%s1 + $0x1428] sm:$0xff]
    %v683 = vld [vmem:[%s1 + $0x1430] sm:$0xff]
    %v684 = vld [vmem:[%s1 + $0x1438] sm:$0xff]
    %v685 = vld [vmem:[%s1 + $0x1440] sm:$0xff]
    %v686 = vld [vmem:[%s1 + $0x1448] sm:$0xff]
    %v687 = vld [vmem:[%s1 + $0x1450] sm:$0xff]
    %v688 = vld [vmem:[%s1 + $0x1458] sm:$0xff]
    %v689 = vld [vmem:[%s1 + $0x1460] sm:$0xff]
    %v690 = vld [vmem:[%s1 + $0x1468] sm:$0xff]
    %v691 = vld [vmem:[%s1 + $0x1470] sm:$0xff]
    %v692 = vld [vmem:[%s1 + $0x1478] sm:$0xff]
    %v693 = vld [vmem:[%s1 + $0x1480] sm:$0xff]
    %v694 = vld [vmem:[%s1 + $0x1488] sm:$0xff]
    %v695 = vld [vmem:[%s1 + $0x1490] sm:$0xff]
    %v696 = vld [vmem:[%s1 + $0x1498] sm:$0xff]
    %v697 = vld [vmem:[%s1 + $0x14a0] sm:$0xff]
    %v698 = vld [vmem:[%s1 + $0x14a8] sm:$0xff]
    %v699 = vld [vmem:[%s1 + $0x14b0] sm:$0xff]
    %v700 = vld [vmem:[%s1 + $0x14b8] sm:$0xff]
    %v701 = vld [vmem:[%s1 + $0x14c0] sm:$0xff]
    %v702 = vld [vmem:[%s1 + $0x14c8] sm:$0xff]
    %v703 = vld [vmem:[%s1 + $0x14d0] sm:$0xff]
    %v704 = vld [vmem:[%s1 + $0x14d8] sm:$0xff]
    %v705 = vld [vmem:[%s1 + $0x14e0] sm:$0xff]
    %v706 = vld [vmem:[%s1 + $0x14e8] sm:$0xff]
    %v707 = vld [vmem:[%s1 + $0x14f0] sm:$0xff]
    %v708 = vld [vmem:[%s1 + $0x14f8] sm:$0xff]
    %v709 = vld [vmem:[%s1 + $0x1500] sm:$0xff]
    %v710 = vld [vmem:[%s1 + $0x1508] sm:$0xff]
    %v711 = vld [vmem:[%s1 + $0x1510] sm:$0xff]
    %v712 = vld [vmem:[%s1 + $0x1518] sm:$0xff]
    %v713 = vld [vmem:[%s1 + $0x1520] sm:$0xff]
    %v714 = vld [vmem:[%s1 + $0x1528] sm:$0xff]
    %v715 = vld [vmem:[%s1 + $0x1530] sm:$0xff]
    %v716 = vld [vmem:[%s1 + $0x1538] sm:$0xff]
    %v717 = vld [vmem:[%s1 + $0x1540] sm:$0xff]
    %v718 = vld [vmem:[%s1 + $0x1548] sm:$0xff]
    %v719 = vld [vmem:[%s1 + $0x1550] sm:$0xff]
    %v720 = vld [vmem:[%s1 + $0x1558] sm:$0xff]
    %v721 = vld [vmem:[%s1 + $0x1560] sm:$0xff]
    %v722 = vld [vmem:[%s1 + $0x1568] sm:$0xff]
    %v723 = vld [vmem:[%s1 + $0x1570] sm:$0xff]
    %v724 = vld [vmem:[%s1 + $0x1578] sm:$0xff]
    %v725 = vld [vmem:[%s1 + $0x1580] sm:$0xff]
    %v726 = vld [vmem:[%s1 + $0x1588] sm:$0xff]
    %v727 = vld [vmem:[%s1 + $0x1590] sm:$0xff]
    %v728 = vld [vmem:[%s1 + $0x1598] sm:$0xff]
    %v729 = vld [vmem:[%s1 + $0x15a0] sm:$0xff]
    %v730 = vld [vmem:[%s1 + $0x15a8] sm:$0xff]
    %v731 = vld [vmem:[%s1 + $0x15b0] sm:$0xff]
    %v732 = vld [vmem:[%s1 + $0x15b8] sm:$0xff]
    %v733 = vld [vmem:[%s1 + $0x15c0] sm:$0xff]
    %v734 = vld [vmem:[%s1 + $0x15c8] sm:$0xff]
    %v735 = vld [vmem:[%s1 + $0x15d0] sm:$0xff]
    %v736 = vld [vmem:[%s1 + $0x15d8] sm:$0xff]
    %v737 = vld [vmem:[%s1 + $0x15e0] sm:$0xff]
    %v738 = vld [vmem:[%s1 + $0x15e8] sm:$0xff]
    %v739 = vld [vmem:[%s1 + $0x15f0] sm:$0xff]
    %v740 = vld [vmem:[%s1 + $0x15f8] sm:$0xff]
    %v741 = vld [vmem:[%s1 + $0x1600] sm:$0xff]
    %v742 = vld [vmem:[%s1 + $0x1608] sm:$0xff]
    %v743 = vld [vmem:[%s1 + $0x1610] sm:$0xff]
    %v744 = vld [vmem:[%s1 + $0x1618] sm:$0xff]
    %v745 = vld [vmem:[%s1 + $0x1620] sm:$0xff]
    %v746 = vld [vmem:[%s1 + $0x1628] sm:$0xff]
    %v747 = vld [vmem:[%s1 + $0x1630] sm:$0xff]
    %v748 = vld [vmem:[%s1 + $0x1638] sm:$0xff]
    %v749 = vld [vmem:[%s1 + $0x1640] sm:$0xff]
    %v750 = vld [vmem:[%s1 + $0x1648] sm:$0xff]
    %v751 = vld [vmem:[%s1 + $0x1650] sm:$0xff]
    %v752 = vld [vmem:[%s1 + $0x1658] sm:$0xff]
    %v753 = vld [vmem:[%s1 + $0x1660] sm:$0xff]
    %v754 = vld [vmem:[%s1 + $0x1668] sm:$0xff]
    %v755 = vld [vmem:[%s1 + $0x1670] sm:$0xff]
    %v756 = vld [vmem:[%s1 + $0x1678] sm:$0xff]
    %v757 = vld [vmem:[%s1 + $0x1680] sm:$0xff]
    %v758 = vld [vmem:[%s1 + $0x1688] sm:$0xff]
    %v759 = vld [vmem:[%s1 + $0x1690] sm:$0xff]
    %v760 = vld [vmem:[%s1 + $0x1698] sm:$0xff]
    %v761 = vld [vmem:[%s1 + $0x16a0] sm:$0xff]
    %v762 = vld [vmem:[%s1 + $0x16a8] sm:$0xff]
    %v763 = vld [vmem:[%s1 + $0x16b0] sm:$0xff]
    %v764 = vld [vmem:[%s1 + $0x16b8] sm:$0xff]
    %v765 = vld [vmem:[%s1 + $0x16c0] sm:$0xff]
    %v766 = vld [vmem:[%s1 + $0x16c8] sm:$0xff]
    %v767 = vld [vmem:[%s1 + $0x16d0] sm:$0xff]
    %v768 = vld [vmem:[%s1 + $0x16d8] sm:$0xff]
    %v769 = vld [vmem:[%s1 + $0x16e0] sm:$0xff]
    %v770 = vld [vmem:[%s1 + $0x16e8] sm:$0xff]
    %v771 = vld [vmem:[%s1 + $0x16f0] sm:$0xff]
    %v772 = vld [vmem:[%s1 + $0x16f8] sm:$0xff]
    %v773 = vld [vmem:[%s1 + $0x1700] sm:$0xff]
    %v774 = vld [vmem:[%s1 + $0x1708] sm:$0xff]
    %v775 = vld [vmem:[%s1 + $0x1710] sm:$0xff]
    %v776 = vld [vmem:[%s1 + $0x1718] sm:$0xff]
    %v777 = vld [vmem:[%s1 + $0x1720] sm:$0xff]
    %v778 = vld [vmem:[%s1 + $0x1728] sm:$0xff]
    %v779 = vld [vmem:[%s1 + $0x1730] sm:$0xff]
    %v780 = vld [vmem:[%s1 + $0x1738] sm:$0xff]
    %v781 = vld [vmem:[%s1 + $0x1740] sm:$0xff]
    %v782 = vld [vmem:[%s1 + $0x1748] sm:$0xff]
    %v783 = vld [vmem:[%s1 + $0x1750] sm:$0xff]
    %v784 = vld [vmem:[%s1 + $0x1758] sm:$0xff]
    %v785 = vld [vmem:[%s1 + $0x1760] sm:$0xff]
    %v786 = vld [vmem:[%s1 + $0x1768] sm:$0xff]
    %v787 = vld [vmem:[%s1 + $0x1770] sm:$0xff]
    %v788 = vld [vmem:[%s1 + $0x1778] sm:$0xff]
    %v789 = vld [vmem:[%s1 + $0x1780] sm:$0xff]
    %v790 = vld [vmem:[%s1 + $0x1788] sm:$0xff]
    %v791 = vld [vmem:[%s1 + $0x1790] sm:$0xff]
    %v792 = vld [vmem:[%s1 + $0x1798] sm:$0xff]
    %v793 = vld [vmem:[%s1 + $0x17a0] sm:$0xff]
    %v794 = vld [vmem:[%s1 + $0x17a8] sm:$0xff]
    %v795 = vld [vmem:[%s1 + $0x17b0] sm:$0xff]
    %v796 = vld [vmem:[%s1 + $0x17b8] sm:$0xff]
    %v797 = vld [vmem:[%s1 + $0x17c0] sm:$0xff]
    %v798 = vld [vmem:[%s1 + $0x17c8] sm:$0xff]
    %v799 = vld [vmem:[%s1 + $0x17d0] sm:$0xff]
    %v800 = vld [vmem:[%s1 + $0x17d8] sm:$0xff]
    %v801 = vld [vmem:[%s1 + $0x17e0] sm:$0xff]
    %v802 = vld [vmem:[%s1 + $0x17e8] sm:$0xff]
    %v803 = vld [vmem:[%s1 + $0x17f0] sm:$0xff]
    %v804 = vld [vmem:[%s1 + $0x17f8] sm:$0xff]
    %v805 = vld [vmem:[%s1 + $0x1800] sm:$0xff]
    %v806 = vld [vmem:[%s1 + $0x1808] sm:$0xff]
    %v807 = vld [vmem:[%s1 + $0x1810] sm:$0xff]
    %v808 = vld [vmem:[%s1 + $0x1818] sm:$0xff]
    %v809 = vld [vmem:[%s1 + $0x1820] sm:$0xff]
    %v810 = vld [vmem:[%s1 + $0x1828] sm:$0xff]
    %v811 = vld [vmem:[%s1 + $0x1830] sm:$0xff]
    %v812 = vld [vmem:[%s1 + $0x1838] sm:$0xff]
    %v813 = vld [vmem:[%s1 + $0x1840] sm:$0xff]
    %v814 = vld [vmem:[%s1 + $0x1848] sm:$0xff]
    %v815 = vld [vmem:[%s1 + $0x1850] sm:$0xff]
    %v816 = vld [vmem:[%s1 + $0x1858] sm:$0xff]
    %v817 = vld [vmem:[%s1 + $0x1860] sm:$0xff]
    %v818 = vld [vmem:[%s1 + $0x1868] sm:$0xff]
    %v819 = vld [vmem:[%s1 + $0x1870] sm:$0xff]
    %v820 = vld [vmem:[%s1 + $0x1878] sm:$0xff]
    %v821 = vld [vmem:[%s1 + $0x1880] sm:$0xff]
    %v822 = vld [vmem:[%s1 + $0x1888] sm:$0xff]
    %v823 = vld [vmem:[%s1 + $0x1890] sm:$0xff]
    %v824 = vld [vmem:[%s1 + $0x1898] sm:$0xff]
    %v825 = vld [vmem:[%s1 + $0x18a0] sm:$0xff]
    %v826 = vld [vmem:[%s1 + $0x18a8] sm:$0xff]
    %v827 = vld [vmem:[%s1 + $0x18b0] sm:$0xff]
    %v828 = vld [vmem:[%s1 + $0x18b8] sm:$0xff]
    %v829 = vld [vmem:[%s1 + $0x18c0] sm:$0xff]
    %v830 = vld [vmem:[%s1 + $0x18c8] sm:$0xff]
    %v831 = vld [vmem:[%s1 + $0x18d0] sm:$0xff]
    %v832 = vld [vmem:[%s1 + $0x18d8] sm:$0xff]
    %v833 = vld [vmem:[%s1 + $0x18e0] sm:$0xff]
    %v834 = vld [vmem:[%s1 + $0x18e8] sm:$0xff]
    %v835 = vld [vmem:[%s1 + $0x18f0] sm:$0xff]
    %v836 = vld [vmem:[%s1 + $0x18f8] sm:$0xff]
    %v837 = vld [vmem:[%s1 + $0x1900] sm:$0xff]
    %v838 = vld [vmem:[%s1 + $0x1908] sm:$0xff]
    %v839 = vld [vmem:[%s1 + $0x1910] sm:$0xff]
    %v840 = vld [vmem:[%s1 + $0x1918] sm:$0xff]
    %v841 = vld [vmem:[%s1 + $0x1920] sm:$0xff]
    %v842 = vld [vmem:[%s1 + $0x1928] sm:$0xff]
    %v843 = vld [vmem:[%s1 + $0x1930] sm:$0xff]
    %v844 = vld [vmem:[%s1 + $0x1938] sm:$0xff]
    %v845 = vld [vmem:[%s1 + $0x1940] sm:$0xff]
    %v846 = vld [vmem:[%s1 + $0x1948] sm:$0xff]
    %v847 = vld [vmem:[%s1 + $0x1950] sm:$0xff]
    %v848 = vld [vmem:[%s1 + $0x1958] sm:$0xff]
    %v849 = vld [vmem:[%s1 + $0x1960] sm:$0xff]
    %v850 = vld [vmem:[%s1 + $0x1968] sm:$0xff]
    %v851 = vld [vmem:[%s1 + $0x1970] sm:$0xff]
    %v852 = vld [vmem:[%s1 + $0x1978] sm:$0xff]
    %v853 = vld [vmem:[%s1 + $0x1980] sm:$0xff]
    %v854 = vld [vmem:[%s1 + $0x1988] sm:$0xff]
    %v855 = vld [vmem:[%s1 + $0x1990] sm:$0xff]
    %v856 = vld [vmem:[%s1 + $0x1998] sm:$0xff]
    %v857 = vld [vmem:[%s1 + $0x19a0] sm:$0xff]
    %v858 = vld [vmem:[%s1 + $0x19a8] sm:$0xff]
    %v859 = vld [vmem:[%s1 + $0x19b0] sm:$0xff]
    %v860 = vld [vmem:[%s1 + $0x19b8] sm:$0xff]
    %v861 = vld [vmem:[%s1 + $0x19c0] sm:$0xff]
    %v862 = vld [vmem:[%s1 + $0x19c8] sm:$0xff]
    %v863 = vld [vmem:[%s1 + $0x19d0] sm:$0xff]
    %v864 = vld [vmem:[%s1 + $0x19d8] sm:$0xff]
    %v865 = vld [vmem:[%s1 + $0x19e0] sm:$0xff]
    %v866 = vld [vmem:[%s1 + $0x19e8] sm:$0xff]
    %v867 = vld [vmem:[%s1 + $0x19f0] sm:$0xff]
    %v868 = vld [vmem:[%s1 + $0x19f8] sm:$0xff]
    %v869 = vld [vmem:[%s1 + $0x1a00] sm:$0xff]
    %v870 = vld [vmem:[%s1 + $0x1a08] sm:$0xff]
    %v871 = vld [vmem:[%s1 + $0x1a10] sm:$0xff]
    %v872 = vld [vmem:[%s1 + $0x1a18] sm:$0xff]
    %v873 = vld [vmem:[%s1 + $0x1a20] sm:$0xff]
    %v874 = vld [vmem:[%s1 + $0x1a28] sm:$0xff]
    %v875 = vld [vmem:[%s1 + $0x1a30] sm:$0xff]
    %v876 = vld [vmem:[%s1 + $0x1a38] sm:$0xff]
    %v877 = vld [vmem:[%s1 + $0x1a40] sm:$0xff]
    %v878 = vld [vmem:[%s1 + $0x1a48] sm:$0xff]
    %v879 = vld [vmem:[%s1 + $0x1a50] sm:$0xff]
    %v880 = vld [vmem:[%s1 + $0x1a58] sm:$0xff]
    %v881 = vld [vmem:[%s1 + $0x1a60] sm:$0xff]
    %v882 = vld [vmem:[%s1 + $0x1a68] sm:$0xff]
    %v883 = vld [vmem:[%s1 + $0x1a70] sm:$0xff]
    %v884 = vld [vmem:[%s1 + $0x1a78] sm:$0xff]
    %v885 = vld [vmem:[%s1 + $0x1a80] sm:$0xff]
    %v886 = vld [vmem:[%s1 + $0x1a88] sm:$0xff]
    %v887 = vld [vmem:[%s1 + $0x1a90] sm:$0xff]
    %v888 = vld [vmem:[%s1 + $0x1a98] sm:$0xff]
    %v889 = vld [vmem:[%s1 + $0x1aa0] sm:$0xff]
    %v890 = vld [vmem:[%s1 + $0x1aa8] sm:$0xff]
    %v891 = vld [vmem:[%s1 + $0x1ab0] sm:$0xff]
    %v892 = vld [vmem:[%s1 + $0x1ab8] sm:$0xff]
    %v893 = vld [vmem:[%s1 + $0x1ac0] sm:$0xff]
    %v894 = vld [vmem:[%s1 + $0x1ac8] sm:$0xff]
    %v895 = vld [vmem:[%s1 + $0x1ad0] sm:$0xff]
    %v896 = vld [vmem:[%s1 + $0x1ad8] sm:$0xff]
    %v897 = vld [vmem:[%s1 + $0x1ae0] sm:$0xff]
    %v898 = vld [vmem:[%s1 + $0x1ae8] sm:$0xff]
    %v899 = vld [vmem:[%s1 + $0x1af0] sm:$0xff]
    %v900 = vld [vmem:[%s1 + $0x1af8] sm:$0xff]
    %v901 = vld [vmem:[%s1 + $0x1b00] sm:$0xff]
    %v902 = vld [vmem:[%s1 + $0x1b08] sm:$0xff]
    %v903 = vld [vmem:[%s1 + $0x1b10] sm:$0xff]
    %v904 = vld [vmem:[%s1 + $0x1b18] sm:$0xff]
    %v905 = vld [vmem:[%s1 + $0x1b20] sm:$0xff]
    %v906 = vld [vmem:[%s1 + $0x1b28] sm:$0xff]
    %v907 = vld [vmem:[%s1 + $0x1b30] sm:$0xff]
    %v908 = vld [vmem:[%s1 + $0x1b38] sm:$0xff]
    %v909 = vld [vmem:[%s1 + $0x1b40] sm:$0xff]
    %v910 = vld [vmem:[%s1 + $0x1b48] sm:$0xff]
    %v911 = vld [vmem:[%s1 + $0x1b50] sm:$0xff]
    %v912 = vld [vmem:[%s1 + $0x1b58] sm:$0xff]
    %v913 = vld [vmem:[%s1 + $0x1b60] sm:$0xff]
    %v914 = vld [vmem:[%s1 + $0x1b68] sm:$0xff]
    %v915 = vld [vmem:[%s1 + $0x1b70] sm:$0xff]
    %v916 = vld [vmem:[%s1 + $0x1b78] sm:$0xff]
    %v917 = vld [vmem:[%s1 + $0x1b80] sm:$0xff]
    %v918 = vld [vmem:[%s1 + $0x1b88] sm:$0xff]
    %v919 = vld [vmem:[%s1 + $0x1b90] sm:$0xff]
    %v920 = vld [vmem:[%s1 + $0x1b98] sm:$0xff]
    %v921 = vld [vmem:[%s1 + $0x1ba0] sm:$0xff]
    %v922 = vld [vmem:[%s1 + $0x1ba8] sm:$0xff]
    %v923 = vld [vmem:[%s1 + $0x1bb0] sm:$0xff]
    %v924 = vld [vmem:[%s1 + $0x1bb8] sm:$0xff]
    %v925 = vld [vmem:[%s1 + $0x1bc0] sm:$0xff]
    %v926 = vld [vmem:[%s1 + $0x1bc8] sm:$0xff]
    %v927 = vld [vmem:[%s1 + $0x1bd0] sm:$0xff]
    %v928 = vld [vmem:[%s1 + $0x1bd8] sm:$0xff]
    %v929 = vld [vmem:[%s1 + $0x1be0] sm:$0xff]
    %v930 = vld [vmem:[%s1 + $0x1be8] sm:$0xff]
    %v931 = vld [vmem:[%s1 + $0x1bf0] sm:$0xff]
    %v932 = vld [vmem:[%s1 + $0x1bf8] sm:$0xff]
    %v933 = vld [vmem:[%s1 + $0x1c00] sm:$0xff]
    %v934 = vld [vmem:[%s1 + $0x1c08] sm:$0xff]
    %v935 = vld [vmem:[%s1 + $0x1c10] sm:$0xff]
    %v936 = vld [vmem:[%s1 + $0x1c18] sm:$0xff]
    %v937 = vld [vmem:[%s1 + $0x1c20] sm:$0xff]
    %v938 = vld [vmem:[%s1 + $0x1c28] sm:$0xff]
    %v939 = vld [vmem:[%s1 + $0x1c30] sm:$0xff]
    %v940 = vld [vmem:[%s1 + $0x1c38] sm:$0xff]
    %v941 = vld [vmem:[%s1 + $0x1c40] sm:$0xff]
    %v942 = vld [vmem:[%s1 + $0x1c48] sm:$0xff]
    %v943 = vld [vmem:[%s1 + $0x1c50] sm:$0xff]
    %v944 = vld [vmem:[%s1 + $0x1c58] sm:$0xff]
    %v945 = vld [vmem:[%s1 + $0x1c60] sm:$0xff]
    %v946 = vld [vmem:[%s1 + $0x1c68] sm:$0xff]
    %v947 = vld [vmem:[%s1 + $0x1c70] sm:$0xff]
    %v948 = vld [vmem:[%s1 + $0x1c78] sm:$0xff]
    %v949 = vld [vmem:[%s1 + $0x1c80] sm:$0xff]
    %v950 = vld [vmem:[%s1 + $0x1c88] sm:$0xff]
    %v951 = vld [vmem:[%s1 + $0x1c90] sm:$0xff]
    %v952 = vld [vmem:[%s1 + $0x1c98] sm:$0xff]
    %v953 = vld [vmem:[%s1 + $0x1ca0] sm:$0xff]
    %v954 = vld [vmem:[%s1 + $0x1ca8] sm:$0xff]
    %v955 = vld [vmem:[%s1 + $0x1cb0] sm:$0xff]
    %v956 = vld [vmem:[%s1 + $0x1cb8] sm:$0xff]
    %v957 = vld [vmem:[%s1 + $0x1cc0] sm:$0xff]
    %v958 = vld [vmem:[%s1 + $0x1cc8] sm:$0xff]
    %v959 = vld [vmem:[%s1 + $0x1cd0] sm:$0xff]
    %v960 = vld [vmem:[%s1 + $0x1cd8] sm:$0xff]
    %v961 = vld [vmem:[%s1 + $0x1ce0] sm:$0xff]
    %v962 = vld [vmem:[%s1 + $0x1ce8] sm:$0xff]
    %v963 = vld [vmem:[%s1 + $0x1cf0] sm:$0xff]
    %v964 = vld [vmem:[%s1 + $0x1cf8] sm:$0xff]
    %v965 = vld [vmem:[%s1 + $0x1d00] sm:$0xff]
    %v966 = vld [vmem:[%s1 + $0x1d08] sm:$0xff]
    %v967 = vld [vmem:[%s1 + $0x1d10] sm:$0xff]
    %v968 = vld [vmem:[%s1 + $0x1d18] sm:$0xff]
    %v969 = vld [vmem:[%s1 + $0x1d20] sm:$0xff]
    %v970 = vld [vmem:[%s1 + $0x1d28] sm:$0xff]
    %v971 = vld [vmem:[%s1 + $0x1d30] sm:$0xff]
    %v972 = vld [vmem:[%s1 + $0x1d38] sm:$0xff]
    %v973 = vld [vmem:[%s1 + $0x1d40] sm:$0xff]
    %v974 = vld [vmem:[%s1 + $0x1d48] sm:$0xff]
    %v975 = vld [vmem:[%s1 + $0x1d50] sm:$0xff]
    %v976 = vld [vmem:[%s1 + $0x1d58] sm:$0xff]
    %v977 = vld [vmem:[%s1 + $0x1d60] sm:$0xff]
    %v978 = vld [vmem:[%s1 + $0x1d68] sm:$0xff]
    %v979 = vld [vmem:[%s1 + $0x1d70] sm:$0xff]
    %v980 = vld [vmem:[%s1 + $0x1d78] sm:$0xff]
    %v981 = vld [vmem:[%s1 + $0x1d80] sm:$0xff]
    %v982 = vld [vmem:[%s1 + $0x1d88] sm:$0xff]
    %v983 = vld [vmem:[%s1 + $0x1d90] sm:$0xff]
    %v984 = vld [vmem:[%s1 + $0x1d98] sm:$0xff]
    %v985 = vld [vmem:[%s1 + $0x1da0] sm:$0xff]
    %v986 = vld [vmem:[%s1 + $0x1da8] sm:$0xff]
    %v987 = vld [vmem:[%s1 + $0x1db0] sm:$0xff]
    %v988 = vld [vmem:[%s1 + $0x1db8] sm:$0xff]
    %v989 = vld [vmem:[%s1 + $0x1dc0] sm:$0xff]
    %v990 = vld [vmem:[%s1 + $0x1dc8] sm:$0xff]
    %v991 = vld [vmem:[%s1 + $0x1dd0] sm:$0xff]
    %v992 = vld [vmem:[%s1 + $0x1dd8] sm:$0xff]
    %v993 = vld [vmem:[%s1 + $0x1de0] sm:$0xff]
    %v994 = vld [vmem:[%s1 + $0x1de8] sm:$0xff]
    %v995 = vld [vmem:[%s1 + $0x1df0] sm:$0xff]
    %v996 = vld [vmem:[%s1 + $0x1df8] sm:$0xff]
    %v997 = vld [vmem:[%s1 + $0x1e00] sm:$0xff]
    %v998 = vld [vmem:[%s1 + $0x1e08] sm:$0xff]
    %v999 = vld [vmem:[%s1 + $0x1e10] sm:$0xff]
    %v1000 = vld [vmem:[%s1 + $0x1e18] sm:$0xff]
    %v1001 = vld [vmem:[%s1 + $0x1e20] sm:$0xff]
    %v1002 = vld [vmem:[%s1 + $0x1e28] sm:$0xff]
    %v1003 = vld [vmem:[%s1 + $0x1e30] sm:$0xff]
    %v1004 = vld [vmem:[%s1 + $0x1e38] sm:$0xff]
    %v1005 = vld [vmem:[%s1 + $0x1e40] sm:$0xff]
    %v1006 = vld [vmem:[%s1 + $0x1e48] sm:$0xff]
    %v1007 = vld [vmem:[%s1 + $0x1e50] sm:$0xff]
    %v1008 = vld [vmem:[%s1 + $0x1e58] sm:$0xff]
    %v1009 = vld [vmem:[%s1 + $0x1e60] sm:$0xff]
    %v1010 = vld [vmem:[%s1 + $0x1e68] sm:$0xff]
    %v1011 = vld [vmem:[%s1 + $0x1e70] sm:$0xff]
    %v1012 = vld [vmem:[%s1 + $0x1e78] sm:$0xff]
    %v1013 = vld [vmem:[%s1 + $0x1e80] sm:$0xff]
    %v1014 = vld [vmem:[%s1 + $0x1e88] sm:$0xff]
    %v1015 = vld [vmem:[%s1 + $0x1e90] sm:$0xff]
    %v1016 = vld [vmem:[%s1 + $0x1e98] sm:$0xff]
    %v1017 = vld [vmem:[%s1 + $0x1ea0] sm:$0xff]
    %v1018 = vld [vmem:[%s1 + $0x1ea8] sm:$0xff]
    %v1019 = vld [vmem:[%s1 + $0x1eb0] sm:$0xff]
    %v1020 = vld [vmem:[%s1 + $0x1eb8] sm:$0xff]
    %v1021 = vld [vmem:[%s1 + $0x1ec0] sm:$0xff]
    %v1022 = vld [vmem:[%s1 + $0x1ec8] sm:$0xff]
    %v1023 = vld [vmem:[%s1 + $0x1ed0] sm:$0xff]
    %v1024 = vld [vmem:[%s1 + $0x1ed8] sm:$0xff]
    %v1025 = vld [vmem:[%s1 + $0x1ee0] sm:$0xff]
    %v1026 = vld [vmem:[%s1 + $0x1ee8] sm:$0xff]
    %v1027 = vld [vmem:[%s1 + $0x1ef0] sm:$0xff]
    %v1028 = vld [vmem:[%s1 + $0x1ef8] sm:$0xff]
    %v1029 = vld [vmem:[%s1 + $0x1f00] sm:$0xff]
    %v1030 = vld [vmem:[%s1 + $0x1f08] sm:$0xff]
    %v1031 = vld [vmem:[%s1 + $0x1f10] sm:$0xff]
    %v1032 = vld [vmem:[%s1 + $0x1f18] sm:$0xff]
    %v1033 = vld [vmem:[%s1 + $0x1f20] sm:$0xff]
    %v1034 = vld [vmem:[%s1 + $0x1f28] sm:$0xff]
    %v1035 = vld [vmem:[%s1 + $0x1f30] sm:$0xff]
    %v1036 = vld [vmem:[%s1 + $0x1f38] sm:$0xff]
    %v1037 = vld [vmem:[%s1 + $0x1f40] sm:$0xff]
    %v1038 = vld [vmem:[%s1 + $0x1f48] sm:$0xff]
    %v1039 = vld [vmem:[%s1 + $0x1f50] sm:$0xff]
    %v1040 = vld [vmem:[%s1 + $0x1f58] sm:$0xff]
    %v1041 = vld [vmem:[%s1 + $0x1f60] sm:$0xff]
    %v1042 = vld [vmem:[%s1 + $0x1f68] sm:$0xff]
    %v1043 = vld [vmem:[%s1 + $0x1f70] sm:$0xff]
    %v1044 = vld [vmem:[%s1 + $0x1f78] sm:$0xff]
    %v1045 = vld [vmem:[%s1 + $0x1f80] sm:$0xff]
    %v1046 = vld [vmem:[%s1 + $0x1f88] sm:$0xff]
    %v1047 = vld [vmem:[%s1 + $0x1f90] sm:$0xff]
    %v1048 = vld [vmem:[%s1 + $0x1f98] sm:$0xff]
    %v1049 = vld [vmem:[%s1 + $0x1fa0] sm:$0xff]
    %v1050 = vld [vmem:[%s1 + $0x1fa8] sm:$0xff]
    %v1051 = vld [vmem:[%s1 + $0x1fb0] sm:$0xff]
    %v1052 = vld [vmem:[%s1 + $0x1fb8] sm:$0xff]
    %v1053 = vld [vmem:[%s1 + $0x1fc0] sm:$0xff]
    %v1054 = vld [vmem:[%s1 + $0x1fc8] sm:$0xff]
    %v1055 = vld [vmem:[%s1 + $0x1fd0] sm:$0xff]
    %v1056 = vld [vmem:[%s1 + $0x1fd8] sm:$0xff]
    %v1057 = vld [vmem:[%s1 + $0x1fe0] sm:$0xff]
    %v1058 = vld [vmem:[%s1 + $0x1fe8] sm:$0xff]
    %v1059 = vld [vmem:[%s1 + $0x1ff0] sm:$0xff]
    %v1060 = vld [vmem:[%s1 + $0x1ff8] sm:$0xff]
    %1062 = vst [vmem:[#allocation1] ss:$9 sm:$0xff] %v35
    %v1063 = vld [vmem:[#allocation1] sm:$0xff]
    %v1064 = vld [vmem:[#allocation1 + $0x9] sm:$0xff]
    %v1065 = vld [vmem:[#allocation1 + $0x12] sm:$0xff]
    %v1066 = vld [vmem:[#allocation1 + $0x1b] sm:$0xff]
    %v1067 = vld [vmem:[#allocation1 + $0x24] sm:$0xff]
    %v1068 = vld [vmem:[#allocation1 + $0x2d] sm:$0xff]
    %v1069 = vld [vmem:[#allocation1 + $0x36] sm:$0xff]
    %v1070 = vld [vmem:[#allocation1 + $0x3f] sm:$0xff]
    %1072 = vst [vmem:[#allocation1] ss:$9 sm:$0xff] %v36
    %v1073 = vld [vmem:[#allocation1] sm:$0xff]
    %v1074 = vld [vmem:[#allocation1 + $0x9] sm:$0xff]
    %v1075 = vld [vmem:[#allocation1 + $0x12] sm:$0xff]
    %v1076 = vld [vmem:[#allocation1 + $0x1b] sm:$0xff]
    %v1077 = vld [vmem:[#allocation1 + $0x24] sm:$0xff]
    %v1078 = vld [vmem:[#allocation1 + $0x2d] sm:$0xff]
    %v1079 = vld [vmem:[#allocation1 + $0x36] sm:$0xff]
    %v1080 = vld [vmem:[#allocation1 + $0x3f] sm:$0xff]
    %v2121 = vunpack.c.l.b16 %v37
    %v2122 = vunpack.c.h.b16 %v37
    %v2123 = vunpack.c.l.b16 %v38
    %v2124 = vunpack.c.h.b16 %v38
    %v2125 = vunpack.c.l.b16 %v39
    %v2126 = vunpack.c.h.b16 %v39
    %v2127 = vunpack.c.l.b16 %v40
    %v2128 = vunpack.c.h.b16 %v40
    %v2129 = vunpack.c.l.b16 %v41
    %v2130 = vunpack.c.h.b16 %v41
    %v2131 = vunpack.c.l.b16 %v42
    %v2132 = vunpack.c.h.b16 %v42
    %v2133 = vunpack.c.l.b16 %v43
    %v2134 = vunpack.c.h.b16 %v43
    %v2135 = vunpack.c.l.b16 %v44
    %v2136 = vunpack.c.h.b16 %v44
    %v2137 = vunpack.c.l.b16 %v45
    %v2138 = vunpack.c.h.b16 %v45
    %v2139 = vunpack.c.l.b16 %v46
    %v2140 = vunpack.c.h.b16 %v46
    %v2141 = vunpack.c.l.b16 %v47
    %v2142 = vunpack.c.h.b16 %v47
    %v2143 = vunpack.c.l.b16 %v48
    %v2144 = vunpack.c.h.b16 %v48
    %v2145 = vunpack.c.l.b16 %v49
    %v2146 = vunpack.c.h.b16 %v49
    %v2147 = vunpack.c.l.b16 %v50
    %v2148 = vunpack.c.h.b16 %v50
    %v2149 = vunpack.c.l.b16 %v51
    %v2150 = vunpack.c.h.b16 %v51
    %v2151 = vunpack.c.l.b16 %v52
    %v2152 = vunpack.c.h.b16 %v52
    %v2153 = vunpack.c.l.b16 %v53
    %v2154 = vunpack.c.h.b16 %v53
    %v2155 = vunpack.c.l.b16 %v54
    %v2156 = vunpack.c.h.b16 %v54
    %v2157 = vunpack.c.l.b16 %v55
    %v2158 = vunpack.c.h.b16 %v55
    %v2159 = vunpack.c.l.b16 %v56
    %v2160 = vunpack.c.h.b16 %v56
    %v2161 = vunpack.c.l.b16 %v57
    %v2162 = vunpack.c.h.b16 %v57
    %v2163 = vunpack.c.l.b16 %v58
    %v2164 = vunpack.c.h.b16 %v58
    %v2165 = vunpack.c.l.b16 %v59
    %v2166 = vunpack.c.h.b16 %v59
    %v2167 = vunpack.c.l.b16 %v60
    %v2168 = vunpack.c.h.b16 %v60
    %v2169 = vunpack.c.l.b16 %v61
    %v2170 = vunpack.c.h.b16 %v61
    %v2171 = vunpack.c.l.b16 %v62
    %v2172 = vunpack.c.h.b16 %v62
    %v2173 = vunpack.c.l.b16 %v63
    %v2174 = vunpack.c.h.b16 %v63
    %v2175 = vunpack.c.l.b16 %v64
    %v2176 = vunpack.c.h.b16 %v64
    %v2177 = vunpack.c.l.b16 %v65
    %v2178 = vunpack.c.h.b16 %v65
    %v2179 = vunpack.c.l.b16 %v66
    %v2180 = vunpack.c.h.b16 %v66
    %v2181 = vunpack.c.l.b16 %v67
    %v2182 = vunpack.c.h.b16 %v67
    %v2183 = vunpack.c.l.b16 %v68
    %v2184 = vunpack.c.h.b16 %v68
    %v2185 = vunpack.c.l.b16 %v69
    %v2186 = vunpack.c.h.b16 %v69
    %v2187 = vunpack.c.l.b16 %v70
    %v2188 = vunpack.c.h.b16 %v70
    %v2189 = vunpack.c.l.b16 %v71
    %v2190 = vunpack.c.h.b16 %v71
    %v2191 = vunpack.c.l.b16 %v72
    %v2192 = vunpack.c.h.b16 %v72
    %v2193 = vunpack.c.l.b16 %v73
    %v2194 = vunpack.c.h.b16 %v73
    %v2195 = vunpack.c.l.b16 %v74
    %v2196 = vunpack.c.h.b16 %v74
    %v2197 = vunpack.c.l.b16 %v75
    %v2198 = vunpack.c.h.b16 %v75
    %v2199 = vunpack.c.l.b16 %v76
    %v2200 = vunpack.c.h.b16 %v76
    %v2201 = vunpack.c.l.b16 %v77
    %v2202 = vunpack.c.h.b16 %v77
    %v2203 = vunpack.c.l.b16 %v78
    %v2204 = vunpack.c.h.b16 %v78
    %v2205 = vunpack.c.l.b16 %v79
    %v2206 = vunpack.c.h.b16 %v79
    %v2207 = vunpack.c.l.b16 %v80
    %v2208 = vunpack.c.h.b16 %v80
    %v2209 = vunpack.c.l.b16 %v81
    %v2210 = vunpack.c.h.b16 %v81
    %v2211 = vunpack.c.l.b16 %v82
    %v2212 = vunpack.c.h.b16 %v82
    %v2213 = vunpack.c.l.b16 %v83
    %v2214 = vunpack.c.h.b16 %v83
    %v2215 = vunpack.c.l.b16 %v84
    %v2216 = vunpack.c.h.b16 %v84
    %v2217 = vunpack.c.l.b16 %v85
    %v2218 = vunpack.c.h.b16 %v85
    %v2219 = vunpack.c.l.b16 %v86
    %v2220 = vunpack.c.h.b16 %v86
    %v2221 = vunpack.c.l.b16 %v87
    %v2222 = vunpack.c.h.b16 %v87
    %v2223 = vunpack.c.l.b16 %v88
    %v2224 = vunpack.c.h.b16 %v88
    %v2225 = vunpack.c.l.b16 %v89
    %v2226 = vunpack.c.h.b16 %v89
    %v2227 = vunpack.c.l.b16 %v90
    %v2228 = vunpack.c.h.b16 %v90
    %v2229 = vunpack.c.l.b16 %v91
    %v2230 = vunpack.c.h.b16 %v91
    %v2231 = vunpack.c.l.b16 %v92
    %v2232 = vunpack.c.h.b16 %v92
    %v2233 = vunpack.c.l.b16 %v93
    %v2234 = vunpack.c.h.b16 %v93
    %v2235 = vunpack.c.l.b16 %v94
    %v2236 = vunpack.c.h.b16 %v94
    %v2237 = vunpack.c.l.b16 %v95
    %v2238 = vunpack.c.h.b16 %v95
    %v2239 = vunpack.c.l.b16 %v96
    %v2240 = vunpack.c.h.b16 %v96
    %v2241 = vunpack.c.l.b16 %v97
    %v2242 = vunpack.c.h.b16 %v97
    %v2243 = vunpack.c.l.b16 %v98
    %v2244 = vunpack.c.h.b16 %v98
    %v2245 = vunpack.c.l.b16 %v99
    %v2246 = vunpack.c.h.b16 %v99
    %v2247 = vunpack.c.l.b16 %v100
    %v2248 = vunpack.c.h.b16 %v100
    %v2249 = vunpack.c.l.b16 %v101
    %v2250 = vunpack.c.h.b16 %v101
    %v2251 = vunpack.c.l.b16 %v102
    %v2252 = vunpack.c.h.b16 %v102
    %v2253 = vunpack.c.l.b16 %v103
    %v2254 = vunpack.c.h.b16 %v103
    %v2255 = vunpack.c.l.b16 %v104
    %v2256 = vunpack.c.h.b16 %v104
    %v2257 = vunpack.c.l.b16 %v105
    %v2258 = vunpack.c.h.b16 %v105
    %v2259 = vunpack.c.l.b16 %v106
    %v2260 = vunpack.c.h.b16 %v106
    %v2261 = vunpack.c.l.b16 %v107
    %v2262 = vunpack.c.h.b16 %v107
    %v2263 = vunpack.c.l.b16 %v108
    %v2264 = vunpack.c.h.b16 %v108
    %v2265 = vunpack.c.l.b16 %v109
    %v2266 = vunpack.c.h.b16 %v109
    %v2267 = vunpack.c.l.b16 %v110
    %v2268 = vunpack.c.h.b16 %v110
    %v2269 = vunpack.c.l.b16 %v111
    %v2270 = vunpack.c.h.b16 %v111
    %v2271 = vunpack.c.l.b16 %v112
    %v2272 = vunpack.c.h.b16 %v112
    %v2273 = vunpack.c.l.b16 %v113
    %v2274 = vunpack.c.h.b16 %v113
    %v2275 = vunpack.c.l.b16 %v114
    %v2276 = vunpack.c.h.b16 %v114
    %v2277 = vunpack.c.l.b16 %v115
    %v2278 = vunpack.c.h.b16 %v115
    %v2279 = vunpack.c.l.b16 %v116
    %v2280 = vunpack.c.h.b16 %v116
    %v2281 = vunpack.c.l.b16 %v117
    %v2282 = vunpack.c.h.b16 %v117
    %v2283 = vunpack.c.l.b16 %v118
    %v2284 = vunpack.c.h.b16 %v118
    %v2285 = vunpack.c.l.b16 %v119
    %v2286 = vunpack.c.h.b16 %v119
    %v2287 = vunpack.c.l.b16 %v120
    %v2288 = vunpack.c.h.b16 %v120
    %v2289 = vunpack.c.l.b16 %v121
    %v2290 = vunpack.c.h.b16 %v121
    %v2291 = vunpack.c.l.b16 %v122
    %v2292 = vunpack.c.h.b16 %v122
    %v2293 = vunpack.c.l.b16 %v123
    %v2294 = vunpack.c.h.b16 %v123
    %v2295 = vunpack.c.l.b16 %v124
    %v2296 = vunpack.c.h.b16 %v124
    %v2297 = vunpack.c.l.b16 %v125
    %v2298 = vunpack.c.h.b16 %v125
    %v2299 = vunpack.c.l.b16 %v126
    %v2300 = vunpack.c.h.b16 %v126
    %v2301 = vunpack.c.l.b16 %v127
    %v2302 = vunpack.c.h.b16 %v127
    %v2303 = vunpack.c.l.b16 %v128
    %v2304 = vunpack.c.h.b16 %v128
    %v2305 = vunpack.c.l.b16 %v129
    %v2306 = vunpack.c.h.b16 %v129
    %v2307 = vunpack.c.l.b16 %v130
    %v2308 = vunpack.c.h.b16 %v130
    %v2309 = vunpack.c.l.b16 %v131
    %v2310 = vunpack.c.h.b16 %v131
    %v2311 = vunpack.c.l.b16 %v132
    %v2312 = vunpack.c.h.b16 %v132
    %v2313 = vunpack.c.l.b16 %v133
    %v2314 = vunpack.c.h.b16 %v133
    %v2315 = vunpack.c.l.b16 %v134
    %v2316 = vunpack.c.h.b16 %v134
    %v2317 = vunpack.c.l.b16 %v135
    %v2318 = vunpack.c.h.b16 %v135
    %v2319 = vunpack.c.l.b16 %v136
    %v2320 = vunpack.c.h.b16 %v136
    %v2321 = vunpack.c.l.b16 %v137
    %v2322 = vunpack.c.h.b16 %v137
    %v2323 = vunpack.c.l.b16 %v138
    %v2324 = vunpack.c.h.b16 %v138
    %v2325 = vunpack.c.l.b16 %v139
    %v2326 = vunpack.c.h.b16 %v139
    %v2327 = vunpack.c.l.b16 %v140
    %v2328 = vunpack.c.h.b16 %v140
    %v2329 = vunpack.c.l.b16 %v141
    %v2330 = vunpack.c.h.b16 %v141
    %v2331 = vunpack.c.l.b16 %v142
    %v2332 = vunpack.c.h.b16 %v142
    %v2333 = vunpack.c.l.b16 %v143
    %v2334 = vunpack.c.h.b16 %v143
    %v2335 = vunpack.c.l.b16 %v144
    %v2336 = vunpack.c.h.b16 %v144
    %v2337 = vunpack.c.l.b16 %v145
    %v2338 = vunpack.c.h.b16 %v145
    %v2339 = vunpack.c.l.b16 %v146
    %v2340 = vunpack.c.h.b16 %v146
    %v2341 = vunpack.c.l.b16 %v147
    %v2342 = vunpack.c.h.b16 %v147
    %v2343 = vunpack.c.l.b16 %v148
    %v2344 = vunpack.c.h.b16 %v148
    %v2345 = vunpack.c.l.b16 %v149
    %v2346 = vunpack.c.h.b16 %v149
    %v2347 = vunpack.c.l.b16 %v150
    %v2348 = vunpack.c.h.b16 %v150
    %v2349 = vunpack.c.l.b16 %v151
    %v2350 = vunpack.c.h.b16 %v151
    %v2351 = vunpack.c.l.b16 %v152
    %v2352 = vunpack.c.h.b16 %v152
    %v2353 = vunpack.c.l.b16 %v153
    %v2354 = vunpack.c.h.b16 %v153
    %v2355 = vunpack.c.l.b16 %v154
    %v2356 = vunpack.c.h.b16 %v154
    %v2357 = vunpack.c.l.b16 %v155
    %v2358 = vunpack.c.h.b16 %v155
    %v2359 = vunpack.c.l.b16 %v156
    %v2360 = vunpack.c.h.b16 %v156
    %v2361 = vunpack.c.l.b16 %v157
    %v2362 = vunpack.c.h.b16 %v157
    %v2363 = vunpack.c.l.b16 %v158
    %v2364 = vunpack.c.h.b16 %v158
    %v2365 = vunpack.c.l.b16 %v159
    %v2366 = vunpack.c.h.b16 %v159
    %v2367 = vunpack.c.l.b16 %v160
    %v2368 = vunpack.c.h.b16 %v160
    %v2369 = vunpack.c.l.b16 %v161
    %v2370 = vunpack.c.h.b16 %v161
    %v2371 = vunpack.c.l.b16 %v162
    %v2372 = vunpack.c.h.b16 %v162
    %v2373 = vunpack.c.l.b16 %v163
    %v2374 = vunpack.c.h.b16 %v163
    %v2375 = vunpack.c.l.b16 %v164
    %v2376 = vunpack.c.h.b16 %v164
    %v2377 = vunpack.c.l.b16 %v165
    %v2378 = vunpack.c.h.b16 %v165
    %v2379 = vunpack.c.l.b16 %v166
    %v2380 = vunpack.c.h.b16 %v166
    %v2381 = vunpack.c.l.b16 %v167
    %v2382 = vunpack.c.h.b16 %v167
    %v2383 = vunpack.c.l.b16 %v168
    %v2384 = vunpack.c.h.b16 %v168
    %v2385 = vunpack.c.l.b16 %v169
    %v2386 = vunpack.c.h.b16 %v169
    %v2387 = vunpack.c.l.b16 %v170
    %v2388 = vunpack.c.h.b16 %v170
    %v2389 = vunpack.c.l.b16 %v171
    %v2390 = vunpack.c.h.b16 %v171
    %v2391 = vunpack.c.l.b16 %v172
    %v2392 = vunpack.c.h.b16 %v172
    %v2393 = vunpack.c.l.b16 %v173
    %v2394 = vunpack.c.h.b16 %v173
    %v2395 = vunpack.c.l.b16 %v174
    %v2396 = vunpack.c.h.b16 %v174
    %v2397 = vunpack.c.l.b16 %v175
    %v2398 = vunpack.c.h.b16 %v175
    %v2399 = vunpack.c.l.b16 %v176
    %v2400 = vunpack.c.h.b16 %v176
    %v2401 = vunpack.c.l.b16 %v177
    %v2402 = vunpack.c.h.b16 %v177
    %v2403 = vunpack.c.l.b16 %v178
    %v2404 = vunpack.c.h.b16 %v178
    %v2405 = vunpack.c.l.b16 %v179
    %v2406 = vunpack.c.h.b16 %v179
    %v2407 = vunpack.c.l.b16 %v180
    %v2408 = vunpack.c.h.b16 %v180
    %v2409 = vunpack.c.l.b16 %v181
    %v2410 = vunpack.c.h.b16 %v181
    %v2411 = vunpack.c.l.b16 %v182
    %v2412 = vunpack.c.h.b16 %v182
    %v2413 = vunpack.c.l.b16 %v183
    %v2414 = vunpack.c.h.b16 %v183
    %v2415 = vunpack.c.l.b16 %v184
    %v2416 = vunpack.c.h.b16 %v184
    %v2417 = vunpack.c.l.b16 %v185
    %v2418 = vunpack.c.h.b16 %v185
    %v2419 = vunpack.c.l.b16 %v186
    %v2420 = vunpack.c.h.b16 %v186
    %v2421 = vunpack.c.l.b16 %v187
    %v2422 = vunpack.c.h.b16 %v187
    %v2423 = vunpack.c.l.b16 %v188
    %v2424 = vunpack.c.h.b16 %v188
    %v2425 = vunpack.c.l.b16 %v189
    %v2426 = vunpack.c.h.b16 %v189
    %v2427 = vunpack.c.l.b16 %v190
    %v2428 = vunpack.c.h.b16 %v190
    %v2429 = vunpack.c.l.b16 %v191
    %v2430 = vunpack.c.h.b16 %v191
    %v2431 = vunpack.c.l.b16 %v192
    %v2432 = vunpack.c.h.b16 %v192
    %v2433 = vunpack.c.l.b16 %v193
    %v2434 = vunpack.c.h.b16 %v193
    %v2435 = vunpack.c.l.b16 %v194
    %v2436 = vunpack.c.h.b16 %v194
    %v2437 = vunpack.c.l.b16 %v195
    %v2438 = vunpack.c.h.b16 %v195
    %v2439 = vunpack.c.l.b16 %v196
    %v2440 = vunpack.c.h.b16 %v196
    %v2441 = vunpack.c.l.b16 %v197
    %v2442 = vunpack.c.h.b16 %v197
    %v2443 = vunpack.c.l.b16 %v198
    %v2444 = vunpack.c.h.b16 %v198
    %v2445 = vunpack.c.l.b16 %v199
    %v2446 = vunpack.c.h.b16 %v199
    %v2447 = vunpack.c.l.b16 %v200
    %v2448 = vunpack.c.h.b16 %v200
    %v2449 = vunpack.c.l.b16 %v201
    %v2450 = vunpack.c.h.b16 %v201
    %v2451 = vunpack.c.l.b16 %v202
    %v2452 = vunpack.c.h.b16 %v202
    %v2453 = vunpack.c.l.b16 %v203
    %v2454 = vunpack.c.h.b16 %v203
    %v2455 = vunpack.c.l.b16 %v204
    %v2456 = vunpack.c.h.b16 %v204
    %v2457 = vunpack.c.l.b16 %v205
    %v2458 = vunpack.c.h.b16 %v205
    %v2459 = vunpack.c.l.b16 %v206
    %v2460 = vunpack.c.h.b16 %v206
    %v2461 = vunpack.c.l.b16 %v207
    %v2462 = vunpack.c.h.b16 %v207
    %v2463 = vunpack.c.l.b16 %v208
    %v2464 = vunpack.c.h.b16 %v208
    %v2465 = vunpack.c.l.b16 %v209
    %v2466 = vunpack.c.h.b16 %v209
    %v2467 = vunpack.c.l.b16 %v210
    %v2468 = vunpack.c.h.b16 %v210
    %v2469 = vunpack.c.l.b16 %v211
    %v2470 = vunpack.c.h.b16 %v211
    %v2471 = vunpack.c.l.b16 %v212
    %v2472 = vunpack.c.h.b16 %v212
    %v2473 = vunpack.c.l.b16 %v213
    %v2474 = vunpack.c.h.b16 %v213
    %v2475 = vunpack.c.l.b16 %v214
    %v2476 = vunpack.c.h.b16 %v214
    %v2477 = vunpack.c.l.b16 %v215
    %v2478 = vunpack.c.h.b16 %v215
    %v2479 = vunpack.c.l.b16 %v216
    %v2480 = vunpack.c.h.b16 %v216
    %v2481 = vunpack.c.l.b16 %v217
    %v2482 = vunpack.c.h.b16 %v217
    %v2483 = vunpack.c.l.b16 %v218
    %v2484 = vunpack.c.h.b16 %v218
    %v2485 = vunpack.c.l.b16 %v219
    %v2486 = vunpack.c.h.b16 %v219
    %v2487 = vunpack.c.l.b16 %v220
    %v2488 = vunpack.c.h.b16 %v220
    %v2489 = vunpack.c.l.b16 %v221
    %v2490 = vunpack.c.h.b16 %v221
    %v2491 = vunpack.c.l.b16 %v222
    %v2492 = vunpack.c.h.b16 %v222
    %v2493 = vunpack.c.l.b16 %v223
    %v2494 = vunpack.c.h.b16 %v223
    %v2495 = vunpack.c.l.b16 %v224
    %v2496 = vunpack.c.h.b16 %v224
    %v2497 = vunpack.c.l.b16 %v225
    %v2498 = vunpack.c.h.b16 %v225
    %v2499 = vunpack.c.l.b16 %v226
    %v2500 = vunpack.c.h.b16 %v226
    %v2501 = vunpack.c.l.b16 %v227
    %v2502 = vunpack.c.h.b16 %v227
    %v2503 = vunpack.c.l.b16 %v228
    %v2504 = vunpack.c.h.b16 %v228
    %v2505 = vunpack.c.l.b16 %v229
    %v2506 = vunpack.c.h.b16 %v229
    %v2507 = vunpack.c.l.b16 %v230
    %v2508 = vunpack.c.h.b16 %v230
    %v2509 = vunpack.c.l.b16 %v231
    %v2510 = vunpack.c.h.b16 %v231
    %v2511 = vunpack.c.l.b16 %v232
    %v2512 = vunpack.c.h.b16 %v232
    %v2513 = vunpack.c.l.b16 %v233
    %v2514 = vunpack.c.h.b16 %v233
    %v2515 = vunpack.c.l.b16 %v234
    %v2516 = vunpack.c.h.b16 %v234
    %v2517 = vunpack.c.l.b16 %v235
    %v2518 = vunpack.c.h.b16 %v235
    %v2519 = vunpack.c.l.b16 %v236
    %v2520 = vunpack.c.h.b16 %v236
    %v2521 = vunpack.c.l.b16 %v237
    %v2522 = vunpack.c.h.b16 %v237
    %v2523 = vunpack.c.l.b16 %v238
    %v2524 = vunpack.c.h.b16 %v238
    %v2525 = vunpack.c.l.b16 %v239
    %v2526 = vunpack.c.h.b16 %v239
    %v2527 = vunpack.c.l.b16 %v240
    %v2528 = vunpack.c.h.b16 %v240
    %v2529 = vunpack.c.l.b16 %v241
    %v2530 = vunpack.c.h.b16 %v241
    %v2531 = vunpack.c.l.b16 %v242
    %v2532 = vunpack.c.h.b16 %v242
    %v2533 = vunpack.c.l.b16 %v243
    %v2534 = vunpack.c.h.b16 %v243
    %v2535 = vunpack.c.l.b16 %v244
    %v2536 = vunpack.c.h.b16 %v244
    %v2537 = vunpack.c.l.b16 %v245
    %v2538 = vunpack.c.h.b16 %v245
    %v2539 = vunpack.c.l.b16 %v246
    %v2540 = vunpack.c.h.b16 %v246
    %v2541 = vunpack.c.l.b16 %v247
    %v2542 = vunpack.c.h.b16 %v247
    %v2543 = vunpack.c.l.b16 %v248
    %v2544 = vunpack.c.h.b16 %v248
    %v2545 = vunpack.c.l.b16 %v249
    %v2546 = vunpack.c.h.b16 %v249
    %v2547 = vunpack.c.l.b16 %v250
    %v2548 = vunpack.c.h.b16 %v250
    %v2549 = vunpack.c.l.b16 %v251
    %v2550 = vunpack.c.h.b16 %v251
    %v2551 = vunpack.c.l.b16 %v252
    %v2552 = vunpack.c.h.b16 %v252
    %v2553 = vunpack.c.l.b16 %v253
    %v2554 = vunpack.c.h.b16 %v253
    %v2555 = vunpack.c.l.b16 %v254
    %v2556 = vunpack.c.h.b16 %v254
    %v2557 = vunpack.c.l.b16 %v255
    %v2558 = vunpack.c.h.b16 %v255
    %v2559 = vunpack.c.l.b16 %v256
    %v2560 = vunpack.c.h.b16 %v256
    %v2561 = vunpack.c.l.b16 %v257
    %v2562 = vunpack.c.h.b16 %v257
    %v2563 = vunpack.c.l.b16 %v258
    %v2564 = vunpack.c.h.b16 %v258
    %v2565 = vunpack.c.l.b16 %v259
    %v2566 = vunpack.c.h.b16 %v259
    %v2567 = vunpack.c.l.b16 %v260
    %v2568 = vunpack.c.h.b16 %v260
    %v2569 = vunpack.c.l.b16 %v261
    %v2570 = vunpack.c.h.b16 %v261
    %v2571 = vunpack.c.l.b16 %v262
    %v2572 = vunpack.c.h.b16 %v262
    %v2573 = vunpack.c.l.b16 %v263
    %v2574 = vunpack.c.h.b16 %v263
    %v2575 = vunpack.c.l.b16 %v264
    %v2576 = vunpack.c.h.b16 %v264
    %v2577 = vunpack.c.l.b16 %v265
    %v2578 = vunpack.c.h.b16 %v265
    %v2579 = vunpack.c.l.b16 %v266
    %v2580 = vunpack.c.h.b16 %v266
    %v2581 = vunpack.c.l.b16 %v267
    %v2582 = vunpack.c.h.b16 %v267
    %v2583 = vunpack.c.l.b16 %v268
    %v2584 = vunpack.c.h.b16 %v268
    %v2585 = vunpack.c.l.b16 %v269
    %v2586 = vunpack.c.h.b16 %v269
    %v2587 = vunpack.c.l.b16 %v270
    %v2588 = vunpack.c.h.b16 %v270
    %v2589 = vunpack.c.l.b16 %v271
    %v2590 = vunpack.c.h.b16 %v271
    %v2591 = vunpack.c.l.b16 %v272
    %v2592 = vunpack.c.h.b16 %v272
    %v2593 = vunpack.c.l.b16 %v273
    %v2594 = vunpack.c.h.b16 %v273
    %v2595 = vunpack.c.l.b16 %v274
    %v2596 = vunpack.c.h.b16 %v274
    %v2597 = vunpack.c.l.b16 %v275
    %v2598 = vunpack.c.h.b16 %v275
    %v2599 = vunpack.c.l.b16 %v276
    %v2600 = vunpack.c.h.b16 %v276
    %v2601 = vunpack.c.l.b16 %v277
    %v2602 = vunpack.c.h.b16 %v277
    %v2603 = vunpack.c.l.b16 %v278
    %v2604 = vunpack.c.h.b16 %v278
    %v2605 = vunpack.c.l.b16 %v279
    %v2606 = vunpack.c.h.b16 %v279
    %v2607 = vunpack.c.l.b16 %v280
    %v2608 = vunpack.c.h.b16 %v280
    %v2609 = vunpack.c.l.b16 %v281
    %v2610 = vunpack.c.h.b16 %v281
    %v2611 = vunpack.c.l.b16 %v282
    %v2612 = vunpack.c.h.b16 %v282
    %v2613 = vunpack.c.l.b16 %v283
    %v2614 = vunpack.c.h.b16 %v283
    %v2615 = vunpack.c.l.b16 %v284
    %v2616 = vunpack.c.h.b16 %v284
    %v2617 = vunpack.c.l.b16 %v285
    %v2618 = vunpack.c.h.b16 %v285
    %v2619 = vunpack.c.l.b16 %v286
    %v2620 = vunpack.c.h.b16 %v286
    %v2621 = vunpack.c.l.b16 %v287
    %v2622 = vunpack.c.h.b16 %v287
    %v2623 = vunpack.c.l.b16 %v288
    %v2624 = vunpack.c.h.b16 %v288
    %v2625 = vunpack.c.l.b16 %v289
    %v2626 = vunpack.c.h.b16 %v289
    %v2627 = vunpack.c.l.b16 %v290
    %v2628 = vunpack.c.h.b16 %v290
    %v2629 = vunpack.c.l.b16 %v291
    %v2630 = vunpack.c.h.b16 %v291
    %v2631 = vunpack.c.l.b16 %v292
    %v2632 = vunpack.c.h.b16 %v292
    %v2633 = vunpack.c.l.b16 %v293
    %v2634 = vunpack.c.h.b16 %v293
    %v2635 = vunpack.c.l.b16 %v294
    %v2636 = vunpack.c.h.b16 %v294
    %v2637 = vunpack.c.l.b16 %v295
    %v2638 = vunpack.c.h.b16 %v295
    %v2639 = vunpack.c.l.b16 %v296
    %v2640 = vunpack.c.h.b16 %v296
    %v2641 = vunpack.c.l.b16 %v297
    %v2642 = vunpack.c.h.b16 %v297
    %v2643 = vunpack.c.l.b16 %v298
    %v2644 = vunpack.c.h.b16 %v298
    %v2645 = vunpack.c.l.b16 %v299
    %v2646 = vunpack.c.h.b16 %v299
    %v2647 = vunpack.c.l.b16 %v300
    %v2648 = vunpack.c.h.b16 %v300
    %v2649 = vunpack.c.l.b16 %v301
    %v2650 = vunpack.c.h.b16 %v301
    %v2651 = vunpack.c.l.b16 %v302
    %v2652 = vunpack.c.h.b16 %v302
    %v2653 = vunpack.c.l.b16 %v303
    %v2654 = vunpack.c.h.b16 %v303
    %v2655 = vunpack.c.l.b16 %v304
    %v2656 = vunpack.c.h.b16 %v304
    %v2657 = vunpack.c.l.b16 %v305
    %v2658 = vunpack.c.h.b16 %v305
    %v2659 = vunpack.c.l.b16 %v306
    %v2660 = vunpack.c.h.b16 %v306
    %v2661 = vunpack.c.l.b16 %v307
    %v2662 = vunpack.c.h.b16 %v307
    %v2663 = vunpack.c.l.b16 %v308
    %v2664 = vunpack.c.h.b16 %v308
    %v2665 = vunpack.c.l.b16 %v309
    %v2666 = vunpack.c.h.b16 %v309
    %v2667 = vunpack.c.l.b16 %v310
    %v2668 = vunpack.c.h.b16 %v310
    %v2669 = vunpack.c.l.b16 %v311
    %v2670 = vunpack.c.h.b16 %v311
    %v2671 = vunpack.c.l.b16 %v312
    %v2672 = vunpack.c.h.b16 %v312
    %v2673 = vunpack.c.l.b16 %v313
    %v2674 = vunpack.c.h.b16 %v313
    %v2675 = vunpack.c.l.b16 %v314
    %v2676 = vunpack.c.h.b16 %v314
    %v2677 = vunpack.c.l.b16 %v315
    %v2678 = vunpack.c.h.b16 %v315
    %v2679 = vunpack.c.l.b16 %v316
    %v2680 = vunpack.c.h.b16 %v316
    %v2681 = vunpack.c.l.b16 %v317
    %v2682 = vunpack.c.h.b16 %v317
    %v2683 = vunpack.c.l.b16 %v318
    %v2684 = vunpack.c.h.b16 %v318
    %v2685 = vunpack.c.l.b16 %v319
    %v2686 = vunpack.c.h.b16 %v319
    %v2687 = vunpack.c.l.b16 %v320
    %v2688 = vunpack.c.h.b16 %v320
    %v2689 = vunpack.c.l.b16 %v321
    %v2690 = vunpack.c.h.b16 %v321
    %v2691 = vunpack.c.l.b16 %v322
    %v2692 = vunpack.c.h.b16 %v322
    %v2693 = vunpack.c.l.b16 %v323
    %v2694 = vunpack.c.h.b16 %v323
    %v2695 = vunpack.c.l.b16 %v324
    %v2696 = vunpack.c.h.b16 %v324
    %v2697 = vunpack.c.l.b16 %v325
    %v2698 = vunpack.c.h.b16 %v325
    %v2699 = vunpack.c.l.b16 %v326
    %v2700 = vunpack.c.h.b16 %v326
    %v2701 = vunpack.c.l.b16 %v327
    %v2702 = vunpack.c.h.b16 %v327
    %v2703 = vunpack.c.l.b16 %v328
    %v2704 = vunpack.c.h.b16 %v328
    %v2705 = vunpack.c.l.b16 %v329
    %v2706 = vunpack.c.h.b16 %v329
    %v2707 = vunpack.c.l.b16 %v330
    %v2708 = vunpack.c.h.b16 %v330
    %v2709 = vunpack.c.l.b16 %v331
    %v2710 = vunpack.c.h.b16 %v331
    %v2711 = vunpack.c.l.b16 %v332
    %v2712 = vunpack.c.h.b16 %v332
    %v2713 = vunpack.c.l.b16 %v333
    %v2714 = vunpack.c.h.b16 %v333
    %v2715 = vunpack.c.l.b16 %v334
    %v2716 = vunpack.c.h.b16 %v334
    %v2717 = vunpack.c.l.b16 %v335
    %v2718 = vunpack.c.h.b16 %v335
    %v2719 = vunpack.c.l.b16 %v336
    %v2720 = vunpack.c.h.b16 %v336
    %v2721 = vunpack.c.l.b16 %v337
    %v2722 = vunpack.c.h.b16 %v337
    %v2723 = vunpack.c.l.b16 %v338
    %v2724 = vunpack.c.h.b16 %v338
    %v2725 = vunpack.c.l.b16 %v339
    %v2726 = vunpack.c.h.b16 %v339
    %v2727 = vunpack.c.l.b16 %v340
    %v2728 = vunpack.c.h.b16 %v340
    %v2729 = vunpack.c.l.b16 %v341
    %v2730 = vunpack.c.h.b16 %v341
    %v2731 = vunpack.c.l.b16 %v342
    %v2732 = vunpack.c.h.b16 %v342
    %v2733 = vunpack.c.l.b16 %v343
    %v2734 = vunpack.c.h.b16 %v343
    %v2735 = vunpack.c.l.b16 %v344
    %v2736 = vunpack.c.h.b16 %v344
    %v2737 = vunpack.c.l.b16 %v345
    %v2738 = vunpack.c.h.b16 %v345
    %v2739 = vunpack.c.l.b16 %v346
    %v2740 = vunpack.c.h.b16 %v346
    %v2741 = vunpack.c.l.b16 %v347
    %v2742 = vunpack.c.h.b16 %v347
    %v2743 = vunpack.c.l.b16 %v348
    %v2744 = vunpack.c.h.b16 %v348
    %v2745 = vunpack.c.l.b16 %v349
    %v2746 = vunpack.c.h.b16 %v349
    %v2747 = vunpack.c.l.b16 %v350
    %v2748 = vunpack.c.h.b16 %v350
    %v2749 = vunpack.c.l.b16 %v351
    %v2750 = vunpack.c.h.b16 %v351
    %v2751 = vunpack.c.l.b16 %v352
    %v2752 = vunpack.c.h.b16 %v352
    %v2753 = vunpack.c.l.b16 %v353
    %v2754 = vunpack.c.h.b16 %v353
    %v2755 = vunpack.c.l.b16 %v354
    %v2756 = vunpack.c.h.b16 %v354
    %v2757 = vunpack.c.l.b16 %v355
    %v2758 = vunpack.c.h.b16 %v355
    %v2759 = vunpack.c.l.b16 %v356
    %v2760 = vunpack.c.h.b16 %v356
    %v2761 = vunpack.c.l.b16 %v357
    %v2762 = vunpack.c.h.b16 %v357
    %v2763 = vunpack.c.l.b16 %v358
    %v2764 = vunpack.c.h.b16 %v358
    %v2765 = vunpack.c.l.b16 %v359
    %v2766 = vunpack.c.h.b16 %v359
    %v2767 = vunpack.c.l.b16 %v360
    %v2768 = vunpack.c.h.b16 %v360
    %v2769 = vunpack.c.l.b16 %v361
    %v2770 = vunpack.c.h.b16 %v361
    %v2771 = vunpack.c.l.b16 %v362
    %v2772 = vunpack.c.h.b16 %v362
    %v2773 = vunpack.c.l.b16 %v363
    %v2774 = vunpack.c.h.b16 %v363
    %v2775 = vunpack.c.l.b16 %v364
    %v2776 = vunpack.c.h.b16 %v364
    %v2777 = vunpack.c.l.b16 %v365
    %v2778 = vunpack.c.h.b16 %v365
    %v2779 = vunpack.c.l.b16 %v366
    %v2780 = vunpack.c.h.b16 %v366
    %v2781 = vunpack.c.l.b16 %v367
    %v2782 = vunpack.c.h.b16 %v367
    %v2783 = vunpack.c.l.b16 %v368
    %v2784 = vunpack.c.h.b16 %v368
    %v2785 = vunpack.c.l.b16 %v369
    %v2786 = vunpack.c.h.b16 %v369
    %v2787 = vunpack.c.l.b16 %v370
    %v2788 = vunpack.c.h.b16 %v370
    %v2789 = vunpack.c.l.b16 %v371
    %v2790 = vunpack.c.h.b16 %v371
    %v2791 = vunpack.c.l.b16 %v372
    %v2792 = vunpack.c.h.b16 %v372
    %v2793 = vunpack.c.l.b16 %v373
    %v2794 = vunpack.c.h.b16 %v373
    %v2795 = vunpack.c.l.b16 %v374
    %v2796 = vunpack.c.h.b16 %v374
    %v2797 = vunpack.c.l.b16 %v375
    %v2798 = vunpack.c.h.b16 %v375
    %v2799 = vunpack.c.l.b16 %v376
    %v2800 = vunpack.c.h.b16 %v376
    %v2801 = vunpack.c.l.b16 %v377
    %v2802 = vunpack.c.h.b16 %v377
    %v2803 = vunpack.c.l.b16 %v378
    %v2804 = vunpack.c.h.b16 %v378
    %v2805 = vunpack.c.l.b16 %v379
    %v2806 = vunpack.c.h.b16 %v379
    %v2807 = vunpack.c.l.b16 %v380
    %v2808 = vunpack.c.h.b16 %v380
    %v2809 = vunpack.c.l.b16 %v381
    %v2810 = vunpack.c.h.b16 %v381
    %v2811 = vunpack.c.l.b16 %v382
    %v2812 = vunpack.c.h.b16 %v382
    %v2813 = vunpack.c.l.b16 %v383
    %v2814 = vunpack.c.h.b16 %v383
    %v2815 = vunpack.c.l.b16 %v384
    %v2816 = vunpack.c.h.b16 %v384
    %v2817 = vunpack.c.l.b16 %v385
    %v2818 = vunpack.c.h.b16 %v385
    %v2819 = vunpack.c.l.b16 %v386
    %v2820 = vunpack.c.h.b16 %v386
    %v2821 = vunpack.c.l.b16 %v387
    %v2822 = vunpack.c.h.b16 %v387
    %v2823 = vunpack.c.l.b16 %v388
    %v2824 = vunpack.c.h.b16 %v388
    %v2825 = vunpack.c.l.b16 %v389
    %v2826 = vunpack.c.h.b16 %v389
    %v2827 = vunpack.c.l.b16 %v390
    %v2828 = vunpack.c.h.b16 %v390
    %v2829 = vunpack.c.l.b16 %v391
    %v2830 = vunpack.c.h.b16 %v391
    %v2831 = vunpack.c.l.b16 %v392
    %v2832 = vunpack.c.h.b16 %v392
    %v2833 = vunpack.c.l.b16 %v393
    %v2834 = vunpack.c.h.b16 %v393
    %v2835 = vunpack.c.l.b16 %v394
    %v2836 = vunpack.c.h.b16 %v394
    %v2837 = vunpack.c.l.b16 %v395
    %v2838 = vunpack.c.h.b16 %v395
    %v2839 = vunpack.c.l.b16 %v396
    %v2840 = vunpack.c.h.b16 %v396
    %v2841 = vunpack.c.l.b16 %v397
    %v2842 = vunpack.c.h.b16 %v397
    %v2843 = vunpack.c.l.b16 %v398
    %v2844 = vunpack.c.h.b16 %v398
    %v2845 = vunpack.c.l.b16 %v399
    %v2846 = vunpack.c.h.b16 %v399
    %v2847 = vunpack.c.l.b16 %v400
    %v2848 = vunpack.c.h.b16 %v400
    %v2849 = vunpack.c.l.b16 %v401
    %v2850 = vunpack.c.h.b16 %v401
    %v2851 = vunpack.c.l.b16 %v402
    %v2852 = vunpack.c.h.b16 %v402
    %v2853 = vunpack.c.l.b16 %v403
    %v2854 = vunpack.c.h.b16 %v403
    %v2855 = vunpack.c.l.b16 %v404
    %v2856 = vunpack.c.h.b16 %v404
    %v2857 = vunpack.c.l.b16 %v405
    %v2858 = vunpack.c.h.b16 %v405
    %v2859 = vunpack.c.l.b16 %v406
    %v2860 = vunpack.c.h.b16 %v406
    %v2861 = vunpack.c.l.b16 %v407
    %v2862 = vunpack.c.h.b16 %v407
    %v2863 = vunpack.c.l.b16 %v408
    %v2864 = vunpack.c.h.b16 %v408
    %v2865 = vunpack.c.l.b16 %v409
    %v2866 = vunpack.c.h.b16 %v409
    %v2867 = vunpack.c.l.b16 %v410
    %v2868 = vunpack.c.h.b16 %v410
    %v2869 = vunpack.c.l.b16 %v411
    %v2870 = vunpack.c.h.b16 %v411
    %v2871 = vunpack.c.l.b16 %v412
    %v2872 = vunpack.c.h.b16 %v412
    %v2873 = vunpack.c.l.b16 %v413
    %v2874 = vunpack.c.h.b16 %v413
    %v2875 = vunpack.c.l.b16 %v414
    %v2876 = vunpack.c.h.b16 %v414
    %v2877 = vunpack.c.l.b16 %v415
    %v2878 = vunpack.c.h.b16 %v415
    %v2879 = vunpack.c.l.b16 %v416
    %v2880 = vunpack.c.h.b16 %v416
    %v2881 = vunpack.c.l.b16 %v417
    %v2882 = vunpack.c.h.b16 %v417
    %v2883 = vunpack.c.l.b16 %v418
    %v2884 = vunpack.c.h.b16 %v418
    %v2885 = vunpack.c.l.b16 %v419
    %v2886 = vunpack.c.h.b16 %v419
    %v2887 = vunpack.c.l.b16 %v420
    %v2888 = vunpack.c.h.b16 %v420
    %v2889 = vunpack.c.l.b16 %v421
    %v2890 = vunpack.c.h.b16 %v421
    %v2891 = vunpack.c.l.b16 %v422
    %v2892 = vunpack.c.h.b16 %v422
    %v2893 = vunpack.c.l.b16 %v423
    %v2894 = vunpack.c.h.b16 %v423
    %v2895 = vunpack.c.l.b16 %v424
    %v2896 = vunpack.c.h.b16 %v424
    %v2897 = vunpack.c.l.b16 %v425
    %v2898 = vunpack.c.h.b16 %v425
    %v2899 = vunpack.c.l.b16 %v426
    %v2900 = vunpack.c.h.b16 %v426
    %v2901 = vunpack.c.l.b16 %v427
    %v2902 = vunpack.c.h.b16 %v427
    %v2903 = vunpack.c.l.b16 %v428
    %v2904 = vunpack.c.h.b16 %v428
    %v2905 = vunpack.c.l.b16 %v429
    %v2906 = vunpack.c.h.b16 %v429
    %v2907 = vunpack.c.l.b16 %v430
    %v2908 = vunpack.c.h.b16 %v430
    %v2909 = vunpack.c.l.b16 %v431
    %v2910 = vunpack.c.h.b16 %v431
    %v2911 = vunpack.c.l.b16 %v432
    %v2912 = vunpack.c.h.b16 %v432
    %v2913 = vunpack.c.l.b16 %v433
    %v2914 = vunpack.c.h.b16 %v433
    %v2915 = vunpack.c.l.b16 %v434
    %v2916 = vunpack.c.h.b16 %v434
    %v2917 = vunpack.c.l.b16 %v435
    %v2918 = vunpack.c.h.b16 %v435
    %v2919 = vunpack.c.l.b16 %v436
    %v2920 = vunpack.c.h.b16 %v436
    %v2921 = vunpack.c.l.b16 %v437
    %v2922 = vunpack.c.h.b16 %v437
    %v2923 = vunpack.c.l.b16 %v438
    %v2924 = vunpack.c.h.b16 %v438
    %v2925 = vunpack.c.l.b16 %v439
    %v2926 = vunpack.c.h.b16 %v439
    %v2927 = vunpack.c.l.b16 %v440
    %v2928 = vunpack.c.h.b16 %v440
    %v2929 = vunpack.c.l.b16 %v441
    %v2930 = vunpack.c.h.b16 %v441
    %v2931 = vunpack.c.l.b16 %v442
    %v2932 = vunpack.c.h.b16 %v442
    %v2933 = vunpack.c.l.b16 %v443
    %v2934 = vunpack.c.h.b16 %v443
    %v2935 = vunpack.c.l.b16 %v444
    %v2936 = vunpack.c.h.b16 %v444
    %v2937 = vunpack.c.l.b16 %v445
    %v2938 = vunpack.c.h.b16 %v445
    %v2939 = vunpack.c.l.b16 %v446
    %v2940 = vunpack.c.h.b16 %v446
    %v2941 = vunpack.c.l.b16 %v447
    %v2942 = vunpack.c.h.b16 %v447
    %v2943 = vunpack.c.l.b16 %v448
    %v2944 = vunpack.c.h.b16 %v448
    %v2945 = vunpack.c.l.b16 %v449
    %v2946 = vunpack.c.h.b16 %v449
    %v2947 = vunpack.c.l.b16 %v450
    %v2948 = vunpack.c.h.b16 %v450
    %v2949 = vunpack.c.l.b16 %v451
    %v2950 = vunpack.c.h.b16 %v451
    %v2951 = vunpack.c.l.b16 %v452
    %v2952 = vunpack.c.h.b16 %v452
    %v2953 = vunpack.c.l.b16 %v453
    %v2954 = vunpack.c.h.b16 %v453
    %v2955 = vunpack.c.l.b16 %v454
    %v2956 = vunpack.c.h.b16 %v454
    %v2957 = vunpack.c.l.b16 %v455
    %v2958 = vunpack.c.h.b16 %v455
    %v2959 = vunpack.c.l.b16 %v456
    %v2960 = vunpack.c.h.b16 %v456
    %v2961 = vunpack.c.l.b16 %v457
    %v2962 = vunpack.c.h.b16 %v457
    %v2963 = vunpack.c.l.b16 %v458
    %v2964 = vunpack.c.h.b16 %v458
    %v2965 = vunpack.c.l.b16 %v459
    %v2966 = vunpack.c.h.b16 %v459
    %v2967 = vunpack.c.l.b16 %v460
    %v2968 = vunpack.c.h.b16 %v460
    %v2969 = vunpack.c.l.b16 %v461
    %v2970 = vunpack.c.h.b16 %v461
    %v2971 = vunpack.c.l.b16 %v462
    %v2972 = vunpack.c.h.b16 %v462
    %v2973 = vunpack.c.l.b16 %v463
    %v2974 = vunpack.c.h.b16 %v463
    %v2975 = vunpack.c.l.b16 %v464
    %v2976 = vunpack.c.h.b16 %v464
    %v2977 = vunpack.c.l.b16 %v465
    %v2978 = vunpack.c.h.b16 %v465
    %v2979 = vunpack.c.l.b16 %v466
    %v2980 = vunpack.c.h.b16 %v466
    %v2981 = vunpack.c.l.b16 %v467
    %v2982 = vunpack.c.h.b16 %v467
    %v2983 = vunpack.c.l.b16 %v468
    %v2984 = vunpack.c.h.b16 %v468
    %v2985 = vunpack.c.l.b16 %v469
    %v2986 = vunpack.c.h.b16 %v469
    %v2987 = vunpack.c.l.b16 %v470
    %v2988 = vunpack.c.h.b16 %v470
    %v2989 = vunpack.c.l.b16 %v471
    %v2990 = vunpack.c.h.b16 %v471
    %v2991 = vunpack.c.l.b16 %v472
    %v2992 = vunpack.c.h.b16 %v472
    %v2993 = vunpack.c.l.b16 %v473
    %v2994 = vunpack.c.h.b16 %v473
    %v2995 = vunpack.c.l.b16 %v474
    %v2996 = vunpack.c.h.b16 %v474
    %v2997 = vunpack.c.l.b16 %v475
    %v2998 = vunpack.c.h.b16 %v475
    %v2999 = vunpack.c.l.b16 %v476
    %v3000 = vunpack.c.h.b16 %v476
    %v3001 = vunpack.c.l.b16 %v477
    %v3002 = vunpack.c.h.b16 %v477
    %v3003 = vunpack.c.l.b16 %v478
    %v3004 = vunpack.c.h.b16 %v478
    %v3005 = vunpack.c.l.b16 %v479
    %v3006 = vunpack.c.h.b16 %v479
    %v3007 = vunpack.c.l.b16 %v480
    %v3008 = vunpack.c.h.b16 %v480
    %v3009 = vunpack.c.l.b16 %v481
    %v3010 = vunpack.c.h.b16 %v481
    %v3011 = vunpack.c.l.b16 %v482
    %v3012 = vunpack.c.h.b16 %v482
    %v3013 = vunpack.c.l.b16 %v483
    %v3014 = vunpack.c.h.b16 %v483
    %v3015 = vunpack.c.l.b16 %v484
    %v3016 = vunpack.c.h.b16 %v484
    %v3017 = vunpack.c.l.b16 %v485
    %v3018 = vunpack.c.h.b16 %v485
    %v3019 = vunpack.c.l.b16 %v486
    %v3020 = vunpack.c.h.b16 %v486
    %v3021 = vunpack.c.l.b16 %v487
    %v3022 = vunpack.c.h.b16 %v487
    %v3023 = vunpack.c.l.b16 %v488
    %v3024 = vunpack.c.h.b16 %v488
    %v3025 = vunpack.c.l.b16 %v489
    %v3026 = vunpack.c.h.b16 %v489
    %v3027 = vunpack.c.l.b16 %v490
    %v3028 = vunpack.c.h.b16 %v490
    %v3029 = vunpack.c.l.b16 %v491
    %v3030 = vunpack.c.h.b16 %v491
    %v3031 = vunpack.c.l.b16 %v492
    %v3032 = vunpack.c.h.b16 %v492
    %v3033 = vunpack.c.l.b16 %v493
    %v3034 = vunpack.c.h.b16 %v493
    %v3035 = vunpack.c.l.b16 %v494
    %v3036 = vunpack.c.h.b16 %v494
    %v3037 = vunpack.c.l.b16 %v495
    %v3038 = vunpack.c.h.b16 %v495
    %v3039 = vunpack.c.l.b16 %v496
    %v3040 = vunpack.c.h.b16 %v496
    %v3041 = vunpack.c.l.b16 %v497
    %v3042 = vunpack.c.h.b16 %v497
    %v3043 = vunpack.c.l.b16 %v498
    %v3044 = vunpack.c.h.b16 %v498
    %v3045 = vunpack.c.l.b16 %v499
    %v3046 = vunpack.c.h.b16 %v499
    %v3047 = vunpack.c.l.b16 %v500
    %v3048 = vunpack.c.h.b16 %v500
    %v3049 = vunpack.c.l.b16 %v501
    %v3050 = vunpack.c.h.b16 %v501
    %v3051 = vunpack.c.l.b16 %v502
    %v3052 = vunpack.c.h.b16 %v502
    %v3053 = vunpack.c.l.b16 %v503
    %v3054 = vunpack.c.h.b16 %v503
    %v3055 = vunpack.c.l.b16 %v504
    %v3056 = vunpack.c.h.b16 %v504
    %v3057 = vunpack.c.l.b16 %v505
    %v3058 = vunpack.c.h.b16 %v505
    %v3059 = vunpack.c.l.b16 %v506
    %v3060 = vunpack.c.h.b16 %v506
    %v3061 = vunpack.c.l.b16 %v507
    %v3062 = vunpack.c.h.b16 %v507
    %v3063 = vunpack.c.l.b16 %v508
    %v3064 = vunpack.c.h.b16 %v508
    %v3065 = vunpack.c.l.b16 %v509
    %v3066 = vunpack.c.h.b16 %v509
    %v3067 = vunpack.c.l.b16 %v510
    %v3068 = vunpack.c.h.b16 %v510
    %v3069 = vunpack.c.l.b16 %v511
    %v3070 = vunpack.c.h.b16 %v511
    %v3071 = vunpack.c.l.b16 %v512
    %v3072 = vunpack.c.h.b16 %v512
    %v3073 = vunpack.c.l.b16 %v513
    %v3074 = vunpack.c.h.b16 %v513
    %v3075 = vunpack.c.l.b16 %v514
    %v3076 = vunpack.c.h.b16 %v514
    %v3077 = vunpack.c.l.b16 %v515
    %v3078 = vunpack.c.h.b16 %v515
    %v3079 = vunpack.c.l.b16 %v516
    %v3080 = vunpack.c.h.b16 %v516
    %v3081 = vunpack.c.l.b16 %v517
    %v3082 = vunpack.c.h.b16 %v517
    %v3083 = vunpack.c.l.b16 %v518
    %v3084 = vunpack.c.h.b16 %v518
    %v3085 = vunpack.c.l.b16 %v519
    %v3086 = vunpack.c.h.b16 %v519
    %v3087 = vunpack.c.l.b16 %v520
    %v3088 = vunpack.c.h.b16 %v520
    %v3089 = vunpack.c.l.b16 %v521
    %v3090 = vunpack.c.h.b16 %v521
    %v3091 = vunpack.c.l.b16 %v522
    %v3092 = vunpack.c.h.b16 %v522
    %v3093 = vunpack.c.l.b16 %v523
    %v3094 = vunpack.c.h.b16 %v523
    %v3095 = vunpack.c.l.b16 %v524
    %v3096 = vunpack.c.h.b16 %v524
    %v3097 = vunpack.c.l.b16 %v525
    %v3098 = vunpack.c.h.b16 %v525
    %v3099 = vunpack.c.l.b16 %v526
    %v3100 = vunpack.c.h.b16 %v526
    %v3101 = vunpack.c.l.b16 %v527
    %v3102 = vunpack.c.h.b16 %v527
    %v3103 = vunpack.c.l.b16 %v528
    %v3104 = vunpack.c.h.b16 %v528
    %v3105 = vunpack.c.l.b16 %v529
    %v3106 = vunpack.c.h.b16 %v529
    %v3107 = vunpack.c.l.b16 %v530
    %v3108 = vunpack.c.h.b16 %v530
    %v3109 = vunpack.c.l.b16 %v531
    %v3110 = vunpack.c.h.b16 %v531
    %v3111 = vunpack.c.l.b16 %v532
    %v3112 = vunpack.c.h.b16 %v532
    %v3113 = vunpack.c.l.b16 %v533
    %v3114 = vunpack.c.h.b16 %v533
    %v3115 = vunpack.c.l.b16 %v534
    %v3116 = vunpack.c.h.b16 %v534
    %v3117 = vunpack.c.l.b16 %v535
    %v3118 = vunpack.c.h.b16 %v535
    %v3119 = vunpack.c.l.b16 %v536
    %v3120 = vunpack.c.h.b16 %v536
    %v3121 = vunpack.c.l.b16 %v537
    %v3122 = vunpack.c.h.b16 %v537
    %v3123 = vunpack.c.l.b16 %v538
    %v3124 = vunpack.c.h.b16 %v538
    %v3125 = vunpack.c.l.b16 %v539
    %v3126 = vunpack.c.h.b16 %v539
    %v3127 = vunpack.c.l.b16 %v540
    %v3128 = vunpack.c.h.b16 %v540
    %v3129 = vunpack.c.l.b16 %v541
    %v3130 = vunpack.c.h.b16 %v541
    %v3131 = vunpack.c.l.b16 %v542
    %v3132 = vunpack.c.h.b16 %v542
    %v3133 = vunpack.c.l.b16 %v543
    %v3134 = vunpack.c.h.b16 %v543
    %v3135 = vunpack.c.l.b16 %v544
    %v3136 = vunpack.c.h.b16 %v544
    %v3137 = vunpack.c.l.b16 %v545
    %v3138 = vunpack.c.h.b16 %v545
    %v3139 = vunpack.c.l.b16 %v546
    %v3140 = vunpack.c.h.b16 %v546
    %v3141 = vunpack.c.l.b16 %v547
    %v3142 = vunpack.c.h.b16 %v547
    %v3143 = vunpack.c.l.b16 %v548
    %v3144 = vunpack.c.h.b16 %v548
    %v3145 = vunpack.c.l.b16 %v549
    %v3146 = vunpack.c.h.b16 %v549
    %v3147 = vunpack.c.l.b16 %v550
    %v3148 = vunpack.c.h.b16 %v550
    %v3149 = vunpack.c.l.b16 %v551
    %v3150 = vunpack.c.h.b16 %v551
    %v3151 = vunpack.c.l.b16 %v552
    %v3152 = vunpack.c.h.b16 %v552
    %v3153 = vunpack.c.l.b16 %v553
    %v3154 = vunpack.c.h.b16 %v553
    %v3155 = vunpack.c.l.b16 %v554
    %v3156 = vunpack.c.h.b16 %v554
    %v3157 = vunpack.c.l.b16 %v555
    %v3158 = vunpack.c.h.b16 %v555
    %v3159 = vunpack.c.l.b16 %v556
    %v3160 = vunpack.c.h.b16 %v556
    %v3161 = vunpack.c.l.b16 %v557
    %v3162 = vunpack.c.h.b16 %v557
    %v3163 = vunpack.c.l.b16 %v558
    %v3164 = vunpack.c.h.b16 %v558
    %v3165 = vunpack.c.l.b16 %v559
    %v3166 = vunpack.c.h.b16 %v559
    %v3167 = vunpack.c.l.b16 %v560
    %v3168 = vunpack.c.h.b16 %v560
    %v3169 = vunpack.c.l.b16 %v561
    %v3170 = vunpack.c.h.b16 %v561
    %v3171 = vunpack.c.l.b16 %v562
    %v3172 = vunpack.c.h.b16 %v562
    %v3173 = vunpack.c.l.b16 %v563
    %v3174 = vunpack.c.h.b16 %v563
    %v3175 = vunpack.c.l.b16 %v564
    %v3176 = vunpack.c.h.b16 %v564
    %v3177 = vunpack.c.l.b16 %v565
    %v3178 = vunpack.c.h.b16 %v565
    %v3179 = vunpack.c.l.b16 %v566
    %v3180 = vunpack.c.h.b16 %v566
    %v3181 = vunpack.c.l.b16 %v567
    %v3182 = vunpack.c.h.b16 %v567
    %v3183 = vunpack.c.l.b16 %v568
    %v3184 = vunpack.c.h.b16 %v568
    %v3185 = vunpack.c.l.b16 %v569
    %v3186 = vunpack.c.h.b16 %v569
    %v3187 = vunpack.c.l.b16 %v570
    %v3188 = vunpack.c.h.b16 %v570
    %v3189 = vunpack.c.l.b16 %v571
    %v3190 = vunpack.c.h.b16 %v571
    %v3191 = vunpack.c.l.b16 %v572
    %v3192 = vunpack.c.h.b16 %v572
    %v3193 = vunpack.c.l.b16 %v573
    %v3194 = vunpack.c.h.b16 %v573
    %v3195 = vunpack.c.l.b16 %v574
    %v3196 = vunpack.c.h.b16 %v574
    %v3197 = vunpack.c.l.b16 %v575
    %v3198 = vunpack.c.h.b16 %v575
    %v3199 = vunpack.c.l.b16 %v576
    %v3200 = vunpack.c.h.b16 %v576
    %v3201 = vunpack.c.l.b16 %v577
    %v3202 = vunpack.c.h.b16 %v577
    %v3203 = vunpack.c.l.b16 %v578
    %v3204 = vunpack.c.h.b16 %v578
    %v3205 = vunpack.c.l.b16 %v579
    %v3206 = vunpack.c.h.b16 %v579
    %v3207 = vunpack.c.l.b16 %v580
    %v3208 = vunpack.c.h.b16 %v580
    %v3209 = vunpack.c.l.b16 %v581
    %v3210 = vunpack.c.h.b16 %v581
    %v3211 = vunpack.c.l.b16 %v582
    %v3212 = vunpack.c.h.b16 %v582
    %v3213 = vunpack.c.l.b16 %v583
    %v3214 = vunpack.c.h.b16 %v583
    %v3215 = vunpack.c.l.b16 %v584
    %v3216 = vunpack.c.h.b16 %v584
    %v3217 = vunpack.c.l.b16 %v585
    %v3218 = vunpack.c.h.b16 %v585
    %v3219 = vunpack.c.l.b16 %v586
    %v3220 = vunpack.c.h.b16 %v586
    %v3221 = vunpack.c.l.b16 %v587
    %v3222 = vunpack.c.h.b16 %v587
    %v3223 = vunpack.c.l.b16 %v588
    %v3224 = vunpack.c.h.b16 %v588
    %v3225 = vunpack.c.l.b16 %v589
    %v3226 = vunpack.c.h.b16 %v589
    %v3227 = vunpack.c.l.b16 %v590
    %v3228 = vunpack.c.h.b16 %v590
    %v3229 = vunpack.c.l.b16 %v591
    %v3230 = vunpack.c.h.b16 %v591
    %v3231 = vunpack.c.l.b16 %v592
    %v3232 = vunpack.c.h.b16 %v592
    %v3233 = vunpack.c.l.b16 %v593
    %v3234 = vunpack.c.h.b16 %v593
    %v3235 = vunpack.c.l.b16 %v594
    %v3236 = vunpack.c.h.b16 %v594
    %v3237 = vunpack.c.l.b16 %v595
    %v3238 = vunpack.c.h.b16 %v595
    %v3239 = vunpack.c.l.b16 %v596
    %v3240 = vunpack.c.h.b16 %v596
    %v3241 = vunpack.c.l.b16 %v597
    %v3242 = vunpack.c.h.b16 %v597
    %v3243 = vunpack.c.l.b16 %v598
    %v3244 = vunpack.c.h.b16 %v598
    %v3245 = vunpack.c.l.b16 %v599
    %v3246 = vunpack.c.h.b16 %v599
    %v3247 = vunpack.c.l.b16 %v600
    %v3248 = vunpack.c.h.b16 %v600
    %v3249 = vunpack.c.l.b16 %v601
    %v3250 = vunpack.c.h.b16 %v601
    %v3251 = vunpack.c.l.b16 %v602
    %v3252 = vunpack.c.h.b16 %v602
    %v3253 = vunpack.c.l.b16 %v603
    %v3254 = vunpack.c.h.b16 %v603
    %v3255 = vunpack.c.l.b16 %v604
    %v3256 = vunpack.c.h.b16 %v604
    %v3257 = vunpack.c.l.b16 %v605
    %v3258 = vunpack.c.h.b16 %v605
    %v3259 = vunpack.c.l.b16 %v606
    %v3260 = vunpack.c.h.b16 %v606
    %v3261 = vunpack.c.l.b16 %v607
    %v3262 = vunpack.c.h.b16 %v607
    %v3263 = vunpack.c.l.b16 %v608
    %v3264 = vunpack.c.h.b16 %v608
    %v3265 = vunpack.c.l.b16 %v609
    %v3266 = vunpack.c.h.b16 %v609
    %v3267 = vunpack.c.l.b16 %v610
    %v3268 = vunpack.c.h.b16 %v610
    %v3269 = vunpack.c.l.b16 %v611
    %v3270 = vunpack.c.h.b16 %v611
    %v3271 = vunpack.c.l.b16 %v612
    %v3272 = vunpack.c.h.b16 %v612
    %v3273 = vunpack.c.l.b16 %v613
    %v3274 = vunpack.c.h.b16 %v613
    %v3275 = vunpack.c.l.b16 %v614
    %v3276 = vunpack.c.h.b16 %v614
    %v3277 = vunpack.c.l.b16 %v615
    %v3278 = vunpack.c.h.b16 %v615
    %v3279 = vunpack.c.l.b16 %v616
    %v3280 = vunpack.c.h.b16 %v616
    %v3281 = vunpack.c.l.b16 %v617
    %v3282 = vunpack.c.h.b16 %v617
    %v3283 = vunpack.c.l.b16 %v618
    %v3284 = vunpack.c.h.b16 %v618
    %v3285 = vunpack.c.l.b16 %v619
    %v3286 = vunpack.c.h.b16 %v619
    %v3287 = vunpack.c.l.b16 %v620
    %v3288 = vunpack.c.h.b16 %v620
    %v3289 = vunpack.c.l.b16 %v621
    %v3290 = vunpack.c.h.b16 %v621
    %v3291 = vunpack.c.l.b16 %v622
    %v3292 = vunpack.c.h.b16 %v622
    %v3293 = vunpack.c.l.b16 %v623
    %v3294 = vunpack.c.h.b16 %v623
    %v3295 = vunpack.c.l.b16 %v624
    %v3296 = vunpack.c.h.b16 %v624
    %v3297 = vunpack.c.l.b16 %v625
    %v3298 = vunpack.c.h.b16 %v625
    %v3299 = vunpack.c.l.b16 %v626
    %v3300 = vunpack.c.h.b16 %v626
    %v3301 = vunpack.c.l.b16 %v627
    %v3302 = vunpack.c.h.b16 %v627
    %v3303 = vunpack.c.l.b16 %v628
    %v3304 = vunpack.c.h.b16 %v628
    %v3305 = vunpack.c.l.b16 %v629
    %v3306 = vunpack.c.h.b16 %v629
    %v3307 = vunpack.c.l.b16 %v630
    %v3308 = vunpack.c.h.b16 %v630
    %v3309 = vunpack.c.l.b16 %v631
    %v3310 = vunpack.c.h.b16 %v631
    %v3311 = vunpack.c.l.b16 %v632
    %v3312 = vunpack.c.h.b16 %v632
    %v3313 = vunpack.c.l.b16 %v633
    %v3314 = vunpack.c.h.b16 %v633
    %v3315 = vunpack.c.l.b16 %v634
    %v3316 = vunpack.c.h.b16 %v634
    %v3317 = vunpack.c.l.b16 %v635
    %v3318 = vunpack.c.h.b16 %v635
    %v3319 = vunpack.c.l.b16 %v636
    %v3320 = vunpack.c.h.b16 %v636
    %v3321 = vunpack.c.l.b16 %v637
    %v3322 = vunpack.c.h.b16 %v637
    %v3323 = vunpack.c.l.b16 %v638
    %v3324 = vunpack.c.h.b16 %v638
    %v3325 = vunpack.c.l.b16 %v639
    %v3326 = vunpack.c.h.b16 %v639
    %v3327 = vunpack.c.l.b16 %v640
    %v3328 = vunpack.c.h.b16 %v640
    %v3329 = vunpack.c.l.b16 %v641
    %v3330 = vunpack.c.h.b16 %v641
    %v3331 = vunpack.c.l.b16 %v642
    %v3332 = vunpack.c.h.b16 %v642
    %v3333 = vunpack.c.l.b16 %v643
    %v3334 = vunpack.c.h.b16 %v643
    %v3335 = vunpack.c.l.b16 %v644
    %v3336 = vunpack.c.h.b16 %v644
    %v3337 = vunpack.c.l.b16 %v645
    %v3338 = vunpack.c.h.b16 %v645
    %v3339 = vunpack.c.l.b16 %v646
    %v3340 = vunpack.c.h.b16 %v646
    %v3341 = vunpack.c.l.b16 %v647
    %v3342 = vunpack.c.h.b16 %v647
    %v3343 = vunpack.c.l.b16 %v648
    %v3344 = vunpack.c.h.b16 %v648
    %v3345 = vunpack.c.l.b16 %v649
    %v3346 = vunpack.c.h.b16 %v649
    %v3347 = vunpack.c.l.b16 %v650
    %v3348 = vunpack.c.h.b16 %v650
    %v3349 = vunpack.c.l.b16 %v651
    %v3350 = vunpack.c.h.b16 %v651
    %v3351 = vunpack.c.l.b16 %v652
    %v3352 = vunpack.c.h.b16 %v652
    %v3353 = vunpack.c.l.b16 %v653
    %v3354 = vunpack.c.h.b16 %v653
    %v3355 = vunpack.c.l.b16 %v654
    %v3356 = vunpack.c.h.b16 %v654
    %v3357 = vunpack.c.l.b16 %v655
    %v3358 = vunpack.c.h.b16 %v655
    %v3359 = vunpack.c.l.b16 %v656
    %v3360 = vunpack.c.h.b16 %v656
    %v3361 = vunpack.c.l.b16 %v657
    %v3362 = vunpack.c.h.b16 %v657
    %v3363 = vunpack.c.l.b16 %v658
    %v3364 = vunpack.c.h.b16 %v658
    %v3365 = vunpack.c.l.b16 %v659
    %v3366 = vunpack.c.h.b16 %v659
    %v3367 = vunpack.c.l.b16 %v660
    %v3368 = vunpack.c.h.b16 %v660
    %v3369 = vunpack.c.l.b16 %v661
    %v3370 = vunpack.c.h.b16 %v661
    %v3371 = vunpack.c.l.b16 %v662
    %v3372 = vunpack.c.h.b16 %v662
    %v3373 = vunpack.c.l.b16 %v663
    %v3374 = vunpack.c.h.b16 %v663
    %v3375 = vunpack.c.l.b16 %v664
    %v3376 = vunpack.c.h.b16 %v664
    %v3377 = vunpack.c.l.b16 %v665
    %v3378 = vunpack.c.h.b16 %v665
    %v3379 = vunpack.c.l.b16 %v666
    %v3380 = vunpack.c.h.b16 %v666
    %v3381 = vunpack.c.l.b16 %v667
    %v3382 = vunpack.c.h.b16 %v667
    %v3383 = vunpack.c.l.b16 %v668
    %v3384 = vunpack.c.h.b16 %v668
    %v3385 = vunpack.c.l.b16 %v669
    %v3386 = vunpack.c.h.b16 %v669
    %v3387 = vunpack.c.l.b16 %v670
    %v3388 = vunpack.c.h.b16 %v670
    %v3389 = vunpack.c.l.b16 %v671
    %v3390 = vunpack.c.h.b16 %v671
    %v3391 = vunpack.c.l.b16 %v672
    %v3392 = vunpack.c.h.b16 %v672
    %v3393 = vunpack.c.l.b16 %v673
    %v3394 = vunpack.c.h.b16 %v673
    %v3395 = vunpack.c.l.b16 %v674
    %v3396 = vunpack.c.h.b16 %v674
    %v3397 = vunpack.c.l.b16 %v675
    %v3398 = vunpack.c.h.b16 %v675
    %v3399 = vunpack.c.l.b16 %v676
    %v3400 = vunpack.c.h.b16 %v676
    %v3401 = vunpack.c.l.b16 %v677
    %v3402 = vunpack.c.h.b16 %v677
    %v3403 = vunpack.c.l.b16 %v678
    %v3404 = vunpack.c.h.b16 %v678
    %v3405 = vunpack.c.l.b16 %v679
    %v3406 = vunpack.c.h.b16 %v679
    %v3407 = vunpack.c.l.b16 %v680
    %v3408 = vunpack.c.h.b16 %v680
    %v3409 = vunpack.c.l.b16 %v681
    %v3410 = vunpack.c.h.b16 %v681
    %v3411 = vunpack.c.l.b16 %v682
    %v3412 = vunpack.c.h.b16 %v682
    %v3413 = vunpack.c.l.b16 %v683
    %v3414 = vunpack.c.h.b16 %v683
    %v3415 = vunpack.c.l.b16 %v684
    %v3416 = vunpack.c.h.b16 %v684
    %v3417 = vunpack.c.l.b16 %v685
    %v3418 = vunpack.c.h.b16 %v685
    %v3419 = vunpack.c.l.b16 %v686
    %v3420 = vunpack.c.h.b16 %v686
    %v3421 = vunpack.c.l.b16 %v687
    %v3422 = vunpack.c.h.b16 %v687
    %v3423 = vunpack.c.l.b16 %v688
    %v3424 = vunpack.c.h.b16 %v688
    %v3425 = vunpack.c.l.b16 %v689
    %v3426 = vunpack.c.h.b16 %v689
    %v3427 = vunpack.c.l.b16 %v690
    %v3428 = vunpack.c.h.b16 %v690
    %v3429 = vunpack.c.l.b16 %v691
    %v3430 = vunpack.c.h.b16 %v691
    %v3431 = vunpack.c.l.b16 %v692
    %v3432 = vunpack.c.h.b16 %v692
    %v3433 = vunpack.c.l.b16 %v693
    %v3434 = vunpack.c.h.b16 %v693
    %v3435 = vunpack.c.l.b16 %v694
    %v3436 = vunpack.c.h.b16 %v694
    %v3437 = vunpack.c.l.b16 %v695
    %v3438 = vunpack.c.h.b16 %v695
    %v3439 = vunpack.c.l.b16 %v696
    %v3440 = vunpack.c.h.b16 %v696
    %v3441 = vunpack.c.l.b16 %v697
    %v3442 = vunpack.c.h.b16 %v697
    %v3443 = vunpack.c.l.b16 %v698
    %v3444 = vunpack.c.h.b16 %v698
    %v3445 = vunpack.c.l.b16 %v699
    %v3446 = vunpack.c.h.b16 %v699
    %v3447 = vunpack.c.l.b16 %v700
    %v3448 = vunpack.c.h.b16 %v700
    %v3449 = vunpack.c.l.b16 %v701
    %v3450 = vunpack.c.h.b16 %v701
    %v3451 = vunpack.c.l.b16 %v702
    %v3452 = vunpack.c.h.b16 %v702
    %v3453 = vunpack.c.l.b16 %v703
    %v3454 = vunpack.c.h.b16 %v703
    %v3455 = vunpack.c.l.b16 %v704
    %v3456 = vunpack.c.h.b16 %v704
    %v3457 = vunpack.c.l.b16 %v705
    %v3458 = vunpack.c.h.b16 %v705
    %v3459 = vunpack.c.l.b16 %v706
    %v3460 = vunpack.c.h.b16 %v706
    %v3461 = vunpack.c.l.b16 %v707
    %v3462 = vunpack.c.h.b16 %v707
    %v3463 = vunpack.c.l.b16 %v708
    %v3464 = vunpack.c.h.b16 %v708
    %v3465 = vunpack.c.l.b16 %v709
    %v3466 = vunpack.c.h.b16 %v709
    %v3467 = vunpack.c.l.b16 %v710
    %v3468 = vunpack.c.h.b16 %v710
    %v3469 = vunpack.c.l.b16 %v711
    %v3470 = vunpack.c.h.b16 %v711
    %v3471 = vunpack.c.l.b16 %v712
    %v3472 = vunpack.c.h.b16 %v712
    %v3473 = vunpack.c.l.b16 %v713
    %v3474 = vunpack.c.h.b16 %v713
    %v3475 = vunpack.c.l.b16 %v714
    %v3476 = vunpack.c.h.b16 %v714
    %v3477 = vunpack.c.l.b16 %v715
    %v3478 = vunpack.c.h.b16 %v715
    %v3479 = vunpack.c.l.b16 %v716
    %v3480 = vunpack.c.h.b16 %v716
    %v3481 = vunpack.c.l.b16 %v717
    %v3482 = vunpack.c.h.b16 %v717
    %v3483 = vunpack.c.l.b16 %v718
    %v3484 = vunpack.c.h.b16 %v718
    %v3485 = vunpack.c.l.b16 %v719
    %v3486 = vunpack.c.h.b16 %v719
    %v3487 = vunpack.c.l.b16 %v720
    %v3488 = vunpack.c.h.b16 %v720
    %v3489 = vunpack.c.l.b16 %v721
    %v3490 = vunpack.c.h.b16 %v721
    %v3491 = vunpack.c.l.b16 %v722
    %v3492 = vunpack.c.h.b16 %v722
    %v3493 = vunpack.c.l.b16 %v723
    %v3494 = vunpack.c.h.b16 %v723
    %v3495 = vunpack.c.l.b16 %v724
    %v3496 = vunpack.c.h.b16 %v724
    %v3497 = vunpack.c.l.b16 %v725
    %v3498 = vunpack.c.h.b16 %v725
    %v3499 = vunpack.c.l.b16 %v726
    %v3500 = vunpack.c.h.b16 %v726
    %v3501 = vunpack.c.l.b16 %v727
    %v3502 = vunpack.c.h.b16 %v727
    %v3503 = vunpack.c.l.b16 %v728
    %v3504 = vunpack.c.h.b16 %v728
    %v3505 = vunpack.c.l.b16 %v729
    %v3506 = vunpack.c.h.b16 %v729
    %v3507 = vunpack.c.l.b16 %v730
    %v3508 = vunpack.c.h.b16 %v730
    %v3509 = vunpack.c.l.b16 %v731
    %v3510 = vunpack.c.h.b16 %v731
    %v3511 = vunpack.c.l.b16 %v732
    %v3512 = vunpack.c.h.b16 %v732
    %v3513 = vunpack.c.l.b16 %v733
    %v3514 = vunpack.c.h.b16 %v733
    %v3515 = vunpack.c.l.b16 %v734
    %v3516 = vunpack.c.h.b16 %v734
    %v3517 = vunpack.c.l.b16 %v735
    %v3518 = vunpack.c.h.b16 %v735
    %v3519 = vunpack.c.l.b16 %v736
    %v3520 = vunpack.c.h.b16 %v736
    %v3521 = vunpack.c.l.b16 %v737
    %v3522 = vunpack.c.h.b16 %v737
    %v3523 = vunpack.c.l.b16 %v738
    %v3524 = vunpack.c.h.b16 %v738
    %v3525 = vunpack.c.l.b16 %v739
    %v3526 = vunpack.c.h.b16 %v739
    %v3527 = vunpack.c.l.b16 %v740
    %v3528 = vunpack.c.h.b16 %v740
    %v3529 = vunpack.c.l.b16 %v741
    %v3530 = vunpack.c.h.b16 %v741
    %v3531 = vunpack.c.l.b16 %v742
    %v3532 = vunpack.c.h.b16 %v742
    %v3533 = vunpack.c.l.b16 %v743
    %v3534 = vunpack.c.h.b16 %v743
    %v3535 = vunpack.c.l.b16 %v744
    %v3536 = vunpack.c.h.b16 %v744
    %v3537 = vunpack.c.l.b16 %v745
    %v3538 = vunpack.c.h.b16 %v745
    %v3539 = vunpack.c.l.b16 %v746
    %v3540 = vunpack.c.h.b16 %v746
    %v3541 = vunpack.c.l.b16 %v747
    %v3542 = vunpack.c.h.b16 %v747
    %v3543 = vunpack.c.l.b16 %v748
    %v3544 = vunpack.c.h.b16 %v748
    %v3545 = vunpack.c.l.b16 %v749
    %v3546 = vunpack.c.h.b16 %v749
    %v3547 = vunpack.c.l.b16 %v750
    %v3548 = vunpack.c.h.b16 %v750
    %v3549 = vunpack.c.l.b16 %v751
    %v3550 = vunpack.c.h.b16 %v751
    %v3551 = vunpack.c.l.b16 %v752
    %v3552 = vunpack.c.h.b16 %v752
    %v3553 = vunpack.c.l.b16 %v753
    %v3554 = vunpack.c.h.b16 %v753
    %v3555 = vunpack.c.l.b16 %v754
    %v3556 = vunpack.c.h.b16 %v754
    %v3557 = vunpack.c.l.b16 %v755
    %v3558 = vunpack.c.h.b16 %v755
    %v3559 = vunpack.c.l.b16 %v756
    %v3560 = vunpack.c.h.b16 %v756
    %v3561 = vunpack.c.l.b16 %v757
    %v3562 = vunpack.c.h.b16 %v757
    %v3563 = vunpack.c.l.b16 %v758
    %v3564 = vunpack.c.h.b16 %v758
    %v3565 = vunpack.c.l.b16 %v759
    %v3566 = vunpack.c.h.b16 %v759
    %v3567 = vunpack.c.l.b16 %v760
    %v3568 = vunpack.c.h.b16 %v760
    %v3569 = vunpack.c.l.b16 %v761
    %v3570 = vunpack.c.h.b16 %v761
    %v3571 = vunpack.c.l.b16 %v762
    %v3572 = vunpack.c.h.b16 %v762
    %v3573 = vunpack.c.l.b16 %v763
    %v3574 = vunpack.c.h.b16 %v763
    %v3575 = vunpack.c.l.b16 %v764
    %v3576 = vunpack.c.h.b16 %v764
    %v3577 = vunpack.c.l.b16 %v765
    %v3578 = vunpack.c.h.b16 %v765
    %v3579 = vunpack.c.l.b16 %v766
    %v3580 = vunpack.c.h.b16 %v766
    %v3581 = vunpack.c.l.b16 %v767
    %v3582 = vunpack.c.h.b16 %v767
    %v3583 = vunpack.c.l.b16 %v768
    %v3584 = vunpack.c.h.b16 %v768
    %v3585 = vunpack.c.l.b16 %v769
    %v3586 = vunpack.c.h.b16 %v769
    %v3587 = vunpack.c.l.b16 %v770
    %v3588 = vunpack.c.h.b16 %v770
    %v3589 = vunpack.c.l.b16 %v771
    %v3590 = vunpack.c.h.b16 %v771
    %v3591 = vunpack.c.l.b16 %v772
    %v3592 = vunpack.c.h.b16 %v772
    %v3593 = vunpack.c.l.b16 %v773
    %v3594 = vunpack.c.h.b16 %v773
    %v3595 = vunpack.c.l.b16 %v774
    %v3596 = vunpack.c.h.b16 %v774
    %v3597 = vunpack.c.l.b16 %v775
    %v3598 = vunpack.c.h.b16 %v775
    %v3599 = vunpack.c.l.b16 %v776
    %v3600 = vunpack.c.h.b16 %v776
    %v3601 = vunpack.c.l.b16 %v777
    %v3602 = vunpack.c.h.b16 %v777
    %v3603 = vunpack.c.l.b16 %v778
    %v3604 = vunpack.c.h.b16 %v778
    %v3605 = vunpack.c.l.b16 %v779
    %v3606 = vunpack.c.h.b16 %v779
    %v3607 = vunpack.c.l.b16 %v780
    %v3608 = vunpack.c.h.b16 %v780
    %v3609 = vunpack.c.l.b16 %v781
    %v3610 = vunpack.c.h.b16 %v781
    %v3611 = vunpack.c.l.b16 %v782
    %v3612 = vunpack.c.h.b16 %v782
    %v3613 = vunpack.c.l.b16 %v783
    %v3614 = vunpack.c.h.b16 %v783
    %v3615 = vunpack.c.l.b16 %v784
    %v3616 = vunpack.c.h.b16 %v784
    %v3617 = vunpack.c.l.b16 %v785
    %v3618 = vunpack.c.h.b16 %v785
    %v3619 = vunpack.c.l.b16 %v786
    %v3620 = vunpack.c.h.b16 %v786
    %v3621 = vunpack.c.l.b16 %v787
    %v3622 = vunpack.c.h.b16 %v787
    %v3623 = vunpack.c.l.b16 %v788
    %v3624 = vunpack.c.h.b16 %v788
    %v3625 = vunpack.c.l.b16 %v789
    %v3626 = vunpack.c.h.b16 %v789
    %v3627 = vunpack.c.l.b16 %v790
    %v3628 = vunpack.c.h.b16 %v790
    %v3629 = vunpack.c.l.b16 %v791
    %v3630 = vunpack.c.h.b16 %v791
    %v3631 = vunpack.c.l.b16 %v792
    %v3632 = vunpack.c.h.b16 %v792
    %v3633 = vunpack.c.l.b16 %v793
    %v3634 = vunpack.c.h.b16 %v793
    %v3635 = vunpack.c.l.b16 %v794
    %v3636 = vunpack.c.h.b16 %v794
    %v3637 = vunpack.c.l.b16 %v795
    %v3638 = vunpack.c.h.b16 %v795
    %v3639 = vunpack.c.l.b16 %v796
    %v3640 = vunpack.c.h.b16 %v796
    %v3641 = vunpack.c.l.b16 %v797
    %v3642 = vunpack.c.h.b16 %v797
    %v3643 = vunpack.c.l.b16 %v798
    %v3644 = vunpack.c.h.b16 %v798
    %v3645 = vunpack.c.l.b16 %v799
    %v3646 = vunpack.c.h.b16 %v799
    %v3647 = vunpack.c.l.b16 %v800
    %v3648 = vunpack.c.h.b16 %v800
    %v3649 = vunpack.c.l.b16 %v801
    %v3650 = vunpack.c.h.b16 %v801
    %v3651 = vunpack.c.l.b16 %v802
    %v3652 = vunpack.c.h.b16 %v802
    %v3653 = vunpack.c.l.b16 %v803
    %v3654 = vunpack.c.h.b16 %v803
    %v3655 = vunpack.c.l.b16 %v804
    %v3656 = vunpack.c.h.b16 %v804
    %v3657 = vunpack.c.l.b16 %v805
    %v3658 = vunpack.c.h.b16 %v805
    %v3659 = vunpack.c.l.b16 %v806
    %v3660 = vunpack.c.h.b16 %v806
    %v3661 = vunpack.c.l.b16 %v807
    %v3662 = vunpack.c.h.b16 %v807
    %v3663 = vunpack.c.l.b16 %v808
    %v3664 = vunpack.c.h.b16 %v808
    %v3665 = vunpack.c.l.b16 %v809
    %v3666 = vunpack.c.h.b16 %v809
    %v3667 = vunpack.c.l.b16 %v810
    %v3668 = vunpack.c.h.b16 %v810
    %v3669 = vunpack.c.l.b16 %v811
    %v3670 = vunpack.c.h.b16 %v811
    %v3671 = vunpack.c.l.b16 %v812
    %v3672 = vunpack.c.h.b16 %v812
    %v3673 = vunpack.c.l.b16 %v813
    %v3674 = vunpack.c.h.b16 %v813
    %v3675 = vunpack.c.l.b16 %v814
    %v3676 = vunpack.c.h.b16 %v814
    %v3677 = vunpack.c.l.b16 %v815
    %v3678 = vunpack.c.h.b16 %v815
    %v3679 = vunpack.c.l.b16 %v816
    %v3680 = vunpack.c.h.b16 %v816
    %v3681 = vunpack.c.l.b16 %v817
    %v3682 = vunpack.c.h.b16 %v817
    %v3683 = vunpack.c.l.b16 %v818
    %v3684 = vunpack.c.h.b16 %v818
    %v3685 = vunpack.c.l.b16 %v819
    %v3686 = vunpack.c.h.b16 %v819
    %v3687 = vunpack.c.l.b16 %v820
    %v3688 = vunpack.c.h.b16 %v820
    %v3689 = vunpack.c.l.b16 %v821
    %v3690 = vunpack.c.h.b16 %v821
    %v3691 = vunpack.c.l.b16 %v822
    %v3692 = vunpack.c.h.b16 %v822
    %v3693 = vunpack.c.l.b16 %v823
    %v3694 = vunpack.c.h.b16 %v823
    %v3695 = vunpack.c.l.b16 %v824
    %v3696 = vunpack.c.h.b16 %v824
    %v3697 = vunpack.c.l.b16 %v825
    %v3698 = vunpack.c.h.b16 %v825
    %v3699 = vunpack.c.l.b16 %v826
    %v3700 = vunpack.c.h.b16 %v826
    %v3701 = vunpack.c.l.b16 %v827
    %v3702 = vunpack.c.h.b16 %v827
    %v3703 = vunpack.c.l.b16 %v828
    %v3704 = vunpack.c.h.b16 %v828
    %v3705 = vunpack.c.l.b16 %v829
    %v3706 = vunpack.c.h.b16 %v829
    %v3707 = vunpack.c.l.b16 %v830
    %v3708 = vunpack.c.h.b16 %v830
    %v3709 = vunpack.c.l.b16 %v831
    %v3710 = vunpack.c.h.b16 %v831
    %v3711 = vunpack.c.l.b16 %v832
    %v3712 = vunpack.c.h.b16 %v832
    %v3713 = vunpack.c.l.b16 %v833
    %v3714 = vunpack.c.h.b16 %v833
    %v3715 = vunpack.c.l.b16 %v834
    %v3716 = vunpack.c.h.b16 %v834
    %v3717 = vunpack.c.l.b16 %v835
    %v3718 = vunpack.c.h.b16 %v835
    %v3719 = vunpack.c.l.b16 %v836
    %v3720 = vunpack.c.h.b16 %v836
    %v3721 = vunpack.c.l.b16 %v837
    %v3722 = vunpack.c.h.b16 %v837
    %v3723 = vunpack.c.l.b16 %v838
    %v3724 = vunpack.c.h.b16 %v838
    %v3725 = vunpack.c.l.b16 %v839
    %v3726 = vunpack.c.h.b16 %v839
    %v3727 = vunpack.c.l.b16 %v840
    %v3728 = vunpack.c.h.b16 %v840
    %v3729 = vunpack.c.l.b16 %v841
    %v3730 = vunpack.c.h.b16 %v841
    %v3731 = vunpack.c.l.b16 %v842
    %v3732 = vunpack.c.h.b16 %v842
    %v3733 = vunpack.c.l.b16 %v843
    %v3734 = vunpack.c.h.b16 %v843
    %v3735 = vunpack.c.l.b16 %v844
    %v3736 = vunpack.c.h.b16 %v844
    %v3737 = vunpack.c.l.b16 %v845
    %v3738 = vunpack.c.h.b16 %v845
    %v3739 = vunpack.c.l.b16 %v846
    %v3740 = vunpack.c.h.b16 %v846
    %v3741 = vunpack.c.l.b16 %v847
    %v3742 = vunpack.c.h.b16 %v847
    %v3743 = vunpack.c.l.b16 %v848
    %v3744 = vunpack.c.h.b16 %v848
    %v3745 = vunpack.c.l.b16 %v849
    %v3746 = vunpack.c.h.b16 %v849
    %v3747 = vunpack.c.l.b16 %v850
    %v3748 = vunpack.c.h.b16 %v850
    %v3749 = vunpack.c.l.b16 %v851
    %v3750 = vunpack.c.h.b16 %v851
    %v3751 = vunpack.c.l.b16 %v852
    %v3752 = vunpack.c.h.b16 %v852
    %v3753 = vunpack.c.l.b16 %v853
    %v3754 = vunpack.c.h.b16 %v853
    %v3755 = vunpack.c.l.b16 %v854
    %v3756 = vunpack.c.h.b16 %v854
    %v3757 = vunpack.c.l.b16 %v855
    %v3758 = vunpack.c.h.b16 %v855
    %v3759 = vunpack.c.l.b16 %v856
    %v3760 = vunpack.c.h.b16 %v856
    %v3761 = vunpack.c.l.b16 %v857
    %v3762 = vunpack.c.h.b16 %v857
    %v3763 = vunpack.c.l.b16 %v858
    %v3764 = vunpack.c.h.b16 %v858
    %v3765 = vunpack.c.l.b16 %v859
    %v3766 = vunpack.c.h.b16 %v859
    %v3767 = vunpack.c.l.b16 %v860
    %v3768 = vunpack.c.h.b16 %v860
    %v3769 = vunpack.c.l.b16 %v861
    %v3770 = vunpack.c.h.b16 %v861
    %v3771 = vunpack.c.l.b16 %v862
    %v3772 = vunpack.c.h.b16 %v862
    %v3773 = vunpack.c.l.b16 %v863
    %v3774 = vunpack.c.h.b16 %v863
    %v3775 = vunpack.c.l.b16 %v864
    %v3776 = vunpack.c.h.b16 %v864
    %v3777 = vunpack.c.l.b16 %v865
    %v3778 = vunpack.c.h.b16 %v865
    %v3779 = vunpack.c.l.b16 %v866
    %v3780 = vunpack.c.h.b16 %v866
    %v3781 = vunpack.c.l.b16 %v867
    %v3782 = vunpack.c.h.b16 %v867
    %v3783 = vunpack.c.l.b16 %v868
    %v3784 = vunpack.c.h.b16 %v868
    %v3785 = vunpack.c.l.b16 %v869
    %v3786 = vunpack.c.h.b16 %v869
    %v3787 = vunpack.c.l.b16 %v870
    %v3788 = vunpack.c.h.b16 %v870
    %v3789 = vunpack.c.l.b16 %v871
    %v3790 = vunpack.c.h.b16 %v871
    %v3791 = vunpack.c.l.b16 %v872
    %v3792 = vunpack.c.h.b16 %v872
    %v3793 = vunpack.c.l.b16 %v873
    %v3794 = vunpack.c.h.b16 %v873
    %v3795 = vunpack.c.l.b16 %v874
    %v3796 = vunpack.c.h.b16 %v874
    %v3797 = vunpack.c.l.b16 %v875
    %v3798 = vunpack.c.h.b16 %v875
    %v3799 = vunpack.c.l.b16 %v876
    %v3800 = vunpack.c.h.b16 %v876
    %v3801 = vunpack.c.l.b16 %v877
    %v3802 = vunpack.c.h.b16 %v877
    %v3803 = vunpack.c.l.b16 %v878
    %v3804 = vunpack.c.h.b16 %v878
    %v3805 = vunpack.c.l.b16 %v879
    %v3806 = vunpack.c.h.b16 %v879
    %v3807 = vunpack.c.l.b16 %v880
    %v3808 = vunpack.c.h.b16 %v880
    %v3809 = vunpack.c.l.b16 %v881
    %v3810 = vunpack.c.h.b16 %v881
    %v3811 = vunpack.c.l.b16 %v882
    %v3812 = vunpack.c.h.b16 %v882
    %v3813 = vunpack.c.l.b16 %v883
    %v3814 = vunpack.c.h.b16 %v883
    %v3815 = vunpack.c.l.b16 %v884
    %v3816 = vunpack.c.h.b16 %v884
    %v3817 = vunpack.c.l.b16 %v885
    %v3818 = vunpack.c.h.b16 %v885
    %v3819 = vunpack.c.l.b16 %v886
    %v3820 = vunpack.c.h.b16 %v886
    %v3821 = vunpack.c.l.b16 %v887
    %v3822 = vunpack.c.h.b16 %v887
    %v3823 = vunpack.c.l.b16 %v888
    %v3824 = vunpack.c.h.b16 %v888
    %v3825 = vunpack.c.l.b16 %v889
    %v3826 = vunpack.c.h.b16 %v889
    %v3827 = vunpack.c.l.b16 %v890
    %v3828 = vunpack.c.h.b16 %v890
    %v3829 = vunpack.c.l.b16 %v891
    %v3830 = vunpack.c.h.b16 %v891
    %v3831 = vunpack.c.l.b16 %v892
    %v3832 = vunpack.c.h.b16 %v892
    %v3833 = vunpack.c.l.b16 %v893
    %v3834 = vunpack.c.h.b16 %v893
    %v3835 = vunpack.c.l.b16 %v894
    %v3836 = vunpack.c.h.b16 %v894
    %v3837 = vunpack.c.l.b16 %v895
    %v3838 = vunpack.c.h.b16 %v895
    %v3839 = vunpack.c.l.b16 %v896
    %v3840 = vunpack.c.h.b16 %v896
    %v3841 = vunpack.c.l.b16 %v897
    %v3842 = vunpack.c.h.b16 %v897
    %v3843 = vunpack.c.l.b16 %v898
    %v3844 = vunpack.c.h.b16 %v898
    %v3845 = vunpack.c.l.b16 %v899
    %v3846 = vunpack.c.h.b16 %v899
    %v3847 = vunpack.c.l.b16 %v900
    %v3848 = vunpack.c.h.b16 %v900
    %v3849 = vunpack.c.l.b16 %v901
    %v3850 = vunpack.c.h.b16 %v901
    %v3851 = vunpack.c.l.b16 %v902
    %v3852 = vunpack.c.h.b16 %v902
    %v3853 = vunpack.c.l.b16 %v903
    %v3854 = vunpack.c.h.b16 %v903
    %v3855 = vunpack.c.l.b16 %v904
    %v3856 = vunpack.c.h.b16 %v904
    %v3857 = vunpack.c.l.b16 %v905
    %v3858 = vunpack.c.h.b16 %v905
    %v3859 = vunpack.c.l.b16 %v906
    %v3860 = vunpack.c.h.b16 %v906
    %v3861 = vunpack.c.l.b16 %v907
    %v3862 = vunpack.c.h.b16 %v907
    %v3863 = vunpack.c.l.b16 %v908
    %v3864 = vunpack.c.h.b16 %v908
    %v3865 = vunpack.c.l.b16 %v909
    %v3866 = vunpack.c.h.b16 %v909
    %v3867 = vunpack.c.l.b16 %v910
    %v3868 = vunpack.c.h.b16 %v910
    %v3869 = vunpack.c.l.b16 %v911
    %v3870 = vunpack.c.h.b16 %v911
    %v3871 = vunpack.c.l.b16 %v912
    %v3872 = vunpack.c.h.b16 %v912
    %v3873 = vunpack.c.l.b16 %v913
    %v3874 = vunpack.c.h.b16 %v913
    %v3875 = vunpack.c.l.b16 %v914
    %v3876 = vunpack.c.h.b16 %v914
    %v3877 = vunpack.c.l.b16 %v915
    %v3878 = vunpack.c.h.b16 %v915
    %v3879 = vunpack.c.l.b16 %v916
    %v3880 = vunpack.c.h.b16 %v916
    %v3881 = vunpack.c.l.b16 %v917
    %v3882 = vunpack.c.h.b16 %v917
    %v3883 = vunpack.c.l.b16 %v918
    %v3884 = vunpack.c.h.b16 %v918
    %v3885 = vunpack.c.l.b16 %v919
    %v3886 = vunpack.c.h.b16 %v919
    %v3887 = vunpack.c.l.b16 %v920
    %v3888 = vunpack.c.h.b16 %v920
    %v3889 = vunpack.c.l.b16 %v921
    %v3890 = vunpack.c.h.b16 %v921
    %v3891 = vunpack.c.l.b16 %v922
    %v3892 = vunpack.c.h.b16 %v922
    %v3893 = vunpack.c.l.b16 %v923
    %v3894 = vunpack.c.h.b16 %v923
    %v3895 = vunpack.c.l.b16 %v924
    %v3896 = vunpack.c.h.b16 %v924
    %v3897 = vunpack.c.l.b16 %v925
    %v3898 = vunpack.c.h.b16 %v925
    %v3899 = vunpack.c.l.b16 %v926
    %v3900 = vunpack.c.h.b16 %v926
    %v3901 = vunpack.c.l.b16 %v927
    %v3902 = vunpack.c.h.b16 %v927
    %v3903 = vunpack.c.l.b16 %v928
    %v3904 = vunpack.c.h.b16 %v928
    %v3905 = vunpack.c.l.b16 %v929
    %v3906 = vunpack.c.h.b16 %v929
    %v3907 = vunpack.c.l.b16 %v930
    %v3908 = vunpack.c.h.b16 %v930
    %v3909 = vunpack.c.l.b16 %v931
    %v3910 = vunpack.c.h.b16 %v931
    %v3911 = vunpack.c.l.b16 %v932
    %v3912 = vunpack.c.h.b16 %v932
    %v3913 = vunpack.c.l.b16 %v933
    %v3914 = vunpack.c.h.b16 %v933
    %v3915 = vunpack.c.l.b16 %v934
    %v3916 = vunpack.c.h.b16 %v934
    %v3917 = vunpack.c.l.b16 %v935
    %v3918 = vunpack.c.h.b16 %v935
    %v3919 = vunpack.c.l.b16 %v936
    %v3920 = vunpack.c.h.b16 %v936
    %v3921 = vunpack.c.l.b16 %v937
    %v3922 = vunpack.c.h.b16 %v937
    %v3923 = vunpack.c.l.b16 %v938
    %v3924 = vunpack.c.h.b16 %v938
    %v3925 = vunpack.c.l.b16 %v939
    %v3926 = vunpack.c.h.b16 %v939
    %v3927 = vunpack.c.l.b16 %v940
    %v3928 = vunpack.c.h.b16 %v940
    %v3929 = vunpack.c.l.b16 %v941
    %v3930 = vunpack.c.h.b16 %v941
    %v3931 = vunpack.c.l.b16 %v942
    %v3932 = vunpack.c.h.b16 %v942
    %v3933 = vunpack.c.l.b16 %v943
    %v3934 = vunpack.c.h.b16 %v943
    %v3935 = vunpack.c.l.b16 %v944
    %v3936 = vunpack.c.h.b16 %v944
    %v3937 = vunpack.c.l.b16 %v945
    %v3938 = vunpack.c.h.b16 %v945
    %v3939 = vunpack.c.l.b16 %v946
    %v3940 = vunpack.c.h.b16 %v946
    %v3941 = vunpack.c.l.b16 %v947
    %v3942 = vunpack.c.h.b16 %v947
    %v3943 = vunpack.c.l.b16 %v948
    %v3944 = vunpack.c.h.b16 %v948
    %v3945 = vunpack.c.l.b16 %v949
    %v3946 = vunpack.c.h.b16 %v949
    %v3947 = vunpack.c.l.b16 %v950
    %v3948 = vunpack.c.h.b16 %v950
    %v3949 = vunpack.c.l.b16 %v951
    %v3950 = vunpack.c.h.b16 %v951
    %v3951 = vunpack.c.l.b16 %v952
    %v3952 = vunpack.c.h.b16 %v952
    %v3953 = vunpack.c.l.b16 %v953
    %v3954 = vunpack.c.h.b16 %v953
    %v3955 = vunpack.c.l.b16 %v954
    %v3956 = vunpack.c.h.b16 %v954
    %v3957 = vunpack.c.l.b16 %v955
    %v3958 = vunpack.c.h.b16 %v955
    %v3959 = vunpack.c.l.b16 %v956
    %v3960 = vunpack.c.h.b16 %v956
    %v3961 = vunpack.c.l.b16 %v957
    %v3962 = vunpack.c.h.b16 %v957
    %v3963 = vunpack.c.l.b16 %v958
    %v3964 = vunpack.c.h.b16 %v958
    %v3965 = vunpack.c.l.b16 %v959
    %v3966 = vunpack.c.h.b16 %v959
    %v3967 = vunpack.c.l.b16 %v960
    %v3968 = vunpack.c.h.b16 %v960
    %v3969 = vunpack.c.l.b16 %v961
    %v3970 = vunpack.c.h.b16 %v961
    %v3971 = vunpack.c.l.b16 %v962
    %v3972 = vunpack.c.h.b16 %v962
    %v3973 = vunpack.c.l.b16 %v963
    %v3974 = vunpack.c.h.b16 %v963
    %v3975 = vunpack.c.l.b16 %v964
    %v3976 = vunpack.c.h.b16 %v964
    %v3977 = vunpack.c.l.b16 %v965
    %v3978 = vunpack.c.h.b16 %v965
    %v3979 = vunpack.c.l.b16 %v966
    %v3980 = vunpack.c.h.b16 %v966
    %v3981 = vunpack.c.l.b16 %v967
    %v3982 = vunpack.c.h.b16 %v967
    %v3983 = vunpack.c.l.b16 %v968
    %v3984 = vunpack.c.h.b16 %v968
    %v3985 = vunpack.c.l.b16 %v969
    %v3986 = vunpack.c.h.b16 %v969
    %v3987 = vunpack.c.l.b16 %v970
    %v3988 = vunpack.c.h.b16 %v970
    %v3989 = vunpack.c.l.b16 %v971
    %v3990 = vunpack.c.h.b16 %v971
    %v3991 = vunpack.c.l.b16 %v972
    %v3992 = vunpack.c.h.b16 %v972
    %v3993 = vunpack.c.l.b16 %v973
    %v3994 = vunpack.c.h.b16 %v973
    %v3995 = vunpack.c.l.b16 %v974
    %v3996 = vunpack.c.h.b16 %v974
    %v3997 = vunpack.c.l.b16 %v975
    %v3998 = vunpack.c.h.b16 %v975
    %v3999 = vunpack.c.l.b16 %v976
    %v4000 = vunpack.c.h.b16 %v976
    %v4001 = vunpack.c.l.b16 %v977
    %v4002 = vunpack.c.h.b16 %v977
    %v4003 = vunpack.c.l.b16 %v978
    %v4004 = vunpack.c.h.b16 %v978
    %v4005 = vunpack.c.l.b16 %v979
    %v4006 = vunpack.c.h.b16 %v979
    %v4007 = vunpack.c.l.b16 %v980
    %v4008 = vunpack.c.h.b16 %v980
    %v4009 = vunpack.c.l.b16 %v981
    %v4010 = vunpack.c.h.b16 %v981
    %v4011 = vunpack.c.l.b16 %v982
    %v4012 = vunpack.c.h.b16 %v982
    %v4013 = vunpack.c.l.b16 %v983
    %v4014 = vunpack.c.h.b16 %v983
    %v4015 = vunpack.c.l.b16 %v984
    %v4016 = vunpack.c.h.b16 %v984
    %v4017 = vunpack.c.l.b16 %v985
    %v4018 = vunpack.c.h.b16 %v985
    %v4019 = vunpack.c.l.b16 %v986
    %v4020 = vunpack.c.h.b16 %v986
    %v4021 = vunpack.c.l.b16 %v987
    %v4022 = vunpack.c.h.b16 %v987
    %v4023 = vunpack.c.l.b16 %v988
    %v4024 = vunpack.c.h.b16 %v988
    %v4025 = vunpack.c.l.b16 %v989
    %v4026 = vunpack.c.h.b16 %v989
    %v4027 = vunpack.c.l.b16 %v990
    %v4028 = vunpack.c.h.b16 %v990
    %v4029 = vunpack.c.l.b16 %v991
    %v4030 = vunpack.c.h.b16 %v991
    %v4031 = vunpack.c.l.b16 %v992
    %v4032 = vunpack.c.h.b16 %v992
    %v4033 = vunpack.c.l.b16 %v993
    %v4034 = vunpack.c.h.b16 %v993
    %v4035 = vunpack.c.l.b16 %v994
    %v4036 = vunpack.c.h.b16 %v994
    %v4037 = vunpack.c.l.b16 %v995
    %v4038 = vunpack.c.h.b16 %v995
    %v4039 = vunpack.c.l.b16 %v996
    %v4040 = vunpack.c.h.b16 %v996
    %v4041 = vunpack.c.l.b16 %v997
    %v4042 = vunpack.c.h.b16 %v997
    %v4043 = vunpack.c.l.b16 %v998
    %v4044 = vunpack.c.h.b16 %v998
    %v4045 = vunpack.c.l.b16 %v999
    %v4046 = vunpack.c.h.b16 %v999
    %v4047 = vunpack.c.l.b16 %v1000
    %v4048 = vunpack.c.h.b16 %v1000
    %v4049 = vunpack.c.l.b16 %v1001
    %v4050 = vunpack.c.h.b16 %v1001
    %v4051 = vunpack.c.l.b16 %v1002
    %v4052 = vunpack.c.h.b16 %v1002
    %v4053 = vunpack.c.l.b16 %v1003
    %v4054 = vunpack.c.h.b16 %v1003
    %v4055 = vunpack.c.l.b16 %v1004
    %v4056 = vunpack.c.h.b16 %v1004
    %v4057 = vunpack.c.l.b16 %v1005
    %v4058 = vunpack.c.h.b16 %v1005
    %v4059 = vunpack.c.l.b16 %v1006
    %v4060 = vunpack.c.h.b16 %v1006
    %v4061 = vunpack.c.l.b16 %v1007
    %v4062 = vunpack.c.h.b16 %v1007
    %v4063 = vunpack.c.l.b16 %v1008
    %v4064 = vunpack.c.h.b16 %v1008
    %v4065 = vunpack.c.l.b16 %v1009
    %v4066 = vunpack.c.h.b16 %v1009
    %v4067 = vunpack.c.l.b16 %v1010
    %v4068 = vunpack.c.h.b16 %v1010
    %v4069 = vunpack.c.l.b16 %v1011
    %v4070 = vunpack.c.h.b16 %v1011
    %v4071 = vunpack.c.l.b16 %v1012
    %v4072 = vunpack.c.h.b16 %v1012
    %v4073 = vunpack.c.l.b16 %v1013
    %v4074 = vunpack.c.h.b16 %v1013
    %v4075 = vunpack.c.l.b16 %v1014
    %v4076 = vunpack.c.h.b16 %v1014
    %v4077 = vunpack.c.l.b16 %v1015
    %v4078 = vunpack.c.h.b16 %v1015
    %v4079 = vunpack.c.l.b16 %v1016
    %v4080 = vunpack.c.h.b16 %v1016
    %v4081 = vunpack.c.l.b16 %v1017
    %v4082 = vunpack.c.h.b16 %v1017
    %v4083 = vunpack.c.l.b16 %v1018
    %v4084 = vunpack.c.h.b16 %v1018
    %v4085 = vunpack.c.l.b16 %v1019
    %v4086 = vunpack.c.h.b16 %v1019
    %v4087 = vunpack.c.l.b16 %v1020
    %v4088 = vunpack.c.h.b16 %v1020
    %v4089 = vunpack.c.l.b16 %v1021
    %v4090 = vunpack.c.h.b16 %v1021
    %v4091 = vunpack.c.l.b16 %v1022
    %v4092 = vunpack.c.h.b16 %v1022
    %v4093 = vunpack.c.l.b16 %v1023
    %v4094 = vunpack.c.h.b16 %v1023
    %v4095 = vunpack.c.l.b16 %v1024
    %v4096 = vunpack.c.h.b16 %v1024
    %v4097 = vunpack.c.l.b16 %v1025
    %v4098 = vunpack.c.h.b16 %v1025
    %v4099 = vunpack.c.l.b16 %v1026
    %v4100 = vunpack.c.h.b16 %v1026
    %v4101 = vunpack.c.l.b16 %v1027
    %v4102 = vunpack.c.h.b16 %v1027
    %v4103 = vunpack.c.l.b16 %v1028
    %v4104 = vunpack.c.h.b16 %v1028
    %v4105 = vunpack.c.l.b16 %v1029
    %v4106 = vunpack.c.h.b16 %v1029
    %v4107 = vunpack.c.l.b16 %v1030
    %v4108 = vunpack.c.h.b16 %v1030
    %v4109 = vunpack.c.l.b16 %v1031
    %v4110 = vunpack.c.h.b16 %v1031
    %v4111 = vunpack.c.l.b16 %v1032
    %v4112 = vunpack.c.h.b16 %v1032
    %v4113 = vunpack.c.l.b16 %v1033
    %v4114 = vunpack.c.h.b16 %v1033
    %v4115 = vunpack.c.l.b16 %v1034
    %v4116 = vunpack.c.h.b16 %v1034
    %v4117 = vunpack.c.l.b16 %v1035
    %v4118 = vunpack.c.h.b16 %v1035
    %v4119 = vunpack.c.l.b16 %v1036
    %v4120 = vunpack.c.h.b16 %v1036
    %v4121 = vunpack.c.l.b16 %v1037
    %v4122 = vunpack.c.h.b16 %v1037
    %v4123 = vunpack.c.l.b16 %v1038
    %v4124 = vunpack.c.h.b16 %v1038
    %v4125 = vunpack.c.l.b16 %v1039
    %v4126 = vunpack.c.h.b16 %v1039
    %v4127 = vunpack.c.l.b16 %v1040
    %v4128 = vunpack.c.h.b16 %v1040
    %v4129 = vunpack.c.l.b16 %v1041
    %v4130 = vunpack.c.h.b16 %v1041
    %v4131 = vunpack.c.l.b16 %v1042
    %v4132 = vunpack.c.h.b16 %v1042
    %v4133 = vunpack.c.l.b16 %v1043
    %v4134 = vunpack.c.h.b16 %v1043
    %v4135 = vunpack.c.l.b16 %v1044
    %v4136 = vunpack.c.h.b16 %v1044
    %v4137 = vunpack.c.l.b16 %v1045
    %v4138 = vunpack.c.h.b16 %v1045
    %v4139 = vunpack.c.l.b16 %v1046
    %v4140 = vunpack.c.h.b16 %v1046
    %v4141 = vunpack.c.l.b16 %v1047
    %v4142 = vunpack.c.h.b16 %v1047
    %v4143 = vunpack.c.l.b16 %v1048
    %v4144 = vunpack.c.h.b16 %v1048
    %v4145 = vunpack.c.l.b16 %v1049
    %v4146 = vunpack.c.h.b16 %v1049
    %v4147 = vunpack.c.l.b16 %v1050
    %v4148 = vunpack.c.h.b16 %v1050
    %v4149 = vunpack.c.l.b16 %v1051
    %v4150 = vunpack.c.h.b16 %v1051
    %v4151 = vunpack.c.l.b16 %v1052
    %v4152 = vunpack.c.h.b16 %v1052
    %v4153 = vunpack.c.l.b16 %v1053
    %v4154 = vunpack.c.h.b16 %v1053
    %v4155 = vunpack.c.l.b16 %v1054
    %v4156 = vunpack.c.h.b16 %v1054
    %v4157 = vunpack.c.l.b16 %v1055
    %v4158 = vunpack.c.h.b16 %v1055
    %v4159 = vunpack.c.l.b16 %v1056
    %v4160 = vunpack.c.h.b16 %v1056
    %v4161 = vunpack.c.l.b16 %v1057
    %v4162 = vunpack.c.h.b16 %v1057
    %v4163 = vunpack.c.l.b16 %v1058
    %v4164 = vunpack.c.h.b16 %v1058
    %v4165 = vunpack.c.l.b16 %v1059
    %v4166 = vunpack.c.h.b16 %v1059
    %v4167 = vunpack.c.l.b16 %v1060
    %v4168 = vunpack.c.h.b16 %v1060
    %v4169 = vpack.c.b16 %v2129, %v2121
    %v4170 = vpack.c.b16 %v2130, %v2122
    %v4171 = vpack.c.b16 %v2131, %v2123
    %v4172 = vpack.c.b16 %v2132, %v2124
    %v4173 = vpack.c.b16 %v2133, %v2125
    %v4174 = vpack.c.b16 %v2134, %v2126
    %v4175 = vpack.c.b16 %v2135, %v2127
    %v4176 = vpack.c.b16 %v2136, %v2128
    %v4177 = vpack.c.b16 %v2145, %v2137
    %v4178 = vpack.c.b16 %v2146, %v2138
    %v4179 = vpack.c.b16 %v2147, %v2139
    %v4180 = vpack.c.b16 %v2148, %v2140
    %v4181 = vpack.c.b16 %v2149, %v2141
    %v4182 = vpack.c.b16 %v2150, %v2142
    %v4183 = vpack.c.b16 %v2151, %v2143
    %v4184 = vpack.c.b16 %v2152, %v2144
    %v4185 = vpack.c.b16 %v2161, %v2153
    %v4186 = vpack.c.b16 %v2162, %v2154
    %v4187 = vpack.c.b16 %v2163, %v2155
    %v4188 = vpack.c.b16 %v2164, %v2156
    %v4189 = vpack.c.b16 %v2165, %v2157
    %v4190 = vpack.c.b16 %v2166, %v2158
    %v4191 = vpack.c.b16 %v2167, %v2159
    %v4192 = vpack.c.b16 %v2168, %v2160
    %v4193 = vpack.c.b16 %v2177, %v2169
    %v4194 = vpack.c.b16 %v2178, %v2170
    %v4195 = vpack.c.b16 %v2179, %v2171
    %v4196 = vpack.c.b16 %v2180, %v2172
    %v4197 = vpack.c.b16 %v2181, %v2173
    %v4198 = vpack.c.b16 %v2182, %v2174
    %v4199 = vpack.c.b16 %v2183, %v2175
    %v4200 = vpack.c.b16 %v2184, %v2176
    %v4201 = vpack.c.b16 %v2193, %v2185
    %v4202 = vpack.c.b16 %v2194, %v2186
    %v4203 = vpack.c.b16 %v2195, %v2187
    %v4204 = vpack.c.b16 %v2196, %v2188
    %v4205 = vpack.c.b16 %v2197, %v2189
    %v4206 = vpack.c.b16 %v2198, %v2190
    %v4207 = vpack.c.b16 %v2199, %v2191
    %v4208 = vpack.c.b16 %v2200, %v2192
    %v4209 = vpack.c.b16 %v2209, %v2201
    %v4210 = vpack.c.b16 %v2210, %v2202
    %v4211 = vpack.c.b16 %v2211, %v2203
    %v4212 = vpack.c.b16 %v2212, %v2204
    %v4213 = vpack.c.b16 %v2213, %v2205
    %v4214 = vpack.c.b16 %v2214, %v2206
    %v4215 = vpack.c.b16 %v2215, %v2207
    %v4216 = vpack.c.b16 %v2216, %v2208
    %v4217 = vpack.c.b16 %v2225, %v2217
    %v4218 = vpack.c.b16 %v2226, %v2218
    %v4219 = vpack.c.b16 %v2227, %v2219
    %v4220 = vpack.c.b16 %v2228, %v2220
    %v4221 = vpack.c.b16 %v2229, %v2221
    %v4222 = vpack.c.b16 %v2230, %v2222
    %v4223 = vpack.c.b16 %v2231, %v2223
    %v4224 = vpack.c.b16 %v2232, %v2224
    %v4225 = vpack.c.b16 %v2241, %v2233
    %v4226 = vpack.c.b16 %v2242, %v2234
    %v4227 = vpack.c.b16 %v2243, %v2235
    %v4228 = vpack.c.b16 %v2244, %v2236
    %v4229 = vpack.c.b16 %v2245, %v2237
    %v4230 = vpack.c.b16 %v2246, %v2238
    %v4231 = vpack.c.b16 %v2247, %v2239
    %v4232 = vpack.c.b16 %v2248, %v2240
    %v4233 = vpack.c.b16 %v2257, %v2249
    %v4234 = vpack.c.b16 %v2258, %v2250
    %v4235 = vpack.c.b16 %v2259, %v2251
    %v4236 = vpack.c.b16 %v2260, %v2252
    %v4237 = vpack.c.b16 %v2261, %v2253
    %v4238 = vpack.c.b16 %v2262, %v2254
    %v4239 = vpack.c.b16 %v2263, %v2255
    %v4240 = vpack.c.b16 %v2264, %v2256
    %v4241 = vpack.c.b16 %v2273, %v2265
    %v4242 = vpack.c.b16 %v2274, %v2266
    %v4243 = vpack.c.b16 %v2275, %v2267
    %v4244 = vpack.c.b16 %v2276, %v2268
    %v4245 = vpack.c.b16 %v2277, %v2269
    %v4246 = vpack.c.b16 %v2278, %v2270
    %v4247 = vpack.c.b16 %v2279, %v2271
    %v4248 = vpack.c.b16 %v2280, %v2272
    %v4249 = vpack.c.b16 %v2289, %v2281
    %v4250 = vpack.c.b16 %v2290, %v2282
    %v4251 = vpack.c.b16 %v2291, %v2283
    %v4252 = vpack.c.b16 %v2292, %v2284
    %v4253 = vpack.c.b16 %v2293, %v2285
    %v4254 = vpack.c.b16 %v2294, %v2286
    %v4255 = vpack.c.b16 %v2295, %v2287
    %v4256 = vpack.c.b16 %v2296, %v2288
    %v4257 = vpack.c.b16 %v2305, %v2297
    %v4258 = vpack.c.b16 %v2306, %v2298
    %v4259 = vpack.c.b16 %v2307, %v2299
    %v4260 = vpack.c.b16 %v2308, %v2300
    %v4261 = vpack.c.b16 %v2309, %v2301
    %v4262 = vpack.c.b16 %v2310, %v2302
    %v4263 = vpack.c.b16 %v2311, %v2303
    %v4264 = vpack.c.b16 %v2312, %v2304
    %v4265 = vpack.c.b16 %v2321, %v2313
    %v4266 = vpack.c.b16 %v2322, %v2314
    %v4267 = vpack.c.b16 %v2323, %v2315
    %v4268 = vpack.c.b16 %v2324, %v2316
    %v4269 = vpack.c.b16 %v2325, %v2317
    %v4270 = vpack.c.b16 %v2326, %v2318
    %v4271 = vpack.c.b16 %v2327, %v2319
    %v4272 = vpack.c.b16 %v2328, %v2320
    %v4273 = vpack.c.b16 %v2337, %v2329
    %v4274 = vpack.c.b16 %v2338, %v2330
    %v4275 = vpack.c.b16 %v2339, %v2331
    %v4276 = vpack.c.b16 %v2340, %v2332
    %v4277 = vpack.c.b16 %v2341, %v2333
    %v4278 = vpack.c.b16 %v2342, %v2334
    %v4279 = vpack.c.b16 %v2343, %v2335
    %v4280 = vpack.c.b16 %v2344, %v2336
    %v4281 = vpack.c.b16 %v2353, %v2345
    %v4282 = vpack.c.b16 %v2354, %v2346
    %v4283 = vpack.c.b16 %v2355, %v2347
    %v4284 = vpack.c.b16 %v2356, %v2348
    %v4285 = vpack.c.b16 %v2357, %v2349
    %v4286 = vpack.c.b16 %v2358, %v2350
    %v4287 = vpack.c.b16 %v2359, %v2351
    %v4288 = vpack.c.b16 %v2360, %v2352
    %v4289 = vpack.c.b16 %v2369, %v2361
    %v4290 = vpack.c.b16 %v2370, %v2362
    %v4291 = vpack.c.b16 %v2371, %v2363
    %v4292 = vpack.c.b16 %v2372, %v2364
    %v4293 = vpack.c.b16 %v2373, %v2365
    %v4294 = vpack.c.b16 %v2374, %v2366
    %v4295 = vpack.c.b16 %v2375, %v2367
    %v4296 = vpack.c.b16 %v2376, %v2368
    %v4297 = vpack.c.b16 %v2385, %v2377
    %v4298 = vpack.c.b16 %v2386, %v2378
    %v4299 = vpack.c.b16 %v2387, %v2379
    %v4300 = vpack.c.b16 %v2388, %v2380
    %v4301 = vpack.c.b16 %v2389, %v2381
    %v4302 = vpack.c.b16 %v2390, %v2382
    %v4303 = vpack.c.b16 %v2391, %v2383
    %v4304 = vpack.c.b16 %v2392, %v2384
    %v4305 = vpack.c.b16 %v2401, %v2393
    %v4306 = vpack.c.b16 %v2402, %v2394
    %v4307 = vpack.c.b16 %v2403, %v2395
    %v4308 = vpack.c.b16 %v2404, %v2396
    %v4309 = vpack.c.b16 %v2405, %v2397
    %v4310 = vpack.c.b16 %v2406, %v2398
    %v4311 = vpack.c.b16 %v2407, %v2399
    %v4312 = vpack.c.b16 %v2408, %v2400
    %v4313 = vpack.c.b16 %v2417, %v2409
    %v4314 = vpack.c.b16 %v2418, %v2410
    %v4315 = vpack.c.b16 %v2419, %v2411
    %v4316 = vpack.c.b16 %v2420, %v2412
    %v4317 = vpack.c.b16 %v2421, %v2413
    %v4318 = vpack.c.b16 %v2422, %v2414
    %v4319 = vpack.c.b16 %v2423, %v2415
    %v4320 = vpack.c.b16 %v2424, %v2416
    %v4321 = vpack.c.b16 %v2433, %v2425
    %v4322 = vpack.c.b16 %v2434, %v2426
    %v4323 = vpack.c.b16 %v2435, %v2427
    %v4324 = vpack.c.b16 %v2436, %v2428
    %v4325 = vpack.c.b16 %v2437, %v2429
    %v4326 = vpack.c.b16 %v2438, %v2430
    %v4327 = vpack.c.b16 %v2439, %v2431
    %v4328 = vpack.c.b16 %v2440, %v2432
    %v4329 = vpack.c.b16 %v2449, %v2441
    %v4330 = vpack.c.b16 %v2450, %v2442
    %v4331 = vpack.c.b16 %v2451, %v2443
    %v4332 = vpack.c.b16 %v2452, %v2444
    %v4333 = vpack.c.b16 %v2453, %v2445
    %v4334 = vpack.c.b16 %v2454, %v2446
    %v4335 = vpack.c.b16 %v2455, %v2447
    %v4336 = vpack.c.b16 %v2456, %v2448
    %v4337 = vpack.c.b16 %v2465, %v2457
    %v4338 = vpack.c.b16 %v2466, %v2458
    %v4339 = vpack.c.b16 %v2467, %v2459
    %v4340 = vpack.c.b16 %v2468, %v2460
    %v4341 = vpack.c.b16 %v2469, %v2461
    %v4342 = vpack.c.b16 %v2470, %v2462
    %v4343 = vpack.c.b16 %v2471, %v2463
    %v4344 = vpack.c.b16 %v2472, %v2464
    %v4345 = vpack.c.b16 %v2481, %v2473
    %v4346 = vpack.c.b16 %v2482, %v2474
    %v4347 = vpack.c.b16 %v2483, %v2475
    %v4348 = vpack.c.b16 %v2484, %v2476
    %v4349 = vpack.c.b16 %v2485, %v2477
    %v4350 = vpack.c.b16 %v2486, %v2478
    %v4351 = vpack.c.b16 %v2487, %v2479
    %v4352 = vpack.c.b16 %v2488, %v2480
    %v4353 = vpack.c.b16 %v2497, %v2489
    %v4354 = vpack.c.b16 %v2498, %v2490
    %v4355 = vpack.c.b16 %v2499, %v2491
    %v4356 = vpack.c.b16 %v2500, %v2492
    %v4357 = vpack.c.b16 %v2501, %v2493
    %v4358 = vpack.c.b16 %v2502, %v2494
    %v4359 = vpack.c.b16 %v2503, %v2495
    %v4360 = vpack.c.b16 %v2504, %v2496
    %v4361 = vpack.c.b16 %v2513, %v2505
    %v4362 = vpack.c.b16 %v2514, %v2506
    %v4363 = vpack.c.b16 %v2515, %v2507
    %v4364 = vpack.c.b16 %v2516, %v2508
    %v4365 = vpack.c.b16 %v2517, %v2509
    %v4366 = vpack.c.b16 %v2518, %v2510
    %v4367 = vpack.c.b16 %v2519, %v2511
    %v4368 = vpack.c.b16 %v2520, %v2512
    %v4369 = vpack.c.b16 %v2529, %v2521
    %v4370 = vpack.c.b16 %v2530, %v2522
    %v4371 = vpack.c.b16 %v2531, %v2523
    %v4372 = vpack.c.b16 %v2532, %v2524
    %v4373 = vpack.c.b16 %v2533, %v2525
    %v4374 = vpack.c.b16 %v2534, %v2526
    %v4375 = vpack.c.b16 %v2535, %v2527
    %v4376 = vpack.c.b16 %v2536, %v2528
    %v4377 = vpack.c.b16 %v2545, %v2537
    %v4378 = vpack.c.b16 %v2546, %v2538
    %v4379 = vpack.c.b16 %v2547, %v2539
    %v4380 = vpack.c.b16 %v2548, %v2540
    %v4381 = vpack.c.b16 %v2549, %v2541
    %v4382 = vpack.c.b16 %v2550, %v2542
    %v4383 = vpack.c.b16 %v2551, %v2543
    %v4384 = vpack.c.b16 %v2552, %v2544
    %v4385 = vpack.c.b16 %v2561, %v2553
    %v4386 = vpack.c.b16 %v2562, %v2554
    %v4387 = vpack.c.b16 %v2563, %v2555
    %v4388 = vpack.c.b16 %v2564, %v2556
    %v4389 = vpack.c.b16 %v2565, %v2557
    %v4390 = vpack.c.b16 %v2566, %v2558
    %v4391 = vpack.c.b16 %v2567, %v2559
    %v4392 = vpack.c.b16 %v2568, %v2560
    %v4393 = vpack.c.b16 %v2577, %v2569
    %v4394 = vpack.c.b16 %v2578, %v2570
    %v4395 = vpack.c.b16 %v2579, %v2571
    %v4396 = vpack.c.b16 %v2580, %v2572
    %v4397 = vpack.c.b16 %v2581, %v2573
    %v4398 = vpack.c.b16 %v2582, %v2574
    %v4399 = vpack.c.b16 %v2583, %v2575
    %v4400 = vpack.c.b16 %v2584, %v2576
    %v4401 = vpack.c.b16 %v2593, %v2585
    %v4402 = vpack.c.b16 %v2594, %v2586
    %v4403 = vpack.c.b16 %v2595, %v2587
    %v4404 = vpack.c.b16 %v2596, %v2588
    %v4405 = vpack.c.b16 %v2597, %v2589
    %v4406 = vpack.c.b16 %v2598, %v2590
    %v4407 = vpack.c.b16 %v2599, %v2591
    %v4408 = vpack.c.b16 %v2600, %v2592
    %v4409 = vpack.c.b16 %v2609, %v2601
    %v4410 = vpack.c.b16 %v2610, %v2602
    %v4411 = vpack.c.b16 %v2611, %v2603
    %v4412 = vpack.c.b16 %v2612, %v2604
    %v4413 = vpack.c.b16 %v2613, %v2605
    %v4414 = vpack.c.b16 %v2614, %v2606
    %v4415 = vpack.c.b16 %v2615, %v2607
    %v4416 = vpack.c.b16 %v2616, %v2608
    %v4417 = vpack.c.b16 %v2625, %v2617
    %v4418 = vpack.c.b16 %v2626, %v2618
    %v4419 = vpack.c.b16 %v2627, %v2619
    %v4420 = vpack.c.b16 %v2628, %v2620
    %v4421 = vpack.c.b16 %v2629, %v2621
    %v4422 = vpack.c.b16 %v2630, %v2622
    %v4423 = vpack.c.b16 %v2631, %v2623
    %v4424 = vpack.c.b16 %v2632, %v2624
    %v4425 = vpack.c.b16 %v2641, %v2633
    %v4426 = vpack.c.b16 %v2642, %v2634
    %v4427 = vpack.c.b16 %v2643, %v2635
    %v4428 = vpack.c.b16 %v2644, %v2636
    %v4429 = vpack.c.b16 %v2645, %v2637
    %v4430 = vpack.c.b16 %v2646, %v2638
    %v4431 = vpack.c.b16 %v2647, %v2639
    %v4432 = vpack.c.b16 %v2648, %v2640
    %v4433 = vpack.c.b16 %v2657, %v2649
    %v4434 = vpack.c.b16 %v2658, %v2650
    %v4435 = vpack.c.b16 %v2659, %v2651
    %v4436 = vpack.c.b16 %v2660, %v2652
    %v4437 = vpack.c.b16 %v2661, %v2653
    %v4438 = vpack.c.b16 %v2662, %v2654
    %v4439 = vpack.c.b16 %v2663, %v2655
    %v4440 = vpack.c.b16 %v2664, %v2656
    %v4441 = vpack.c.b16 %v2673, %v2665
    %v4442 = vpack.c.b16 %v2674, %v2666
    %v4443 = vpack.c.b16 %v2675, %v2667
    %v4444 = vpack.c.b16 %v2676, %v2668
    %v4445 = vpack.c.b16 %v2677, %v2669
    %v4446 = vpack.c.b16 %v2678, %v2670
    %v4447 = vpack.c.b16 %v2679, %v2671
    %v4448 = vpack.c.b16 %v2680, %v2672
    %v4449 = vpack.c.b16 %v2689, %v2681
    %v4450 = vpack.c.b16 %v2690, %v2682
    %v4451 = vpack.c.b16 %v2691, %v2683
    %v4452 = vpack.c.b16 %v2692, %v2684
    %v4453 = vpack.c.b16 %v2693, %v2685
    %v4454 = vpack.c.b16 %v2694, %v2686
    %v4455 = vpack.c.b16 %v2695, %v2687
    %v4456 = vpack.c.b16 %v2696, %v2688
    %v4457 = vpack.c.b16 %v2705, %v2697
    %v4458 = vpack.c.b16 %v2706, %v2698
    %v4459 = vpack.c.b16 %v2707, %v2699
    %v4460 = vpack.c.b16 %v2708, %v2700
    %v4461 = vpack.c.b16 %v2709, %v2701
    %v4462 = vpack.c.b16 %v2710, %v2702
    %v4463 = vpack.c.b16 %v2711, %v2703
    %v4464 = vpack.c.b16 %v2712, %v2704
    %v4465 = vpack.c.b16 %v2721, %v2713
    %v4466 = vpack.c.b16 %v2722, %v2714
    %v4467 = vpack.c.b16 %v2723, %v2715
    %v4468 = vpack.c.b16 %v2724, %v2716
    %v4469 = vpack.c.b16 %v2725, %v2717
    %v4470 = vpack.c.b16 %v2726, %v2718
    %v4471 = vpack.c.b16 %v2727, %v2719
    %v4472 = vpack.c.b16 %v2728, %v2720
    %v4473 = vpack.c.b16 %v2737, %v2729
    %v4474 = vpack.c.b16 %v2738, %v2730
    %v4475 = vpack.c.b16 %v2739, %v2731
    %v4476 = vpack.c.b16 %v2740, %v2732
    %v4477 = vpack.c.b16 %v2741, %v2733
    %v4478 = vpack.c.b16 %v2742, %v2734
    %v4479 = vpack.c.b16 %v2743, %v2735
    %v4480 = vpack.c.b16 %v2744, %v2736
    %v4481 = vpack.c.b16 %v2753, %v2745
    %v4482 = vpack.c.b16 %v2754, %v2746
    %v4483 = vpack.c.b16 %v2755, %v2747
    %v4484 = vpack.c.b16 %v2756, %v2748
    %v4485 = vpack.c.b16 %v2757, %v2749
    %v4486 = vpack.c.b16 %v2758, %v2750
    %v4487 = vpack.c.b16 %v2759, %v2751
    %v4488 = vpack.c.b16 %v2760, %v2752
    %v4489 = vpack.c.b16 %v2769, %v2761
    %v4490 = vpack.c.b16 %v2770, %v2762
    %v4491 = vpack.c.b16 %v2771, %v2763
    %v4492 = vpack.c.b16 %v2772, %v2764
    %v4493 = vpack.c.b16 %v2773, %v2765
    %v4494 = vpack.c.b16 %v2774, %v2766
    %v4495 = vpack.c.b16 %v2775, %v2767
    %v4496 = vpack.c.b16 %v2776, %v2768
    %v4497 = vpack.c.b16 %v2785, %v2777
    %v4498 = vpack.c.b16 %v2786, %v2778
    %v4499 = vpack.c.b16 %v2787, %v2779
    %v4500 = vpack.c.b16 %v2788, %v2780
    %v4501 = vpack.c.b16 %v2789, %v2781
    %v4502 = vpack.c.b16 %v2790, %v2782
    %v4503 = vpack.c.b16 %v2791, %v2783
    %v4504 = vpack.c.b16 %v2792, %v2784
    %v4505 = vpack.c.b16 %v2801, %v2793
    %v4506 = vpack.c.b16 %v2802, %v2794
    %v4507 = vpack.c.b16 %v2803, %v2795
    %v4508 = vpack.c.b16 %v2804, %v2796
    %v4509 = vpack.c.b16 %v2805, %v2797
    %v4510 = vpack.c.b16 %v2806, %v2798
    %v4511 = vpack.c.b16 %v2807, %v2799
    %v4512 = vpack.c.b16 %v2808, %v2800
    %v4513 = vpack.c.b16 %v2817, %v2809
    %v4514 = vpack.c.b16 %v2818, %v2810
    %v4515 = vpack.c.b16 %v2819, %v2811
    %v4516 = vpack.c.b16 %v2820, %v2812
    %v4517 = vpack.c.b16 %v2821, %v2813
    %v4518 = vpack.c.b16 %v2822, %v2814
    %v4519 = vpack.c.b16 %v2823, %v2815
    %v4520 = vpack.c.b16 %v2824, %v2816
    %v4521 = vpack.c.b16 %v2833, %v2825
    %v4522 = vpack.c.b16 %v2834, %v2826
    %v4523 = vpack.c.b16 %v2835, %v2827
    %v4524 = vpack.c.b16 %v2836, %v2828
    %v4525 = vpack.c.b16 %v2837, %v2829
    %v4526 = vpack.c.b16 %v2838, %v2830
    %v4527 = vpack.c.b16 %v2839, %v2831
    %v4528 = vpack.c.b16 %v2840, %v2832
    %v4529 = vpack.c.b16 %v2849, %v2841
    %v4530 = vpack.c.b16 %v2850, %v2842
    %v4531 = vpack.c.b16 %v2851, %v2843
    %v4532 = vpack.c.b16 %v2852, %v2844
    %v4533 = vpack.c.b16 %v2853, %v2845
    %v4534 = vpack.c.b16 %v2854, %v2846
    %v4535 = vpack.c.b16 %v2855, %v2847
    %v4536 = vpack.c.b16 %v2856, %v2848
    %v4537 = vpack.c.b16 %v2865, %v2857
    %v4538 = vpack.c.b16 %v2866, %v2858
    %v4539 = vpack.c.b16 %v2867, %v2859
    %v4540 = vpack.c.b16 %v2868, %v2860
    %v4541 = vpack.c.b16 %v2869, %v2861
    %v4542 = vpack.c.b16 %v2870, %v2862
    %v4543 = vpack.c.b16 %v2871, %v2863
    %v4544 = vpack.c.b16 %v2872, %v2864
    %v4545 = vpack.c.b16 %v2881, %v2873
    %v4546 = vpack.c.b16 %v2882, %v2874
    %v4547 = vpack.c.b16 %v2883, %v2875
    %v4548 = vpack.c.b16 %v2884, %v2876
    %v4549 = vpack.c.b16 %v2885, %v2877
    %v4550 = vpack.c.b16 %v2886, %v2878
    %v4551 = vpack.c.b16 %v2887, %v2879
    %v4552 = vpack.c.b16 %v2888, %v2880
    %v4553 = vpack.c.b16 %v2897, %v2889
    %v4554 = vpack.c.b16 %v2898, %v2890
    %v4555 = vpack.c.b16 %v2899, %v2891
    %v4556 = vpack.c.b16 %v2900, %v2892
    %v4557 = vpack.c.b16 %v2901, %v2893
    %v4558 = vpack.c.b16 %v2902, %v2894
    %v4559 = vpack.c.b16 %v2903, %v2895
    %v4560 = vpack.c.b16 %v2904, %v2896
    %v4561 = vpack.c.b16 %v2913, %v2905
    %v4562 = vpack.c.b16 %v2914, %v2906
    %v4563 = vpack.c.b16 %v2915, %v2907
    %v4564 = vpack.c.b16 %v2916, %v2908
    %v4565 = vpack.c.b16 %v2917, %v2909
    %v4566 = vpack.c.b16 %v2918, %v2910
    %v4567 = vpack.c.b16 %v2919, %v2911
    %v4568 = vpack.c.b16 %v2920, %v2912
    %v4569 = vpack.c.b16 %v2929, %v2921
    %v4570 = vpack.c.b16 %v2930, %v2922
    %v4571 = vpack.c.b16 %v2931, %v2923
    %v4572 = vpack.c.b16 %v2932, %v2924
    %v4573 = vpack.c.b16 %v2933, %v2925
    %v4574 = vpack.c.b16 %v2934, %v2926
    %v4575 = vpack.c.b16 %v2935, %v2927
    %v4576 = vpack.c.b16 %v2936, %v2928
    %v4577 = vpack.c.b16 %v2945, %v2937
    %v4578 = vpack.c.b16 %v2946, %v2938
    %v4579 = vpack.c.b16 %v2947, %v2939
    %v4580 = vpack.c.b16 %v2948, %v2940
    %v4581 = vpack.c.b16 %v2949, %v2941
    %v4582 = vpack.c.b16 %v2950, %v2942
    %v4583 = vpack.c.b16 %v2951, %v2943
    %v4584 = vpack.c.b16 %v2952, %v2944
    %v4585 = vpack.c.b16 %v2961, %v2953
    %v4586 = vpack.c.b16 %v2962, %v2954
    %v4587 = vpack.c.b16 %v2963, %v2955
    %v4588 = vpack.c.b16 %v2964, %v2956
    %v4589 = vpack.c.b16 %v2965, %v2957
    %v4590 = vpack.c.b16 %v2966, %v2958
    %v4591 = vpack.c.b16 %v2967, %v2959
    %v4592 = vpack.c.b16 %v2968, %v2960
    %v4593 = vpack.c.b16 %v2977, %v2969
    %v4594 = vpack.c.b16 %v2978, %v2970
    %v4595 = vpack.c.b16 %v2979, %v2971
    %v4596 = vpack.c.b16 %v2980, %v2972
    %v4597 = vpack.c.b16 %v2981, %v2973
    %v4598 = vpack.c.b16 %v2982, %v2974
    %v4599 = vpack.c.b16 %v2983, %v2975
    %v4600 = vpack.c.b16 %v2984, %v2976
    %v4601 = vpack.c.b16 %v2993, %v2985
    %v4602 = vpack.c.b16 %v2994, %v2986
    %v4603 = vpack.c.b16 %v2995, %v2987
    %v4604 = vpack.c.b16 %v2996, %v2988
    %v4605 = vpack.c.b16 %v2997, %v2989
    %v4606 = vpack.c.b16 %v2998, %v2990
    %v4607 = vpack.c.b16 %v2999, %v2991
    %v4608 = vpack.c.b16 %v3000, %v2992
    %v4609 = vpack.c.b16 %v3009, %v3001
    %v4610 = vpack.c.b16 %v3010, %v3002
    %v4611 = vpack.c.b16 %v3011, %v3003
    %v4612 = vpack.c.b16 %v3012, %v3004
    %v4613 = vpack.c.b16 %v3013, %v3005
    %v4614 = vpack.c.b16 %v3014, %v3006
    %v4615 = vpack.c.b16 %v3015, %v3007
    %v4616 = vpack.c.b16 %v3016, %v3008
    %v4617 = vpack.c.b16 %v3025, %v3017
    %v4618 = vpack.c.b16 %v3026, %v3018
    %v4619 = vpack.c.b16 %v3027, %v3019
    %v4620 = vpack.c.b16 %v3028, %v3020
    %v4621 = vpack.c.b16 %v3029, %v3021
    %v4622 = vpack.c.b16 %v3030, %v3022
    %v4623 = vpack.c.b16 %v3031, %v3023
    %v4624 = vpack.c.b16 %v3032, %v3024
    %v4625 = vpack.c.b16 %v3041, %v3033
    %v4626 = vpack.c.b16 %v3042, %v3034
    %v4627 = vpack.c.b16 %v3043, %v3035
    %v4628 = vpack.c.b16 %v3044, %v3036
    %v4629 = vpack.c.b16 %v3045, %v3037
    %v4630 = vpack.c.b16 %v3046, %v3038
    %v4631 = vpack.c.b16 %v3047, %v3039
    %v4632 = vpack.c.b16 %v3048, %v3040
    %v4633 = vpack.c.b16 %v3057, %v3049
    %v4634 = vpack.c.b16 %v3058, %v3050
    %v4635 = vpack.c.b16 %v3059, %v3051
    %v4636 = vpack.c.b16 %v3060, %v3052
    %v4637 = vpack.c.b16 %v3061, %v3053
    %v4638 = vpack.c.b16 %v3062, %v3054
    %v4639 = vpack.c.b16 %v3063, %v3055
    %v4640 = vpack.c.b16 %v3064, %v3056
    %v4641 = vpack.c.b16 %v3073, %v3065
    %v4642 = vpack.c.b16 %v3074, %v3066
    %v4643 = vpack.c.b16 %v3075, %v3067
    %v4644 = vpack.c.b16 %v3076, %v3068
    %v4645 = vpack.c.b16 %v3077, %v3069
    %v4646 = vpack.c.b16 %v3078, %v3070
    %v4647 = vpack.c.b16 %v3079, %v3071
    %v4648 = vpack.c.b16 %v3080, %v3072
    %v4649 = vpack.c.b16 %v3089, %v3081
    %v4650 = vpack.c.b16 %v3090, %v3082
    %v4651 = vpack.c.b16 %v3091, %v3083
    %v4652 = vpack.c.b16 %v3092, %v3084
    %v4653 = vpack.c.b16 %v3093, %v3085
    %v4654 = vpack.c.b16 %v3094, %v3086
    %v4655 = vpack.c.b16 %v3095, %v3087
    %v4656 = vpack.c.b16 %v3096, %v3088
    %v4657 = vpack.c.b16 %v3105, %v3097
    %v4658 = vpack.c.b16 %v3106, %v3098
    %v4659 = vpack.c.b16 %v3107, %v3099
    %v4660 = vpack.c.b16 %v3108, %v3100
    %v4661 = vpack.c.b16 %v3109, %v3101
    %v4662 = vpack.c.b16 %v3110, %v3102
    %v4663 = vpack.c.b16 %v3111, %v3103
    %v4664 = vpack.c.b16 %v3112, %v3104
    %v4665 = vpack.c.b16 %v3121, %v3113
    %v4666 = vpack.c.b16 %v3122, %v3114
    %v4667 = vpack.c.b16 %v3123, %v3115
    %v4668 = vpack.c.b16 %v3124, %v3116
    %v4669 = vpack.c.b16 %v3125, %v3117
    %v4670 = vpack.c.b16 %v3126, %v3118
    %v4671 = vpack.c.b16 %v3127, %v3119
    %v4672 = vpack.c.b16 %v3128, %v3120
    %v4673 = vpack.c.b16 %v3137, %v3129
    %v4674 = vpack.c.b16 %v3138, %v3130
    %v4675 = vpack.c.b16 %v3139, %v3131
    %v4676 = vpack.c.b16 %v3140, %v3132
    %v4677 = vpack.c.b16 %v3141, %v3133
    %v4678 = vpack.c.b16 %v3142, %v3134
    %v4679 = vpack.c.b16 %v3143, %v3135
    %v4680 = vpack.c.b16 %v3144, %v3136
    %v4681 = vpack.c.b16 %v3153, %v3145
    %v4682 = vpack.c.b16 %v3154, %v3146
    %v4683 = vpack.c.b16 %v3155, %v3147
    %v4684 = vpack.c.b16 %v3156, %v3148
    %v4685 = vpack.c.b16 %v3157, %v3149
    %v4686 = vpack.c.b16 %v3158, %v3150
    %v4687 = vpack.c.b16 %v3159, %v3151
    %v4688 = vpack.c.b16 %v3160, %v3152
    %v4689 = vpack.c.b16 %v3169, %v3161
    %v4690 = vpack.c.b16 %v3170, %v3162
    %v4691 = vpack.c.b16 %v3171, %v3163
    %v4692 = vpack.c.b16 %v3172, %v3164
    %v4693 = vpack.c.b16 %v3173, %v3165
    %v4694 = vpack.c.b16 %v3174, %v3166
    %v4695 = vpack.c.b16 %v3175, %v3167
    %v4696 = vpack.c.b16 %v3176, %v3168
    %v4697 = vpack.c.b16 %v3185, %v3177
    %v4698 = vpack.c.b16 %v3186, %v3178
    %v4699 = vpack.c.b16 %v3187, %v3179
    %v4700 = vpack.c.b16 %v3188, %v3180
    %v4701 = vpack.c.b16 %v3189, %v3181
    %v4702 = vpack.c.b16 %v3190, %v3182
    %v4703 = vpack.c.b16 %v3191, %v3183
    %v4704 = vpack.c.b16 %v3192, %v3184
    %v4705 = vpack.c.b16 %v3201, %v3193
    %v4706 = vpack.c.b16 %v3202, %v3194
    %v4707 = vpack.c.b16 %v3203, %v3195
    %v4708 = vpack.c.b16 %v3204, %v3196
    %v4709 = vpack.c.b16 %v3205, %v3197
    %v4710 = vpack.c.b16 %v3206, %v3198
    %v4711 = vpack.c.b16 %v3207, %v3199
    %v4712 = vpack.c.b16 %v3208, %v3200
    %v4713 = vpack.c.b16 %v3217, %v3209
    %v4714 = vpack.c.b16 %v3218, %v3210
    %v4715 = vpack.c.b16 %v3219, %v3211
    %v4716 = vpack.c.b16 %v3220, %v3212
    %v4717 = vpack.c.b16 %v3221, %v3213
    %v4718 = vpack.c.b16 %v3222, %v3214
    %v4719 = vpack.c.b16 %v3223, %v3215
    %v4720 = vpack.c.b16 %v3224, %v3216
    %v4721 = vpack.c.b16 %v3233, %v3225
    %v4722 = vpack.c.b16 %v3234, %v3226
    %v4723 = vpack.c.b16 %v3235, %v3227
    %v4724 = vpack.c.b16 %v3236, %v3228
    %v4725 = vpack.c.b16 %v3237, %v3229
    %v4726 = vpack.c.b16 %v3238, %v3230
    %v4727 = vpack.c.b16 %v3239, %v3231
    %v4728 = vpack.c.b16 %v3240, %v3232
    %v4729 = vpack.c.b16 %v3249, %v3241
    %v4730 = vpack.c.b16 %v3250, %v3242
    %v4731 = vpack.c.b16 %v3251, %v3243
    %v4732 = vpack.c.b16 %v3252, %v3244
    %v4733 = vpack.c.b16 %v3253, %v3245
    %v4734 = vpack.c.b16 %v3254, %v3246
    %v4735 = vpack.c.b16 %v3255, %v3247
    %v4736 = vpack.c.b16 %v3256, %v3248
    %v4737 = vpack.c.b16 %v3265, %v3257
    %v4738 = vpack.c.b16 %v3266, %v3258
    %v4739 = vpack.c.b16 %v3267, %v3259
    %v4740 = vpack.c.b16 %v3268, %v3260
    %v4741 = vpack.c.b16 %v3269, %v3261
    %v4742 = vpack.c.b16 %v3270, %v3262
    %v4743 = vpack.c.b16 %v3271, %v3263
    %v4744 = vpack.c.b16 %v3272, %v3264
    %v4745 = vpack.c.b16 %v3281, %v3273
    %v4746 = vpack.c.b16 %v3282, %v3274
    %v4747 = vpack.c.b16 %v3283, %v3275
    %v4748 = vpack.c.b16 %v3284, %v3276
    %v4749 = vpack.c.b16 %v3285, %v3277
    %v4750 = vpack.c.b16 %v3286, %v3278
    %v4751 = vpack.c.b16 %v3287, %v3279
    %v4752 = vpack.c.b16 %v3288, %v3280
    %v4753 = vpack.c.b16 %v3297, %v3289
    %v4754 = vpack.c.b16 %v3298, %v3290
    %v4755 = vpack.c.b16 %v3299, %v3291
    %v4756 = vpack.c.b16 %v3300, %v3292
    %v4757 = vpack.c.b16 %v3301, %v3293
    %v4758 = vpack.c.b16 %v3302, %v3294
    %v4759 = vpack.c.b16 %v3303, %v3295
    %v4760 = vpack.c.b16 %v3304, %v3296
    %v4761 = vpack.c.b16 %v3313, %v3305
    %v4762 = vpack.c.b16 %v3314, %v3306
    %v4763 = vpack.c.b16 %v3315, %v3307
    %v4764 = vpack.c.b16 %v3316, %v3308
    %v4765 = vpack.c.b16 %v3317, %v3309
    %v4766 = vpack.c.b16 %v3318, %v3310
    %v4767 = vpack.c.b16 %v3319, %v3311
    %v4768 = vpack.c.b16 %v3320, %v3312
    %v4769 = vpack.c.b16 %v3329, %v3321
    %v4770 = vpack.c.b16 %v3330, %v3322
    %v4771 = vpack.c.b16 %v3331, %v3323
    %v4772 = vpack.c.b16 %v3332, %v3324
    %v4773 = vpack.c.b16 %v3333, %v3325
    %v4774 = vpack.c.b16 %v3334, %v3326
    %v4775 = vpack.c.b16 %v3335, %v3327
    %v4776 = vpack.c.b16 %v3336, %v3328
    %v4777 = vpack.c.b16 %v3345, %v3337
    %v4778 = vpack.c.b16 %v3346, %v3338
    %v4779 = vpack.c.b16 %v3347, %v3339
    %v4780 = vpack.c.b16 %v3348, %v3340
    %v4781 = vpack.c.b16 %v3349, %v3341
    %v4782 = vpack.c.b16 %v3350, %v3342
    %v4783 = vpack.c.b16 %v3351, %v3343
    %v4784 = vpack.c.b16 %v3352, %v3344
    %v4785 = vpack.c.b16 %v3361, %v3353
    %v4786 = vpack.c.b16 %v3362, %v3354
    %v4787 = vpack.c.b16 %v3363, %v3355
    %v4788 = vpack.c.b16 %v3364, %v3356
    %v4789 = vpack.c.b16 %v3365, %v3357
    %v4790 = vpack.c.b16 %v3366, %v3358
    %v4791 = vpack.c.b16 %v3367, %v3359
    %v4792 = vpack.c.b16 %v3368, %v3360
    %v4793 = vpack.c.b16 %v3377, %v3369
    %v4794 = vpack.c.b16 %v3378, %v3370
    %v4795 = vpack.c.b16 %v3379, %v3371
    %v4796 = vpack.c.b16 %v3380, %v3372
    %v4797 = vpack.c.b16 %v3381, %v3373
    %v4798 = vpack.c.b16 %v3382, %v3374
    %v4799 = vpack.c.b16 %v3383, %v3375
    %v4800 = vpack.c.b16 %v3384, %v3376
    %v4801 = vpack.c.b16 %v3393, %v3385
    %v4802 = vpack.c.b16 %v3394, %v3386
    %v4803 = vpack.c.b16 %v3395, %v3387
    %v4804 = vpack.c.b16 %v3396, %v3388
    %v4805 = vpack.c.b16 %v3397, %v3389
    %v4806 = vpack.c.b16 %v3398, %v3390
    %v4807 = vpack.c.b16 %v3399, %v3391
    %v4808 = vpack.c.b16 %v3400, %v3392
    %v4809 = vpack.c.b16 %v3409, %v3401
    %v4810 = vpack.c.b16 %v3410, %v3402
    %v4811 = vpack.c.b16 %v3411, %v3403
    %v4812 = vpack.c.b16 %v3412, %v3404
    %v4813 = vpack.c.b16 %v3413, %v3405
    %v4814 = vpack.c.b16 %v3414, %v3406
    %v4815 = vpack.c.b16 %v3415, %v3407
    %v4816 = vpack.c.b16 %v3416, %v3408
    %v4817 = vpack.c.b16 %v3425, %v3417
    %v4818 = vpack.c.b16 %v3426, %v3418
    %v4819 = vpack.c.b16 %v3427, %v3419
    %v4820 = vpack.c.b16 %v3428, %v3420
    %v4821 = vpack.c.b16 %v3429, %v3421
    %v4822 = vpack.c.b16 %v3430, %v3422
    %v4823 = vpack.c.b16 %v3431, %v3423
    %v4824 = vpack.c.b16 %v3432, %v3424
    %v4825 = vpack.c.b16 %v3441, %v3433
    %v4826 = vpack.c.b16 %v3442, %v3434
    %v4827 = vpack.c.b16 %v3443, %v3435
    %v4828 = vpack.c.b16 %v3444, %v3436
    %v4829 = vpack.c.b16 %v3445, %v3437
    %v4830 = vpack.c.b16 %v3446, %v3438
    %v4831 = vpack.c.b16 %v3447, %v3439
    %v4832 = vpack.c.b16 %v3448, %v3440
    %v4833 = vpack.c.b16 %v3457, %v3449
    %v4834 = vpack.c.b16 %v3458, %v3450
    %v4835 = vpack.c.b16 %v3459, %v3451
    %v4836 = vpack.c.b16 %v3460, %v3452
    %v4837 = vpack.c.b16 %v3461, %v3453
    %v4838 = vpack.c.b16 %v3462, %v3454
    %v4839 = vpack.c.b16 %v3463, %v3455
    %v4840 = vpack.c.b16 %v3464, %v3456
    %v4841 = vpack.c.b16 %v3473, %v3465
    %v4842 = vpack.c.b16 %v3474, %v3466
    %v4843 = vpack.c.b16 %v3475, %v3467
    %v4844 = vpack.c.b16 %v3476, %v3468
    %v4845 = vpack.c.b16 %v3477, %v3469
    %v4846 = vpack.c.b16 %v3478, %v3470
    %v4847 = vpack.c.b16 %v3479, %v3471
    %v4848 = vpack.c.b16 %v3480, %v3472
    %v4849 = vpack.c.b16 %v3489, %v3481
    %v4850 = vpack.c.b16 %v3490, %v3482
    %v4851 = vpack.c.b16 %v3491, %v3483
    %v4852 = vpack.c.b16 %v3492, %v3484
    %v4853 = vpack.c.b16 %v3493, %v3485
    %v4854 = vpack.c.b16 %v3494, %v3486
    %v4855 = vpack.c.b16 %v3495, %v3487
    %v4856 = vpack.c.b16 %v3496, %v3488
    %v4857 = vpack.c.b16 %v3505, %v3497
    %v4858 = vpack.c.b16 %v3506, %v3498
    %v4859 = vpack.c.b16 %v3507, %v3499
    %v4860 = vpack.c.b16 %v3508, %v3500
    %v4861 = vpack.c.b16 %v3509, %v3501
    %v4862 = vpack.c.b16 %v3510, %v3502
    %v4863 = vpack.c.b16 %v3511, %v3503
    %v4864 = vpack.c.b16 %v3512, %v3504
    %v4865 = vpack.c.b16 %v3521, %v3513
    %v4866 = vpack.c.b16 %v3522, %v3514
    %v4867 = vpack.c.b16 %v3523, %v3515
    %v4868 = vpack.c.b16 %v3524, %v3516
    %v4869 = vpack.c.b16 %v3525, %v3517
    %v4870 = vpack.c.b16 %v3526, %v3518
    %v4871 = vpack.c.b16 %v3527, %v3519
    %v4872 = vpack.c.b16 %v3528, %v3520
    %v4873 = vpack.c.b16 %v3537, %v3529
    %v4874 = vpack.c.b16 %v3538, %v3530
    %v4875 = vpack.c.b16 %v3539, %v3531
    %v4876 = vpack.c.b16 %v3540, %v3532
    %v4877 = vpack.c.b16 %v3541, %v3533
    %v4878 = vpack.c.b16 %v3542, %v3534
    %v4879 = vpack.c.b16 %v3543, %v3535
    %v4880 = vpack.c.b16 %v3544, %v3536
    %v4881 = vpack.c.b16 %v3553, %v3545
    %v4882 = vpack.c.b16 %v3554, %v3546
    %v4883 = vpack.c.b16 %v3555, %v3547
    %v4884 = vpack.c.b16 %v3556, %v3548
    %v4885 = vpack.c.b16 %v3557, %v3549
    %v4886 = vpack.c.b16 %v3558, %v3550
    %v4887 = vpack.c.b16 %v3559, %v3551
    %v4888 = vpack.c.b16 %v3560, %v3552
    %v4889 = vpack.c.b16 %v3569, %v3561
    %v4890 = vpack.c.b16 %v3570, %v3562
    %v4891 = vpack.c.b16 %v3571, %v3563
    %v4892 = vpack.c.b16 %v3572, %v3564
    %v4893 = vpack.c.b16 %v3573, %v3565
    %v4894 = vpack.c.b16 %v3574, %v3566
    %v4895 = vpack.c.b16 %v3575, %v3567
    %v4896 = vpack.c.b16 %v3576, %v3568
    %v4897 = vpack.c.b16 %v3585, %v3577
    %v4898 = vpack.c.b16 %v3586, %v3578
    %v4899 = vpack.c.b16 %v3587, %v3579
    %v4900 = vpack.c.b16 %v3588, %v3580
    %v4901 = vpack.c.b16 %v3589, %v3581
    %v4902 = vpack.c.b16 %v3590, %v3582
    %v4903 = vpack.c.b16 %v3591, %v3583
    %v4904 = vpack.c.b16 %v3592, %v3584
    %v4905 = vpack.c.b16 %v3601, %v3593
    %v4906 = vpack.c.b16 %v3602, %v3594
    %v4907 = vpack.c.b16 %v3603, %v3595
    %v4908 = vpack.c.b16 %v3604, %v3596
    %v4909 = vpack.c.b16 %v3605, %v3597
    %v4910 = vpack.c.b16 %v3606, %v3598
    %v4911 = vpack.c.b16 %v3607, %v3599
    %v4912 = vpack.c.b16 %v3608, %v3600
    %v4913 = vpack.c.b16 %v3617, %v3609
    %v4914 = vpack.c.b16 %v3618, %v3610
    %v4915 = vpack.c.b16 %v3619, %v3611
    %v4916 = vpack.c.b16 %v3620, %v3612
    %v4917 = vpack.c.b16 %v3621, %v3613
    %v4918 = vpack.c.b16 %v3622, %v3614
    %v4919 = vpack.c.b16 %v3623, %v3615
    %v4920 = vpack.c.b16 %v3624, %v3616
    %v4921 = vpack.c.b16 %v3633, %v3625
    %v4922 = vpack.c.b16 %v3634, %v3626
    %v4923 = vpack.c.b16 %v3635, %v3627
    %v4924 = vpack.c.b16 %v3636, %v3628
    %v4925 = vpack.c.b16 %v3637, %v3629
    %v4926 = vpack.c.b16 %v3638, %v3630
    %v4927 = vpack.c.b16 %v3639, %v3631
    %v4928 = vpack.c.b16 %v3640, %v3632
    %v4929 = vpack.c.b16 %v3649, %v3641
    %v4930 = vpack.c.b16 %v3650, %v3642
    %v4931 = vpack.c.b16 %v3651, %v3643
    %v4932 = vpack.c.b16 %v3652, %v3644
    %v4933 = vpack.c.b16 %v3653, %v3645
    %v4934 = vpack.c.b16 %v3654, %v3646
    %v4935 = vpack.c.b16 %v3655, %v3647
    %v4936 = vpack.c.b16 %v3656, %v3648
    %v4937 = vpack.c.b16 %v3665, %v3657
    %v4938 = vpack.c.b16 %v3666, %v3658
    %v4939 = vpack.c.b16 %v3667, %v3659
    %v4940 = vpack.c.b16 %v3668, %v3660
    %v4941 = vpack.c.b16 %v3669, %v3661
    %v4942 = vpack.c.b16 %v3670, %v3662
    %v4943 = vpack.c.b16 %v3671, %v3663
    %v4944 = vpack.c.b16 %v3672, %v3664
    %v4945 = vpack.c.b16 %v3681, %v3673
    %v4946 = vpack.c.b16 %v3682, %v3674
    %v4947 = vpack.c.b16 %v3683, %v3675
    %v4948 = vpack.c.b16 %v3684, %v3676
    %v4949 = vpack.c.b16 %v3685, %v3677
    %v4950 = vpack.c.b16 %v3686, %v3678
    %v4951 = vpack.c.b16 %v3687, %v3679
    %v4952 = vpack.c.b16 %v3688, %v3680
    %v4953 = vpack.c.b16 %v3697, %v3689
    %v4954 = vpack.c.b16 %v3698, %v3690
    %v4955 = vpack.c.b16 %v3699, %v3691
    %v4956 = vpack.c.b16 %v3700, %v3692
    %v4957 = vpack.c.b16 %v3701, %v3693
    %v4958 = vpack.c.b16 %v3702, %v3694
    %v4959 = vpack.c.b16 %v3703, %v3695
    %v4960 = vpack.c.b16 %v3704, %v3696
    %v4961 = vpack.c.b16 %v3713, %v3705
    %v4962 = vpack.c.b16 %v3714, %v3706
    %v4963 = vpack.c.b16 %v3715, %v3707
    %v4964 = vpack.c.b16 %v3716, %v3708
    %v4965 = vpack.c.b16 %v3717, %v3709
    %v4966 = vpack.c.b16 %v3718, %v3710
    %v4967 = vpack.c.b16 %v3719, %v3711
    %v4968 = vpack.c.b16 %v3720, %v3712
    %v4969 = vpack.c.b16 %v3729, %v3721
    %v4970 = vpack.c.b16 %v3730, %v3722
    %v4971 = vpack.c.b16 %v3731, %v3723
    %v4972 = vpack.c.b16 %v3732, %v3724
    %v4973 = vpack.c.b16 %v3733, %v3725
    %v4974 = vpack.c.b16 %v3734, %v3726
    %v4975 = vpack.c.b16 %v3735, %v3727
    %v4976 = vpack.c.b16 %v3736, %v3728
    %v4977 = vpack.c.b16 %v3745, %v3737
    %v4978 = vpack.c.b16 %v3746, %v3738
    %v4979 = vpack.c.b16 %v3747, %v3739
    %v4980 = vpack.c.b16 %v3748, %v3740
    %v4981 = vpack.c.b16 %v3749, %v3741
    %v4982 = vpack.c.b16 %v3750, %v3742
    %v4983 = vpack.c.b16 %v3751, %v3743
    %v4984 = vpack.c.b16 %v3752, %v3744
    %v4985 = vpack.c.b16 %v3761, %v3753
    %v4986 = vpack.c.b16 %v3762, %v3754
    %v4987 = vpack.c.b16 %v3763, %v3755
    %v4988 = vpack.c.b16 %v3764, %v3756
    %v4989 = vpack.c.b16 %v3765, %v3757
    %v4990 = vpack.c.b16 %v3766, %v3758
    %v4991 = vpack.c.b16 %v3767, %v3759
    %v4992 = vpack.c.b16 %v3768, %v3760
    %v4993 = vpack.c.b16 %v3777, %v3769
    %v4994 = vpack.c.b16 %v3778, %v3770
    %v4995 = vpack.c.b16 %v3779, %v3771
    %v4996 = vpack.c.b16 %v3780, %v3772
    %v4997 = vpack.c.b16 %v3781, %v3773
    %v4998 = vpack.c.b16 %v3782, %v3774
    %v4999 = vpack.c.b16 %v3783, %v3775
    %v5000 = vpack.c.b16 %v3784, %v3776
    %v5001 = vpack.c.b16 %v3793, %v3785
    %v5002 = vpack.c.b16 %v3794, %v3786
    %v5003 = vpack.c.b16 %v3795, %v3787
    %v5004 = vpack.c.b16 %v3796, %v3788
    %v5005 = vpack.c.b16 %v3797, %v3789
    %v5006 = vpack.c.b16 %v3798, %v3790
    %v5007 = vpack.c.b16 %v3799, %v3791
    %v5008 = vpack.c.b16 %v3800, %v3792
    %v5009 = vpack.c.b16 %v3809, %v3801
    %v5010 = vpack.c.b16 %v3810, %v3802
    %v5011 = vpack.c.b16 %v3811, %v3803
    %v5012 = vpack.c.b16 %v3812, %v3804
    %v5013 = vpack.c.b16 %v3813, %v3805
    %v5014 = vpack.c.b16 %v3814, %v3806
    %v5015 = vpack.c.b16 %v3815, %v3807
    %v5016 = vpack.c.b16 %v3816, %v3808
    %v5017 = vpack.c.b16 %v3825, %v3817
    %v5018 = vpack.c.b16 %v3826, %v3818
    %v5019 = vpack.c.b16 %v3827, %v3819
    %v5020 = vpack.c.b16 %v3828, %v3820
    %v5021 = vpack.c.b16 %v3829, %v3821
    %v5022 = vpack.c.b16 %v3830, %v3822
    %v5023 = vpack.c.b16 %v3831, %v3823
    %v5024 = vpack.c.b16 %v3832, %v3824
    %v5025 = vpack.c.b16 %v3841, %v3833
    %v5026 = vpack.c.b16 %v3842, %v3834
    %v5027 = vpack.c.b16 %v3843, %v3835
    %v5028 = vpack.c.b16 %v3844, %v3836
    %v5029 = vpack.c.b16 %v3845, %v3837
    %v5030 = vpack.c.b16 %v3846, %v3838
    %v5031 = vpack.c.b16 %v3847, %v3839
    %v5032 = vpack.c.b16 %v3848, %v3840
    %v5033 = vpack.c.b16 %v3857, %v3849
    %v5034 = vpack.c.b16 %v3858, %v3850
    %v5035 = vpack.c.b16 %v3859, %v3851
    %v5036 = vpack.c.b16 %v3860, %v3852
    %v5037 = vpack.c.b16 %v3861, %v3853
    %v5038 = vpack.c.b16 %v3862, %v3854
    %v5039 = vpack.c.b16 %v3863, %v3855
    %v5040 = vpack.c.b16 %v3864, %v3856
    %v5041 = vpack.c.b16 %v3873, %v3865
    %v5042 = vpack.c.b16 %v3874, %v3866
    %v5043 = vpack.c.b16 %v3875, %v3867
    %v5044 = vpack.c.b16 %v3876, %v3868
    %v5045 = vpack.c.b16 %v3877, %v3869
    %v5046 = vpack.c.b16 %v3878, %v3870
    %v5047 = vpack.c.b16 %v3879, %v3871
    %v5048 = vpack.c.b16 %v3880, %v3872
    %v5049 = vpack.c.b16 %v3889, %v3881
    %v5050 = vpack.c.b16 %v3890, %v3882
    %v5051 = vpack.c.b16 %v3891, %v3883
    %v5052 = vpack.c.b16 %v3892, %v3884
    %v5053 = vpack.c.b16 %v3893, %v3885
    %v5054 = vpack.c.b16 %v3894, %v3886
    %v5055 = vpack.c.b16 %v3895, %v3887
    %v5056 = vpack.c.b16 %v3896, %v3888
    %v5057 = vpack.c.b16 %v3905, %v3897
    %v5058 = vpack.c.b16 %v3906, %v3898
    %v5059 = vpack.c.b16 %v3907, %v3899
    %v5060 = vpack.c.b16 %v3908, %v3900
    %v5061 = vpack.c.b16 %v3909, %v3901
    %v5062 = vpack.c.b16 %v3910, %v3902
    %v5063 = vpack.c.b16 %v3911, %v3903
    %v5064 = vpack.c.b16 %v3912, %v3904
    %v5065 = vpack.c.b16 %v3921, %v3913
    %v5066 = vpack.c.b16 %v3922, %v3914
    %v5067 = vpack.c.b16 %v3923, %v3915
    %v5068 = vpack.c.b16 %v3924, %v3916
    %v5069 = vpack.c.b16 %v3925, %v3917
    %v5070 = vpack.c.b16 %v3926, %v3918
    %v5071 = vpack.c.b16 %v3927, %v3919
    %v5072 = vpack.c.b16 %v3928, %v3920
    %v5073 = vpack.c.b16 %v3937, %v3929
    %v5074 = vpack.c.b16 %v3938, %v3930
    %v5075 = vpack.c.b16 %v3939, %v3931
    %v5076 = vpack.c.b16 %v3940, %v3932
    %v5077 = vpack.c.b16 %v3941, %v3933
    %v5078 = vpack.c.b16 %v3942, %v3934
    %v5079 = vpack.c.b16 %v3943, %v3935
    %v5080 = vpack.c.b16 %v3944, %v3936
    %v5081 = vpack.c.b16 %v3953, %v3945
    %v5082 = vpack.c.b16 %v3954, %v3946
    %v5083 = vpack.c.b16 %v3955, %v3947
    %v5084 = vpack.c.b16 %v3956, %v3948
    %v5085 = vpack.c.b16 %v3957, %v3949
    %v5086 = vpack.c.b16 %v3958, %v3950
    %v5087 = vpack.c.b16 %v3959, %v3951
    %v5088 = vpack.c.b16 %v3960, %v3952
    %v5089 = vpack.c.b16 %v3969, %v3961
    %v5090 = vpack.c.b16 %v3970, %v3962
    %v5091 = vpack.c.b16 %v3971, %v3963
    %v5092 = vpack.c.b16 %v3972, %v3964
    %v5093 = vpack.c.b16 %v3973, %v3965
    %v5094 = vpack.c.b16 %v3974, %v3966
    %v5095 = vpack.c.b16 %v3975, %v3967
    %v5096 = vpack.c.b16 %v3976, %v3968
    %v5097 = vpack.c.b16 %v3985, %v3977
    %v5098 = vpack.c.b16 %v3986, %v3978
    %v5099 = vpack.c.b16 %v3987, %v3979
    %v5100 = vpack.c.b16 %v3988, %v3980
    %v5101 = vpack.c.b16 %v3989, %v3981
    %v5102 = vpack.c.b16 %v3990, %v3982
    %v5103 = vpack.c.b16 %v3991, %v3983
    %v5104 = vpack.c.b16 %v3992, %v3984
    %v5105 = vpack.c.b16 %v4001, %v3993
    %v5106 = vpack.c.b16 %v4002, %v3994
    %v5107 = vpack.c.b16 %v4003, %v3995
    %v5108 = vpack.c.b16 %v4004, %v3996
    %v5109 = vpack.c.b16 %v4005, %v3997
    %v5110 = vpack.c.b16 %v4006, %v3998
    %v5111 = vpack.c.b16 %v4007, %v3999
    %v5112 = vpack.c.b16 %v4008, %v4000
    %v5113 = vpack.c.b16 %v4017, %v4009
    %v5114 = vpack.c.b16 %v4018, %v4010
    %v5115 = vpack.c.b16 %v4019, %v4011
    %v5116 = vpack.c.b16 %v4020, %v4012
    %v5117 = vpack.c.b16 %v4021, %v4013
    %v5118 = vpack.c.b16 %v4022, %v4014
    %v5119 = vpack.c.b16 %v4023, %v4015
    %v5120 = vpack.c.b16 %v4024, %v4016
    %v5121 = vpack.c.b16 %v4033, %v4025
    %v5122 = vpack.c.b16 %v4034, %v4026
    %v5123 = vpack.c.b16 %v4035, %v4027
    %v5124 = vpack.c.b16 %v4036, %v4028
    %v5125 = vpack.c.b16 %v4037, %v4029
    %v5126 = vpack.c.b16 %v4038, %v4030
    %v5127 = vpack.c.b16 %v4039, %v4031
    %v5128 = vpack.c.b16 %v4040, %v4032
    %v5129 = vpack.c.b16 %v4049, %v4041
    %v5130 = vpack.c.b16 %v4050, %v4042
    %v5131 = vpack.c.b16 %v4051, %v4043
    %v5132 = vpack.c.b16 %v4052, %v4044
    %v5133 = vpack.c.b16 %v4053, %v4045
    %v5134 = vpack.c.b16 %v4054, %v4046
    %v5135 = vpack.c.b16 %v4055, %v4047
    %v5136 = vpack.c.b16 %v4056, %v4048
    %v5137 = vpack.c.b16 %v4065, %v4057
    %v5138 = vpack.c.b16 %v4066, %v4058
    %v5139 = vpack.c.b16 %v4067, %v4059
    %v5140 = vpack.c.b16 %v4068, %v4060
    %v5141 = vpack.c.b16 %v4069, %v4061
    %v5142 = vpack.c.b16 %v4070, %v4062
    %v5143 = vpack.c.b16 %v4071, %v4063
    %v5144 = vpack.c.b16 %v4072, %v4064
    %v5145 = vpack.c.b16 %v4081, %v4073
    %v5146 = vpack.c.b16 %v4082, %v4074
    %v5147 = vpack.c.b16 %v4083, %v4075
    %v5148 = vpack.c.b16 %v4084, %v4076
    %v5149 = vpack.c.b16 %v4085, %v4077
    %v5150 = vpack.c.b16 %v4086, %v4078
    %v5151 = vpack.c.b16 %v4087, %v4079
    %v5152 = vpack.c.b16 %v4088, %v4080
    %v5153 = vpack.c.b16 %v4097, %v4089
    %v5154 = vpack.c.b16 %v4098, %v4090
    %v5155 = vpack.c.b16 %v4099, %v4091
    %v5156 = vpack.c.b16 %v4100, %v4092
    %v5157 = vpack.c.b16 %v4101, %v4093
    %v5158 = vpack.c.b16 %v4102, %v4094
    %v5159 = vpack.c.b16 %v4103, %v4095
    %v5160 = vpack.c.b16 %v4104, %v4096
    %v5161 = vpack.c.b16 %v4113, %v4105
    %v5162 = vpack.c.b16 %v4114, %v4106
    %v5163 = vpack.c.b16 %v4115, %v4107
    %v5164 = vpack.c.b16 %v4116, %v4108
    %v5165 = vpack.c.b16 %v4117, %v4109
    %v5166 = vpack.c.b16 %v4118, %v4110
    %v5167 = vpack.c.b16 %v4119, %v4111
    %v5168 = vpack.c.b16 %v4120, %v4112
    %v5169 = vpack.c.b16 %v4129, %v4121
    %v5170 = vpack.c.b16 %v4130, %v4122
    %v5171 = vpack.c.b16 %v4131, %v4123
    %v5172 = vpack.c.b16 %v4132, %v4124
    %v5173 = vpack.c.b16 %v4133, %v4125
    %v5174 = vpack.c.b16 %v4134, %v4126
    %v5175 = vpack.c.b16 %v4135, %v4127
    %v5176 = vpack.c.b16 %v4136, %v4128
    %v5177 = vpack.c.b16 %v4145, %v4137
    %v5178 = vpack.c.b16 %v4146, %v4138
    %v5179 = vpack.c.b16 %v4147, %v4139
    %v5180 = vpack.c.b16 %v4148, %v4140
    %v5181 = vpack.c.b16 %v4149, %v4141
    %v5182 = vpack.c.b16 %v4150, %v4142
    %v5183 = vpack.c.b16 %v4151, %v4143
    %v5184 = vpack.c.b16 %v4152, %v4144
    %v5185 = vpack.c.b16 %v4161, %v4153
    %v5186 = vpack.c.b16 %v4162, %v4154
    %v5187 = vpack.c.b16 %v4163, %v4155
    %v5188 = vpack.c.b16 %v4164, %v4156
    %v5189 = vpack.c.b16 %v4165, %v4157
    %v5190 = vpack.c.b16 %v4166, %v4158
    %v5191 = vpack.c.b16 %v4167, %v4159
    %v5192 = vpack.c.b16 %v4168, %v4160
    %6217 = vmatpush.bf16.msra.mxu0 %v4225
    %6218 = vmatpush.bf16.msra.mxu0 %v4217
    %6219 = vmatpush.bf16.msra.mxu0 %v4209
    %6220 = vmatpush.bf16.msra.mxu0 %v4201
    %6221 = vmatpush.bf16.msra.mxu0 %v4193
    %6222 = vmatpush.bf16.msra.mxu0 %v4185
    %6223 = vmatpush.bf16.msra.mxu0 %v4177
    %6224 = vmatpush.bf16.msra.mxu0 %v4169
    %6225 = vmatmul.bf16.gmra.mxu0 %v1063
    %v6226 = vpop.f32.mrf.mxu0
    %v6227 = vadd.f32 0.0, %v6226
    %v6228 = vpop.f32.mrf.mxu0
    %6229 = vdwg.mxu0
    %6230 = vmatpush.bf16.msra.mxu0 %v4289
    %6231 = vmatpush.bf16.msra.mxu0 %v4281
    %6232 = vmatpush.bf16.msra.mxu0 %v4273
    %6233 = vmatpush.bf16.msra.mxu0 %v4265
    %6234 = vmatpush.bf16.msra.mxu0 %v4257
    %6235 = vmatpush.bf16.msra.mxu0 %v4249
    %6236 = vmatpush.bf16.msra.mxu0 %v4241
    %6237 = vmatpush.bf16.msra.mxu0 %v4233
    %6238 = vmatmul.bf16.gmra.mxu0 %v1064
    %v6239 = vpop.f32.mrf.mxu0
    %v6240 = vadd.f32 %v6227, %v6239
    %v6241 = vpop.f32.mrf.mxu0
    %6242 = vdwg.mxu0
    %6243 = vmatpush.bf16.msra.mxu0 %v4353
    %6244 = vmatpush.bf16.msra.mxu0 %v4345
    %6245 = vmatpush.bf16.msra.mxu0 %v4337
    %6246 = vmatpush.bf16.msra.mxu0 %v4329
    %6247 = vmatpush.bf16.msra.mxu0 %v4321
    %6248 = vmatpush.bf16.msra.mxu0 %v4313
    %6249 = vmatpush.bf16.msra.mxu0 %v4305
    %6250 = vmatpush.bf16.msra.mxu0 %v4297
    %6251 = vmatmul.bf16.gmra.mxu0 %v1065
    %v6252 = vpop.f32.mrf.mxu0
    %v6253 = vadd.f32 %v6240, %v6252
    %v6254 = vpop.f32.mrf.mxu0
    %6255 = vdwg.mxu0
    %6256 = vmatpush.bf16.msra.mxu0 %v4417
    %6257 = vmatpush.bf16.msra.mxu0 %v4409
    %6258 = vmatpush.bf16.msra.mxu0 %v4401
    %6259 = vmatpush.bf16.msra.mxu0 %v4393
    %6260 = vmatpush.bf16.msra.mxu0 %v4385
    %6261 = vmatpush.bf16.msra.mxu0 %v4377
    %6262 = vmatpush.bf16.msra.mxu0 %v4369
    %6263 = vmatpush.bf16.msra.mxu0 %v4361
    %6264 = vmatmul.bf16.gmra.mxu0 %v1066
    %v6265 = vpop.f32.mrf.mxu0
    %v6266 = vadd.f32 %v6253, %v6265
    %v6267 = vpop.f32.mrf.mxu0
    %6268 = vdwg.mxu0
    %6269 = vmatpush.bf16.msra.mxu0 %v4481
    %6270 = vmatpush.bf16.msra.mxu0 %v4473
    %6271 = vmatpush.bf16.msra.mxu0 %v4465
    %6272 = vmatpush.bf16.msra.mxu0 %v4457
    %6273 = vmatpush.bf16.msra.mxu0 %v4449
    %6274 = vmatpush.bf16.msra.mxu0 %v4441
    %6275 = vmatpush.bf16.msra.mxu0 %v4433
    %6276 = vmatpush.bf16.msra.mxu0 %v4425
    %6277 = vmatmul.bf16.gmra.mxu0 %v1067
    %v6278 = vpop.f32.mrf.mxu0
    %v6279 = vadd.f32 %v6266, %v6278
    %v6280 = vpop.f32.mrf.mxu0
    %6281 = vdwg.mxu0
    %6282 = vmatpush.bf16.msra.mxu0 %v4545
    %6283 = vmatpush.bf16.msra.mxu0 %v4537
    %6284 = vmatpush.bf16.msra.mxu0 %v4529
    %6285 = vmatpush.bf16.msra.mxu0 %v4521
    %6286 = vmatpush.bf16.msra.mxu0 %v4513
    %6287 = vmatpush.bf16.msra.mxu0 %v4505
    %6288 = vmatpush.bf16.msra.mxu0 %v4497
    %6289 = vmatpush.bf16.msra.mxu0 %v4489
    %6290 = vmatmul.bf16.gmra.mxu0 %v1068
    %v6291 = vpop.f32.mrf.mxu0
    %v6292 = vadd.f32 %v6279, %v6291
    %v6293 = vpop.f32.mrf.mxu0
    %6294 = vdwg.mxu0
    %6295 = vmatpush.bf16.msra.mxu0 %v4609
    %6296 = vmatpush.bf16.msra.mxu0 %v4601
    %6297 = vmatpush.bf16.msra.mxu0 %v4593
    %6298 = vmatpush.bf16.msra.mxu0 %v4585
    %6299 = vmatpush.bf16.msra.mxu0 %v4577
    %6300 = vmatpush.bf16.msra.mxu0 %v4569
    %6301 = vmatpush.bf16.msra.mxu0 %v4561
    %6302 = vmatpush.bf16.msra.mxu0 %v4553
    %6303 = vmatmul.bf16.gmra.mxu0 %v1069
    %v6304 = vpop.f32.mrf.mxu0
    %v6305 = vadd.f32 %v6292, %v6304
    %v6306 = vpop.f32.mrf.mxu0
    %6307 = vdwg.mxu0
    %6308 = vmatpush.bf16.msra.mxu0 %v4673
    %6309 = vmatpush.bf16.msra.mxu0 %v4665
    %6310 = vmatpush.bf16.msra.mxu0 %v4657
    %6311 = vmatpush.bf16.msra.mxu0 %v4649
    %6312 = vmatpush.bf16.msra.mxu0 %v4641
    %6313 = vmatpush.bf16.msra.mxu0 %v4633
    %6314 = vmatpush.bf16.msra.mxu0 %v4625
    %6315 = vmatpush.bf16.msra.mxu0 %v4617
    %6316 = vmatmul.bf16.gmra.mxu0 %v1070
    %v6317 = vpop.f32.mrf.mxu0
    %v6318 = vadd.f32 %v6305, %v6317
    %v6319 = vpop.f32.mrf.mxu0
    %6320 = vdwg.mxu0
    %6321 = vmatpush.bf16.msra.mxu0 %v4737
    %6322 = vmatpush.bf16.msra.mxu0 %v4729
    %6323 = vmatpush.bf16.msra.mxu0 %v4721
    %6324 = vmatpush.bf16.msra.mxu0 %v4713
    %6325 = vmatpush.bf16.msra.mxu0 %v4705
    %6326 = vmatpush.bf16.msra.mxu0 %v4697
    %6327 = vmatpush.bf16.msra.mxu0 %v4689
    %6328 = vmatpush.bf16.msra.mxu0 %v4681
    %6329 = vmatmul.bf16.gmra.mxu0 %v1073
    %v6330 = vpop.f32.mrf.mxu0
    %v6331 = vadd.f32 %v6318, %v6330
    %v6332 = vpop.f32.mrf.mxu0
    %6333 = vdwg.mxu0
    %6334 = vmatpush.bf16.msra.mxu0 %v4801
    %6335 = vmatpush.bf16.msra.mxu0 %v4793
    %6336 = vmatpush.bf16.msra.mxu0 %v4785
    %6337 = vmatpush.bf16.msra.mxu0 %v4777
    %6338 = vmatpush.bf16.msra.mxu0 %v4769
    %6339 = vmatpush.bf16.msra.mxu0 %v4761
    %6340 = vmatpush.bf16.msra.mxu0 %v4753
    %6341 = vmatpush.bf16.msra.mxu0 %v4745
    %6342 = vmatmul.bf16.gmra.mxu0 %v1074
    %v6343 = vpop.f32.mrf.mxu0
    %v6344 = vadd.f32 %v6331, %v6343
    %v6345 = vpop.f32.mrf.mxu0
    %6346 = vdwg.mxu0
    %6347 = vmatpush.bf16.msra.mxu0 %v4865
    %6348 = vmatpush.bf16.msra.mxu0 %v4857
    %6349 = vmatpush.bf16.msra.mxu0 %v4849
    %6350 = vmatpush.bf16.msra.mxu0 %v4841
    %6351 = vmatpush.bf16.msra.mxu0 %v4833
    %6352 = vmatpush.bf16.msra.mxu0 %v4825
    %6353 = vmatpush.bf16.msra.mxu0 %v4817
    %6354 = vmatpush.bf16.msra.mxu0 %v4809
    %6355 = vmatmul.bf16.gmra.mxu0 %v1075
    %v6356 = vpop.f32.mrf.mxu0
    %v6357 = vadd.f32 %v6344, %v6356
    %v6358 = vpop.f32.mrf.mxu0
    %6359 = vdwg.mxu0
    %6360 = vmatpush.bf16.msra.mxu0 %v4929
    %6361 = vmatpush.bf16.msra.mxu0 %v4921
    %6362 = vmatpush.bf16.msra.mxu0 %v4913
    %6363 = vmatpush.bf16.msra.mxu0 %v4905
    %6364 = vmatpush.bf16.msra.mxu0 %v4897
    %6365 = vmatpush.bf16.msra.mxu0 %v4889
    %6366 = vmatpush.bf16.msra.mxu0 %v4881
    %6367 = vmatpush.bf16.msra.mxu0 %v4873
    %6368 = vmatmul.bf16.gmra.mxu0 %v1076
    %v6369 = vpop.f32.mrf.mxu0
    %v6370 = vadd.f32 %v6357, %v6369
    %v6371 = vpop.f32.mrf.mxu0
    %6372 = vdwg.mxu0
    %6373 = vmatpush.bf16.msra.mxu0 %v4993
    %6374 = vmatpush.bf16.msra.mxu0 %v4985
    %6375 = vmatpush.bf16.msra.mxu0 %v4977
    %6376 = vmatpush.bf16.msra.mxu0 %v4969
    %6377 = vmatpush.bf16.msra.mxu0 %v4961
    %6378 = vmatpush.bf16.msra.mxu0 %v4953
    %6379 = vmatpush.bf16.msra.mxu0 %v4945
    %6380 = vmatpush.bf16.msra.mxu0 %v4937
    %6381 = vmatmul.bf16.gmra.mxu0 %v1077
    %v6382 = vpop.f32.mrf.mxu0
    %v6383 = vadd.f32 %v6370, %v6382
    %v6384 = vpop.f32.mrf.mxu0
    %6385 = vdwg.mxu0
    %6386 = vmatpush.bf16.msra.mxu0 %v5057
    %6387 = vmatpush.bf16.msra.mxu0 %v5049
    %6388 = vmatpush.bf16.msra.mxu0 %v5041
    %6389 = vmatpush.bf16.msra.mxu0 %v5033
    %6390 = vmatpush.bf16.msra.mxu0 %v5025
    %6391 = vmatpush.bf16.msra.mxu0 %v5017
    %6392 = vmatpush.bf16.msra.mxu0 %v5009
    %6393 = vmatpush.bf16.msra.mxu0 %v5001
    %6394 = vmatmul.bf16.gmra.mxu0 %v1078
    %v6395 = vpop.f32.mrf.mxu0
    %v6396 = vadd.f32 %v6383, %v6395
    %v6397 = vpop.f32.mrf.mxu0
    %6398 = vdwg.mxu0
    %6399 = vmatpush.bf16.msra.mxu0 %v5121
    %6400 = vmatpush.bf16.msra.mxu0 %v5113
    %6401 = vmatpush.bf16.msra.mxu0 %v5105
    %6402 = vmatpush.bf16.msra.mxu0 %v5097
    %6403 = vmatpush.bf16.msra.mxu0 %v5089
    %6404 = vmatpush.bf16.msra.mxu0 %v5081
    %6405 = vmatpush.bf16.msra.mxu0 %v5073
    %6406 = vmatpush.bf16.msra.mxu0 %v5065
    %6407 = vmatmul.bf16.gmra.mxu0 %v1079
    %v6408 = vpop.f32.mrf.mxu0
    %v6409 = vadd.f32 %v6396, %v6408
    %v6410 = vpop.f32.mrf.mxu0
    %6411 = vdwg.mxu0
    %6412 = vmatpush.bf16.msra.mxu0 %v5185
    %6413 = vmatpush.bf16.msra.mxu0 %v5177
    %6414 = vmatpush.bf16.msra.mxu0 %v5169
    %6415 = vmatpush.bf16.msra.mxu0 %v5161
    %6416 = vmatpush.bf16.msra.mxu0 %v5153
    %6417 = vmatpush.bf16.msra.mxu0 %v5145
    %6418 = vmatpush.bf16.msra.mxu0 %v5137
    %6419 = vmatpush.bf16.msra.mxu0 %v5129
    %6420 = vmatmul.bf16.gmra.mxu0 %v1080
    %v6421 = vpop.f32.mrf.mxu0
    %v6422 = vadd.f32 %v6409, %v6421
    %v6423 = vpop.f32.mrf.mxu0
    %6424 = vdwg.mxu0
    %6425 = vmatpush.bf16.msra.mxu0 %v4226
    %6426 = vmatpush.bf16.msra.mxu0 %v4218
    %6427 = vmatpush.bf16.msra.mxu0 %v4210
    %6428 = vmatpush.bf16.msra.mxu0 %v4202
    %6429 = vmatpush.bf16.msra.mxu0 %v4194
    %6430 = vmatpush.bf16.msra.mxu0 %v4186
    %6431 = vmatpush.bf16.msra.mxu0 %v4178
    %6432 = vmatpush.bf16.msra.mxu0 %v4170
    %6433 = vmatmul.bf16.gmra.mxu0 %v1063
    %v6434 = vpop.f32.mrf.mxu0
    %v6435 = vadd.f32 0.0, %v6434
    %v6436 = vpop.f32.mrf.mxu0
    %6437 = vdwg.mxu0
    %6438 = vmatpush.bf16.msra.mxu0 %v4290
    %6439 = vmatpush.bf16.msra.mxu0 %v4282
    %6440 = vmatpush.bf16.msra.mxu0 %v4274
    %6441 = vmatpush.bf16.msra.mxu0 %v4266
    %6442 = vmatpush.bf16.msra.mxu0 %v4258
    %6443 = vmatpush.bf16.msra.mxu0 %v4250
    %6444 = vmatpush.bf16.msra.mxu0 %v4242
    %6445 = vmatpush.bf16.msra.mxu0 %v4234
    %6446 = vmatmul.bf16.gmra.mxu0 %v1064
    %v6447 = vpop.f32.mrf.mxu0
    %v6448 = vadd.f32 %v6435, %v6447
    %v6449 = vpop.f32.mrf.mxu0
    %6450 = vdwg.mxu0
    %6451 = vmatpush.bf16.msra.mxu0 %v4354
    %6452 = vmatpush.bf16.msra.mxu0 %v4346
    %6453 = vmatpush.bf16.msra.mxu0 %v4338
    %6454 = vmatpush.bf16.msra.mxu0 %v4330
    %6455 = vmatpush.bf16.msra.mxu0 %v4322
    %6456 = vmatpush.bf16.msra.mxu0 %v4314
    %6457 = vmatpush.bf16.msra.mxu0 %v4306
    %6458 = vmatpush.bf16.msra.mxu0 %v4298
    %6459 = vmatmul.bf16.gmra.mxu0 %v1065
    %v6460 = vpop.f32.mrf.mxu0
    %v6461 = vadd.f32 %v6448, %v6460
    %v6462 = vpop.f32.mrf.mxu0
    %6463 = vdwg.mxu0
    %6464 = vmatpush.bf16.msra.mxu0 %v4418
    %6465 = vmatpush.bf16.msra.mxu0 %v4410
    %6466 = vmatpush.bf16.msra.mxu0 %v4402
    %6467 = vmatpush.bf16.msra.mxu0 %v4394
    %6468 = vmatpush.bf16.msra.mxu0 %v4386
    %6469 = vmatpush.bf16.msra.mxu0 %v4378
    %6470 = vmatpush.bf16.msra.mxu0 %v4370
    %6471 = vmatpush.bf16.msra.mxu0 %v4362
    %6472 = vmatmul.bf16.gmra.mxu0 %v1066
    %v6473 = vpop.f32.mrf.mxu0
    %v6474 = vadd.f32 %v6461, %v6473
    %v6475 = vpop.f32.mrf.mxu0
    %6476 = vdwg.mxu0
    %6477 = vmatpush.bf16.msra.mxu0 %v4482
    %6478 = vmatpush.bf16.msra.mxu0 %v4474
    %6479 = vmatpush.bf16.msra.mxu0 %v4466
    %6480 = vmatpush.bf16.msra.mxu0 %v4458
    %6481 = vmatpush.bf16.msra.mxu0 %v4450
    %6482 = vmatpush.bf16.msra.mxu0 %v4442
    %6483 = vmatpush.bf16.msra.mxu0 %v4434
    %6484 = vmatpush.bf16.msra.mxu0 %v4426
    %6485 = vmatmul.bf16.gmra.mxu0 %v1067
    %v6486 = vpop.f32.mrf.mxu0
    %v6487 = vadd.f32 %v6474, %v6486
    %v6488 = vpop.f32.mrf.mxu0
    %6489 = vdwg.mxu0
    %6490 = vmatpush.bf16.msra.mxu0 %v4546
    %6491 = vmatpush.bf16.msra.mxu0 %v4538
    %6492 = vmatpush.bf16.msra.mxu0 %v4530
    %6493 = vmatpush.bf16.msra.mxu0 %v4522
    %6494 = vmatpush.bf16.msra.mxu0 %v4514
    %6495 = vmatpush.bf16.msra.mxu0 %v4506
    %6496 = vmatpush.bf16.msra.mxu0 %v4498
    %6497 = vmatpush.bf16.msra.mxu0 %v4490
    %6498 = vmatmul.bf16.gmra.mxu0 %v1068
    %v6499 = vpop.f32.mrf.mxu0
    %v6500 = vadd.f32 %v6487, %v6499
    %v6501 = vpop.f32.mrf.mxu0
    %6502 = vdwg.mxu0
    %6503 = vmatpush.bf16.msra.mxu0 %v4610
    %6504 = vmatpush.bf16.msra.mxu0 %v4602
    %6505 = vmatpush.bf16.msra.mxu0 %v4594
    %6506 = vmatpush.bf16.msra.mxu0 %v4586
    %6507 = vmatpush.bf16.msra.mxu0 %v4578
    %6508 = vmatpush.bf16.msra.mxu0 %v4570
    %6509 = vmatpush.bf16.msra.mxu0 %v4562
    %6510 = vmatpush.bf16.msra.mxu0 %v4554
    %6511 = vmatmul.bf16.gmra.mxu0 %v1069
    %v6512 = vpop.f32.mrf.mxu0
    %v6513 = vadd.f32 %v6500, %v6512
    %v6514 = vpop.f32.mrf.mxu0
    %6515 = vdwg.mxu0
    %6516 = vmatpush.bf16.msra.mxu0 %v4674
    %6517 = vmatpush.bf16.msra.mxu0 %v4666
    %6518 = vmatpush.bf16.msra.mxu0 %v4658
    %6519 = vmatpush.bf16.msra.mxu0 %v4650
    %6520 = vmatpush.bf16.msra.mxu0 %v4642
    %6521 = vmatpush.bf16.msra.mxu0 %v4634
    %6522 = vmatpush.bf16.msra.mxu0 %v4626
    %6523 = vmatpush.bf16.msra.mxu0 %v4618
    %6524 = vmatmul.bf16.gmra.mxu0 %v1070
    %v6525 = vpop.f32.mrf.mxu0
    %v6526 = vadd.f32 %v6513, %v6525
    %v6527 = vpop.f32.mrf.mxu0
    %6528 = vdwg.mxu0
    %6529 = vmatpush.bf16.msra.mxu0 %v4738
    %6530 = vmatpush.bf16.msra.mxu0 %v4730
    %6531 = vmatpush.bf16.msra.mxu0 %v4722
    %6532 = vmatpush.bf16.msra.mxu0 %v4714
    %6533 = vmatpush.bf16.msra.mxu0 %v4706
    %6534 = vmatpush.bf16.msra.mxu0 %v4698
    %6535 = vmatpush.bf16.msra.mxu0 %v4690
    %6536 = vmatpush.bf16.msra.mxu0 %v4682
    %6537 = vmatmul.bf16.gmra.mxu0 %v1073
    %v6538 = vpop.f32.mrf.mxu0
    %v6539 = vadd.f32 %v6526, %v6538
    %v6540 = vpop.f32.mrf.mxu0
    %6541 = vdwg.mxu0
    %6542 = vmatpush.bf16.msra.mxu0 %v4802
    %6543 = vmatpush.bf16.msra.mxu0 %v4794
    %6544 = vmatpush.bf16.msra.mxu0 %v4786
    %6545 = vmatpush.bf16.msra.mxu0 %v4778
    %6546 = vmatpush.bf16.msra.mxu0 %v4770
    %6547 = vmatpush.bf16.msra.mxu0 %v4762
    %6548 = vmatpush.bf16.msra.mxu0 %v4754
    %6549 = vmatpush.bf16.msra.mxu0 %v4746
    %6550 = vmatmul.bf16.gmra.mxu0 %v1074
    %v6551 = vpop.f32.mrf.mxu0
    %v6552 = vadd.f32 %v6539, %v6551
    %v6553 = vpop.f32.mrf.mxu0
    %6554 = vdwg.mxu0
    %6555 = vmatpush.bf16.msra.mxu0 %v4866
    %6556 = vmatpush.bf16.msra.mxu0 %v4858
    %6557 = vmatpush.bf16.msra.mxu0 %v4850
    %6558 = vmatpush.bf16.msra.mxu0 %v4842
    %6559 = vmatpush.bf16.msra.mxu0 %v4834
    %6560 = vmatpush.bf16.msra.mxu0 %v4826
    %6561 = vmatpush.bf16.msra.mxu0 %v4818
    %6562 = vmatpush.bf16.msra.mxu0 %v4810
    %6563 = vmatmul.bf16.gmra.mxu0 %v1075
    %v6564 = vpop.f32.mrf.mxu0
    %v6565 = vadd.f32 %v6552, %v6564
    %v6566 = vpop.f32.mrf.mxu0
    %6567 = vdwg.mxu0
    %6568 = vmatpush.bf16.msra.mxu0 %v4930
    %6569 = vmatpush.bf16.msra.mxu0 %v4922
    %6570 = vmatpush.bf16.msra.mxu0 %v4914
    %6571 = vmatpush.bf16.msra.mxu0 %v4906
    %6572 = vmatpush.bf16.msra.mxu0 %v4898
    %6573 = vmatpush.bf16.msra.mxu0 %v4890
    %6574 = vmatpush.bf16.msra.mxu0 %v4882
    %6575 = vmatpush.bf16.msra.mxu0 %v4874
    %6576 = vmatmul.bf16.gmra.mxu0 %v1076
    %v6577 = vpop.f32.mrf.mxu0
    %v6578 = vadd.f32 %v6565, %v6577
    %v6579 = vpop.f32.mrf.mxu0
    %6580 = vdwg.mxu0
    %6581 = vmatpush.bf16.msra.mxu0 %v4994
    %6582 = vmatpush.bf16.msra.mxu0 %v4986
    %6583 = vmatpush.bf16.msra.mxu0 %v4978
    %6584 = vmatpush.bf16.msra.mxu0 %v4970
    %6585 = vmatpush.bf16.msra.mxu0 %v4962
    %6586 = vmatpush.bf16.msra.mxu0 %v4954
    %6587 = vmatpush.bf16.msra.mxu0 %v4946
    %6588 = vmatpush.bf16.msra.mxu0 %v4938
    %6589 = vmatmul.bf16.gmra.mxu0 %v1077
    %v6590 = vpop.f32.mrf.mxu0
    %v6591 = vadd.f32 %v6578, %v6590
    %v6592 = vpop.f32.mrf.mxu0
    %6593 = vdwg.mxu0
    %6594 = vmatpush.bf16.msra.mxu0 %v5058
    %6595 = vmatpush.bf16.msra.mxu0 %v5050
    %6596 = vmatpush.bf16.msra.mxu0 %v5042
    %6597 = vmatpush.bf16.msra.mxu0 %v5034
    %6598 = vmatpush.bf16.msra.mxu0 %v5026
    %6599 = vmatpush.bf16.msra.mxu0 %v5018
    %6600 = vmatpush.bf16.msra.mxu0 %v5010
    %6601 = vmatpush.bf16.msra.mxu0 %v5002
    %6602 = vmatmul.bf16.gmra.mxu0 %v1078
    %v6603 = vpop.f32.mrf.mxu0
    %v6604 = vadd.f32 %v6591, %v6603
    %v6605 = vpop.f32.mrf.mxu0
    %6606 = vdwg.mxu0
    %6607 = vmatpush.bf16.msra.mxu0 %v5122
    %6608 = vmatpush.bf16.msra.mxu0 %v5114
    %6609 = vmatpush.bf16.msra.mxu0 %v5106
    %6610 = vmatpush.bf16.msra.mxu0 %v5098
    %6611 = vmatpush.bf16.msra.mxu0 %v5090
    %6612 = vmatpush.bf16.msra.mxu0 %v5082
    %6613 = vmatpush.bf16.msra.mxu0 %v5074
    %6614 = vmatpush.bf16.msra.mxu0 %v5066
    %6615 = vmatmul.bf16.gmra.mxu0 %v1079
    %v6616 = vpop.f32.mrf.mxu0
    %v6617 = vadd.f32 %v6604, %v6616
    %v6618 = vpop.f32.mrf.mxu0
    %6619 = vdwg.mxu0
    %6620 = vmatpush.bf16.msra.mxu0 %v5186
    %6621 = vmatpush.bf16.msra.mxu0 %v5178
    %6622 = vmatpush.bf16.msra.mxu0 %v5170
    %6623 = vmatpush.bf16.msra.mxu0 %v5162
    %6624 = vmatpush.bf16.msra.mxu0 %v5154
    %6625 = vmatpush.bf16.msra.mxu0 %v5146
    %6626 = vmatpush.bf16.msra.mxu0 %v5138
    %6627 = vmatpush.bf16.msra.mxu0 %v5130
    %6628 = vmatmul.bf16.gmra.mxu0 %v1080
    %v6629 = vpop.f32.mrf.mxu0
    %v6630 = vadd.f32 %v6617, %v6629
    %v6631 = vpop.f32.mrf.mxu0
    %6632 = vdwg.mxu0
    %6633 = vmatpush.bf16.msra.mxu0 %v4227
    %6634 = vmatpush.bf16.msra.mxu0 %v4219
    %6635 = vmatpush.bf16.msra.mxu0 %v4211
    %6636 = vmatpush.bf16.msra.mxu0 %v4203
    %6637 = vmatpush.bf16.msra.mxu0 %v4195
    %6638 = vmatpush.bf16.msra.mxu0 %v4187
    %6639 = vmatpush.bf16.msra.mxu0 %v4179
    %6640 = vmatpush.bf16.msra.mxu0 %v4171
    %6641 = vmatmul.bf16.gmra.mxu0 %v1063
    %v6642 = vpop.f32.mrf.mxu0
    %v6643 = vadd.f32 0.0, %v6642
    %v6644 = vpop.f32.mrf.mxu0
    %6645 = vdwg.mxu0
    %6646 = vmatpush.bf16.msra.mxu0 %v4291
    %6647 = vmatpush.bf16.msra.mxu0 %v4283
    %6648 = vmatpush.bf16.msra.mxu0 %v4275
    %6649 = vmatpush.bf16.msra.mxu0 %v4267
    %6650 = vmatpush.bf16.msra.mxu0 %v4259
    %6651 = vmatpush.bf16.msra.mxu0 %v4251
    %6652 = vmatpush.bf16.msra.mxu0 %v4243
    %6653 = vmatpush.bf16.msra.mxu0 %v4235
    %6654 = vmatmul.bf16.gmra.mxu0 %v1064
    %v6655 = vpop.f32.mrf.mxu0
    %v6656 = vadd.f32 %v6643, %v6655
    %v6657 = vpop.f32.mrf.mxu0
    %6658 = vdwg.mxu0
    %6659 = vmatpush.bf16.msra.mxu0 %v4355
    %6660 = vmatpush.bf16.msra.mxu0 %v4347
    %6661 = vmatpush.bf16.msra.mxu0 %v4339
    %6662 = vmatpush.bf16.msra.mxu0 %v4331
    %6663 = vmatpush.bf16.msra.mxu0 %v4323
    %6664 = vmatpush.bf16.msra.mxu0 %v4315
    %6665 = vmatpush.bf16.msra.mxu0 %v4307
    %6666 = vmatpush.bf16.msra.mxu0 %v4299
    %6667 = vmatmul.bf16.gmra.mxu0 %v1065
    %v6668 = vpop.f32.mrf.mxu0
    %v6669 = vadd.f32 %v6656, %v6668
    %v6670 = vpop.f32.mrf.mxu0
    %6671 = vdwg.mxu0
    %6672 = vmatpush.bf16.msra.mxu0 %v4419
    %6673 = vmatpush.bf16.msra.mxu0 %v4411
    %6674 = vmatpush.bf16.msra.mxu0 %v4403
    %6675 = vmatpush.bf16.msra.mxu0 %v4395
    %6676 = vmatpush.bf16.msra.mxu0 %v4387
    %6677 = vmatpush.bf16.msra.mxu0 %v4379
    %6678 = vmatpush.bf16.msra.mxu0 %v4371
    %6679 = vmatpush.bf16.msra.mxu0 %v4363
    %6680 = vmatmul.bf16.gmra.mxu0 %v1066
    %v6681 = vpop.f32.mrf.mxu0
    %v6682 = vadd.f32 %v6669, %v6681
    %v6683 = vpop.f32.mrf.mxu0
    %6684 = vdwg.mxu0
    %6685 = vmatpush.bf16.msra.mxu0 %v4483
    %6686 = vmatpush.bf16.msra.mxu0 %v4475
    %6687 = vmatpush.bf16.msra.mxu0 %v4467
    %6688 = vmatpush.bf16.msra.mxu0 %v4459
    %6689 = vmatpush.bf16.msra.mxu0 %v4451
    %6690 = vmatpush.bf16.msra.mxu0 %v4443
    %6691 = vmatpush.bf16.msra.mxu0 %v4435
    %6692 = vmatpush.bf16.msra.mxu0 %v4427
    %6693 = vmatmul.bf16.gmra.mxu0 %v1067
    %v6694 = vpop.f32.mrf.mxu0
    %v6695 = vadd.f32 %v6682, %v6694
    %v6696 = vpop.f32.mrf.mxu0
    %6697 = vdwg.mxu0
    %6698 = vmatpush.bf16.msra.mxu0 %v4547
    %6699 = vmatpush.bf16.msra.mxu0 %v4539
    %6700 = vmatpush.bf16.msra.mxu0 %v4531
    %6701 = vmatpush.bf16.msra.mxu0 %v4523
    %6702 = vmatpush.bf16.msra.mxu0 %v4515
    %6703 = vmatpush.bf16.msra.mxu0 %v4507
    %6704 = vmatpush.bf16.msra.mxu0 %v4499
    %6705 = vmatpush.bf16.msra.mxu0 %v4491
    %6706 = vmatmul.bf16.gmra.mxu0 %v1068
    %v6707 = vpop.f32.mrf.mxu0
    %v6708 = vadd.f32 %v6695, %v6707
    %v6709 = vpop.f32.mrf.mxu0
    %6710 = vdwg.mxu0
    %6711 = vmatpush.bf16.msra.mxu0 %v4611
    %6712 = vmatpush.bf16.msra.mxu0 %v4603
    %6713 = vmatpush.bf16.msra.mxu0 %v4595
    %6714 = vmatpush.bf16.msra.mxu0 %v4587
    %6715 = vmatpush.bf16.msra.mxu0 %v4579
    %6716 = vmatpush.bf16.msra.mxu0 %v4571
    %6717 = vmatpush.bf16.msra.mxu0 %v4563
    %6718 = vmatpush.bf16.msra.mxu0 %v4555
    %6719 = vmatmul.bf16.gmra.mxu0 %v1069
    %v6720 = vpop.f32.mrf.mxu0
    %v6721 = vadd.f32 %v6708, %v6720
    %v6722 = vpop.f32.mrf.mxu0
    %6723 = vdwg.mxu0
    %6724 = vmatpush.bf16.msra.mxu0 %v4675
    %6725 = vmatpush.bf16.msra.mxu0 %v4667
    %6726 = vmatpush.bf16.msra.mxu0 %v4659
    %6727 = vmatpush.bf16.msra.mxu0 %v4651
    %6728 = vmatpush.bf16.msra.mxu0 %v4643
    %6729 = vmatpush.bf16.msra.mxu0 %v4635
    %6730 = vmatpush.bf16.msra.mxu0 %v4627
    %6731 = vmatpush.bf16.msra.mxu0 %v4619
    %6732 = vmatmul.bf16.gmra.mxu0 %v1070
    %v6733 = vpop.f32.mrf.mxu0
    %v6734 = vadd.f32 %v6721, %v6733
    %v6735 = vpop.f32.mrf.mxu0
    %6736 = vdwg.mxu0
    %6737 = vmatpush.bf16.msra.mxu0 %v4739
    %6738 = vmatpush.bf16.msra.mxu0 %v4731
    %6739 = vmatpush.bf16.msra.mxu0 %v4723
    %6740 = vmatpush.bf16.msra.mxu0 %v4715
    %6741 = vmatpush.bf16.msra.mxu0 %v4707
    %6742 = vmatpush.bf16.msra.mxu0 %v4699
    %6743 = vmatpush.bf16.msra.mxu0 %v4691
    %6744 = vmatpush.bf16.msra.mxu0 %v4683
    %6745 = vmatmul.bf16.gmra.mxu0 %v1073
    %v6746 = vpop.f32.mrf.mxu0
    %v6747 = vadd.f32 %v6734, %v6746
    %v6748 = vpop.f32.mrf.mxu0
    %6749 = vdwg.mxu0
    %6750 = vmatpush.bf16.msra.mxu0 %v4803
    %6751 = vmatpush.bf16.msra.mxu0 %v4795
    %6752 = vmatpush.bf16.msra.mxu0 %v4787
    %6753 = vmatpush.bf16.msra.mxu0 %v4779
    %6754 = vmatpush.bf16.msra.mxu0 %v4771
    %6755 = vmatpush.bf16.msra.mxu0 %v4763
    %6756 = vmatpush.bf16.msra.mxu0 %v4755
    %6757 = vmatpush.bf16.msra.mxu0 %v4747
    %6758 = vmatmul.bf16.gmra.mxu0 %v1074
    %v6759 = vpop.f32.mrf.mxu0
    %v6760 = vadd.f32 %v6747, %v6759
    %v6761 = vpop.f32.mrf.mxu0
    %6762 = vdwg.mxu0
    %6763 = vmatpush.bf16.msra.mxu0 %v4867
    %6764 = vmatpush.bf16.msra.mxu0 %v4859
    %6765 = vmatpush.bf16.msra.mxu0 %v4851
    %6766 = vmatpush.bf16.msra.mxu0 %v4843
    %6767 = vmatpush.bf16.msra.mxu0 %v4835
    %6768 = vmatpush.bf16.msra.mxu0 %v4827
    %6769 = vmatpush.bf16.msra.mxu0 %v4819
    %6770 = vmatpush.bf16.msra.mxu0 %v4811
    %6771 = vmatmul.bf16.gmra.mxu0 %v1075
    %v6772 = vpop.f32.mrf.mxu0
    %v6773 = vadd.f32 %v6760, %v6772
    %v6774 = vpop.f32.mrf.mxu0
    %6775 = vdwg.mxu0
    %6776 = vmatpush.bf16.msra.mxu0 %v4931
    %6777 = vmatpush.bf16.msra.mxu0 %v4923
    %6778 = vmatpush.bf16.msra.mxu0 %v4915
    %6779 = vmatpush.bf16.msra.mxu0 %v4907
    %6780 = vmatpush.bf16.msra.mxu0 %v4899
    %6781 = vmatpush.bf16.msra.mxu0 %v4891
    %6782 = vmatpush.bf16.msra.mxu0 %v4883
    %6783 = vmatpush.bf16.msra.mxu0 %v4875
    %6784 = vmatmul.bf16.gmra.mxu0 %v1076
    %v6785 = vpop.f32.mrf.mxu0
    %v6786 = vadd.f32 %v6773, %v6785
    %v6787 = vpop.f32.mrf.mxu0
    %6788 = vdwg.mxu0
    %6789 = vmatpush.bf16.msra.mxu0 %v4995
    %6790 = vmatpush.bf16.msra.mxu0 %v4987
    %6791 = vmatpush.bf16.msra.mxu0 %v4979
    %6792 = vmatpush.bf16.msra.mxu0 %v4971
    %6793 = vmatpush.bf16.msra.mxu0 %v4963
    %6794 = vmatpush.bf16.msra.mxu0 %v4955
    %6795 = vmatpush.bf16.msra.mxu0 %v4947
    %6796 = vmatpush.bf16.msra.mxu0 %v4939
    %6797 = vmatmul.bf16.gmra.mxu0 %v1077
    %v6798 = vpop.f32.mrf.mxu0
    %v6799 = vadd.f32 %v6786, %v6798
    %v6800 = vpop.f32.mrf.mxu0
    %6801 = vdwg.mxu0
    %6802 = vmatpush.bf16.msra.mxu0 %v5059
    %6803 = vmatpush.bf16.msra.mxu0 %v5051
    %6804 = vmatpush.bf16.msra.mxu0 %v5043
    %6805 = vmatpush.bf16.msra.mxu0 %v5035
    %6806 = vmatpush.bf16.msra.mxu0 %v5027
    %6807 = vmatpush.bf16.msra.mxu0 %v5019
    %6808 = vmatpush.bf16.msra.mxu0 %v5011
    %6809 = vmatpush.bf16.msra.mxu0 %v5003
    %6810 = vmatmul.bf16.gmra.mxu0 %v1078
    %v6811 = vpop.f32.mrf.mxu0
    %v6812 = vadd.f32 %v6799, %v6811
    %v6813 = vpop.f32.mrf.mxu0
    %6814 = vdwg.mxu0
    %6815 = vmatpush.bf16.msra.mxu0 %v5123
    %6816 = vmatpush.bf16.msra.mxu0 %v5115
    %6817 = vmatpush.bf16.msra.mxu0 %v5107
    %6818 = vmatpush.bf16.msra.mxu0 %v5099
    %6819 = vmatpush.bf16.msra.mxu0 %v5091
    %6820 = vmatpush.bf16.msra.mxu0 %v5083
    %6821 = vmatpush.bf16.msra.mxu0 %v5075
    %6822 = vmatpush.bf16.msra.mxu0 %v5067
    %6823 = vmatmul.bf16.gmra.mxu0 %v1079
    %v6824 = vpop.f32.mrf.mxu0
    %v6825 = vadd.f32 %v6812, %v6824
    %v6826 = vpop.f32.mrf.mxu0
    %6827 = vdwg.mxu0
    %6828 = vmatpush.bf16.msra.mxu0 %v5187
    %6829 = vmatpush.bf16.msra.mxu0 %v5179
    %6830 = vmatpush.bf16.msra.mxu0 %v5171
    %6831 = vmatpush.bf16.msra.mxu0 %v5163
    %6832 = vmatpush.bf16.msra.mxu0 %v5155
    %6833 = vmatpush.bf16.msra.mxu0 %v5147
    %6834 = vmatpush.bf16.msra.mxu0 %v5139
    %6835 = vmatpush.bf16.msra.mxu0 %v5131
    %6836 = vmatmul.bf16.gmra.mxu0 %v1080
    %v6837 = vpop.f32.mrf.mxu0
    %v6838 = vadd.f32 %v6825, %v6837
    %v6839 = vpop.f32.mrf.mxu0
    %6840 = vdwg.mxu0
    %6841 = vmatpush.bf16.msra.mxu0 %v4228
    %6842 = vmatpush.bf16.msra.mxu0 %v4220
    %6843 = vmatpush.bf16.msra.mxu0 %v4212
    %6844 = vmatpush.bf16.msra.mxu0 %v4204
    %6845 = vmatpush.bf16.msra.mxu0 %v4196
    %6846 = vmatpush.bf16.msra.mxu0 %v4188
    %6847 = vmatpush.bf16.msra.mxu0 %v4180
    %6848 = vmatpush.bf16.msra.mxu0 %v4172
    %6849 = vmatmul.bf16.gmra.mxu0 %v1063
    %v6850 = vpop.f32.mrf.mxu0
    %v6851 = vadd.f32 0.0, %v6850
    %v6852 = vpop.f32.mrf.mxu0
    %6853 = vdwg.mxu0
    %6854 = vmatpush.bf16.msra.mxu0 %v4292
    %6855 = vmatpush.bf16.msra.mxu0 %v4284
    %6856 = vmatpush.bf16.msra.mxu0 %v4276
    %6857 = vmatpush.bf16.msra.mxu0 %v4268
    %6858 = vmatpush.bf16.msra.mxu0 %v4260
    %6859 = vmatpush.bf16.msra.mxu0 %v4252
    %6860 = vmatpush.bf16.msra.mxu0 %v4244
    %6861 = vmatpush.bf16.msra.mxu0 %v4236
    %6862 = vmatmul.bf16.gmra.mxu0 %v1064
    %v6863 = vpop.f32.mrf.mxu0
    %v6864 = vadd.f32 %v6851, %v6863
    %v6865 = vpop.f32.mrf.mxu0
    %6866 = vdwg.mxu0
    %6867 = vmatpush.bf16.msra.mxu0 %v4356
    %6868 = vmatpush.bf16.msra.mxu0 %v4348
    %6869 = vmatpush.bf16.msra.mxu0 %v4340
    %6870 = vmatpush.bf16.msra.mxu0 %v4332
    %6871 = vmatpush.bf16.msra.mxu0 %v4324
    %6872 = vmatpush.bf16.msra.mxu0 %v4316
    %6873 = vmatpush.bf16.msra.mxu0 %v4308
    %6874 = vmatpush.bf16.msra.mxu0 %v4300
    %6875 = vmatmul.bf16.gmra.mxu0 %v1065
    %v6876 = vpop.f32.mrf.mxu0
    %v6877 = vadd.f32 %v6864, %v6876
    %v6878 = vpop.f32.mrf.mxu0
    %6879 = vdwg.mxu0
    %6880 = vmatpush.bf16.msra.mxu0 %v4420
    %6881 = vmatpush.bf16.msra.mxu0 %v4412
    %6882 = vmatpush.bf16.msra.mxu0 %v4404
    %6883 = vmatpush.bf16.msra.mxu0 %v4396
    %6884 = vmatpush.bf16.msra.mxu0 %v4388
    %6885 = vmatpush.bf16.msra.mxu0 %v4380
    %6886 = vmatpush.bf16.msra.mxu0 %v4372
    %6887 = vmatpush.bf16.msra.mxu0 %v4364
    %6888 = vmatmul.bf16.gmra.mxu0 %v1066
    %v6889 = vpop.f32.mrf.mxu0
    %v6890 = vadd.f32 %v6877, %v6889
    %v6891 = vpop.f32.mrf.mxu0
    %6892 = vdwg.mxu0
    %6893 = vmatpush.bf16.msra.mxu0 %v4484
    %6894 = vmatpush.bf16.msra.mxu0 %v4476
    %6895 = vmatpush.bf16.msra.mxu0 %v4468
    %6896 = vmatpush.bf16.msra.mxu0 %v4460
    %6897 = vmatpush.bf16.msra.mxu0 %v4452
    %6898 = vmatpush.bf16.msra.mxu0 %v4444
    %6899 = vmatpush.bf16.msra.mxu0 %v4436
    %6900 = vmatpush.bf16.msra.mxu0 %v4428
    %6901 = vmatmul.bf16.gmra.mxu0 %v1067
    %v6902 = vpop.f32.mrf.mxu0
    %v6903 = vadd.f32 %v6890, %v6902
    %v6904 = vpop.f32.mrf.mxu0
    %6905 = vdwg.mxu0
    %6906 = vmatpush.bf16.msra.mxu0 %v4548
    %6907 = vmatpush.bf16.msra.mxu0 %v4540
    %6908 = vmatpush.bf16.msra.mxu0 %v4532
    %6909 = vmatpush.bf16.msra.mxu0 %v4524
    %6910 = vmatpush.bf16.msra.mxu0 %v4516
    %6911 = vmatpush.bf16.msra.mxu0 %v4508
    %6912 = vmatpush.bf16.msra.mxu0 %v4500
    %6913 = vmatpush.bf16.msra.mxu0 %v4492
    %6914 = vmatmul.bf16.gmra.mxu0 %v1068
    %v6915 = vpop.f32.mrf.mxu0
    %v6916 = vadd.f32 %v6903, %v6915
    %v6917 = vpop.f32.mrf.mxu0
    %6918 = vdwg.mxu0
    %6919 = vmatpush.bf16.msra.mxu0 %v4612
    %6920 = vmatpush.bf16.msra.mxu0 %v4604
    %6921 = vmatpush.bf16.msra.mxu0 %v4596
    %6922 = vmatpush.bf16.msra.mxu0 %v4588
    %6923 = vmatpush.bf16.msra.mxu0 %v4580
    %6924 = vmatpush.bf16.msra.mxu0 %v4572
    %6925 = vmatpush.bf16.msra.mxu0 %v4564
    %6926 = vmatpush.bf16.msra.mxu0 %v4556
    %6927 = vmatmul.bf16.gmra.mxu0 %v1069
    %v6928 = vpop.f32.mrf.mxu0
    %v6929 = vadd.f32 %v6916, %v6928
    %v6930 = vpop.f32.mrf.mxu0
    %6931 = vdwg.mxu0
    %6932 = vmatpush.bf16.msra.mxu0 %v4676
    %6933 = vmatpush.bf16.msra.mxu0 %v4668
    %6934 = vmatpush.bf16.msra.mxu0 %v4660
    %6935 = vmatpush.bf16.msra.mxu0 %v4652
    %6936 = vmatpush.bf16.msra.mxu0 %v4644
    %6937 = vmatpush.bf16.msra.mxu0 %v4636
    %6938 = vmatpush.bf16.msra.mxu0 %v4628
    %6939 = vmatpush.bf16.msra.mxu0 %v4620
    %6940 = vmatmul.bf16.gmra.mxu0 %v1070
    %v6941 = vpop.f32.mrf.mxu0
    %v6942 = vadd.f32 %v6929, %v6941
    %v6943 = vpop.f32.mrf.mxu0
    %6944 = vdwg.mxu0
    %6945 = vmatpush.bf16.msra.mxu0 %v4740
    %6946 = vmatpush.bf16.msra.mxu0 %v4732
    %6947 = vmatpush.bf16.msra.mxu0 %v4724
    %6948 = vmatpush.bf16.msra.mxu0 %v4716
    %6949 = vmatpush.bf16.msra.mxu0 %v4708
    %6950 = vmatpush.bf16.msra.mxu0 %v4700
    %6951 = vmatpush.bf16.msra.mxu0 %v4692
    %6952 = vmatpush.bf16.msra.mxu0 %v4684
    %6953 = vmatmul.bf16.gmra.mxu0 %v1073
    %v6954 = vpop.f32.mrf.mxu0
    %v6955 = vadd.f32 %v6942, %v6954
    %v6956 = vpop.f32.mrf.mxu0
    %6957 = vdwg.mxu0
    %6958 = vmatpush.bf16.msra.mxu0 %v4804
    %6959 = vmatpush.bf16.msra.mxu0 %v4796
    %6960 = vmatpush.bf16.msra.mxu0 %v4788
    %6961 = vmatpush.bf16.msra.mxu0 %v4780
    %6962 = vmatpush.bf16.msra.mxu0 %v4772
    %6963 = vmatpush.bf16.msra.mxu0 %v4764
    %6964 = vmatpush.bf16.msra.mxu0 %v4756
    %6965 = vmatpush.bf16.msra.mxu0 %v4748
    %6966 = vmatmul.bf16.gmra.mxu0 %v1074
    %v6967 = vpop.f32.mrf.mxu0
    %v6968 = vadd.f32 %v6955, %v6967
    %v6969 = vpop.f32.mrf.mxu0
    %6970 = vdwg.mxu0
    %6971 = vmatpush.bf16.msra.mxu0 %v4868
    %6972 = vmatpush.bf16.msra.mxu0 %v4860
    %6973 = vmatpush.bf16.msra.mxu0 %v4852
    %6974 = vmatpush.bf16.msra.mxu0 %v4844
    %6975 = vmatpush.bf16.msra.mxu0 %v4836
    %6976 = vmatpush.bf16.msra.mxu0 %v4828
    %6977 = vmatpush.bf16.msra.mxu0 %v4820
    %6978 = vmatpush.bf16.msra.mxu0 %v4812
    %6979 = vmatmul.bf16.gmra.mxu0 %v1075
    %v6980 = vpop.f32.mrf.mxu0
    %v6981 = vadd.f32 %v6968, %v6980
    %v6982 = vpop.f32.mrf.mxu0
    %6983 = vdwg.mxu0
    %6984 = vmatpush.bf16.msra.mxu0 %v4932
    %6985 = vmatpush.bf16.msra.mxu0 %v4924
    %6986 = vmatpush.bf16.msra.mxu0 %v4916
    %6987 = vmatpush.bf16.msra.mxu0 %v4908
    %6988 = vmatpush.bf16.msra.mxu0 %v4900
    %6989 = vmatpush.bf16.msra.mxu0 %v4892
    %6990 = vmatpush.bf16.msra.mxu0 %v4884
    %6991 = vmatpush.bf16.msra.mxu0 %v4876
    %6992 = vmatmul.bf16.gmra.mxu0 %v1076
    %v6993 = vpop.f32.mrf.mxu0
    %v6994 = vadd.f32 %v6981, %v6993
    %v6995 = vpop.f32.mrf.mxu0
    %6996 = vdwg.mxu0
    %6997 = vmatpush.bf16.msra.mxu0 %v4996
    %6998 = vmatpush.bf16.msra.mxu0 %v4988
    %6999 = vmatpush.bf16.msra.mxu0 %v4980
    %7000 = vmatpush.bf16.msra.mxu0 %v4972
    %7001 = vmatpush.bf16.msra.mxu0 %v4964
    %7002 = vmatpush.bf16.msra.mxu0 %v4956
    %7003 = vmatpush.bf16.msra.mxu0 %v4948
    %7004 = vmatpush.bf16.msra.mxu0 %v4940
    %7005 = vmatmul.bf16.gmra.mxu0 %v1077
    %v7006 = vpop.f32.mrf.mxu0
    %v7007 = vadd.f32 %v6994, %v7006
    %v7008 = vpop.f32.mrf.mxu0
    %7009 = vdwg.mxu0
    %7010 = vmatpush.bf16.msra.mxu0 %v5060
    %7011 = vmatpush.bf16.msra.mxu0 %v5052
    %7012 = vmatpush.bf16.msra.mxu0 %v5044
    %7013 = vmatpush.bf16.msra.mxu0 %v5036
    %7014 = vmatpush.bf16.msra.mxu0 %v5028
    %7015 = vmatpush.bf16.msra.mxu0 %v5020
    %7016 = vmatpush.bf16.msra.mxu0 %v5012
    %7017 = vmatpush.bf16.msra.mxu0 %v5004
    %7018 = vmatmul.bf16.gmra.mxu0 %v1078
    %v7019 = vpop.f32.mrf.mxu0
    %v7020 = vadd.f32 %v7007, %v7019
    %v7021 = vpop.f32.mrf.mxu0
    %7022 = vdwg.mxu0
    %7023 = vmatpush.bf16.msra.mxu0 %v5124
    %7024 = vmatpush.bf16.msra.mxu0 %v5116
    %7025 = vmatpush.bf16.msra.mxu0 %v5108
    %7026 = vmatpush.bf16.msra.mxu0 %v5100
    %7027 = vmatpush.bf16.msra.mxu0 %v5092
    %7028 = vmatpush.bf16.msra.mxu0 %v5084
    %7029 = vmatpush.bf16.msra.mxu0 %v5076
    %7030 = vmatpush.bf16.msra.mxu0 %v5068
    %7031 = vmatmul.bf16.gmra.mxu0 %v1079
    %v7032 = vpop.f32.mrf.mxu0
    %v7033 = vadd.f32 %v7020, %v7032
    %v7034 = vpop.f32.mrf.mxu0
    %7035 = vdwg.mxu0
    %7036 = vmatpush.bf16.msra.mxu0 %v5188
    %7037 = vmatpush.bf16.msra.mxu0 %v5180
    %7038 = vmatpush.bf16.msra.mxu0 %v5172
    %7039 = vmatpush.bf16.msra.mxu0 %v5164
    %7040 = vmatpush.bf16.msra.mxu0 %v5156
    %7041 = vmatpush.bf16.msra.mxu0 %v5148
    %7042 = vmatpush.bf16.msra.mxu0 %v5140
    %7043 = vmatpush.bf16.msra.mxu0 %v5132
    %7044 = vmatmul.bf16.gmra.mxu0 %v1080
    %v7045 = vpop.f32.mrf.mxu0
    %v7046 = vadd.f32 %v7033, %v7045
    %v7047 = vpop.f32.mrf.mxu0
    %7048 = vdwg.mxu0
    %7049 = vmatpush.bf16.msra.mxu0 %v4229
    %7050 = vmatpush.bf16.msra.mxu0 %v4221
    %7051 = vmatpush.bf16.msra.mxu0 %v4213
    %7052 = vmatpush.bf16.msra.mxu0 %v4205
    %7053 = vmatpush.bf16.msra.mxu0 %v4197
    %7054 = vmatpush.bf16.msra.mxu0 %v4189
    %7055 = vmatpush.bf16.msra.mxu0 %v4181
    %7056 = vmatpush.bf16.msra.mxu0 %v4173
    %7057 = vmatmul.bf16.gmra.mxu0 %v1063
    %v7058 = vpop.f32.mrf.mxu0
    %v7059 = vadd.f32 0.0, %v7058
    %v7060 = vpop.f32.mrf.mxu0
    %7061 = vdwg.mxu0
    %7062 = vmatpush.bf16.msra.mxu0 %v4293
    %7063 = vmatpush.bf16.msra.mxu0 %v4285
    %7064 = vmatpush.bf16.msra.mxu0 %v4277
    %7065 = vmatpush.bf16.msra.mxu0 %v4269
    %7066 = vmatpush.bf16.msra.mxu0 %v4261
    %7067 = vmatpush.bf16.msra.mxu0 %v4253
    %7068 = vmatpush.bf16.msra.mxu0 %v4245
    %7069 = vmatpush.bf16.msra.mxu0 %v4237
    %7070 = vmatmul.bf16.gmra.mxu0 %v1064
    %v7071 = vpop.f32.mrf.mxu0
    %v7072 = vadd.f32 %v7059, %v7071
    %v7073 = vpop.f32.mrf.mxu0
    %7074 = vdwg.mxu0
    %7075 = vmatpush.bf16.msra.mxu0 %v4357
    %7076 = vmatpush.bf16.msra.mxu0 %v4349
    %7077 = vmatpush.bf16.msra.mxu0 %v4341
    %7078 = vmatpush.bf16.msra.mxu0 %v4333
    %7079 = vmatpush.bf16.msra.mxu0 %v4325
    %7080 = vmatpush.bf16.msra.mxu0 %v4317
    %7081 = vmatpush.bf16.msra.mxu0 %v4309
    %7082 = vmatpush.bf16.msra.mxu0 %v4301
    %7083 = vmatmul.bf16.gmra.mxu0 %v1065
    %v7084 = vpop.f32.mrf.mxu0
    %v7085 = vadd.f32 %v7072, %v7084
    %v7086 = vpop.f32.mrf.mxu0
    %7087 = vdwg.mxu0
    %7088 = vmatpush.bf16.msra.mxu0 %v4421
    %7089 = vmatpush.bf16.msra.mxu0 %v4413
    %7090 = vmatpush.bf16.msra.mxu0 %v4405
    %7091 = vmatpush.bf16.msra.mxu0 %v4397
    %7092 = vmatpush.bf16.msra.mxu0 %v4389
    %7093 = vmatpush.bf16.msra.mxu0 %v4381
    %7094 = vmatpush.bf16.msra.mxu0 %v4373
    %7095 = vmatpush.bf16.msra.mxu0 %v4365
    %7096 = vmatmul.bf16.gmra.mxu0 %v1066
    %v7097 = vpop.f32.mrf.mxu0
    %v7098 = vadd.f32 %v7085, %v7097
    %v7099 = vpop.f32.mrf.mxu0
    %7100 = vdwg.mxu0
    %7101 = vmatpush.bf16.msra.mxu0 %v4485
    %7102 = vmatpush.bf16.msra.mxu0 %v4477
    %7103 = vmatpush.bf16.msra.mxu0 %v4469
    %7104 = vmatpush.bf16.msra.mxu0 %v4461
    %7105 = vmatpush.bf16.msra.mxu0 %v4453
    %7106 = vmatpush.bf16.msra.mxu0 %v4445
    %7107 = vmatpush.bf16.msra.mxu0 %v4437
    %7108 = vmatpush.bf16.msra.mxu0 %v4429
    %7109 = vmatmul.bf16.gmra.mxu0 %v1067
    %v7110 = vpop.f32.mrf.mxu0
    %v7111 = vadd.f32 %v7098, %v7110
    %v7112 = vpop.f32.mrf.mxu0
    %7113 = vdwg.mxu0
    %7114 = vmatpush.bf16.msra.mxu0 %v4549
    %7115 = vmatpush.bf16.msra.mxu0 %v4541
    %7116 = vmatpush.bf16.msra.mxu0 %v4533
    %7117 = vmatpush.bf16.msra.mxu0 %v4525
    %7118 = vmatpush.bf16.msra.mxu0 %v4517
    %7119 = vmatpush.bf16.msra.mxu0 %v4509
    %7120 = vmatpush.bf16.msra.mxu0 %v4501
    %7121 = vmatpush.bf16.msra.mxu0 %v4493
    %7122 = vmatmul.bf16.gmra.mxu0 %v1068
    %v7123 = vpop.f32.mrf.mxu0
    %v7124 = vadd.f32 %v7111, %v7123
    %v7125 = vpop.f32.mrf.mxu0
    %7126 = vdwg.mxu0
    %7127 = vmatpush.bf16.msra.mxu0 %v4613
    %7128 = vmatpush.bf16.msra.mxu0 %v4605
    %7129 = vmatpush.bf16.msra.mxu0 %v4597
    %7130 = vmatpush.bf16.msra.mxu0 %v4589
    %7131 = vmatpush.bf16.msra.mxu0 %v4581
    %7132 = vmatpush.bf16.msra.mxu0 %v4573
    %7133 = vmatpush.bf16.msra.mxu0 %v4565
    %7134 = vmatpush.bf16.msra.mxu0 %v4557
    %7135 = vmatmul.bf16.gmra.mxu0 %v1069
    %v7136 = vpop.f32.mrf.mxu0
    %v7137 = vadd.f32 %v7124, %v7136
    %v7138 = vpop.f32.mrf.mxu0
    %7139 = vdwg.mxu0
    %7140 = vmatpush.bf16.msra.mxu0 %v4677
    %7141 = vmatpush.bf16.msra.mxu0 %v4669
    %7142 = vmatpush.bf16.msra.mxu0 %v4661
    %7143 = vmatpush.bf16.msra.mxu0 %v4653
    %7144 = vmatpush.bf16.msra.mxu0 %v4645
    %7145 = vmatpush.bf16.msra.mxu0 %v4637
    %7146 = vmatpush.bf16.msra.mxu0 %v4629
    %7147 = vmatpush.bf16.msra.mxu0 %v4621
    %7148 = vmatmul.bf16.gmra.mxu0 %v1070
    %v7149 = vpop.f32.mrf.mxu0
    %v7150 = vadd.f32 %v7137, %v7149
    %v7151 = vpop.f32.mrf.mxu0
    %7152 = vdwg.mxu0
    %7153 = vmatpush.bf16.msra.mxu0 %v4741
    %7154 = vmatpush.bf16.msra.mxu0 %v4733
    %7155 = vmatpush.bf16.msra.mxu0 %v4725
    %7156 = vmatpush.bf16.msra.mxu0 %v4717
    %7157 = vmatpush.bf16.msra.mxu0 %v4709
    %7158 = vmatpush.bf16.msra.mxu0 %v4701
    %7159 = vmatpush.bf16.msra.mxu0 %v4693
    %7160 = vmatpush.bf16.msra.mxu0 %v4685
    %7161 = vmatmul.bf16.gmra.mxu0 %v1073
    %v7162 = vpop.f32.mrf.mxu0
    %v7163 = vadd.f32 %v7150, %v7162
    %v7164 = vpop.f32.mrf.mxu0
    %7165 = vdwg.mxu0
    %7166 = vmatpush.bf16.msra.mxu0 %v4805
    %7167 = vmatpush.bf16.msra.mxu0 %v4797
    %7168 = vmatpush.bf16.msra.mxu0 %v4789
    %7169 = vmatpush.bf16.msra.mxu0 %v4781
    %7170 = vmatpush.bf16.msra.mxu0 %v4773
    %7171 = vmatpush.bf16.msra.mxu0 %v4765
    %7172 = vmatpush.bf16.msra.mxu0 %v4757
    %7173 = vmatpush.bf16.msra.mxu0 %v4749
    %7174 = vmatmul.bf16.gmra.mxu0 %v1074
    %v7175 = vpop.f32.mrf.mxu0
    %v7176 = vadd.f32 %v7163, %v7175
    %v7177 = vpop.f32.mrf.mxu0
    %7178 = vdwg.mxu0
    %7179 = vmatpush.bf16.msra.mxu0 %v4869
    %7180 = vmatpush.bf16.msra.mxu0 %v4861
    %7181 = vmatpush.bf16.msra.mxu0 %v4853
    %7182 = vmatpush.bf16.msra.mxu0 %v4845
    %7183 = vmatpush.bf16.msra.mxu0 %v4837
    %7184 = vmatpush.bf16.msra.mxu0 %v4829
    %7185 = vmatpush.bf16.msra.mxu0 %v4821
    %7186 = vmatpush.bf16.msra.mxu0 %v4813
    %7187 = vmatmul.bf16.gmra.mxu0 %v1075
    %v7188 = vpop.f32.mrf.mxu0
    %v7189 = vadd.f32 %v7176, %v7188
    %v7190 = vpop.f32.mrf.mxu0
    %7191 = vdwg.mxu0
    %7192 = vmatpush.bf16.msra.mxu0 %v4933
    %7193 = vmatpush.bf16.msra.mxu0 %v4925
    %7194 = vmatpush.bf16.msra.mxu0 %v4917
    %7195 = vmatpush.bf16.msra.mxu0 %v4909
    %7196 = vmatpush.bf16.msra.mxu0 %v4901
    %7197 = vmatpush.bf16.msra.mxu0 %v4893
    %7198 = vmatpush.bf16.msra.mxu0 %v4885
    %7199 = vmatpush.bf16.msra.mxu0 %v4877
    %7200 = vmatmul.bf16.gmra.mxu0 %v1076
    %v7201 = vpop.f32.mrf.mxu0
    %v7202 = vadd.f32 %v7189, %v7201
    %v7203 = vpop.f32.mrf.mxu0
    %7204 = vdwg.mxu0
    %7205 = vmatpush.bf16.msra.mxu0 %v4997
    %7206 = vmatpush.bf16.msra.mxu0 %v4989
    %7207 = vmatpush.bf16.msra.mxu0 %v4981
    %7208 = vmatpush.bf16.msra.mxu0 %v4973
    %7209 = vmatpush.bf16.msra.mxu0 %v4965
    %7210 = vmatpush.bf16.msra.mxu0 %v4957
    %7211 = vmatpush.bf16.msra.mxu0 %v4949
    %7212 = vmatpush.bf16.msra.mxu0 %v4941
    %7213 = vmatmul.bf16.gmra.mxu0 %v1077
    %v7214 = vpop.f32.mrf.mxu0
    %v7215 = vadd.f32 %v7202, %v7214
    %v7216 = vpop.f32.mrf.mxu0
    %7217 = vdwg.mxu0
    %7218 = vmatpush.bf16.msra.mxu0 %v5061
    %7219 = vmatpush.bf16.msra.mxu0 %v5053
    %7220 = vmatpush.bf16.msra.mxu0 %v5045
    %7221 = vmatpush.bf16.msra.mxu0 %v5037
    %7222 = vmatpush.bf16.msra.mxu0 %v5029
    %7223 = vmatpush.bf16.msra.mxu0 %v5021
    %7224 = vmatpush.bf16.msra.mxu0 %v5013
    %7225 = vmatpush.bf16.msra.mxu0 %v5005
    %7226 = vmatmul.bf16.gmra.mxu0 %v1078
    %v7227 = vpop.f32.mrf.mxu0
    %v7228 = vadd.f32 %v7215, %v7227
    %v7229 = vpop.f32.mrf.mxu0
    %7230 = vdwg.mxu0
    %7231 = vmatpush.bf16.msra.mxu0 %v5125
    %7232 = vmatpush.bf16.msra.mxu0 %v5117
    %7233 = vmatpush.bf16.msra.mxu0 %v5109
    %7234 = vmatpush.bf16.msra.mxu0 %v5101
    %7235 = vmatpush.bf16.msra.mxu0 %v5093
    %7236 = vmatpush.bf16.msra.mxu0 %v5085
    %7237 = vmatpush.bf16.msra.mxu0 %v5077
    %7238 = vmatpush.bf16.msra.mxu0 %v5069
    %7239 = vmatmul.bf16.gmra.mxu0 %v1079
    %v7240 = vpop.f32.mrf.mxu0
    %v7241 = vadd.f32 %v7228, %v7240
    %v7242 = vpop.f32.mrf.mxu0
    %7243 = vdwg.mxu0
    %7244 = vmatpush.bf16.msra.mxu0 %v5189
    %7245 = vmatpush.bf16.msra.mxu0 %v5181
    %7246 = vmatpush.bf16.msra.mxu0 %v5173
    %7247 = vmatpush.bf16.msra.mxu0 %v5165
    %7248 = vmatpush.bf16.msra.mxu0 %v5157
    %7249 = vmatpush.bf16.msra.mxu0 %v5149
    %7250 = vmatpush.bf16.msra.mxu0 %v5141
    %7251 = vmatpush.bf16.msra.mxu0 %v5133
    %7252 = vmatmul.bf16.gmra.mxu0 %v1080
    %v7253 = vpop.f32.mrf.mxu0
    %v7254 = vadd.f32 %v7241, %v7253
    %v7255 = vpop.f32.mrf.mxu0
    %7256 = vdwg.mxu0
    %7257 = vmatpush.bf16.msra.mxu0 %v4230
    %7258 = vmatpush.bf16.msra.mxu0 %v4222
    %7259 = vmatpush.bf16.msra.mxu0 %v4214
    %7260 = vmatpush.bf16.msra.mxu0 %v4206
    %7261 = vmatpush.bf16.msra.mxu0 %v4198
    %7262 = vmatpush.bf16.msra.mxu0 %v4190
    %7263 = vmatpush.bf16.msra.mxu0 %v4182
    %7264 = vmatpush.bf16.msra.mxu0 %v4174
    %7265 = vmatmul.bf16.gmra.mxu0 %v1063
    %v7266 = vpop.f32.mrf.mxu0
    %v7267 = vadd.f32 0.0, %v7266
    %v7268 = vpop.f32.mrf.mxu0
    %7269 = vdwg.mxu0
    %7270 = vmatpush.bf16.msra.mxu0 %v4294
    %7271 = vmatpush.bf16.msra.mxu0 %v4286
    %7272 = vmatpush.bf16.msra.mxu0 %v4278
    %7273 = vmatpush.bf16.msra.mxu0 %v4270
    %7274 = vmatpush.bf16.msra.mxu0 %v4262
    %7275 = vmatpush.bf16.msra.mxu0 %v4254
    %7276 = vmatpush.bf16.msra.mxu0 %v4246
    %7277 = vmatpush.bf16.msra.mxu0 %v4238
    %7278 = vmatmul.bf16.gmra.mxu0 %v1064
    %v7279 = vpop.f32.mrf.mxu0
    %v7280 = vadd.f32 %v7267, %v7279
    %v7281 = vpop.f32.mrf.mxu0
    %7282 = vdwg.mxu0
    %7283 = vmatpush.bf16.msra.mxu0 %v4358
    %7284 = vmatpush.bf16.msra.mxu0 %v4350
    %7285 = vmatpush.bf16.msra.mxu0 %v4342
    %7286 = vmatpush.bf16.msra.mxu0 %v4334
    %7287 = vmatpush.bf16.msra.mxu0 %v4326
    %7288 = vmatpush.bf16.msra.mxu0 %v4318
    %7289 = vmatpush.bf16.msra.mxu0 %v4310
    %7290 = vmatpush.bf16.msra.mxu0 %v4302
    %7291 = vmatmul.bf16.gmra.mxu0 %v1065
    %v7292 = vpop.f32.mrf.mxu0
    %v7293 = vadd.f32 %v7280, %v7292
    %v7294 = vpop.f32.mrf.mxu0
    %7295 = vdwg.mxu0
    %7296 = vmatpush.bf16.msra.mxu0 %v4422
    %7297 = vmatpush.bf16.msra.mxu0 %v4414
    %7298 = vmatpush.bf16.msra.mxu0 %v4406
    %7299 = vmatpush.bf16.msra.mxu0 %v4398
    %7300 = vmatpush.bf16.msra.mxu0 %v4390
    %7301 = vmatpush.bf16.msra.mxu0 %v4382
    %7302 = vmatpush.bf16.msra.mxu0 %v4374
    %7303 = vmatpush.bf16.msra.mxu0 %v4366
    %7304 = vmatmul.bf16.gmra.mxu0 %v1066
    %v7305 = vpop.f32.mrf.mxu0
    %v7306 = vadd.f32 %v7293, %v7305
    %v7307 = vpop.f32.mrf.mxu0
    %7308 = vdwg.mxu0
    %7309 = vmatpush.bf16.msra.mxu0 %v4486
    %7310 = vmatpush.bf16.msra.mxu0 %v4478
    %7311 = vmatpush.bf16.msra.mxu0 %v4470
    %7312 = vmatpush.bf16.msra.mxu0 %v4462
    %7313 = vmatpush.bf16.msra.mxu0 %v4454
    %7314 = vmatpush.bf16.msra.mxu0 %v4446
    %7315 = vmatpush.bf16.msra.mxu0 %v4438
    %7316 = vmatpush.bf16.msra.mxu0 %v4430
    %7317 = vmatmul.bf16.gmra.mxu0 %v1067
    %v7318 = vpop.f32.mrf.mxu0
    %v7319 = vadd.f32 %v7306, %v7318
    %v7320 = vpop.f32.mrf.mxu0
    %7321 = vdwg.mxu0
    %7322 = vmatpush.bf16.msra.mxu0 %v4550
    %7323 = vmatpush.bf16.msra.mxu0 %v4542
    %7324 = vmatpush.bf16.msra.mxu0 %v4534
    %7325 = vmatpush.bf16.msra.mxu0 %v4526
    %7326 = vmatpush.bf16.msra.mxu0 %v4518
    %7327 = vmatpush.bf16.msra.mxu0 %v4510
    %7328 = vmatpush.bf16.msra.mxu0 %v4502
    %7329 = vmatpush.bf16.msra.mxu0 %v4494
    %7330 = vmatmul.bf16.gmra.mxu0 %v1068
    %v7331 = vpop.f32.mrf.mxu0
    %v7332 = vadd.f32 %v7319, %v7331
    %v7333 = vpop.f32.mrf.mxu0
    %7334 = vdwg.mxu0
    %7335 = vmatpush.bf16.msra.mxu0 %v4614
    %7336 = vmatpush.bf16.msra.mxu0 %v4606
    %7337 = vmatpush.bf16.msra.mxu0 %v4598
    %7338 = vmatpush.bf16.msra.mxu0 %v4590
    %7339 = vmatpush.bf16.msra.mxu0 %v4582
    %7340 = vmatpush.bf16.msra.mxu0 %v4574
    %7341 = vmatpush.bf16.msra.mxu0 %v4566
    %7342 = vmatpush.bf16.msra.mxu0 %v4558
    %7343 = vmatmul.bf16.gmra.mxu0 %v1069
    %v7344 = vpop.f32.mrf.mxu0
    %v7345 = vadd.f32 %v7332, %v7344
    %v7346 = vpop.f32.mrf.mxu0
    %7347 = vdwg.mxu0
    %7348 = vmatpush.bf16.msra.mxu0 %v4678
    %7349 = vmatpush.bf16.msra.mxu0 %v4670
    %7350 = vmatpush.bf16.msra.mxu0 %v4662
    %7351 = vmatpush.bf16.msra.mxu0 %v4654
    %7352 = vmatpush.bf16.msra.mxu0 %v4646
    %7353 = vmatpush.bf16.msra.mxu0 %v4638
    %7354 = vmatpush.bf16.msra.mxu0 %v4630
    %7355 = vmatpush.bf16.msra.mxu0 %v4622
    %7356 = vmatmul.bf16.gmra.mxu0 %v1070
    %v7357 = vpop.f32.mrf.mxu0
    %v7358 = vadd.f32 %v7345, %v7357
    %v7359 = vpop.f32.mrf.mxu0
    %7360 = vdwg.mxu0
    %7361 = vmatpush.bf16.msra.mxu0 %v4742
    %7362 = vmatpush.bf16.msra.mxu0 %v4734
    %7363 = vmatpush.bf16.msra.mxu0 %v4726
    %7364 = vmatpush.bf16.msra.mxu0 %v4718
    %7365 = vmatpush.bf16.msra.mxu0 %v4710
    %7366 = vmatpush.bf16.msra.mxu0 %v4702
    %7367 = vmatpush.bf16.msra.mxu0 %v4694
    %7368 = vmatpush.bf16.msra.mxu0 %v4686
    %7369 = vmatmul.bf16.gmra.mxu0 %v1073
    %v7370 = vpop.f32.mrf.mxu0
    %v7371 = vadd.f32 %v7358, %v7370
    %v7372 = vpop.f32.mrf.mxu0
    %7373 = vdwg.mxu0
    %7374 = vmatpush.bf16.msra.mxu0 %v4806
    %7375 = vmatpush.bf16.msra.mxu0 %v4798
    %7376 = vmatpush.bf16.msra.mxu0 %v4790
    %7377 = vmatpush.bf16.msra.mxu0 %v4782
    %7378 = vmatpush.bf16.msra.mxu0 %v4774
    %7379 = vmatpush.bf16.msra.mxu0 %v4766
    %7380 = vmatpush.bf16.msra.mxu0 %v4758
    %7381 = vmatpush.bf16.msra.mxu0 %v4750
    %7382 = vmatmul.bf16.gmra.mxu0 %v1074
    %v7383 = vpop.f32.mrf.mxu0
    %v7384 = vadd.f32 %v7371, %v7383
    %v7385 = vpop.f32.mrf.mxu0
    %7386 = vdwg.mxu0
    %7387 = vmatpush.bf16.msra.mxu0 %v4870
    %7388 = vmatpush.bf16.msra.mxu0 %v4862
    %7389 = vmatpush.bf16.msra.mxu0 %v4854
    %7390 = vmatpush.bf16.msra.mxu0 %v4846
    %7391 = vmatpush.bf16.msra.mxu0 %v4838
    %7392 = vmatpush.bf16.msra.mxu0 %v4830
    %7393 = vmatpush.bf16.msra.mxu0 %v4822
    %7394 = vmatpush.bf16.msra.mxu0 %v4814
    %7395 = vmatmul.bf16.gmra.mxu0 %v1075
    %v7396 = vpop.f32.mrf.mxu0
    %v7397 = vadd.f32 %v7384, %v7396
    %v7398 = vpop.f32.mrf.mxu0
    %7399 = vdwg.mxu0
    %7400 = vmatpush.bf16.msra.mxu0 %v4934
    %7401 = vmatpush.bf16.msra.mxu0 %v4926
    %7402 = vmatpush.bf16.msra.mxu0 %v4918
    %7403 = vmatpush.bf16.msra.mxu0 %v4910
    %7404 = vmatpush.bf16.msra.mxu0 %v4902
    %7405 = vmatpush.bf16.msra.mxu0 %v4894
    %7406 = vmatpush.bf16.msra.mxu0 %v4886
    %7407 = vmatpush.bf16.msra.mxu0 %v4878
    %7408 = vmatmul.bf16.gmra.mxu0 %v1076
    %v7409 = vpop.f32.mrf.mxu0
    %v7410 = vadd.f32 %v7397, %v7409
    %v7411 = vpop.f32.mrf.mxu0
    %7412 = vdwg.mxu0
    %7413 = vmatpush.bf16.msra.mxu0 %v4998
    %7414 = vmatpush.bf16.msra.mxu0 %v4990
    %7415 = vmatpush.bf16.msra.mxu0 %v4982
    %7416 = vmatpush.bf16.msra.mxu0 %v4974
    %7417 = vmatpush.bf16.msra.mxu0 %v4966
    %7418 = vmatpush.bf16.msra.mxu0 %v4958
    %7419 = vmatpush.bf16.msra.mxu0 %v4950
    %7420 = vmatpush.bf16.msra.mxu0 %v4942
    %7421 = vmatmul.bf16.gmra.mxu0 %v1077
    %v7422 = vpop.f32.mrf.mxu0
    %v7423 = vadd.f32 %v7410, %v7422
    %v7424 = vpop.f32.mrf.mxu0
    %7425 = vdwg.mxu0
    %7426 = vmatpush.bf16.msra.mxu0 %v5062
    %7427 = vmatpush.bf16.msra.mxu0 %v5054
    %7428 = vmatpush.bf16.msra.mxu0 %v5046
    %7429 = vmatpush.bf16.msra.mxu0 %v5038
    %7430 = vmatpush.bf16.msra.mxu0 %v5030
    %7431 = vmatpush.bf16.msra.mxu0 %v5022
    %7432 = vmatpush.bf16.msra.mxu0 %v5014
    %7433 = vmatpush.bf16.msra.mxu0 %v5006
    %7434 = vmatmul.bf16.gmra.mxu0 %v1078
    %v7435 = vpop.f32.mrf.mxu0
    %v7436 = vadd.f32 %v7423, %v7435
    %v7437 = vpop.f32.mrf.mxu0
    %7438 = vdwg.mxu0
    %7439 = vmatpush.bf16.msra.mxu0 %v5126
    %7440 = vmatpush.bf16.msra.mxu0 %v5118
    %7441 = vmatpush.bf16.msra.mxu0 %v5110
    %7442 = vmatpush.bf16.msra.mxu0 %v5102
    %7443 = vmatpush.bf16.msra.mxu0 %v5094
    %7444 = vmatpush.bf16.msra.mxu0 %v5086
    %7445 = vmatpush.bf16.msra.mxu0 %v5078
    %7446 = vmatpush.bf16.msra.mxu0 %v5070
    %7447 = vmatmul.bf16.gmra.mxu0 %v1079
    %v7448 = vpop.f32.mrf.mxu0
    %v7449 = vadd.f32 %v7436, %v7448
    %v7450 = vpop.f32.mrf.mxu0
    %7451 = vdwg.mxu0
    %7452 = vmatpush.bf16.msra.mxu0 %v5190
    %7453 = vmatpush.bf16.msra.mxu0 %v5182
    %7454 = vmatpush.bf16.msra.mxu0 %v5174
    %7455 = vmatpush.bf16.msra.mxu0 %v5166
    %7456 = vmatpush.bf16.msra.mxu0 %v5158
    %7457 = vmatpush.bf16.msra.mxu0 %v5150
    %7458 = vmatpush.bf16.msra.mxu0 %v5142
    %7459 = vmatpush.bf16.msra.mxu0 %v5134
    %7460 = vmatmul.bf16.gmra.mxu0 %v1080
    %v7461 = vpop.f32.mrf.mxu0
    %v7462 = vadd.f32 %v7449, %v7461
    %v7463 = vpop.f32.mrf.mxu0
    %7464 = vdwg.mxu0
    %7465 = vmatpush.bf16.msra.mxu0 %v4231
    %7466 = vmatpush.bf16.msra.mxu0 %v4223
    %7467 = vmatpush.bf16.msra.mxu0 %v4215
    %7468 = vmatpush.bf16.msra.mxu0 %v4207
    %7469 = vmatpush.bf16.msra.mxu0 %v4199
    %7470 = vmatpush.bf16.msra.mxu0 %v4191
    %7471 = vmatpush.bf16.msra.mxu0 %v4183
    %7472 = vmatpush.bf16.msra.mxu0 %v4175
    %7473 = vmatmul.bf16.gmra.mxu0 %v1063
    %v7474 = vpop.f32.mrf.mxu0
    %v7475 = vadd.f32 0.0, %v7474
    %v7476 = vpop.f32.mrf.mxu0
    %7477 = vdwg.mxu0
    %7478 = vmatpush.bf16.msra.mxu0 %v4295
    %7479 = vmatpush.bf16.msra.mxu0 %v4287
    %7480 = vmatpush.bf16.msra.mxu0 %v4279
    %7481 = vmatpush.bf16.msra.mxu0 %v4271
    %7482 = vmatpush.bf16.msra.mxu0 %v4263
    %7483 = vmatpush.bf16.msra.mxu0 %v4255
    %7484 = vmatpush.bf16.msra.mxu0 %v4247
    %7485 = vmatpush.bf16.msra.mxu0 %v4239
    %7486 = vmatmul.bf16.gmra.mxu0 %v1064
    %v7487 = vpop.f32.mrf.mxu0
    %v7488 = vadd.f32 %v7475, %v7487
    %v7489 = vpop.f32.mrf.mxu0
    %7490 = vdwg.mxu0
    %7491 = vmatpush.bf16.msra.mxu0 %v4359
    %7492 = vmatpush.bf16.msra.mxu0 %v4351
    %7493 = vmatpush.bf16.msra.mxu0 %v4343
    %7494 = vmatpush.bf16.msra.mxu0 %v4335
    %7495 = vmatpush.bf16.msra.mxu0 %v4327
    %7496 = vmatpush.bf16.msra.mxu0 %v4319
    %7497 = vmatpush.bf16.msra.mxu0 %v4311
    %7498 = vmatpush.bf16.msra.mxu0 %v4303
    %7499 = vmatmul.bf16.gmra.mxu0 %v1065
    %v7500 = vpop.f32.mrf.mxu0
    %v7501 = vadd.f32 %v7488, %v7500
    %v7502 = vpop.f32.mrf.mxu0
    %7503 = vdwg.mxu0
    %7504 = vmatpush.bf16.msra.mxu0 %v4423
    %7505 = vmatpush.bf16.msra.mxu0 %v4415
    %7506 = vmatpush.bf16.msra.mxu0 %v4407
    %7507 = vmatpush.bf16.msra.mxu0 %v4399
    %7508 = vmatpush.bf16.msra.mxu0 %v4391
    %7509 = vmatpush.bf16.msra.mxu0 %v4383
    %7510 = vmatpush.bf16.msra.mxu0 %v4375
    %7511 = vmatpush.bf16.msra.mxu0 %v4367
    %7512 = vmatmul.bf16.gmra.mxu0 %v1066
    %v7513 = vpop.f32.mrf.mxu0
    %v7514 = vadd.f32 %v7501, %v7513
    %v7515 = vpop.f32.mrf.mxu0
    %7516 = vdwg.mxu0
    %7517 = vmatpush.bf16.msra.mxu0 %v4487
    %7518 = vmatpush.bf16.msra.mxu0 %v4479
    %7519 = vmatpush.bf16.msra.mxu0 %v4471
    %7520 = vmatpush.bf16.msra.mxu0 %v4463
    %7521 = vmatpush.bf16.msra.mxu0 %v4455
    %7522 = vmatpush.bf16.msra.mxu0 %v4447
    %7523 = vmatpush.bf16.msra.mxu0 %v4439
    %7524 = vmatpush.bf16.msra.mxu0 %v4431
    %7525 = vmatmul.bf16.gmra.mxu0 %v1067
    %v7526 = vpop.f32.mrf.mxu0
    %v7527 = vadd.f32 %v7514, %v7526
    %v7528 = vpop.f32.mrf.mxu0
    %7529 = vdwg.mxu0
    %7530 = vmatpush.bf16.msra.mxu0 %v4551
    %7531 = vmatpush.bf16.msra.mxu0 %v4543
    %7532 = vmatpush.bf16.msra.mxu0 %v4535
    %7533 = vmatpush.bf16.msra.mxu0 %v4527
    %7534 = vmatpush.bf16.msra.mxu0 %v4519
    %7535 = vmatpush.bf16.msra.mxu0 %v4511
    %7536 = vmatpush.bf16.msra.mxu0 %v4503
    %7537 = vmatpush.bf16.msra.mxu0 %v4495
    %7538 = vmatmul.bf16.gmra.mxu0 %v1068
    %v7539 = vpop.f32.mrf.mxu0
    %v7540 = vadd.f32 %v7527, %v7539
    %v7541 = vpop.f32.mrf.mxu0
    %7542 = vdwg.mxu0
    %7543 = vmatpush.bf16.msra.mxu0 %v4615
    %7544 = vmatpush.bf16.msra.mxu0 %v4607
    %7545 = vmatpush.bf16.msra.mxu0 %v4599
    %7546 = vmatpush.bf16.msra.mxu0 %v4591
    %7547 = vmatpush.bf16.msra.mxu0 %v4583
    %7548 = vmatpush.bf16.msra.mxu0 %v4575
    %7549 = vmatpush.bf16.msra.mxu0 %v4567
    %7550 = vmatpush.bf16.msra.mxu0 %v4559
    %7551 = vmatmul.bf16.gmra.mxu0 %v1069
    %v7552 = vpop.f32.mrf.mxu0
    %v7553 = vadd.f32 %v7540, %v7552
    %v7554 = vpop.f32.mrf.mxu0
    %7555 = vdwg.mxu0
    %7556 = vmatpush.bf16.msra.mxu0 %v4679
    %7557 = vmatpush.bf16.msra.mxu0 %v4671
    %7558 = vmatpush.bf16.msra.mxu0 %v4663
    %7559 = vmatpush.bf16.msra.mxu0 %v4655
    %7560 = vmatpush.bf16.msra.mxu0 %v4647
    %7561 = vmatpush.bf16.msra.mxu0 %v4639
    %7562 = vmatpush.bf16.msra.mxu0 %v4631
    %7563 = vmatpush.bf16.msra.mxu0 %v4623
    %7564 = vmatmul.bf16.gmra.mxu0 %v1070
    %v7565 = vpop.f32.mrf.mxu0
    %v7566 = vadd.f32 %v7553, %v7565
    %v7567 = vpop.f32.mrf.mxu0
    %7568 = vdwg.mxu0
    %7569 = vmatpush.bf16.msra.mxu0 %v4743
    %7570 = vmatpush.bf16.msra.mxu0 %v4735
    %7571 = vmatpush.bf16.msra.mxu0 %v4727
    %7572 = vmatpush.bf16.msra.mxu0 %v4719
    %7573 = vmatpush.bf16.msra.mxu0 %v4711
    %7574 = vmatpush.bf16.msra.mxu0 %v4703
    %7575 = vmatpush.bf16.msra.mxu0 %v4695
    %7576 = vmatpush.bf16.msra.mxu0 %v4687
    %7577 = vmatmul.bf16.gmra.mxu0 %v1073
    %v7578 = vpop.f32.mrf.mxu0
    %v7579 = vadd.f32 %v7566, %v7578
    %v7580 = vpop.f32.mrf.mxu0
    %7581 = vdwg.mxu0
    %7582 = vmatpush.bf16.msra.mxu0 %v4807
    %7583 = vmatpush.bf16.msra.mxu0 %v4799
    %7584 = vmatpush.bf16.msra.mxu0 %v4791
    %7585 = vmatpush.bf16.msra.mxu0 %v4783
    %7586 = vmatpush.bf16.msra.mxu0 %v4775
    %7587 = vmatpush.bf16.msra.mxu0 %v4767
    %7588 = vmatpush.bf16.msra.mxu0 %v4759
    %7589 = vmatpush.bf16.msra.mxu0 %v4751
    %7590 = vmatmul.bf16.gmra.mxu0 %v1074
    %v7591 = vpop.f32.mrf.mxu0
    %v7592 = vadd.f32 %v7579, %v7591
    %v7593 = vpop.f32.mrf.mxu0
    %7594 = vdwg.mxu0
    %7595 = vmatpush.bf16.msra.mxu0 %v4871
    %7596 = vmatpush.bf16.msra.mxu0 %v4863
    %7597 = vmatpush.bf16.msra.mxu0 %v4855
    %7598 = vmatpush.bf16.msra.mxu0 %v4847
    %7599 = vmatpush.bf16.msra.mxu0 %v4839
    %7600 = vmatpush.bf16.msra.mxu0 %v4831
    %7601 = vmatpush.bf16.msra.mxu0 %v4823
    %7602 = vmatpush.bf16.msra.mxu0 %v4815
    %7603 = vmatmul.bf16.gmra.mxu0 %v1075
    %v7604 = vpop.f32.mrf.mxu0
    %v7605 = vadd.f32 %v7592, %v7604
    %v7606 = vpop.f32.mrf.mxu0
    %7607 = vdwg.mxu0
    %7608 = vmatpush.bf16.msra.mxu0 %v4935
    %7609 = vmatpush.bf16.msra.mxu0 %v4927
    %7610 = vmatpush.bf16.msra.mxu0 %v4919
    %7611 = vmatpush.bf16.msra.mxu0 %v4911
    %7612 = vmatpush.bf16.msra.mxu0 %v4903
    %7613 = vmatpush.bf16.msra.mxu0 %v4895
    %7614 = vmatpush.bf16.msra.mxu0 %v4887
    %7615 = vmatpush.bf16.msra.mxu0 %v4879
    %7616 = vmatmul.bf16.gmra.mxu0 %v1076
    %v7617 = vpop.f32.mrf.mxu0
    %v7618 = vadd.f32 %v7605, %v7617
    %v7619 = vpop.f32.mrf.mxu0
    %7620 = vdwg.mxu0
    %7621 = vmatpush.bf16.msra.mxu0 %v4999
    %7622 = vmatpush.bf16.msra.mxu0 %v4991
    %7623 = vmatpush.bf16.msra.mxu0 %v4983
    %7624 = vmatpush.bf16.msra.mxu0 %v4975
    %7625 = vmatpush.bf16.msra.mxu0 %v4967
    %7626 = vmatpush.bf16.msra.mxu0 %v4959
    %7627 = vmatpush.bf16.msra.mxu0 %v4951
    %7628 = vmatpush.bf16.msra.mxu0 %v4943
    %7629 = vmatmul.bf16.gmra.mxu0 %v1077
    %v7630 = vpop.f32.mrf.mxu0
    %v7631 = vadd.f32 %v7618, %v7630
    %v7632 = vpop.f32.mrf.mxu0
    %7633 = vdwg.mxu0
    %7634 = vmatpush.bf16.msra.mxu0 %v5063
    %7635 = vmatpush.bf16.msra.mxu0 %v5055
    %7636 = vmatpush.bf16.msra.mxu0 %v5047
    %7637 = vmatpush.bf16.msra.mxu0 %v5039
    %7638 = vmatpush.bf16.msra.mxu0 %v5031
    %7639 = vmatpush.bf16.msra.mxu0 %v5023
    %7640 = vmatpush.bf16.msra.mxu0 %v5015
    %7641 = vmatpush.bf16.msra.mxu0 %v5007
    %7642 = vmatmul.bf16.gmra.mxu0 %v1078
    %v7643 = vpop.f32.mrf.mxu0
    %v7644 = vadd.f32 %v7631, %v7643
    %v7645 = vpop.f32.mrf.mxu0
    %7646 = vdwg.mxu0
    %7647 = vmatpush.bf16.msra.mxu0 %v5127
    %7648 = vmatpush.bf16.msra.mxu0 %v5119
    %7649 = vmatpush.bf16.msra.mxu0 %v5111
    %7650 = vmatpush.bf16.msra.mxu0 %v5103
    %7651 = vmatpush.bf16.msra.mxu0 %v5095
    %7652 = vmatpush.bf16.msra.mxu0 %v5087
    %7653 = vmatpush.bf16.msra.mxu0 %v5079
    %7654 = vmatpush.bf16.msra.mxu0 %v5071
    %7655 = vmatmul.bf16.gmra.mxu0 %v1079
    %v7656 = vpop.f32.mrf.mxu0
    %v7657 = vadd.f32 %v7644, %v7656
    %v7658 = vpop.f32.mrf.mxu0
    %7659 = vdwg.mxu0
    %7660 = vmatpush.bf16.msra.mxu0 %v5191
    %7661 = vmatpush.bf16.msra.mxu0 %v5183
    %7662 = vmatpush.bf16.msra.mxu0 %v5175
    %7663 = vmatpush.bf16.msra.mxu0 %v5167
    %7664 = vmatpush.bf16.msra.mxu0 %v5159
    %7665 = vmatpush.bf16.msra.mxu0 %v5151
    %7666 = vmatpush.bf16.msra.mxu0 %v5143
    %7667 = vmatpush.bf16.msra.mxu0 %v5135
    %7668 = vmatmul.bf16.gmra.mxu0 %v1080
    %v7669 = vpop.f32.mrf.mxu0
    %v7670 = vadd.f32 %v7657, %v7669
    %v7671 = vpop.f32.mrf.mxu0
    %7672 = vdwg.mxu0
    %7673 = vmatpush.bf16.msra.mxu0 %v4232
    %7674 = vmatpush.bf16.msra.mxu0 %v4224
    %7675 = vmatpush.bf16.msra.mxu0 %v4216
    %7676 = vmatpush.bf16.msra.mxu0 %v4208
    %7677 = vmatpush.bf16.msra.mxu0 %v4200
    %7678 = vmatpush.bf16.msra.mxu0 %v4192
    %7679 = vmatpush.bf16.msra.mxu0 %v4184
    %7680 = vmatpush.bf16.msra.mxu0 %v4176
    %7681 = vmatmul.bf16.gmra.mxu0 %v1063
    %v7682 = vpop.f32.mrf.mxu0
    %v7683 = vadd.f32 0.0, %v7682
    %v7684 = vpop.f32.mrf.mxu0
    %7685 = vdwg.mxu0
    %7686 = vmatpush.bf16.msra.mxu0 %v4296
    %7687 = vmatpush.bf16.msra.mxu0 %v4288
    %7688 = vmatpush.bf16.msra.mxu0 %v4280
    %7689 = vmatpush.bf16.msra.mxu0 %v4272
    %7690 = vmatpush.bf16.msra.mxu0 %v4264
    %7691 = vmatpush.bf16.msra.mxu0 %v4256
    %7692 = vmatpush.bf16.msra.mxu0 %v4248
    %7693 = vmatpush.bf16.msra.mxu0 %v4240
    %7694 = vmatmul.bf16.gmra.mxu0 %v1064
    %v7695 = vpop.f32.mrf.mxu0
    %v7696 = vadd.f32 %v7683, %v7695
    %v7697 = vpop.f32.mrf.mxu0
    %7698 = vdwg.mxu0
    %7699 = vmatpush.bf16.msra.mxu0 %v4360
    %7700 = vmatpush.bf16.msra.mxu0 %v4352
    %7701 = vmatpush.bf16.msra.mxu0 %v4344
    %7702 = vmatpush.bf16.msra.mxu0 %v4336
    %7703 = vmatpush.bf16.msra.mxu0 %v4328
    %7704 = vmatpush.bf16.msra.mxu0 %v4320
    %7705 = vmatpush.bf16.msra.mxu0 %v4312
    %7706 = vmatpush.bf16.msra.mxu0 %v4304
    %7707 = vmatmul.bf16.gmra.mxu0 %v1065
    %v7708 = vpop.f32.mrf.mxu0
    %v7709 = vadd.f32 %v7696, %v7708
    %v7710 = vpop.f32.mrf.mxu0
    %7711 = vdwg.mxu0
    %7712 = vmatpush.bf16.msra.mxu0 %v4424
    %7713 = vmatpush.bf16.msra.mxu0 %v4416
    %7714 = vmatpush.bf16.msra.mxu0 %v4408
    %7715 = vmatpush.bf16.msra.mxu0 %v4400
    %7716 = vmatpush.bf16.msra.mxu0 %v4392
    %7717 = vmatpush.bf16.msra.mxu0 %v4384
    %7718 = vmatpush.bf16.msra.mxu0 %v4376
    %7719 = vmatpush.bf16.msra.mxu0 %v4368
    %7720 = vmatmul.bf16.gmra.mxu0 %v1066
    %v7721 = vpop.f32.mrf.mxu0
    %v7722 = vadd.f32 %v7709, %v7721
    %v7723 = vpop.f32.mrf.mxu0
    %7724 = vdwg.mxu0
    %7725 = vmatpush.bf16.msra.mxu0 %v4488
    %7726 = vmatpush.bf16.msra.mxu0 %v4480
    %7727 = vmatpush.bf16.msra.mxu0 %v4472
    %7728 = vmatpush.bf16.msra.mxu0 %v4464
    %7729 = vmatpush.bf16.msra.mxu0 %v4456
    %7730 = vmatpush.bf16.msra.mxu0 %v4448
    %7731 = vmatpush.bf16.msra.mxu0 %v4440
    %7732 = vmatpush.bf16.msra.mxu0 %v4432
    %7733 = vmatmul.bf16.gmra.mxu0 %v1067
    %v7734 = vpop.f32.mrf.mxu0
    %v7735 = vadd.f32 %v7722, %v7734
    %v7736 = vpop.f32.mrf.mxu0
    %7737 = vdwg.mxu0
    %7738 = vmatpush.bf16.msra.mxu0 %v4552
    %7739 = vmatpush.bf16.msra.mxu0 %v4544
    %7740 = vmatpush.bf16.msra.mxu0 %v4536
    %7741 = vmatpush.bf16.msra.mxu0 %v4528
    %7742 = vmatpush.bf16.msra.mxu0 %v4520
    %7743 = vmatpush.bf16.msra.mxu0 %v4512
    %7744 = vmatpush.bf16.msra.mxu0 %v4504
    %7745 = vmatpush.bf16.msra.mxu0 %v4496
    %7746 = vmatmul.bf16.gmra.mxu0 %v1068
    %v7747 = vpop.f32.mrf.mxu0
    %v7748 = vadd.f32 %v7735, %v7747
    %v7749 = vpop.f32.mrf.mxu0
    %7750 = vdwg.mxu0
    %7751 = vmatpush.bf16.msra.mxu0 %v4616
    %7752 = vmatpush.bf16.msra.mxu0 %v4608
    %7753 = vmatpush.bf16.msra.mxu0 %v4600
    %7754 = vmatpush.bf16.msra.mxu0 %v4592
    %7755 = vmatpush.bf16.msra.mxu0 %v4584
    %7756 = vmatpush.bf16.msra.mxu0 %v4576
    %7757 = vmatpush.bf16.msra.mxu0 %v4568
    %7758 = vmatpush.bf16.msra.mxu0 %v4560
    %7759 = vmatmul.bf16.gmra.mxu0 %v1069
    %v7760 = vpop.f32.mrf.mxu0
    %v7761 = vadd.f32 %v7748, %v7760
    %v7762 = vpop.f32.mrf.mxu0
    %7763 = vdwg.mxu0
    %7764 = vmatpush.bf16.msra.mxu0 %v4680
    %7765 = vmatpush.bf16.msra.mxu0 %v4672
    %7766 = vmatpush.bf16.msra.mxu0 %v4664
    %7767 = vmatpush.bf16.msra.mxu0 %v4656
    %7768 = vmatpush.bf16.msra.mxu0 %v4648
    %7769 = vmatpush.bf16.msra.mxu0 %v4640
    %7770 = vmatpush.bf16.msra.mxu0 %v4632
    %7771 = vmatpush.bf16.msra.mxu0 %v4624
    %7772 = vmatmul.bf16.gmra.mxu0 %v1070
    %v7773 = vpop.f32.mrf.mxu0
    %v7774 = vadd.f32 %v7761, %v7773
    %v7775 = vpop.f32.mrf.mxu0
    %7776 = vdwg.mxu0
    %7777 = vmatpush.bf16.msra.mxu0 %v4744
    %7778 = vmatpush.bf16.msra.mxu0 %v4736
    %7779 = vmatpush.bf16.msra.mxu0 %v4728
    %7780 = vmatpush.bf16.msra.mxu0 %v4720
    %7781 = vmatpush.bf16.msra.mxu0 %v4712
    %7782 = vmatpush.bf16.msra.mxu0 %v4704
    %7783 = vmatpush.bf16.msra.mxu0 %v4696
    %7784 = vmatpush.bf16.msra.mxu0 %v4688
    %7785 = vmatmul.bf16.gmra.mxu0 %v1073
    %v7786 = vpop.f32.mrf.mxu0
    %v7787 = vadd.f32 %v7774, %v7786
    %v7788 = vpop.f32.mrf.mxu0
    %7789 = vdwg.mxu0
    %7790 = vmatpush.bf16.msra.mxu0 %v4808
    %7791 = vmatpush.bf16.msra.mxu0 %v4800
    %7792 = vmatpush.bf16.msra.mxu0 %v4792
    %7793 = vmatpush.bf16.msra.mxu0 %v4784
    %7794 = vmatpush.bf16.msra.mxu0 %v4776
    %7795 = vmatpush.bf16.msra.mxu0 %v4768
    %7796 = vmatpush.bf16.msra.mxu0 %v4760
    %7797 = vmatpush.bf16.msra.mxu0 %v4752
    %7798 = vmatmul.bf16.gmra.mxu0 %v1074
    %v7799 = vpop.f32.mrf.mxu0
    %v7800 = vadd.f32 %v7787, %v7799
    %v7801 = vpop.f32.mrf.mxu0
    %7802 = vdwg.mxu0
    %7803 = vmatpush.bf16.msra.mxu0 %v4872
    %7804 = vmatpush.bf16.msra.mxu0 %v4864
    %7805 = vmatpush.bf16.msra.mxu0 %v4856
    %7806 = vmatpush.bf16.msra.mxu0 %v4848
    %7807 = vmatpush.bf16.msra.mxu0 %v4840
    %7808 = vmatpush.bf16.msra.mxu0 %v4832
    %7809 = vmatpush.bf16.msra.mxu0 %v4824
    %7810 = vmatpush.bf16.msra.mxu0 %v4816
    %7811 = vmatmul.bf16.gmra.mxu0 %v1075
    %v7812 = vpop.f32.mrf.mxu0
    %v7813 = vadd.f32 %v7800, %v7812
    %v7814 = vpop.f32.mrf.mxu0
    %7815 = vdwg.mxu0
    %7816 = vmatpush.bf16.msra.mxu0 %v4936
    %7817 = vmatpush.bf16.msra.mxu0 %v4928
    %7818 = vmatpush.bf16.msra.mxu0 %v4920
    %7819 = vmatpush.bf16.msra.mxu0 %v4912
    %7820 = vmatpush.bf16.msra.mxu0 %v4904
    %7821 = vmatpush.bf16.msra.mxu0 %v4896
    %7822 = vmatpush.bf16.msra.mxu0 %v4888
    %7823 = vmatpush.bf16.msra.mxu0 %v4880
    %7824 = vmatmul.bf16.gmra.mxu0 %v1076
    %v7825 = vpop.f32.mrf.mxu0
    %v7826 = vadd.f32 %v7813, %v7825
    %v7827 = vpop.f32.mrf.mxu0
    %7828 = vdwg.mxu0
    %7829 = vmatpush.bf16.msra.mxu0 %v5000
    %7830 = vmatpush.bf16.msra.mxu0 %v4992
    %7831 = vmatpush.bf16.msra.mxu0 %v4984
    %7832 = vmatpush.bf16.msra.mxu0 %v4976
    %7833 = vmatpush.bf16.msra.mxu0 %v4968
    %7834 = vmatpush.bf16.msra.mxu0 %v4960
    %7835 = vmatpush.bf16.msra.mxu0 %v4952
    %7836 = vmatpush.bf16.msra.mxu0 %v4944
    %7837 = vmatmul.bf16.gmra.mxu0 %v1077
    %v7838 = vpop.f32.mrf.mxu0
    %v7839 = vadd.f32 %v7826, %v7838
    %v7840 = vpop.f32.mrf.mxu0
    %7841 = vdwg.mxu0
    %7842 = vmatpush.bf16.msra.mxu0 %v5064
    %7843 = vmatpush.bf16.msra.mxu0 %v5056
    %7844 = vmatpush.bf16.msra.mxu0 %v5048
    %7845 = vmatpush.bf16.msra.mxu0 %v5040
    %7846 = vmatpush.bf16.msra.mxu0 %v5032
    %7847 = vmatpush.bf16.msra.mxu0 %v5024
    %7848 = vmatpush.bf16.msra.mxu0 %v5016
    %7849 = vmatpush.bf16.msra.mxu0 %v5008
    %7850 = vmatmul.bf16.gmra.mxu0 %v1078
    %v7851 = vpop.f32.mrf.mxu0
    %v7852 = vadd.f32 %v7839, %v7851
    %v7853 = vpop.f32.mrf.mxu0
    %7854 = vdwg.mxu0
    %7855 = vmatpush.bf16.msra.mxu0 %v5128
    %7856 = vmatpush.bf16.msra.mxu0 %v5120
    %7857 = vmatpush.bf16.msra.mxu0 %v5112
    %7858 = vmatpush.bf16.msra.mxu0 %v5104
    %7859 = vmatpush.bf16.msra.mxu0 %v5096
    %7860 = vmatpush.bf16.msra.mxu0 %v5088
    %7861 = vmatpush.bf16.msra.mxu0 %v5080
    %7862 = vmatpush.bf16.msra.mxu0 %v5072
    %7863 = vmatmul.bf16.gmra.mxu0 %v1079
    %v7864 = vpop.f32.mrf.mxu0
    %v7865 = vadd.f32 %v7852, %v7864
    %v7866 = vpop.f32.mrf.mxu0
    %7867 = vdwg.mxu0
    %7868 = vmatpush.bf16.msra.mxu0 %v5192
    %7869 = vmatpush.bf16.msra.mxu0 %v5184
    %7870 = vmatpush.bf16.msra.mxu0 %v5176
    %7871 = vmatpush.bf16.msra.mxu0 %v5168
    %7872 = vmatpush.bf16.msra.mxu0 %v5160
    %7873 = vmatpush.bf16.msra.mxu0 %v5152
    %7874 = vmatpush.bf16.msra.mxu0 %v5144
    %7875 = vmatpush.bf16.msra.mxu0 %v5136
    %7876 = vmatmul.bf16.gmra.mxu0 %v1080
    %v7877 = vpop.f32.mrf.mxu0
    %v7878 = vadd.f32 %v7865, %v7877
    %v7879 = vpop.f32.mrf.mxu0
    %7880 = vdwg.mxu0
    %v7881 = vld [vmem:[%s2] sm:$0xff]
    %v7883 = vperm.slane %v7881, 0
    %v7884 = vperm.slane %v7881, 1
    %v7885 = vperm.slane %v7881, 2
    %v7886 = vperm.slane %v7881, 3
    %v7887 = vperm.slane %v7881, 4
    %v7888 = vperm.slane %v7881, 5
    %v7889 = vperm.slane %v7881, 6
    %v7890 = vperm.slane %v7881, 7
    %v7899 = vmul.f32 %v6422, %v7883
    %v7900 = vmul.f32 %v6630, %v7884
    %v7901 = vmul.f32 %v6838, %v7885
    %v7902 = vmul.f32 %v7046, %v7886
    %v7903 = vmul.f32 %v7254, %v7887
    %v7904 = vmul.f32 %v7462, %v7888
    %v7905 = vmul.f32 %v7670, %v7889
    %v7906 = vmul.f32 %v7878, %v7890
    %v7907 = vld [vmem:[%s3] sm:$0xff]
    %v7909 = vperm.slane %v7907, 0
    %v7910 = vperm.slane %v7907, 1
    %v7911 = vperm.slane %v7907, 2
    %v7912 = vperm.slane %v7907, 3
    %v7913 = vperm.slane %v7907, 4
    %v7914 = vperm.slane %v7907, 5
    %v7915 = vperm.slane %v7907, 6
    %v7916 = vperm.slane %v7907, 7
    %v7925 = vadd.f32 %v7899, %v7909
    %v7926 = vadd.f32 %v7900, %v7910
    %v7927 = vadd.f32 %v7901, %v7911
    %v7928 = vadd.f32 %v7902, %v7912
    %v7929 = vadd.f32 %v7903, %v7913
    %v7930 = vadd.f32 %v7904, %v7914
    %v7931 = vadd.f32 %v7905, %v7915
    %v7932 = vadd.f32 %v7906, %v7916
    %v7933 = vmax.f32 %v7925, 0.0
    %v7934 = vmax.f32 %v7926, 0.0
    %v7935 = vmax.f32 %v7927, 0.0
    %v7936 = vmax.f32 %v7928, 0.0
    %v7937 = vmax.f32 %v7929, 0.0
    %v7938 = vmax.f32 %v7930, 0.0
    %v7939 = vmax.f32 %v7931, 0.0
    %v7940 = vmax.f32 %v7932, 0.0
    %v7941 = vpack.c.bf16 %v7933, %v7933
    %v7942 = vpack.c.bf16 %v7934, %v7934
    %v7943 = vpack.c.bf16 %v7935, %v7935
    %v7944 = vpack.c.bf16 %v7936, %v7936
    %v7945 = vpack.c.bf16 %v7937, %v7937
    %v7946 = vpack.c.bf16 %v7938, %v7938
    %v7947 = vpack.c.bf16 %v7939, %v7939
    %v7948 = vpack.c.bf16 %v7940, %v7940
    %v7949 = vld [vmem:[%s4] sm:$0xff]
    %v7950 = vld [vmem:[%s4 + $0x8] sm:$0xff]
    %v7951 = vld [vmem:[%s4 + $0x10] sm:$0xff]
    %v7952 = vld [vmem:[%s4 + $0x18] sm:$0xff]
    %v7953 = vld [vmem:[%s4 + $0x20] sm:$0xff]
    %v7954 = vld [vmem:[%s4 + $0x28] sm:$0xff]
    %v7955 = vld [vmem:[%s4 + $0x30] sm:$0xff]
    %v7956 = vld [vmem:[%s4 + $0x38] sm:$0xff]
    %v7957 = vld [vmem:[%s4 + $0x40] sm:$0xff]
    %v7958 = vld [vmem:[%s4 + $0x48] sm:$0xff]
    %v7959 = vld [vmem:[%s4 + $0x50] sm:$0xff]
    %v7960 = vld [vmem:[%s4 + $0x58] sm:$0xff]
    %v7961 = vld [vmem:[%s4 + $0x60] sm:$0xff]
    %v7962 = vld [vmem:[%s4 + $0x68] sm:$0xff]
    %v7963 = vld [vmem:[%s4 + $0x70] sm:$0xff]
    %v7964 = vld [vmem:[%s4 + $0x78] sm:$0xff]
    %v7965 = vld [vmem:[%s4 + $0x80] sm:$0xff]
    %v7966 = vld [vmem:[%s4 + $0x88] sm:$0xff]
    %v7967 = vld [vmem:[%s4 + $0x90] sm:$0xff]
    %v7968 = vld [vmem:[%s4 + $0x98] sm:$0xff]
    %v7969 = vld [vmem:[%s4 + $0xa0] sm:$0xff]
    %v7970 = vld [vmem:[%s4 + $0xa8] sm:$0xff]
    %v7971 = vld [vmem:[%s4 + $0xb0] sm:$0xff]
    %v7972 = vld [vmem:[%s4 + $0xb8] sm:$0xff]
    %v7973 = vld [vmem:[%s4 + $0xc0] sm:$0xff]
    %v7974 = vld [vmem:[%s4 + $0xc8] sm:$0xff]
    %v7975 = vld [vmem:[%s4 + $0xd0] sm:$0xff]
    %v7976 = vld [vmem:[%s4 + $0xd8] sm:$0xff]
    %v7977 = vld [vmem:[%s4 + $0xe0] sm:$0xff]
    %v7978 = vld [vmem:[%s4 + $0xe8] sm:$0xff]
    %v7979 = vld [vmem:[%s4 + $0xf0] sm:$0xff]
    %v7980 = vld [vmem:[%s4 + $0xf8] sm:$0xff]
    %v7981 = vld [vmem:[%s4 + $0x100] sm:$0xff]
    %v7982 = vld [vmem:[%s4 + $0x108] sm:$0xff]
    %v7983 = vld [vmem:[%s4 + $0x110] sm:$0xff]
    %v7984 = vld [vmem:[%s4 + $0x118] sm:$0xff]
    %v7985 = vld [vmem:[%s4 + $0x120] sm:$0xff]
    %v7986 = vld [vmem:[%s4 + $0x128] sm:$0xff]
    %v7987 = vld [vmem:[%s4 + $0x130] sm:$0xff]
    %v7988 = vld [vmem:[%s4 + $0x138] sm:$0xff]
    %v7989 = vld [vmem:[%s4 + $0x140] sm:$0xff]
    %v7990 = vld [vmem:[%s4 + $0x148] sm:$0xff]
    %v7991 = vld [vmem:[%s4 + $0x150] sm:$0xff]
    %v7992 = vld [vmem:[%s4 + $0x158] sm:$0xff]
    %v7993 = vld [vmem:[%s4 + $0x160] sm:$0xff]
    %v7994 = vld [vmem:[%s4 + $0x168] sm:$0xff]
    %v7995 = vld [vmem:[%s4 + $0x170] sm:$0xff]
    %v7996 = vld [vmem:[%s4 + $0x178] sm:$0xff]
    %v7997 = vld [vmem:[%s4 + $0x180] sm:$0xff]
    %v7998 = vld [vmem:[%s4 + $0x188] sm:$0xff]
    %v7999 = vld [vmem:[%s4 + $0x190] sm:$0xff]
    %v8000 = vld [vmem:[%s4 + $0x198] sm:$0xff]
    %v8001 = vld [vmem:[%s4 + $0x1a0] sm:$0xff]
    %v8002 = vld [vmem:[%s4 + $0x1a8] sm:$0xff]
    %v8003 = vld [vmem:[%s4 + $0x1b0] sm:$0xff]
    %v8004 = vld [vmem:[%s4 + $0x1b8] sm:$0xff]
    %v8005 = vld [vmem:[%s4 + $0x1c0] sm:$0xff]
    %v8006 = vld [vmem:[%s4 + $0x1c8] sm:$0xff]
    %v8007 = vld [vmem:[%s4 + $0x1d0] sm:$0xff]
    %v8008 = vld [vmem:[%s4 + $0x1d8] sm:$0xff]
    %v8009 = vld [vmem:[%s4 + $0x1e0] sm:$0xff]
    %v8010 = vld [vmem:[%s4 + $0x1e8] sm:$0xff]
    %v8011 = vld [vmem:[%s4 + $0x1f0] sm:$0xff]
    %v8012 = vld [vmem:[%s4 + $0x1f8] sm:$0xff]
    %v8013 = vld [vmem:[%s4 + $0x200] sm:$0xff]
    %v8014 = vld [vmem:[%s4 + $0x208] sm:$0xff]
    %v8015 = vld [vmem:[%s4 + $0x210] sm:$0xff]
    %v8016 = vld [vmem:[%s4 + $0x218] sm:$0xff]
    %v8017 = vld [vmem:[%s4 + $0x220] sm:$0xff]
    %v8018 = vld [vmem:[%s4 + $0x228] sm:$0xff]
    %v8019 = vld [vmem:[%s4 + $0x230] sm:$0xff]
    %v8020 = vld [vmem:[%s4 + $0x238] sm:$0xff]
    %v8021 = vld [vmem:[%s4 + $0x240] sm:$0xff]
    %v8022 = vld [vmem:[%s4 + $0x248] sm:$0xff]
    %v8023 = vld [vmem:[%s4 + $0x250] sm:$0xff]
    %v8024 = vld [vmem:[%s4 + $0x258] sm:$0xff]
    %v8025 = vld [vmem:[%s4 + $0x260] sm:$0xff]
    %v8026 = vld [vmem:[%s4 + $0x268] sm:$0xff]
    %v8027 = vld [vmem:[%s4 + $0x270] sm:$0xff]
    %v8028 = vld [vmem:[%s4 + $0x278] sm:$0xff]
    %v8029 = vld [vmem:[%s4 + $0x280] sm:$0xff]
    %v8030 = vld [vmem:[%s4 + $0x288] sm:$0xff]
    %v8031 = vld [vmem:[%s4 + $0x290] sm:$0xff]
    %v8032 = vld [vmem:[%s4 + $0x298] sm:$0xff]
    %v8033 = vld [vmem:[%s4 + $0x2a0] sm:$0xff]
    %v8034 = vld [vmem:[%s4 + $0x2a8] sm:$0xff]
    %v8035 = vld [vmem:[%s4 + $0x2b0] sm:$0xff]
    %v8036 = vld [vmem:[%s4 + $0x2b8] sm:$0xff]
    %v8037 = vld [vmem:[%s4 + $0x2c0] sm:$0xff]
    %v8038 = vld [vmem:[%s4 + $0x2c8] sm:$0xff]
    %v8039 = vld [vmem:[%s4 + $0x2d0] sm:$0xff]
    %v8040 = vld [vmem:[%s4 + $0x2d8] sm:$0xff]
    %v8041 = vld [vmem:[%s4 + $0x2e0] sm:$0xff]
    %v8042 = vld [vmem:[%s4 + $0x2e8] sm:$0xff]
    %v8043 = vld [vmem:[%s4 + $0x2f0] sm:$0xff]
    %v8044 = vld [vmem:[%s4 + $0x2f8] sm:$0xff]
    %v8045 = vld [vmem:[%s4 + $0x300] sm:$0xff]
    %v8046 = vld [vmem:[%s4 + $0x308] sm:$0xff]
    %v8047 = vld [vmem:[%s4 + $0x310] sm:$0xff]
    %v8048 = vld [vmem:[%s4 + $0x318] sm:$0xff]
    %v8049 = vld [vmem:[%s4 + $0x320] sm:$0xff]
    %v8050 = vld [vmem:[%s4 + $0x328] sm:$0xff]
    %v8051 = vld [vmem:[%s4 + $0x330] sm:$0xff]
    %v8052 = vld [vmem:[%s4 + $0x338] sm:$0xff]
    %v8053 = vld [vmem:[%s4 + $0x340] sm:$0xff]
    %v8054 = vld [vmem:[%s4 + $0x348] sm:$0xff]
    %v8055 = vld [vmem:[%s4 + $0x350] sm:$0xff]
    %v8056 = vld [vmem:[%s4 + $0x358] sm:$0xff]
    %v8057 = vld [vmem:[%s4 + $0x360] sm:$0xff]
    %v8058 = vld [vmem:[%s4 + $0x368] sm:$0xff]
    %v8059 = vld [vmem:[%s4 + $0x370] sm:$0xff]
    %v8060 = vld [vmem:[%s4 + $0x378] sm:$0xff]
    %v8061 = vld [vmem:[%s4 + $0x380] sm:$0xff]
    %v8062 = vld [vmem:[%s4 + $0x388] sm:$0xff]
    %v8063 = vld [vmem:[%s4 + $0x390] sm:$0xff]
    %v8064 = vld [vmem:[%s4 + $0x398] sm:$0xff]
    %v8065 = vld [vmem:[%s4 + $0x3a0] sm:$0xff]
    %v8066 = vld [vmem:[%s4 + $0x3a8] sm:$0xff]
    %v8067 = vld [vmem:[%s4 + $0x3b0] sm:$0xff]
    %v8068 = vld [vmem:[%s4 + $0x3b8] sm:$0xff]
    %v8069 = vld [vmem:[%s4 + $0x3c0] sm:$0xff]
    %v8070 = vld [vmem:[%s4 + $0x3c8] sm:$0xff]
    %v8071 = vld [vmem:[%s4 + $0x3d0] sm:$0xff]
    %v8072 = vld [vmem:[%s4 + $0x3d8] sm:$0xff]
    %v8073 = vld [vmem:[%s4 + $0x3e0] sm:$0xff]
    %v8074 = vld [vmem:[%s4 + $0x3e8] sm:$0xff]
    %v8075 = vld [vmem:[%s4 + $0x3f0] sm:$0xff]
    %v8076 = vld [vmem:[%s4 + $0x3f8] sm:$0xff]
    %v8077 = vld [vmem:[%s4 + $0x400] sm:$0xff]
    %v8078 = vld [vmem:[%s4 + $0x408] sm:$0xff]
    %v8079 = vld [vmem:[%s4 + $0x410] sm:$0xff]
    %v8080 = vld [vmem:[%s4 + $0x418] sm:$0xff]
    %v8081 = vld [vmem:[%s4 + $0x420] sm:$0xff]
    %v8082 = vld [vmem:[%s4 + $0x428] sm:$0xff]
    %v8083 = vld [vmem:[%s4 + $0x430] sm:$0xff]
    %v8084 = vld [vmem:[%s4 + $0x438] sm:$0xff]
    %v8085 = vld [vmem:[%s4 + $0x440] sm:$0xff]
    %v8086 = vld [vmem:[%s4 + $0x448] sm:$0xff]
    %v8087 = vld [vmem:[%s4 + $0x450] sm:$0xff]
    %v8088 = vld [vmem:[%s4 + $0x458] sm:$0xff]
    %v8089 = vld [vmem:[%s4 + $0x460] sm:$0xff]
    %v8090 = vld [vmem:[%s4 + $0x468] sm:$0xff]
    %v8091 = vld [vmem:[%s4 + $0x470] sm:$0xff]
    %v8092 = vld [vmem:[%s4 + $0x478] sm:$0xff]
    %v8093 = vld [vmem:[%s4 + $0x480] sm:$0xff]
    %v8094 = vld [vmem:[%s4 + $0x488] sm:$0xff]
    %v8095 = vld [vmem:[%s4 + $0x490] sm:$0xff]
    %v8096 = vld [vmem:[%s4 + $0x498] sm:$0xff]
    %v8097 = vld [vmem:[%s4 + $0x4a0] sm:$0xff]
    %v8098 = vld [vmem:[%s4 + $0x4a8] sm:$0xff]
    %v8099 = vld [vmem:[%s4 + $0x4b0] sm:$0xff]
    %v8100 = vld [vmem:[%s4 + $0x4b8] sm:$0xff]
    %v8101 = vld [vmem:[%s4 + $0x4c0] sm:$0xff]
    %v8102 = vld [vmem:[%s4 + $0x4c8] sm:$0xff]
    %v8103 = vld [vmem:[%s4 + $0x4d0] sm:$0xff]
    %v8104 = vld [vmem:[%s4 + $0x4d8] sm:$0xff]
    %v8105 = vld [vmem:[%s4 + $0x4e0] sm:$0xff]
    %v8106 = vld [vmem:[%s4 + $0x4e8] sm:$0xff]
    %v8107 = vld [vmem:[%s4 + $0x4f0] sm:$0xff]
    %v8108 = vld [vmem:[%s4 + $0x4f8] sm:$0xff]
    %v8109 = vld [vmem:[%s4 + $0x500] sm:$0xff]
    %v8110 = vld [vmem:[%s4 + $0x508] sm:$0xff]
    %v8111 = vld [vmem:[%s4 + $0x510] sm:$0xff]
    %v8112 = vld [vmem:[%s4 + $0x518] sm:$0xff]
    %v8113 = vld [vmem:[%s4 + $0x520] sm:$0xff]
    %v8114 = vld [vmem:[%s4 + $0x528] sm:$0xff]
    %v8115 = vld [vmem:[%s4 + $0x530] sm:$0xff]
    %v8116 = vld [vmem:[%s4 + $0x538] sm:$0xff]
    %v8117 = vld [vmem:[%s4 + $0x540] sm:$0xff]
    %v8118 = vld [vmem:[%s4 + $0x548] sm:$0xff]
    %v8119 = vld [vmem:[%s4 + $0x550] sm:$0xff]
    %v8120 = vld [vmem:[%s4 + $0x558] sm:$0xff]
    %v8121 = vld [vmem:[%s4 + $0x560] sm:$0xff]
    %v8122 = vld [vmem:[%s4 + $0x568] sm:$0xff]
    %v8123 = vld [vmem:[%s4 + $0x570] sm:$0xff]
    %v8124 = vld [vmem:[%s4 + $0x578] sm:$0xff]
    %v8125 = vld [vmem:[%s4 + $0x580] sm:$0xff]
    %v8126 = vld [vmem:[%s4 + $0x588] sm:$0xff]
    %v8127 = vld [vmem:[%s4 + $0x590] sm:$0xff]
    %v8128 = vld [vmem:[%s4 + $0x598] sm:$0xff]
    %v8129 = vld [vmem:[%s4 + $0x5a0] sm:$0xff]
    %v8130 = vld [vmem:[%s4 + $0x5a8] sm:$0xff]
    %v8131 = vld [vmem:[%s4 + $0x5b0] sm:$0xff]
    %v8132 = vld [vmem:[%s4 + $0x5b8] sm:$0xff]
    %v8133 = vld [vmem:[%s4 + $0x5c0] sm:$0xff]
    %v8134 = vld [vmem:[%s4 + $0x5c8] sm:$0xff]
    %v8135 = vld [vmem:[%s4 + $0x5d0] sm:$0xff]
    %v8136 = vld [vmem:[%s4 + $0x5d8] sm:$0xff]
    %v8137 = vld [vmem:[%s4 + $0x5e0] sm:$0xff]
    %v8138 = vld [vmem:[%s4 + $0x5e8] sm:$0xff]
    %v8139 = vld [vmem:[%s4 + $0x5f0] sm:$0xff]
    %v8140 = vld [vmem:[%s4 + $0x5f8] sm:$0xff]
    %v8141 = vld [vmem:[%s4 + $0x600] sm:$0xff]
    %v8142 = vld [vmem:[%s4 + $0x608] sm:$0xff]
    %v8143 = vld [vmem:[%s4 + $0x610] sm:$0xff]
    %v8144 = vld [vmem:[%s4 + $0x618] sm:$0xff]
    %v8145 = vld [vmem:[%s4 + $0x620] sm:$0xff]
    %v8146 = vld [vmem:[%s4 + $0x628] sm:$0xff]
    %v8147 = vld [vmem:[%s4 + $0x630] sm:$0xff]
    %v8148 = vld [vmem:[%s4 + $0x638] sm:$0xff]
    %v8149 = vld [vmem:[%s4 + $0x640] sm:$0xff]
    %v8150 = vld [vmem:[%s4 + $0x648] sm:$0xff]
    %v8151 = vld [vmem:[%s4 + $0x650] sm:$0xff]
    %v8152 = vld [vmem:[%s4 + $0x658] sm:$0xff]
    %v8153 = vld [vmem:[%s4 + $0x660] sm:$0xff]
    %v8154 = vld [vmem:[%s4 + $0x668] sm:$0xff]
    %v8155 = vld [vmem:[%s4 + $0x670] sm:$0xff]
    %v8156 = vld [vmem:[%s4 + $0x678] sm:$0xff]
    %v8157 = vld [vmem:[%s4 + $0x680] sm:$0xff]
    %v8158 = vld [vmem:[%s4 + $0x688] sm:$0xff]
    %v8159 = vld [vmem:[%s4 + $0x690] sm:$0xff]
    %v8160 = vld [vmem:[%s4 + $0x698] sm:$0xff]
    %v8161 = vld [vmem:[%s4 + $0x6a0] sm:$0xff]
    %v8162 = vld [vmem:[%s4 + $0x6a8] sm:$0xff]
    %v8163 = vld [vmem:[%s4 + $0x6b0] sm:$0xff]
    %v8164 = vld [vmem:[%s4 + $0x6b8] sm:$0xff]
    %v8165 = vld [vmem:[%s4 + $0x6c0] sm:$0xff]
    %v8166 = vld [vmem:[%s4 + $0x6c8] sm:$0xff]
    %v8167 = vld [vmem:[%s4 + $0x6d0] sm:$0xff]
    %v8168 = vld [vmem:[%s4 + $0x6d8] sm:$0xff]
    %v8169 = vld [vmem:[%s4 + $0x6e0] sm:$0xff]
    %v8170 = vld [vmem:[%s4 + $0x6e8] sm:$0xff]
    %v8171 = vld [vmem:[%s4 + $0x6f0] sm:$0xff]
    %v8172 = vld [vmem:[%s4 + $0x6f8] sm:$0xff]
    %v8173 = vld [vmem:[%s4 + $0x700] sm:$0xff]
    %v8174 = vld [vmem:[%s4 + $0x708] sm:$0xff]
    %v8175 = vld [vmem:[%s4 + $0x710] sm:$0xff]
    %v8176 = vld [vmem:[%s4 + $0x718] sm:$0xff]
    %v8177 = vld [vmem:[%s4 + $0x720] sm:$0xff]
    %v8178 = vld [vmem:[%s4 + $0x728] sm:$0xff]
    %v8179 = vld [vmem:[%s4 + $0x730] sm:$0xff]
    %v8180 = vld [vmem:[%s4 + $0x738] sm:$0xff]
    %v8181 = vld [vmem:[%s4 + $0x740] sm:$0xff]
    %v8182 = vld [vmem:[%s4 + $0x748] sm:$0xff]
    %v8183 = vld [vmem:[%s4 + $0x750] sm:$0xff]
    %v8184 = vld [vmem:[%s4 + $0x758] sm:$0xff]
    %v8185 = vld [vmem:[%s4 + $0x760] sm:$0xff]
    %v8186 = vld [vmem:[%s4 + $0x768] sm:$0xff]
    %v8187 = vld [vmem:[%s4 + $0x770] sm:$0xff]
    %v8188 = vld [vmem:[%s4 + $0x778] sm:$0xff]
    %v8189 = vld [vmem:[%s4 + $0x780] sm:$0xff]
    %v8190 = vld [vmem:[%s4 + $0x788] sm:$0xff]
    %v8191 = vld [vmem:[%s4 + $0x790] sm:$0xff]
    %v8192 = vld [vmem:[%s4 + $0x798] sm:$0xff]
    %v8193 = vld [vmem:[%s4 + $0x7a0] sm:$0xff]
    %v8194 = vld [vmem:[%s4 + $0x7a8] sm:$0xff]
    %v8195 = vld [vmem:[%s4 + $0x7b0] sm:$0xff]
    %v8196 = vld [vmem:[%s4 + $0x7b8] sm:$0xff]
    %v8197 = vld [vmem:[%s4 + $0x7c0] sm:$0xff]
    %v8198 = vld [vmem:[%s4 + $0x7c8] sm:$0xff]
    %v8199 = vld [vmem:[%s4 + $0x7d0] sm:$0xff]
    %v8200 = vld [vmem:[%s4 + $0x7d8] sm:$0xff]
    %v8201 = vld [vmem:[%s4 + $0x7e0] sm:$0xff]
    %v8202 = vld [vmem:[%s4 + $0x7e8] sm:$0xff]
    %v8203 = vld [vmem:[%s4 + $0x7f0] sm:$0xff]
    %v8204 = vld [vmem:[%s4 + $0x7f8] sm:$0xff]
    %v8461 = vunpack.c.l.b16 %v7949
    %v8462 = vunpack.c.h.b16 %v7949
    %v8463 = vunpack.c.l.b16 %v7950
    %v8464 = vunpack.c.h.b16 %v7950
    %v8465 = vunpack.c.l.b16 %v7951
    %v8466 = vunpack.c.h.b16 %v7951
    %v8467 = vunpack.c.l.b16 %v7952
    %v8468 = vunpack.c.h.b16 %v7952
    %v8469 = vunpack.c.l.b16 %v7953
    %v8470 = vunpack.c.h.b16 %v7953
    %v8471 = vunpack.c.l.b16 %v7954
    %v8472 = vunpack.c.h.b16 %v7954
    %v8473 = vunpack.c.l.b16 %v7955
    %v8474 = vunpack.c.h.b16 %v7955
    %v8475 = vunpack.c.l.b16 %v7956
    %v8476 = vunpack.c.h.b16 %v7956
    %v8477 = vunpack.c.l.b16 %v7957
    %v8478 = vunpack.c.h.b16 %v7957
    %v8479 = vunpack.c.l.b16 %v7958
    %v8480 = vunpack.c.h.b16 %v7958
    %v8481 = vunpack.c.l.b16 %v7959
    %v8482 = vunpack.c.h.b16 %v7959
    %v8483 = vunpack.c.l.b16 %v7960
    %v8484 = vunpack.c.h.b16 %v7960
    %v8485 = vunpack.c.l.b16 %v7961
    %v8486 = vunpack.c.h.b16 %v7961
    %v8487 = vunpack.c.l.b16 %v7962
    %v8488 = vunpack.c.h.b16 %v7962
    %v8489 = vunpack.c.l.b16 %v7963
    %v8490 = vunpack.c.h.b16 %v7963
    %v8491 = vunpack.c.l.b16 %v7964
    %v8492 = vunpack.c.h.b16 %v7964
    %v8493 = vunpack.c.l.b16 %v7965
    %v8494 = vunpack.c.h.b16 %v7965
    %v8495 = vunpack.c.l.b16 %v7966
    %v8496 = vunpack.c.h.b16 %v7966
    %v8497 = vunpack.c.l.b16 %v7967
    %v8498 = vunpack.c.h.b16 %v7967
    %v8499 = vunpack.c.l.b16 %v7968
    %v8500 = vunpack.c.h.b16 %v7968
    %v8501 = vunpack.c.l.b16 %v7969
    %v8502 = vunpack.c.h.b16 %v7969
    %v8503 = vunpack.c.l.b16 %v7970
    %v8504 = vunpack.c.h.b16 %v7970
    %v8505 = vunpack.c.l.b16 %v7971
    %v8506 = vunpack.c.h.b16 %v7971
    %v8507 = vunpack.c.l.b16 %v7972
    %v8508 = vunpack.c.h.b16 %v7972
    %v8509 = vunpack.c.l.b16 %v7973
    %v8510 = vunpack.c.h.b16 %v7973
    %v8511 = vunpack.c.l.b16 %v7974
    %v8512 = vunpack.c.h.b16 %v7974
    %v8513 = vunpack.c.l.b16 %v7975
    %v8514 = vunpack.c.h.b16 %v7975
    %v8515 = vunpack.c.l.b16 %v7976
    %v8516 = vunpack.c.h.b16 %v7976
    %v8517 = vunpack.c.l.b16 %v7977
    %v8518 = vunpack.c.h.b16 %v7977
    %v8519 = vunpack.c.l.b16 %v7978
    %v8520 = vunpack.c.h.b16 %v7978
    %v8521 = vunpack.c.l.b16 %v7979
    %v8522 = vunpack.c.h.b16 %v7979
    %v8523 = vunpack.c.l.b16 %v7980
    %v8524 = vunpack.c.h.b16 %v7980
    %v8525 = vunpack.c.l.b16 %v7981
    %v8526 = vunpack.c.h.b16 %v7981
    %v8527 = vunpack.c.l.b16 %v7982
    %v8528 = vunpack.c.h.b16 %v7982
    %v8529 = vunpack.c.l.b16 %v7983
    %v8530 = vunpack.c.h.b16 %v7983
    %v8531 = vunpack.c.l.b16 %v7984
    %v8532 = vunpack.c.h.b16 %v7984
    %v8533 = vunpack.c.l.b16 %v7985
    %v8534 = vunpack.c.h.b16 %v7985
    %v8535 = vunpack.c.l.b16 %v7986
    %v8536 = vunpack.c.h.b16 %v7986
    %v8537 = vunpack.c.l.b16 %v7987
    %v8538 = vunpack.c.h.b16 %v7987
    %v8539 = vunpack.c.l.b16 %v7988
    %v8540 = vunpack.c.h.b16 %v7988
    %v8541 = vunpack.c.l.b16 %v7989
    %v8542 = vunpack.c.h.b16 %v7989
    %v8543 = vunpack.c.l.b16 %v7990
    %v8544 = vunpack.c.h.b16 %v7990
    %v8545 = vunpack.c.l.b16 %v7991
    %v8546 = vunpack.c.h.b16 %v7991
    %v8547 = vunpack.c.l.b16 %v7992
    %v8548 = vunpack.c.h.b16 %v7992
    %v8549 = vunpack.c.l.b16 %v7993
    %v8550 = vunpack.c.h.b16 %v7993
    %v8551 = vunpack.c.l.b16 %v7994
    %v8552 = vunpack.c.h.b16 %v7994
    %v8553 = vunpack.c.l.b16 %v7995
    %v8554 = vunpack.c.h.b16 %v7995
    %v8555 = vunpack.c.l.b16 %v7996
    %v8556 = vunpack.c.h.b16 %v7996
    %v8557 = vunpack.c.l.b16 %v7997
    %v8558 = vunpack.c.h.b16 %v7997
    %v8559 = vunpack.c.l.b16 %v7998
    %v8560 = vunpack.c.h.b16 %v7998
    %v8561 = vunpack.c.l.b16 %v7999
    %v8562 = vunpack.c.h.b16 %v7999
    %v8563 = vunpack.c.l.b16 %v8000
    %v8564 = vunpack.c.h.b16 %v8000
    %v8565 = vunpack.c.l.b16 %v8001
    %v8566 = vunpack.c.h.b16 %v8001
    %v8567 = vunpack.c.l.b16 %v8002
    %v8568 = vunpack.c.h.b16 %v8002
    %v8569 = vunpack.c.l.b16 %v8003
    %v8570 = vunpack.c.h.b16 %v8003
    %v8571 = vunpack.c.l.b16 %v8004
    %v8572 = vunpack.c.h.b16 %v8004
    %v8573 = vunpack.c.l.b16 %v8005
    %v8574 = vunpack.c.h.b16 %v8005
    %v8575 = vunpack.c.l.b16 %v8006
    %v8576 = vunpack.c.h.b16 %v8006
    %v8577 = vunpack.c.l.b16 %v8007
    %v8578 = vunpack.c.h.b16 %v8007
    %v8579 = vunpack.c.l.b16 %v8008
    %v8580 = vunpack.c.h.b16 %v8008
    %v8581 = vunpack.c.l.b16 %v8009
    %v8582 = vunpack.c.h.b16 %v8009
    %v8583 = vunpack.c.l.b16 %v8010
    %v8584 = vunpack.c.h.b16 %v8010
    %v8585 = vunpack.c.l.b16 %v8011
    %v8586 = vunpack.c.h.b16 %v8011
    %v8587 = vunpack.c.l.b16 %v8012
    %v8588 = vunpack.c.h.b16 %v8012
    %v8589 = vunpack.c.l.b16 %v8013
    %v8590 = vunpack.c.h.b16 %v8013
    %v8591 = vunpack.c.l.b16 %v8014
    %v8592 = vunpack.c.h.b16 %v8014
    %v8593 = vunpack.c.l.b16 %v8015
    %v8594 = vunpack.c.h.b16 %v8015
    %v8595 = vunpack.c.l.b16 %v8016
    %v8596 = vunpack.c.h.b16 %v8016
    %v8597 = vunpack.c.l.b16 %v8017
    %v8598 = vunpack.c.h.b16 %v8017
    %v8599 = vunpack.c.l.b16 %v8018
    %v8600 = vunpack.c.h.b16 %v8018
    %v8601 = vunpack.c.l.b16 %v8019
    %v8602 = vunpack.c.h.b16 %v8019
    %v8603 = vunpack.c.l.b16 %v8020
    %v8604 = vunpack.c.h.b16 %v8020
    %v8605 = vunpack.c.l.b16 %v8021
    %v8606 = vunpack.c.h.b16 %v8021
    %v8607 = vunpack.c.l.b16 %v8022
    %v8608 = vunpack.c.h.b16 %v8022
    %v8609 = vunpack.c.l.b16 %v8023
    %v8610 = vunpack.c.h.b16 %v8023
    %v8611 = vunpack.c.l.b16 %v8024
    %v8612 = vunpack.c.h.b16 %v8024
    %v8613 = vunpack.c.l.b16 %v8025
    %v8614 = vunpack.c.h.b16 %v8025
    %v8615 = vunpack.c.l.b16 %v8026
    %v8616 = vunpack.c.h.b16 %v8026
    %v8617 = vunpack.c.l.b16 %v8027
    %v8618 = vunpack.c.h.b16 %v8027
    %v8619 = vunpack.c.l.b16 %v8028
    %v8620 = vunpack.c.h.b16 %v8028
    %v8621 = vunpack.c.l.b16 %v8029
    %v8622 = vunpack.c.h.b16 %v8029
    %v8623 = vunpack.c.l.b16 %v8030
    %v8624 = vunpack.c.h.b16 %v8030
    %v8625 = vunpack.c.l.b16 %v8031
    %v8626 = vunpack.c.h.b16 %v8031
    %v8627 = vunpack.c.l.b16 %v8032
    %v8628 = vunpack.c.h.b16 %v8032
    %v8629 = vunpack.c.l.b16 %v8033
    %v8630 = vunpack.c.h.b16 %v8033
    %v8631 = vunpack.c.l.b16 %v8034
    %v8632 = vunpack.c.h.b16 %v8034
    %v8633 = vunpack.c.l.b16 %v8035
    %v8634 = vunpack.c.h.b16 %v8035
    %v8635 = vunpack.c.l.b16 %v8036
    %v8636 = vunpack.c.h.b16 %v8036
    %v8637 = vunpack.c.l.b16 %v8037
    %v8638 = vunpack.c.h.b16 %v8037
    %v8639 = vunpack.c.l.b16 %v8038
    %v8640 = vunpack.c.h.b16 %v8038
    %v8641 = vunpack.c.l.b16 %v8039
    %v8642 = vunpack.c.h.b16 %v8039
    %v8643 = vunpack.c.l.b16 %v8040
    %v8644 = vunpack.c.h.b16 %v8040
    %v8645 = vunpack.c.l.b16 %v8041
    %v8646 = vunpack.c.h.b16 %v8041
    %v8647 = vunpack.c.l.b16 %v8042
    %v8648 = vunpack.c.h.b16 %v8042
    %v8649 = vunpack.c.l.b16 %v8043
    %v8650 = vunpack.c.h.b16 %v8043
    %v8651 = vunpack.c.l.b16 %v8044
    %v8652 = vunpack.c.h.b16 %v8044
    %v8653 = vunpack.c.l.b16 %v8045
    %v8654 = vunpack.c.h.b16 %v8045
    %v8655 = vunpack.c.l.b16 %v8046
    %v8656 = vunpack.c.h.b16 %v8046
    %v8657 = vunpack.c.l.b16 %v8047
    %v8658 = vunpack.c.h.b16 %v8047
    %v8659 = vunpack.c.l.b16 %v8048
    %v8660 = vunpack.c.h.b16 %v8048
    %v8661 = vunpack.c.l.b16 %v8049
    %v8662 = vunpack.c.h.b16 %v8049
    %v8663 = vunpack.c.l.b16 %v8050
    %v8664 = vunpack.c.h.b16 %v8050
    %v8665 = vunpack.c.l.b16 %v8051
    %v8666 = vunpack.c.h.b16 %v8051
    %v8667 = vunpack.c.l.b16 %v8052
    %v8668 = vunpack.c.h.b16 %v8052
    %v8669 = vunpack.c.l.b16 %v8053
    %v8670 = vunpack.c.h.b16 %v8053
    %v8671 = vunpack.c.l.b16 %v8054
    %v8672 = vunpack.c.h.b16 %v8054
    %v8673 = vunpack.c.l.b16 %v8055
    %v8674 = vunpack.c.h.b16 %v8055
    %v8675 = vunpack.c.l.b16 %v8056
    %v8676 = vunpack.c.h.b16 %v8056
    %v8677 = vunpack.c.l.b16 %v8057
    %v8678 = vunpack.c.h.b16 %v8057
    %v8679 = vunpack.c.l.b16 %v8058
    %v8680 = vunpack.c.h.b16 %v8058
    %v8681 = vunpack.c.l.b16 %v8059
    %v8682 = vunpack.c.h.b16 %v8059
    %v8683 = vunpack.c.l.b16 %v8060
    %v8684 = vunpack.c.h.b16 %v8060
    %v8685 = vunpack.c.l.b16 %v8061
    %v8686 = vunpack.c.h.b16 %v8061
    %v8687 = vunpack.c.l.b16 %v8062
    %v8688 = vunpack.c.h.b16 %v8062
    %v8689 = vunpack.c.l.b16 %v8063
    %v8690 = vunpack.c.h.b16 %v8063
    %v8691 = vunpack.c.l.b16 %v8064
    %v8692 = vunpack.c.h.b16 %v8064
    %v8693 = vunpack.c.l.b16 %v8065
    %v8694 = vunpack.c.h.b16 %v8065
    %v8695 = vunpack.c.l.b16 %v8066
    %v8696 = vunpack.c.h.b16 %v8066
    %v8697 = vunpack.c.l.b16 %v8067
    %v8698 = vunpack.c.h.b16 %v8067
    %v8699 = vunpack.c.l.b16 %v8068
    %v8700 = vunpack.c.h.b16 %v8068
    %v8701 = vunpack.c.l.b16 %v8069
    %v8702 = vunpack.c.h.b16 %v8069
    %v8703 = vunpack.c.l.b16 %v8070
    %v8704 = vunpack.c.h.b16 %v8070
    %v8705 = vunpack.c.l.b16 %v8071
    %v8706 = vunpack.c.h.b16 %v8071
    %v8707 = vunpack.c.l.b16 %v8072
    %v8708 = vunpack.c.h.b16 %v8072
    %v8709 = vunpack.c.l.b16 %v8073
    %v8710 = vunpack.c.h.b16 %v8073
    %v8711 = vunpack.c.l.b16 %v8074
    %v8712 = vunpack.c.h.b16 %v8074
    %v8713 = vunpack.c.l.b16 %v8075
    %v8714 = vunpack.c.h.b16 %v8075
    %v8715 = vunpack.c.l.b16 %v8076
    %v8716 = vunpack.c.h.b16 %v8076
    %v8717 = vunpack.c.l.b16 %v8077
    %v8718 = vunpack.c.h.b16 %v8077
    %v8719 = vunpack.c.l.b16 %v8078
    %v8720 = vunpack.c.h.b16 %v8078
    %v8721 = vunpack.c.l.b16 %v8079
    %v8722 = vunpack.c.h.b16 %v8079
    %v8723 = vunpack.c.l.b16 %v8080
    %v8724 = vunpack.c.h.b16 %v8080
    %v8725 = vunpack.c.l.b16 %v8081
    %v8726 = vunpack.c.h.b16 %v8081
    %v8727 = vunpack.c.l.b16 %v8082
    %v8728 = vunpack.c.h.b16 %v8082
    %v8729 = vunpack.c.l.b16 %v8083
    %v8730 = vunpack.c.h.b16 %v8083
    %v8731 = vunpack.c.l.b16 %v8084
    %v8732 = vunpack.c.h.b16 %v8084
    %v8733 = vunpack.c.l.b16 %v8085
    %v8734 = vunpack.c.h.b16 %v8085
    %v8735 = vunpack.c.l.b16 %v8086
    %v8736 = vunpack.c.h.b16 %v8086
    %v8737 = vunpack.c.l.b16 %v8087
    %v8738 = vunpack.c.h.b16 %v8087
    %v8739 = vunpack.c.l.b16 %v8088
    %v8740 = vunpack.c.h.b16 %v8088
    %v8741 = vunpack.c.l.b16 %v8089
    %v8742 = vunpack.c.h.b16 %v8089
    %v8743 = vunpack.c.l.b16 %v8090
    %v8744 = vunpack.c.h.b16 %v8090
    %v8745 = vunpack.c.l.b16 %v8091
    %v8746 = vunpack.c.h.b16 %v8091
    %v8747 = vunpack.c.l.b16 %v8092
    %v8748 = vunpack.c.h.b16 %v8092
    %v8749 = vunpack.c.l.b16 %v8093
    %v8750 = vunpack.c.h.b16 %v8093
    %v8751 = vunpack.c.l.b16 %v8094
    %v8752 = vunpack.c.h.b16 %v8094
    %v8753 = vunpack.c.l.b16 %v8095
    %v8754 = vunpack.c.h.b16 %v8095
    %v8755 = vunpack.c.l.b16 %v8096
    %v8756 = vunpack.c.h.b16 %v8096
    %v8757 = vunpack.c.l.b16 %v8097
    %v8758 = vunpack.c.h.b16 %v8097
    %v8759 = vunpack.c.l.b16 %v8098
    %v8760 = vunpack.c.h.b16 %v8098
    %v8761 = vunpack.c.l.b16 %v8099
    %v8762 = vunpack.c.h.b16 %v8099
    %v8763 = vunpack.c.l.b16 %v8100
    %v8764 = vunpack.c.h.b16 %v8100
    %v8765 = vunpack.c.l.b16 %v8101
    %v8766 = vunpack.c.h.b16 %v8101
    %v8767 = vunpack.c.l.b16 %v8102
    %v8768 = vunpack.c.h.b16 %v8102
    %v8769 = vunpack.c.l.b16 %v8103
    %v8770 = vunpack.c.h.b16 %v8103
    %v8771 = vunpack.c.l.b16 %v8104
    %v8772 = vunpack.c.h.b16 %v8104
    %v8773 = vunpack.c.l.b16 %v8105
    %v8774 = vunpack.c.h.b16 %v8105
    %v8775 = vunpack.c.l.b16 %v8106
    %v8776 = vunpack.c.h.b16 %v8106
    %v8777 = vunpack.c.l.b16 %v8107
    %v8778 = vunpack.c.h.b16 %v8107
    %v8779 = vunpack.c.l.b16 %v8108
    %v8780 = vunpack.c.h.b16 %v8108
    %v8781 = vunpack.c.l.b16 %v8109
    %v8782 = vunpack.c.h.b16 %v8109
    %v8783 = vunpack.c.l.b16 %v8110
    %v8784 = vunpack.c.h.b16 %v8110
    %v8785 = vunpack.c.l.b16 %v8111
    %v8786 = vunpack.c.h.b16 %v8111
    %v8787 = vunpack.c.l.b16 %v8112
    %v8788 = vunpack.c.h.b16 %v8112
    %v8789 = vunpack.c.l.b16 %v8113
    %v8790 = vunpack.c.h.b16 %v8113
    %v8791 = vunpack.c.l.b16 %v8114
    %v8792 = vunpack.c.h.b16 %v8114
    %v8793 = vunpack.c.l.b16 %v8115
    %v8794 = vunpack.c.h.b16 %v8115
    %v8795 = vunpack.c.l.b16 %v8116
    %v8796 = vunpack.c.h.b16 %v8116
    %v8797 = vunpack.c.l.b16 %v8117
    %v8798 = vunpack.c.h.b16 %v8117
    %v8799 = vunpack.c.l.b16 %v8118
    %v8800 = vunpack.c.h.b16 %v8118
    %v8801 = vunpack.c.l.b16 %v8119
    %v8802 = vunpack.c.h.b16 %v8119
    %v8803 = vunpack.c.l.b16 %v8120
    %v8804 = vunpack.c.h.b16 %v8120
    %v8805 = vunpack.c.l.b16 %v8121
    %v8806 = vunpack.c.h.b16 %v8121
    %v8807 = vunpack.c.l.b16 %v8122
    %v8808 = vunpack.c.h.b16 %v8122
    %v8809 = vunpack.c.l.b16 %v8123
    %v8810 = vunpack.c.h.b16 %v8123
    %v8811 = vunpack.c.l.b16 %v8124
    %v8812 = vunpack.c.h.b16 %v8124
    %v8813 = vunpack.c.l.b16 %v8125
    %v8814 = vunpack.c.h.b16 %v8125
    %v8815 = vunpack.c.l.b16 %v8126
    %v8816 = vunpack.c.h.b16 %v8126
    %v8817 = vunpack.c.l.b16 %v8127
    %v8818 = vunpack.c.h.b16 %v8127
    %v8819 = vunpack.c.l.b16 %v8128
    %v8820 = vunpack.c.h.b16 %v8128
    %v8821 = vunpack.c.l.b16 %v8129
    %v8822 = vunpack.c.h.b16 %v8129
    %v8823 = vunpack.c.l.b16 %v8130
    %v8824 = vunpack.c.h.b16 %v8130
    %v8825 = vunpack.c.l.b16 %v8131
    %v8826 = vunpack.c.h.b16 %v8131
    %v8827 = vunpack.c.l.b16 %v8132
    %v8828 = vunpack.c.h.b16 %v8132
    %v8829 = vunpack.c.l.b16 %v8133
    %v8830 = vunpack.c.h.b16 %v8133
    %v8831 = vunpack.c.l.b16 %v8134
    %v8832 = vunpack.c.h.b16 %v8134
    %v8833 = vunpack.c.l.b16 %v8135
    %v8834 = vunpack.c.h.b16 %v8135
    %v8835 = vunpack.c.l.b16 %v8136
    %v8836 = vunpack.c.h.b16 %v8136
    %v8837 = vunpack.c.l.b16 %v8137
    %v8838 = vunpack.c.h.b16 %v8137
    %v8839 = vunpack.c.l.b16 %v8138
    %v8840 = vunpack.c.h.b16 %v8138
    %v8841 = vunpack.c.l.b16 %v8139
    %v8842 = vunpack.c.h.b16 %v8139
    %v8843 = vunpack.c.l.b16 %v8140
    %v8844 = vunpack.c.h.b16 %v8140
    %v8845 = vunpack.c.l.b16 %v8141
    %v8846 = vunpack.c.h.b16 %v8141
    %v8847 = vunpack.c.l.b16 %v8142
    %v8848 = vunpack.c.h.b16 %v8142
    %v8849 = vunpack.c.l.b16 %v8143
    %v8850 = vunpack.c.h.b16 %v8143
    %v8851 = vunpack.c.l.b16 %v8144
    %v8852 = vunpack.c.h.b16 %v8144
    %v8853 = vunpack.c.l.b16 %v8145
    %v8854 = vunpack.c.h.b16 %v8145
    %v8855 = vunpack.c.l.b16 %v8146
    %v8856 = vunpack.c.h.b16 %v8146
    %v8857 = vunpack.c.l.b16 %v8147
    %v8858 = vunpack.c.h.b16 %v8147
    %v8859 = vunpack.c.l.b16 %v8148
    %v8860 = vunpack.c.h.b16 %v8148
    %v8861 = vunpack.c.l.b16 %v8149
    %v8862 = vunpack.c.h.b16 %v8149
    %v8863 = vunpack.c.l.b16 %v8150
    %v8864 = vunpack.c.h.b16 %v8150
    %v8865 = vunpack.c.l.b16 %v8151
    %v8866 = vunpack.c.h.b16 %v8151
    %v8867 = vunpack.c.l.b16 %v8152
    %v8868 = vunpack.c.h.b16 %v8152
    %v8869 = vunpack.c.l.b16 %v8153
    %v8870 = vunpack.c.h.b16 %v8153
    %v8871 = vunpack.c.l.b16 %v8154
    %v8872 = vunpack.c.h.b16 %v8154
    %v8873 = vunpack.c.l.b16 %v8155
    %v8874 = vunpack.c.h.b16 %v8155
    %v8875 = vunpack.c.l.b16 %v8156
    %v8876 = vunpack.c.h.b16 %v8156
    %v8877 = vunpack.c.l.b16 %v8157
    %v8878 = vunpack.c.h.b16 %v8157
    %v8879 = vunpack.c.l.b16 %v8158
    %v8880 = vunpack.c.h.b16 %v8158
    %v8881 = vunpack.c.l.b16 %v8159
    %v8882 = vunpack.c.h.b16 %v8159
    %v8883 = vunpack.c.l.b16 %v8160
    %v8884 = vunpack.c.h.b16 %v8160
    %v8885 = vunpack.c.l.b16 %v8161
    %v8886 = vunpack.c.h.b16 %v8161
    %v8887 = vunpack.c.l.b16 %v8162
    %v8888 = vunpack.c.h.b16 %v8162
    %v8889 = vunpack.c.l.b16 %v8163
    %v8890 = vunpack.c.h.b16 %v8163
    %v8891 = vunpack.c.l.b16 %v8164
    %v8892 = vunpack.c.h.b16 %v8164
    %v8893 = vunpack.c.l.b16 %v8165
    %v8894 = vunpack.c.h.b16 %v8165
    %v8895 = vunpack.c.l.b16 %v8166
    %v8896 = vunpack.c.h.b16 %v8166
    %v8897 = vunpack.c.l.b16 %v8167
    %v8898 = vunpack.c.h.b16 %v8167
    %v8899 = vunpack.c.l.b16 %v8168
    %v8900 = vunpack.c.h.b16 %v8168
    %v8901 = vunpack.c.l.b16 %v8169
    %v8902 = vunpack.c.h.b16 %v8169
    %v8903 = vunpack.c.l.b16 %v8170
    %v8904 = vunpack.c.h.b16 %v8170
    %v8905 = vunpack.c.l.b16 %v8171
    %v8906 = vunpack.c.h.b16 %v8171
    %v8907 = vunpack.c.l.b16 %v8172
    %v8908 = vunpack.c.h.b16 %v8172
    %v8909 = vunpack.c.l.b16 %v8173
    %v8910 = vunpack.c.h.b16 %v8173
    %v8911 = vunpack.c.l.b16 %v8174
    %v8912 = vunpack.c.h.b16 %v8174
    %v8913 = vunpack.c.l.b16 %v8175
    %v8914 = vunpack.c.h.b16 %v8175
    %v8915 = vunpack.c.l.b16 %v8176
    %v8916 = vunpack.c.h.b16 %v8176
    %v8917 = vunpack.c.l.b16 %v8177
    %v8918 = vunpack.c.h.b16 %v8177
    %v8919 = vunpack.c.l.b16 %v8178
    %v8920 = vunpack.c.h.b16 %v8178
    %v8921 = vunpack.c.l.b16 %v8179
    %v8922 = vunpack.c.h.b16 %v8179
    %v8923 = vunpack.c.l.b16 %v8180
    %v8924 = vunpack.c.h.b16 %v8180
    %v8925 = vunpack.c.l.b16 %v8181
    %v8926 = vunpack.c.h.b16 %v8181
    %v8927 = vunpack.c.l.b16 %v8182
    %v8928 = vunpack.c.h.b16 %v8182
    %v8929 = vunpack.c.l.b16 %v8183
    %v8930 = vunpack.c.h.b16 %v8183
    %v8931 = vunpack.c.l.b16 %v8184
    %v8932 = vunpack.c.h.b16 %v8184
    %v8933 = vunpack.c.l.b16 %v8185
    %v8934 = vunpack.c.h.b16 %v8185
    %v8935 = vunpack.c.l.b16 %v8186
    %v8936 = vunpack.c.h.b16 %v8186
    %v8937 = vunpack.c.l.b16 %v8187
    %v8938 = vunpack.c.h.b16 %v8187
    %v8939 = vunpack.c.l.b16 %v8188
    %v8940 = vunpack.c.h.b16 %v8188
    %v8941 = vunpack.c.l.b16 %v8189
    %v8942 = vunpack.c.h.b16 %v8189
    %v8943 = vunpack.c.l.b16 %v8190
    %v8944 = vunpack.c.h.b16 %v8190
    %v8945 = vunpack.c.l.b16 %v8191
    %v8946 = vunpack.c.h.b16 %v8191
    %v8947 = vunpack.c.l.b16 %v8192
    %v8948 = vunpack.c.h.b16 %v8192
    %v8949 = vunpack.c.l.b16 %v8193
    %v8950 = vunpack.c.h.b16 %v8193
    %v8951 = vunpack.c.l.b16 %v8194
    %v8952 = vunpack.c.h.b16 %v8194
    %v8953 = vunpack.c.l.b16 %v8195
    %v8954 = vunpack.c.h.b16 %v8195
    %v8955 = vunpack.c.l.b16 %v8196
    %v8956 = vunpack.c.h.b16 %v8196
    %v8957 = vunpack.c.l.b16 %v8197
    %v8958 = vunpack.c.h.b16 %v8197
    %v8959 = vunpack.c.l.b16 %v8198
    %v8960 = vunpack.c.h.b16 %v8198
    %v8961 = vunpack.c.l.b16 %v8199
    %v8962 = vunpack.c.h.b16 %v8199
    %v8963 = vunpack.c.l.b16 %v8200
    %v8964 = vunpack.c.h.b16 %v8200
    %v8965 = vunpack.c.l.b16 %v8201
    %v8966 = vunpack.c.h.b16 %v8201
    %v8967 = vunpack.c.l.b16 %v8202
    %v8968 = vunpack.c.h.b16 %v8202
    %v8969 = vunpack.c.l.b16 %v8203
    %v8970 = vunpack.c.h.b16 %v8203
    %v8971 = vunpack.c.l.b16 %v8204
    %v8972 = vunpack.c.h.b16 %v8204
    %v8973 = vpack.c.b16 %v8465, %v8461
    %v8974 = vpack.c.b16 %v8466, %v8462
    %v8975 = vpack.c.b16 %v8467, %v8463
    %v8976 = vpack.c.b16 %v8468, %v8464
    %v8977 = vpack.c.b16 %v8473, %v8469
    %v8978 = vpack.c.b16 %v8474, %v8470
    %v8979 = vpack.c.b16 %v8475, %v8471
    %v8980 = vpack.c.b16 %v8476, %v8472
    %v8981 = vpack.c.b16 %v8481, %v8477
    %v8982 = vpack.c.b16 %v8482, %v8478
    %v8983 = vpack.c.b16 %v8483, %v8479
    %v8984 = vpack.c.b16 %v8484, %v8480
    %v8985 = vpack.c.b16 %v8489, %v8485
    %v8986 = vpack.c.b16 %v8490, %v8486
    %v8987 = vpack.c.b16 %v8491, %v8487
    %v8988 = vpack.c.b16 %v8492, %v8488
    %v8989 = vpack.c.b16 %v8497, %v8493
    %v8990 = vpack.c.b16 %v8498, %v8494
    %v8991 = vpack.c.b16 %v8499, %v8495
    %v8992 = vpack.c.b16 %v8500, %v8496
    %v8993 = vpack.c.b16 %v8505, %v8501
    %v8994 = vpack.c.b16 %v8506, %v8502
    %v8995 = vpack.c.b16 %v8507, %v8503
    %v8996 = vpack.c.b16 %v8508, %v8504
    %v8997 = vpack.c.b16 %v8513, %v8509
    %v8998 = vpack.c.b16 %v8514, %v8510
    %v8999 = vpack.c.b16 %v8515, %v8511
    %v9000 = vpack.c.b16 %v8516, %v8512
    %v9001 = vpack.c.b16 %v8521, %v8517
    %v9002 = vpack.c.b16 %v8522, %v8518
    %v9003 = vpack.c.b16 %v8523, %v8519
    %v9004 = vpack.c.b16 %v8524, %v8520
    %v9005 = vpack.c.b16 %v8529, %v8525
    %v9006 = vpack.c.b16 %v8530, %v8526
    %v9007 = vpack.c.b16 %v8531, %v8527
    %v9008 = vpack.c.b16 %v8532, %v8528
    %v9009 = vpack.c.b16 %v8537, %v8533
    %v9010 = vpack.c.b16 %v8538, %v8534
    %v9011 = vpack.c.b16 %v8539, %v8535
    %v9012 = vpack.c.b16 %v8540, %v8536
    %v9013 = vpack.c.b16 %v8545, %v8541
    %v9014 = vpack.c.b16 %v8546, %v8542
    %v9015 = vpack.c.b16 %v8547, %v8543
    %v9016 = vpack.c.b16 %v8548, %v8544
    %v9017 = vpack.c.b16 %v8553, %v8549
    %v9018 = vpack.c.b16 %v8554, %v8550
    %v9019 = vpack.c.b16 %v8555, %v8551
    %v9020 = vpack.c.b16 %v8556, %v8552
    %v9021 = vpack.c.b16 %v8561, %v8557
    %v9022 = vpack.c.b16 %v8562, %v8558
    %v9023 = vpack.c.b16 %v8563, %v8559
    %v9024 = vpack.c.b16 %v8564, %v8560
    %v9025 = vpack.c.b16 %v8569, %v8565
    %v9026 = vpack.c.b16 %v8570, %v8566
    %v9027 = vpack.c.b16 %v8571, %v8567
    %v9028 = vpack.c.b16 %v8572, %v8568
    %v9029 = vpack.c.b16 %v8577, %v8573
    %v9030 = vpack.c.b16 %v8578, %v8574
    %v9031 = vpack.c.b16 %v8579, %v8575
    %v9032 = vpack.c.b16 %v8580, %v8576
    %v9033 = vpack.c.b16 %v8585, %v8581
    %v9034 = vpack.c.b16 %v8586, %v8582
    %v9035 = vpack.c.b16 %v8587, %v8583
    %v9036 = vpack.c.b16 %v8588, %v8584
    %v9037 = vpack.c.b16 %v8593, %v8589
    %v9038 = vpack.c.b16 %v8594, %v8590
    %v9039 = vpack.c.b16 %v8595, %v8591
    %v9040 = vpack.c.b16 %v8596, %v8592
    %v9041 = vpack.c.b16 %v8601, %v8597
    %v9042 = vpack.c.b16 %v8602, %v8598
    %v9043 = vpack.c.b16 %v8603, %v8599
    %v9044 = vpack.c.b16 %v8604, %v8600
    %v9045 = vpack.c.b16 %v8609, %v8605
    %v9046 = vpack.c.b16 %v8610, %v8606
    %v9047 = vpack.c.b16 %v8611, %v8607
    %v9048 = vpack.c.b16 %v8612, %v8608
    %v9049 = vpack.c.b16 %v8617, %v8613
    %v9050 = vpack.c.b16 %v8618, %v8614
    %v9051 = vpack.c.b16 %v8619, %v8615
    %v9052 = vpack.c.b16 %v8620, %v8616
    %v9053 = vpack.c.b16 %v8625, %v8621
    %v9054 = vpack.c.b16 %v8626, %v8622
    %v9055 = vpack.c.b16 %v8627, %v8623
    %v9056 = vpack.c.b16 %v8628, %v8624
    %v9057 = vpack.c.b16 %v8633, %v8629
    %v9058 = vpack.c.b16 %v8634, %v8630
    %v9059 = vpack.c.b16 %v8635, %v8631
    %v9060 = vpack.c.b16 %v8636, %v8632
    %v9061 = vpack.c.b16 %v8641, %v8637
    %v9062 = vpack.c.b16 %v8642, %v8638
    %v9063 = vpack.c.b16 %v8643, %v8639
    %v9064 = vpack.c.b16 %v8644, %v8640
    %v9065 = vpack.c.b16 %v8649, %v8645
    %v9066 = vpack.c.b16 %v8650, %v8646
    %v9067 = vpack.c.b16 %v8651, %v8647
    %v9068 = vpack.c.b16 %v8652, %v8648
    %v9069 = vpack.c.b16 %v8657, %v8653
    %v9070 = vpack.c.b16 %v8658, %v8654
    %v9071 = vpack.c.b16 %v8659, %v8655
    %v9072 = vpack.c.b16 %v8660, %v8656
    %v9073 = vpack.c.b16 %v8665, %v8661
    %v9074 = vpack.c.b16 %v8666, %v8662
    %v9075 = vpack.c.b16 %v8667, %v8663
    %v9076 = vpack.c.b16 %v8668, %v8664
    %v9077 = vpack.c.b16 %v8673, %v8669
    %v9078 = vpack.c.b16 %v8674, %v8670
    %v9079 = vpack.c.b16 %v8675, %v8671
    %v9080 = vpack.c.b16 %v8676, %v8672
    %v9081 = vpack.c.b16 %v8681, %v8677
    %v9082 = vpack.c.b16 %v8682, %v8678
    %v9083 = vpack.c.b16 %v8683, %v8679
    %v9084 = vpack.c.b16 %v8684, %v8680
    %v9085 = vpack.c.b16 %v8689, %v8685
    %v9086 = vpack.c.b16 %v8690, %v8686
    %v9087 = vpack.c.b16 %v8691, %v8687
    %v9088 = vpack.c.b16 %v8692, %v8688
    %v9089 = vpack.c.b16 %v8697, %v8693
    %v9090 = vpack.c.b16 %v8698, %v8694
    %v9091 = vpack.c.b16 %v8699, %v8695
    %v9092 = vpack.c.b16 %v8700, %v8696
    %v9093 = vpack.c.b16 %v8705, %v8701
    %v9094 = vpack.c.b16 %v8706, %v8702
    %v9095 = vpack.c.b16 %v8707, %v8703
    %v9096 = vpack.c.b16 %v8708, %v8704
    %v9097 = vpack.c.b16 %v8713, %v8709
    %v9098 = vpack.c.b16 %v8714, %v8710
    %v9099 = vpack.c.b16 %v8715, %v8711
    %v9100 = vpack.c.b16 %v8716, %v8712
    %v9101 = vpack.c.b16 %v8721, %v8717
    %v9102 = vpack.c.b16 %v8722, %v8718
    %v9103 = vpack.c.b16 %v8723, %v8719
    %v9104 = vpack.c.b16 %v8724, %v8720
    %v9105 = vpack.c.b16 %v8729, %v8725
    %v9106 = vpack.c.b16 %v8730, %v8726
    %v9107 = vpack.c.b16 %v8731, %v8727
    %v9108 = vpack.c.b16 %v8732, %v8728
    %v9109 = vpack.c.b16 %v8737, %v8733
    %v9110 = vpack.c.b16 %v8738, %v8734
    %v9111 = vpack.c.b16 %v8739, %v8735
    %v9112 = vpack.c.b16 %v8740, %v8736
    %v9113 = vpack.c.b16 %v8745, %v8741
    %v9114 = vpack.c.b16 %v8746, %v8742
    %v9115 = vpack.c.b16 %v8747, %v8743
    %v9116 = vpack.c.b16 %v8748, %v8744
    %v9117 = vpack.c.b16 %v8753, %v8749
    %v9118 = vpack.c.b16 %v8754, %v8750
    %v9119 = vpack.c.b16 %v8755, %v8751
    %v9120 = vpack.c.b16 %v8756, %v8752
    %v9121 = vpack.c.b16 %v8761, %v8757
    %v9122 = vpack.c.b16 %v8762, %v8758
    %v9123 = vpack.c.b16 %v8763, %v8759
    %v9124 = vpack.c.b16 %v8764, %v8760
    %v9125 = vpack.c.b16 %v8769, %v8765
    %v9126 = vpack.c.b16 %v8770, %v8766
    %v9127 = vpack.c.b16 %v8771, %v8767
    %v9128 = vpack.c.b16 %v8772, %v8768
    %v9129 = vpack.c.b16 %v8777, %v8773
    %v9130 = vpack.c.b16 %v8778, %v8774
    %v9131 = vpack.c.b16 %v8779, %v8775
    %v9132 = vpack.c.b16 %v8780, %v8776
    %v9133 = vpack.c.b16 %v8785, %v8781
    %v9134 = vpack.c.b16 %v8786, %v8782
    %v9135 = vpack.c.b16 %v8787, %v8783
    %v9136 = vpack.c.b16 %v8788, %v8784
    %v9137 = vpack.c.b16 %v8793, %v8789
    %v9138 = vpack.c.b16 %v8794, %v8790
    %v9139 = vpack.c.b16 %v8795, %v8791
    %v9140 = vpack.c.b16 %v8796, %v8792
    %v9141 = vpack.c.b16 %v8801, %v8797
    %v9142 = vpack.c.b16 %v8802, %v8798
    %v9143 = vpack.c.b16 %v8803, %v8799
    %v9144 = vpack.c.b16 %v8804, %v8800
    %v9145 = vpack.c.b16 %v8809, %v8805
    %v9146 = vpack.c.b16 %v8810, %v8806
    %v9147 = vpack.c.b16 %v8811, %v8807
    %v9148 = vpack.c.b16 %v8812, %v8808
    %v9149 = vpack.c.b16 %v8817, %v8813
    %v9150 = vpack.c.b16 %v8818, %v8814
    %v9151 = vpack.c.b16 %v8819, %v8815
    %v9152 = vpack.c.b16 %v8820, %v8816
    %v9153 = vpack.c.b16 %v8825, %v8821
    %v9154 = vpack.c.b16 %v8826, %v8822
    %v9155 = vpack.c.b16 %v8827, %v8823
    %v9156 = vpack.c.b16 %v8828, %v8824
    %v9157 = vpack.c.b16 %v8833, %v8829
    %v9158 = vpack.c.b16 %v8834, %v8830
    %v9159 = vpack.c.b16 %v8835, %v8831
    %v9160 = vpack.c.b16 %v8836, %v8832
    %v9161 = vpack.c.b16 %v8841, %v8837
    %v9162 = vpack.c.b16 %v8842, %v8838
    %v9163 = vpack.c.b16 %v8843, %v8839
    %v9164 = vpack.c.b16 %v8844, %v8840
    %v9165 = vpack.c.b16 %v8849, %v8845
    %v9166 = vpack.c.b16 %v8850, %v8846
    %v9167 = vpack.c.b16 %v8851, %v8847
    %v9168 = vpack.c.b16 %v8852, %v8848
    %v9169 = vpack.c.b16 %v8857, %v8853
    %v9170 = vpack.c.b16 %v8858, %v8854
    %v9171 = vpack.c.b16 %v8859, %v8855
    %v9172 = vpack.c.b16 %v8860, %v8856
    %v9173 = vpack.c.b16 %v8865, %v8861
    %v9174 = vpack.c.b16 %v8866, %v8862
    %v9175 = vpack.c.b16 %v8867, %v8863
    %v9176 = vpack.c.b16 %v8868, %v8864
    %v9177 = vpack.c.b16 %v8873, %v8869
    %v9178 = vpack.c.b16 %v8874, %v8870
    %v9179 = vpack.c.b16 %v8875, %v8871
    %v9180 = vpack.c.b16 %v8876, %v8872
    %v9181 = vpack.c.b16 %v8881, %v8877
    %v9182 = vpack.c.b16 %v8882, %v8878
    %v9183 = vpack.c.b16 %v8883, %v8879
    %v9184 = vpack.c.b16 %v8884, %v8880
    %v9185 = vpack.c.b16 %v8889, %v8885
    %v9186 = vpack.c.b16 %v8890, %v8886
    %v9187 = vpack.c.b16 %v8891, %v8887
    %v9188 = vpack.c.b16 %v8892, %v8888
    %v9189 = vpack.c.b16 %v8897, %v8893
    %v9190 = vpack.c.b16 %v8898, %v8894
    %v9191 = vpack.c.b16 %v8899, %v8895
    %v9192 = vpack.c.b16 %v8900, %v8896
    %v9193 = vpack.c.b16 %v8905, %v8901
    %v9194 = vpack.c.b16 %v8906, %v8902
    %v9195 = vpack.c.b16 %v8907, %v8903
    %v9196 = vpack.c.b16 %v8908, %v8904
    %v9197 = vpack.c.b16 %v8913, %v8909
    %v9198 = vpack.c.b16 %v8914, %v8910
    %v9199 = vpack.c.b16 %v8915, %v8911
    %v9200 = vpack.c.b16 %v8916, %v8912
    %v9201 = vpack.c.b16 %v8921, %v8917
    %v9202 = vpack.c.b16 %v8922, %v8918
    %v9203 = vpack.c.b16 %v8923, %v8919
    %v9204 = vpack.c.b16 %v8924, %v8920
    %v9205 = vpack.c.b16 %v8929, %v8925
    %v9206 = vpack.c.b16 %v8930, %v8926
    %v9207 = vpack.c.b16 %v8931, %v8927
    %v9208 = vpack.c.b16 %v8932, %v8928
    %v9209 = vpack.c.b16 %v8937, %v8933
    %v9210 = vpack.c.b16 %v8938, %v8934
    %v9211 = vpack.c.b16 %v8939, %v8935
    %v9212 = vpack.c.b16 %v8940, %v8936
    %v9213 = vpack.c.b16 %v8945, %v8941
    %v9214 = vpack.c.b16 %v8946, %v8942
    %v9215 = vpack.c.b16 %v8947, %v8943
    %v9216 = vpack.c.b16 %v8948, %v8944
    %v9217 = vpack.c.b16 %v8953, %v8949
    %v9218 = vpack.c.b16 %v8954, %v8950
    %v9219 = vpack.c.b16 %v8955, %v8951
    %v9220 = vpack.c.b16 %v8956, %v8952
    %v9221 = vpack.c.b16 %v8961, %v8957
    %v9222 = vpack.c.b16 %v8962, %v8958
    %v9223 = vpack.c.b16 %v8963, %v8959
    %v9224 = vpack.c.b16 %v8964, %v8960
    %v9225 = vpack.c.b16 %v8969, %v8965
    %v9226 = vpack.c.b16 %v8970, %v8966
    %v9227 = vpack.c.b16 %v8971, %v8967
    %v9228 = vpack.c.b16 %v8972, %v8968
    %9485 = vmatpush.bf16.msra.mxu0 %v9001
    %9486 = vmatpush.bf16.msra.mxu0 %v8997
    %9487 = vmatpush.bf16.msra.mxu0 %v8993
    %9488 = vmatpush.bf16.msra.mxu0 %v8989
    %9489 = vmatpush.bf16.msra.mxu0 %v8985
    %9490 = vmatpush.bf16.msra.mxu0 %v8981
    %9491 = vmatpush.bf16.msra.mxu0 %v8977
    %9492 = vmatpush.bf16.msra.mxu0 %v8973
    %9493 = vmatmul.bf16.gmra.mxu0 %v7941
    %v9494 = vpop.f32.mrf.mxu0
    %v9495 = vadd.f32 0.0, %v9494
    %v9496 = vpop.f32.mrf.mxu0
    %9497 = vdwg.mxu0
    %9498 = vmatpush.bf16.msra.mxu0 %v9033
    %9499 = vmatpush.bf16.msra.mxu0 %v9029
    %9500 = vmatpush.bf16.msra.mxu0 %v9025
    %9501 = vmatpush.bf16.msra.mxu0 %v9021
    %9502 = vmatpush.bf16.msra.mxu0 %v9017
    %9503 = vmatpush.bf16.msra.mxu0 %v9013
    %9504 = vmatpush.bf16.msra.mxu0 %v9009
    %9505 = vmatpush.bf16.msra.mxu0 %v9005
    %9506 = vmatmul.bf16.gmra.mxu0 %v7942
    %v9507 = vpop.f32.mrf.mxu0
    %v9508 = vadd.f32 %v9495, %v9507
    %v9509 = vpop.f32.mrf.mxu0
    %9510 = vdwg.mxu0
    %9511 = vmatpush.bf16.msra.mxu0 %v9065
    %9512 = vmatpush.bf16.msra.mxu0 %v9061
    %9513 = vmatpush.bf16.msra.mxu0 %v9057
    %9514 = vmatpush.bf16.msra.mxu0 %v9053
    %9515 = vmatpush.bf16.msra.mxu0 %v9049
    %9516 = vmatpush.bf16.msra.mxu0 %v9045
    %9517 = vmatpush.bf16.msra.mxu0 %v9041
    %9518 = vmatpush.bf16.msra.mxu0 %v9037
    %9519 = vmatmul.bf16.gmra.mxu0 %v7943
    %v9520 = vpop.f32.mrf.mxu0
    %v9521 = vadd.f32 %v9508, %v9520
    %v9522 = vpop.f32.mrf.mxu0
    %9523 = vdwg.mxu0
    %9524 = vmatpush.bf16.msra.mxu0 %v9097
    %9525 = vmatpush.bf16.msra.mxu0 %v9093
    %9526 = vmatpush.bf16.msra.mxu0 %v9089
    %9527 = vmatpush.bf16.msra.mxu0 %v9085
    %9528 = vmatpush.bf16.msra.mxu0 %v9081
    %9529 = vmatpush.bf16.msra.mxu0 %v9077
    %9530 = vmatpush.bf16.msra.mxu0 %v9073
    %9531 = vmatpush.bf16.msra.mxu0 %v9069
    %9532 = vmatmul.bf16.gmra.mxu0 %v7944
    %v9533 = vpop.f32.mrf.mxu0
    %v9534 = vadd.f32 %v9521, %v9533
    %v9535 = vpop.f32.mrf.mxu0
    %9536 = vdwg.mxu0
    %9537 = vmatpush.bf16.msra.mxu0 %v9129
    %9538 = vmatpush.bf16.msra.mxu0 %v9125
    %9539 = vmatpush.bf16.msra.mxu0 %v9121
    %9540 = vmatpush.bf16.msra.mxu0 %v9117
    %9541 = vmatpush.bf16.msra.mxu0 %v9113
    %9542 = vmatpush.bf16.msra.mxu0 %v9109
    %9543 = vmatpush.bf16.msra.mxu0 %v9105
    %9544 = vmatpush.bf16.msra.mxu0 %v9101
    %9545 = vmatmul.bf16.gmra.mxu0 %v7945
    %v9546 = vpop.f32.mrf.mxu0
    %v9547 = vadd.f32 %v9534, %v9546
    %v9548 = vpop.f32.mrf.mxu0
    %9549 = vdwg.mxu0
    %9550 = vmatpush.bf16.msra.mxu0 %v9161
    %9551 = vmatpush.bf16.msra.mxu0 %v9157
    %9552 = vmatpush.bf16.msra.mxu0 %v9153
    %9553 = vmatpush.bf16.msra.mxu0 %v9149
    %9554 = vmatpush.bf16.msra.mxu0 %v9145
    %9555 = vmatpush.bf16.msra.mxu0 %v9141
    %9556 = vmatpush.bf16.msra.mxu0 %v9137
    %9557 = vmatpush.bf16.msra.mxu0 %v9133
    %9558 = vmatmul.bf16.gmra.mxu0 %v7946
    %v9559 = vpop.f32.mrf.mxu0
    %v9560 = vadd.f32 %v9547, %v9559
    %v9561 = vpop.f32.mrf.mxu0
    %9562 = vdwg.mxu0
    %9563 = vmatpush.bf16.msra.mxu0 %v9193
    %9564 = vmatpush.bf16.msra.mxu0 %v9189
    %9565 = vmatpush.bf16.msra.mxu0 %v9185
    %9566 = vmatpush.bf16.msra.mxu0 %v9181
    %9567 = vmatpush.bf16.msra.mxu0 %v9177
    %9568 = vmatpush.bf16.msra.mxu0 %v9173
    %9569 = vmatpush.bf16.msra.mxu0 %v9169
    %9570 = vmatpush.bf16.msra.mxu0 %v9165
    %9571 = vmatmul.bf16.gmra.mxu0 %v7947
    %v9572 = vpop.f32.mrf.mxu0
    %v9573 = vadd.f32 %v9560, %v9572
    %v9574 = vpop.f32.mrf.mxu0
    %9575 = vdwg.mxu0
    %9576 = vmatpush.bf16.msra.mxu0 %v9225
    %9577 = vmatpush.bf16.msra.mxu0 %v9221
    %9578 = vmatpush.bf16.msra.mxu0 %v9217
    %9579 = vmatpush.bf16.msra.mxu0 %v9213
    %9580 = vmatpush.bf16.msra.mxu0 %v9209
    %9581 = vmatpush.bf16.msra.mxu0 %v9205
    %9582 = vmatpush.bf16.msra.mxu0 %v9201
    %9583 = vmatpush.bf16.msra.mxu0 %v9197
    %9584 = vmatmul.bf16.gmra.mxu0 %v7948
    %v9585 = vpop.f32.mrf.mxu0
    %v9586 = vadd.f32 %v9573, %v9585
    %v9587 = vpop.f32.mrf.mxu0
    %9588 = vdwg.mxu0
    %9589 = vmatpush.bf16.msra.mxu0 %v9002
    %9590 = vmatpush.bf16.msra.mxu0 %v8998
    %9591 = vmatpush.bf16.msra.mxu0 %v8994
    %9592 = vmatpush.bf16.msra.mxu0 %v8990
    %9593 = vmatpush.bf16.msra.mxu0 %v8986
    %9594 = vmatpush.bf16.msra.mxu0 %v8982
    %9595 = vmatpush.bf16.msra.mxu0 %v8978
    %9596 = vmatpush.bf16.msra.mxu0 %v8974
    %9597 = vmatmul.bf16.gmra.mxu0 %v7941
    %v9598 = vpop.f32.mrf.mxu0
    %v9599 = vadd.f32 0.0, %v9598
    %v9600 = vpop.f32.mrf.mxu0
    %9601 = vdwg.mxu0
    %9602 = vmatpush.bf16.msra.mxu0 %v9034
    %9603 = vmatpush.bf16.msra.mxu0 %v9030
    %9604 = vmatpush.bf16.msra.mxu0 %v9026
    %9605 = vmatpush.bf16.msra.mxu0 %v9022
    %9606 = vmatpush.bf16.msra.mxu0 %v9018
    %9607 = vmatpush.bf16.msra.mxu0 %v9014
    %9608 = vmatpush.bf16.msra.mxu0 %v9010
    %9609 = vmatpush.bf16.msra.mxu0 %v9006
    %9610 = vmatmul.bf16.gmra.mxu0 %v7942
    %v9611 = vpop.f32.mrf.mxu0
    %v9612 = vadd.f32 %v9599, %v9611
    %v9613 = vpop.f32.mrf.mxu0
    %9614 = vdwg.mxu0
    %9615 = vmatpush.bf16.msra.mxu0 %v9066
    %9616 = vmatpush.bf16.msra.mxu0 %v9062
    %9617 = vmatpush.bf16.msra.mxu0 %v9058
    %9618 = vmatpush.bf16.msra.mxu0 %v9054
    %9619 = vmatpush.bf16.msra.mxu0 %v9050
    %9620 = vmatpush.bf16.msra.mxu0 %v9046
    %9621 = vmatpush.bf16.msra.mxu0 %v9042
    %9622 = vmatpush.bf16.msra.mxu0 %v9038
    %9623 = vmatmul.bf16.gmra.mxu0 %v7943
    %v9624 = vpop.f32.mrf.mxu0
    %v9625 = vadd.f32 %v9612, %v9624
    %v9626 = vpop.f32.mrf.mxu0
    %9627 = vdwg.mxu0
    %9628 = vmatpush.bf16.msra.mxu0 %v9098
    %9629 = vmatpush.bf16.msra.mxu0 %v9094
    %9630 = vmatpush.bf16.msra.mxu0 %v9090
    %9631 = vmatpush.bf16.msra.mxu0 %v9086
    %9632 = vmatpush.bf16.msra.mxu0 %v9082
    %9633 = vmatpush.bf16.msra.mxu0 %v9078
    %9634 = vmatpush.bf16.msra.mxu0 %v9074
    %9635 = vmatpush.bf16.msra.mxu0 %v9070
    %9636 = vmatmul.bf16.gmra.mxu0 %v7944
    %v9637 = vpop.f32.mrf.mxu0
    %v9638 = vadd.f32 %v9625, %v9637
    %v9639 = vpop.f32.mrf.mxu0
    %9640 = vdwg.mxu0
    %9641 = vmatpush.bf16.msra.mxu0 %v9130
    %9642 = vmatpush.bf16.msra.mxu0 %v9126
    %9643 = vmatpush.bf16.msra.mxu0 %v9122
    %9644 = vmatpush.bf16.msra.mxu0 %v9118
    %9645 = vmatpush.bf16.msra.mxu0 %v9114
    %9646 = vmatpush.bf16.msra.mxu0 %v9110
    %9647 = vmatpush.bf16.msra.mxu0 %v9106
    %9648 = vmatpush.bf16.msra.mxu0 %v9102
    %9649 = vmatmul.bf16.gmra.mxu0 %v7945
    %v9650 = vpop.f32.mrf.mxu0
    %v9651 = vadd.f32 %v9638, %v9650
    %v9652 = vpop.f32.mrf.mxu0
    %9653 = vdwg.mxu0
    %9654 = vmatpush.bf16.msra.mxu0 %v9162
    %9655 = vmatpush.bf16.msra.mxu0 %v9158
    %9656 = vmatpush.bf16.msra.mxu0 %v9154
    %9657 = vmatpush.bf16.msra.mxu0 %v9150
    %9658 = vmatpush.bf16.msra.mxu0 %v9146
    %9659 = vmatpush.bf16.msra.mxu0 %v9142
    %9660 = vmatpush.bf16.msra.mxu0 %v9138
    %9661 = vmatpush.bf16.msra.mxu0 %v9134
    %9662 = vmatmul.bf16.gmra.mxu0 %v7946
    %v9663 = vpop.f32.mrf.mxu0
    %v9664 = vadd.f32 %v9651, %v9663
    %v9665 = vpop.f32.mrf.mxu0
    %9666 = vdwg.mxu0
    %9667 = vmatpush.bf16.msra.mxu0 %v9194
    %9668 = vmatpush.bf16.msra.mxu0 %v9190
    %9669 = vmatpush.bf16.msra.mxu0 %v9186
    %9670 = vmatpush.bf16.msra.mxu0 %v9182
    %9671 = vmatpush.bf16.msra.mxu0 %v9178
    %9672 = vmatpush.bf16.msra.mxu0 %v9174
    %9673 = vmatpush.bf16.msra.mxu0 %v9170
    %9674 = vmatpush.bf16.msra.mxu0 %v9166
    %9675 = vmatmul.bf16.gmra.mxu0 %v7947
    %v9676 = vpop.f32.mrf.mxu0
    %v9677 = vadd.f32 %v9664, %v9676
    %v9678 = vpop.f32.mrf.mxu0
    %9679 = vdwg.mxu0
    %9680 = vmatpush.bf16.msra.mxu0 %v9226
    %9681 = vmatpush.bf16.msra.mxu0 %v9222
    %9682 = vmatpush.bf16.msra.mxu0 %v9218
    %9683 = vmatpush.bf16.msra.mxu0 %v9214
    %9684 = vmatpush.bf16.msra.mxu0 %v9210
    %9685 = vmatpush.bf16.msra.mxu0 %v9206
    %9686 = vmatpush.bf16.msra.mxu0 %v9202
    %9687 = vmatpush.bf16.msra.mxu0 %v9198
    %9688 = vmatmul.bf16.gmra.mxu0 %v7948
    %v9689 = vpop.f32.mrf.mxu0
    %v9690 = vadd.f32 %v9677, %v9689
    %v9691 = vpop.f32.mrf.mxu0
    %9692 = vdwg.mxu0
    %9693 = vmatpush.bf16.msra.mxu0 %v9003
    %9694 = vmatpush.bf16.msra.mxu0 %v8999
    %9695 = vmatpush.bf16.msra.mxu0 %v8995
    %9696 = vmatpush.bf16.msra.mxu0 %v8991
    %9697 = vmatpush.bf16.msra.mxu0 %v8987
    %9698 = vmatpush.bf16.msra.mxu0 %v8983
    %9699 = vmatpush.bf16.msra.mxu0 %v8979
    %9700 = vmatpush.bf16.msra.mxu0 %v8975
    %9701 = vmatmul.bf16.gmra.mxu0 %v7941
    %v9702 = vpop.f32.mrf.mxu0
    %v9703 = vadd.f32 0.0, %v9702
    %v9704 = vpop.f32.mrf.mxu0
    %9705 = vdwg.mxu0
    %9706 = vmatpush.bf16.msra.mxu0 %v9035
    %9707 = vmatpush.bf16.msra.mxu0 %v9031
    %9708 = vmatpush.bf16.msra.mxu0 %v9027
    %9709 = vmatpush.bf16.msra.mxu0 %v9023
    %9710 = vmatpush.bf16.msra.mxu0 %v9019
    %9711 = vmatpush.bf16.msra.mxu0 %v9015
    %9712 = vmatpush.bf16.msra.mxu0 %v9011
    %9713 = vmatpush.bf16.msra.mxu0 %v9007
    %9714 = vmatmul.bf16.gmra.mxu0 %v7942
    %v9715 = vpop.f32.mrf.mxu0
    %v9716 = vadd.f32 %v9703, %v9715
    %v9717 = vpop.f32.mrf.mxu0
    %9718 = vdwg.mxu0
    %9719 = vmatpush.bf16.msra.mxu0 %v9067
    %9720 = vmatpush.bf16.msra.mxu0 %v9063
    %9721 = vmatpush.bf16.msra.mxu0 %v9059
    %9722 = vmatpush.bf16.msra.mxu0 %v9055
    %9723 = vmatpush.bf16.msra.mxu0 %v9051
    %9724 = vmatpush.bf16.msra.mxu0 %v9047
    %9725 = vmatpush.bf16.msra.mxu0 %v9043
    %9726 = vmatpush.bf16.msra.mxu0 %v9039
    %9727 = vmatmul.bf16.gmra.mxu0 %v7943
    %v9728 = vpop.f32.mrf.mxu0
    %v9729 = vadd.f32 %v9716, %v9728
    %v9730 = vpop.f32.mrf.mxu0
    %9731 = vdwg.mxu0
    %9732 = vmatpush.bf16.msra.mxu0 %v9099
    %9733 = vmatpush.bf16.msra.mxu0 %v9095
    %9734 = vmatpush.bf16.msra.mxu0 %v9091
    %9735 = vmatpush.bf16.msra.mxu0 %v9087
    %9736 = vmatpush.bf16.msra.mxu0 %v9083
    %9737 = vmatpush.bf16.msra.mxu0 %v9079
    %9738 = vmatpush.bf16.msra.mxu0 %v9075
    %9739 = vmatpush.bf16.msra.mxu0 %v9071
    %9740 = vmatmul.bf16.gmra.mxu0 %v7944
    %v9741 = vpop.f32.mrf.mxu0
    %v9742 = vadd.f32 %v9729, %v9741
    %v9743 = vpop.f32.mrf.mxu0
    %9744 = vdwg.mxu0
    %9745 = vmatpush.bf16.msra.mxu0 %v9131
    %9746 = vmatpush.bf16.msra.mxu0 %v9127
    %9747 = vmatpush.bf16.msra.mxu0 %v9123
    %9748 = vmatpush.bf16.msra.mxu0 %v9119
    %9749 = vmatpush.bf16.msra.mxu0 %v9115
    %9750 = vmatpush.bf16.msra.mxu0 %v9111
    %9751 = vmatpush.bf16.msra.mxu0 %v9107
    %9752 = vmatpush.bf16.msra.mxu0 %v9103
    %9753 = vmatmul.bf16.gmra.mxu0 %v7945
    %v9754 = vpop.f32.mrf.mxu0
    %v9755 = vadd.f32 %v9742, %v9754
    %v9756 = vpop.f32.mrf.mxu0
    %9757 = vdwg.mxu0
    %9758 = vmatpush.bf16.msra.mxu0 %v9163
    %9759 = vmatpush.bf16.msra.mxu0 %v9159
    %9760 = vmatpush.bf16.msra.mxu0 %v9155
    %9761 = vmatpush.bf16.msra.mxu0 %v9151
    %9762 = vmatpush.bf16.msra.mxu0 %v9147
    %9763 = vmatpush.bf16.msra.mxu0 %v9143
    %9764 = vmatpush.bf16.msra.mxu0 %v9139
    %9765 = vmatpush.bf16.msra.mxu0 %v9135
    %9766 = vmatmul.bf16.gmra.mxu0 %v7946
    %v9767 = vpop.f32.mrf.mxu0
    %v9768 = vadd.f32 %v9755, %v9767
    %v9769 = vpop.f32.mrf.mxu0
    %9770 = vdwg.mxu0
    %9771 = vmatpush.bf16.msra.mxu0 %v9195
    %9772 = vmatpush.bf16.msra.mxu0 %v9191
    %9773 = vmatpush.bf16.msra.mxu0 %v9187
    %9774 = vmatpush.bf16.msra.mxu0 %v9183
    %9775 = vmatpush.bf16.msra.mxu0 %v9179
    %9776 = vmatpush.bf16.msra.mxu0 %v9175
    %9777 = vmatpush.bf16.msra.mxu0 %v9171
    %9778 = vmatpush.bf16.msra.mxu0 %v9167
    %9779 = vmatmul.bf16.gmra.mxu0 %v7947
    %v9780 = vpop.f32.mrf.mxu0
    %v9781 = vadd.f32 %v9768, %v9780
    %v9782 = vpop.f32.mrf.mxu0
    %9783 = vdwg.mxu0
    %9784 = vmatpush.bf16.msra.mxu0 %v9227
    %9785 = vmatpush.bf16.msra.mxu0 %v9223
    %9786 = vmatpush.bf16.msra.mxu0 %v9219
    %9787 = vmatpush.bf16.msra.mxu0 %v9215
    %9788 = vmatpush.bf16.msra.mxu0 %v9211
    %9789 = vmatpush.bf16.msra.mxu0 %v9207
    %9790 = vmatpush.bf16.msra.mxu0 %v9203
    %9791 = vmatpush.bf16.msra.mxu0 %v9199
    %9792 = vmatmul.bf16.gmra.mxu0 %v7948
    %v9793 = vpop.f32.mrf.mxu0
    %v9794 = vadd.f32 %v9781, %v9793
    %v9795 = vpop.f32.mrf.mxu0
    %9796 = vdwg.mxu0
    %9797 = vmatpush.bf16.msra.mxu0 %v9004
    %9798 = vmatpush.bf16.msra.mxu0 %v9000
    %9799 = vmatpush.bf16.msra.mxu0 %v8996
    %9800 = vmatpush.bf16.msra.mxu0 %v8992
    %9801 = vmatpush.bf16.msra.mxu0 %v8988
    %9802 = vmatpush.bf16.msra.mxu0 %v8984
    %9803 = vmatpush.bf16.msra.mxu0 %v8980
    %9804 = vmatpush.bf16.msra.mxu0 %v8976
    %9805 = vmatmul.bf16.gmra.mxu0 %v7941
    %v9806 = vpop.f32.mrf.mxu0
    %v9807 = vadd.f32 0.0, %v9806
    %v9808 = vpop.f32.mrf.mxu0
    %9809 = vdwg.mxu0
    %9810 = vmatpush.bf16.msra.mxu0 %v9036
    %9811 = vmatpush.bf16.msra.mxu0 %v9032
    %9812 = vmatpush.bf16.msra.mxu0 %v9028
    %9813 = vmatpush.bf16.msra.mxu0 %v9024
    %9814 = vmatpush.bf16.msra.mxu0 %v9020
    %9815 = vmatpush.bf16.msra.mxu0 %v9016
    %9816 = vmatpush.bf16.msra.mxu0 %v9012
    %9817 = vmatpush.bf16.msra.mxu0 %v9008
    %9818 = vmatmul.bf16.gmra.mxu0 %v7942
    %v9819 = vpop.f32.mrf.mxu0
    %v9820 = vadd.f32 %v9807, %v9819
    %v9821 = vpop.f32.mrf.mxu0
    %9822 = vdwg.mxu0
    %9823 = vmatpush.bf16.msra.mxu0 %v9068
    %9824 = vmatpush.bf16.msra.mxu0 %v9064
    %9825 = vmatpush.bf16.msra.mxu0 %v9060
    %9826 = vmatpush.bf16.msra.mxu0 %v9056
    %9827 = vmatpush.bf16.msra.mxu0 %v9052
    %9828 = vmatpush.bf16.msra.mxu0 %v9048
    %9829 = vmatpush.bf16.msra.mxu0 %v9044
    %9830 = vmatpush.bf16.msra.mxu0 %v9040
    %9831 = vmatmul.bf16.gmra.mxu0 %v7943
    %v9832 = vpop.f32.mrf.mxu0
    %v9833 = vadd.f32 %v9820, %v9832
    %v9834 = vpop.f32.mrf.mxu0
    %9835 = vdwg.mxu0
    %9836 = vmatpush.bf16.msra.mxu0 %v9100
    %9837 = vmatpush.bf16.msra.mxu0 %v9096
    %9838 = vmatpush.bf16.msra.mxu0 %v9092
    %9839 = vmatpush.bf16.msra.mxu0 %v9088
    %9840 = vmatpush.bf16.msra.mxu0 %v9084
    %9841 = vmatpush.bf16.msra.mxu0 %v9080
    %9842 = vmatpush.bf16.msra.mxu0 %v9076
    %9843 = vmatpush.bf16.msra.mxu0 %v9072
    %9844 = vmatmul.bf16.gmra.mxu0 %v7944
    %v9845 = vpop.f32.mrf.mxu0
    %v9846 = vadd.f32 %v9833, %v9845
    %v9847 = vpop.f32.mrf.mxu0
    %9848 = vdwg.mxu0
    %9849 = vmatpush.bf16.msra.mxu0 %v9132
    %9850 = vmatpush.bf16.msra.mxu0 %v9128
    %9851 = vmatpush.bf16.msra.mxu0 %v9124
    %9852 = vmatpush.bf16.msra.mxu0 %v9120
    %9853 = vmatpush.bf16.msra.mxu0 %v9116
    %9854 = vmatpush.bf16.msra.mxu0 %v9112
    %9855 = vmatpush.bf16.msra.mxu0 %v9108
    %9856 = vmatpush.bf16.msra.mxu0 %v9104
    %9857 = vmatmul.bf16.gmra.mxu0 %v7945
    %v9858 = vpop.f32.mrf.mxu0
    %v9859 = vadd.f32 %v9846, %v9858
    %v9860 = vpop.f32.mrf.mxu0
    %9861 = vdwg.mxu0
    %9862 = vmatpush.bf16.msra.mxu0 %v9164
    %9863 = vmatpush.bf16.msra.mxu0 %v9160
    %9864 = vmatpush.bf16.msra.mxu0 %v9156
    %9865 = vmatpush.bf16.msra.mxu0 %v9152
    %9866 = vmatpush.bf16.msra.mxu0 %v9148
    %9867 = vmatpush.bf16.msra.mxu0 %v9144
    %9868 = vmatpush.bf16.msra.mxu0 %v9140
    %9869 = vmatpush.bf16.msra.mxu0 %v9136
    %9870 = vmatmul.bf16.gmra.mxu0 %v7946
    %v9871 = vpop.f32.mrf.mxu0
    %v9872 = vadd.f32 %v9859, %v9871
    %v9873 = vpop.f32.mrf.mxu0
    %9874 = vdwg.mxu0
    %9875 = vmatpush.bf16.msra.mxu0 %v9196
    %9876 = vmatpush.bf16.msra.mxu0 %v9192
    %9877 = vmatpush.bf16.msra.mxu0 %v9188
    %9878 = vmatpush.bf16.msra.mxu0 %v9184
    %9879 = vmatpush.bf16.msra.mxu0 %v9180
    %9880 = vmatpush.bf16.msra.mxu0 %v9176
    %9881 = vmatpush.bf16.msra.mxu0 %v9172
    %9882 = vmatpush.bf16.msra.mxu0 %v9168
    %9883 = vmatmul.bf16.gmra.mxu0 %v7947
    %v9884 = vpop.f32.mrf.mxu0
    %v9885 = vadd.f32 %v9872, %v9884
    %v9886 = vpop.f32.mrf.mxu0
    %9887 = vdwg.mxu0
    %9888 = vmatpush.bf16.msra.mxu0 %v9228
    %9889 = vmatpush.bf16.msra.mxu0 %v9224
    %9890 = vmatpush.bf16.msra.mxu0 %v9220
    %9891 = vmatpush.bf16.msra.mxu0 %v9216
    %9892 = vmatpush.bf16.msra.mxu0 %v9212
    %9893 = vmatpush.bf16.msra.mxu0 %v9208
    %9894 = vmatpush.bf16.msra.mxu0 %v9204
    %9895 = vmatpush.bf16.msra.mxu0 %v9200
    %9896 = vmatmul.bf16.gmra.mxu0 %v7948
    %v9897 = vpop.f32.mrf.mxu0
    %v9898 = vadd.f32 %v9885, %v9897
    %v9899 = vpop.f32.mrf.mxu0
    %9900 = vdwg.mxu0
    %v9901 = vld [vmem:[%s5] sm:$0xf]
    %v9903 = vperm.slane %v9901, 0
    %v9904 = vperm.slane %v9901, 1
    %v9905 = vperm.slane %v9901, 2
    %v9906 = vperm.slane %v9901, 3
    %v9911 = vmul.f32 %v9586, %v9903
    %v9912 = vmul.f32 %v9690, %v9904
    %v9913 = vmul.f32 %v9794, %v9905
    %v9914 = vmul.f32 %v9898, %v9906
    %v9915 = vld [vmem:[%s6] sm:$0xf]
    %v9917 = vperm.slane %v9915, 0
    %v9918 = vperm.slane %v9915, 1
    %v9919 = vperm.slane %v9915, 2
    %v9920 = vperm.slane %v9915, 3
    %v9925 = vadd.f32 %v9911, %v9917
    %v9926 = vadd.f32 %v9912, %v9918
    %v9927 = vadd.f32 %v9913, %v9919
    %v9928 = vadd.f32 %v9914, %v9920
    %v9929 = vmax.f32 %v9925, 0.0
    %v9930 = vmax.f32 %v9926, 0.0
    %v9931 = vmax.f32 %v9927, 0.0
    %v9932 = vmax.f32 %v9928, 0.0
    %v9933 = vpack.c.bf16 %v9929, %v9929
    %v9934 = vpack.c.bf16 %v9930, %v9930
    %v9935 = vpack.c.bf16 %v9931, %v9931
    %v9936 = vpack.c.bf16 %v9932, %v9932
    %v9937 = vld [vmem:[%s7] sm:$0xff]
    %v9938 = vld [vmem:[%s7 + $0x8] sm:$0xff]
    %v9939 = vld [vmem:[%s7 + $0x10] sm:$0xff]
    %v9940 = vld [vmem:[%s7 + $0x18] sm:$0xff]
    %v9941 = vld [vmem:[%s7 + $0x20] sm:$0xff]
    %v9942 = vld [vmem:[%s7 + $0x28] sm:$0xff]
    %v9943 = vld [vmem:[%s7 + $0x30] sm:$0xff]
    %v9944 = vld [vmem:[%s7 + $0x38] sm:$0xff]
    %v9945 = vld [vmem:[%s7 + $0x40] sm:$0xff]
    %v9946 = vld [vmem:[%s7 + $0x48] sm:$0xff]
    %v9947 = vld [vmem:[%s7 + $0x50] sm:$0xff]
    %v9948 = vld [vmem:[%s7 + $0x58] sm:$0xff]
    %v9949 = vld [vmem:[%s7 + $0x60] sm:$0xff]
    %v9950 = vld [vmem:[%s7 + $0x68] sm:$0xff]
    %v9951 = vld [vmem:[%s7 + $0x70] sm:$0xff]
    %v9952 = vld [vmem:[%s7 + $0x78] sm:$0xff]
    %v9953 = vld [vmem:[%s7 + $0x80] sm:$0xff]
    %v9954 = vld [vmem:[%s7 + $0x88] sm:$0xff]
    %v9955 = vld [vmem:[%s7 + $0x90] sm:$0xff]
    %v9956 = vld [vmem:[%s7 + $0x98] sm:$0xff]
    %v9957 = vld [vmem:[%s7 + $0xa0] sm:$0xff]
    %v9958 = vld [vmem:[%s7 + $0xa8] sm:$0xff]
    %v9959 = vld [vmem:[%s7 + $0xb0] sm:$0xff]
    %v9960 = vld [vmem:[%s7 + $0xb8] sm:$0xff]
    %v9961 = vld [vmem:[%s7 + $0xc0] sm:$0xff]
    %v9962 = vld [vmem:[%s7 + $0xc8] sm:$0xff]
    %v9963 = vld [vmem:[%s7 + $0xd0] sm:$0xff]
    %v9964 = vld [vmem:[%s7 + $0xd8] sm:$0xff]
    %v9965 = vld [vmem:[%s7 + $0xe0] sm:$0xff]
    %v9966 = vld [vmem:[%s7 + $0xe8] sm:$0xff]
    %v9967 = vld [vmem:[%s7 + $0xf0] sm:$0xff]
    %v9968 = vld [vmem:[%s7 + $0xf8] sm:$0xff]
    %v9969 = vld [vmem:[%s7 + $0x100] sm:$0xff]
    %v9970 = vld [vmem:[%s7 + $0x108] sm:$0xff]
    %v9971 = vld [vmem:[%s7 + $0x110] sm:$0xff]
    %v9972 = vld [vmem:[%s7 + $0x118] sm:$0xff]
    %v9973 = vld [vmem:[%s7 + $0x120] sm:$0xff]
    %v9974 = vld [vmem:[%s7 + $0x128] sm:$0xff]
    %v9975 = vld [vmem:[%s7 + $0x130] sm:$0xff]
    %v9976 = vld [vmem:[%s7 + $0x138] sm:$0xff]
    %v9977 = vld [vmem:[%s7 + $0x140] sm:$0xff]
    %v9978 = vld [vmem:[%s7 + $0x148] sm:$0xff]
    %v9979 = vld [vmem:[%s7 + $0x150] sm:$0xff]
    %v9980 = vld [vmem:[%s7 + $0x158] sm:$0xff]
    %v9981 = vld [vmem:[%s7 + $0x160] sm:$0xff]
    %v9982 = vld [vmem:[%s7 + $0x168] sm:$0xff]
    %v9983 = vld [vmem:[%s7 + $0x170] sm:$0xff]
    %v9984 = vld [vmem:[%s7 + $0x178] sm:$0xff]
    %v9985 = vld [vmem:[%s7 + $0x180] sm:$0xff]
    %v9986 = vld [vmem:[%s7 + $0x188] sm:$0xff]
    %v9987 = vld [vmem:[%s7 + $0x190] sm:$0xff]
    %v9988 = vld [vmem:[%s7 + $0x198] sm:$0xff]
    %v9989 = vld [vmem:[%s7 + $0x1a0] sm:$0xff]
    %v9990 = vld [vmem:[%s7 + $0x1a8] sm:$0xff]
    %v9991 = vld [vmem:[%s7 + $0x1b0] sm:$0xff]
    %v9992 = vld [vmem:[%s7 + $0x1b8] sm:$0xff]
    %v9993 = vld [vmem:[%s7 + $0x1c0] sm:$0xff]
    %v9994 = vld [vmem:[%s7 + $0x1c8] sm:$0xff]
    %v9995 = vld [vmem:[%s7 + $0x1d0] sm:$0xff]
    %v9996 = vld [vmem:[%s7 + $0x1d8] sm:$0xff]
    %v9997 = vld [vmem:[%s7 + $0x1e0] sm:$0xff]
    %v9998 = vld [vmem:[%s7 + $0x1e8] sm:$0xff]
    %v9999 = vld [vmem:[%s7 + $0x1f0] sm:$0xff]
    %v10000 = vld [vmem:[%s7 + $0x1f8] sm:$0xff]
    %v10001 = vld [vmem:[%s8] sm:$0x3]
    %v10003 = vperm.slane %v10001, 0
    %v10004 = vperm.slane %v10001, 1
    %v10071 = vunpack.c.l.b16 %v9937
    %v10072 = vunpack.c.h.b16 %v9937
    %v10073 = vunpack.c.l.b16 %v9938
    %v10074 = vunpack.c.h.b16 %v9938
    %v10075 = vunpack.c.l.b16 %v9939
    %v10076 = vunpack.c.h.b16 %v9939
    %v10077 = vunpack.c.l.b16 %v9940
    %v10078 = vunpack.c.h.b16 %v9940
    %v10079 = vunpack.c.l.b16 %v9941
    %v10080 = vunpack.c.h.b16 %v9941
    %v10081 = vunpack.c.l.b16 %v9942
    %v10082 = vunpack.c.h.b16 %v9942
    %v10083 = vunpack.c.l.b16 %v9943
    %v10084 = vunpack.c.h.b16 %v9943
    %v10085 = vunpack.c.l.b16 %v9944
    %v10086 = vunpack.c.h.b16 %v9944
    %v10087 = vunpack.c.l.b16 %v9945
    %v10088 = vunpack.c.h.b16 %v9945
    %v10089 = vunpack.c.l.b16 %v9946
    %v10090 = vunpack.c.h.b16 %v9946
    %v10091 = vunpack.c.l.b16 %v9947
    %v10092 = vunpack.c.h.b16 %v9947
    %v10093 = vunpack.c.l.b16 %v9948
    %v10094 = vunpack.c.h.b16 %v9948
    %v10095 = vunpack.c.l.b16 %v9949
    %v10096 = vunpack.c.h.b16 %v9949
    %v10097 = vunpack.c.l.b16 %v9950
    %v10098 = vunpack.c.h.b16 %v9950
    %v10099 = vunpack.c.l.b16 %v9951
    %v10100 = vunpack.c.h.b16 %v9951
    %v10101 = vunpack.c.l.b16 %v9952
    %v10102 = vunpack.c.h.b16 %v9952
    %v10103 = vunpack.c.l.b16 %v9953
    %v10104 = vunpack.c.h.b16 %v9953
    %v10105 = vunpack.c.l.b16 %v9954
    %v10106 = vunpack.c.h.b16 %v9954
    %v10107 = vunpack.c.l.b16 %v9955
    %v10108 = vunpack.c.h.b16 %v9955
    %v10109 = vunpack.c.l.b16 %v9956
    %v10110 = vunpack.c.h.b16 %v9956
    %v10111 = vunpack.c.l.b16 %v9957
    %v10112 = vunpack.c.h.b16 %v9957
    %v10113 = vunpack.c.l.b16 %v9958
    %v10114 = vunpack.c.h.b16 %v9958
    %v10115 = vunpack.c.l.b16 %v9959
    %v10116 = vunpack.c.h.b16 %v9959
    %v10117 = vunpack.c.l.b16 %v9960
    %v10118 = vunpack.c.h.b16 %v9960
    %v10119 = vunpack.c.l.b16 %v9961
    %v10120 = vunpack.c.h.b16 %v9961
    %v10121 = vunpack.c.l.b16 %v9962
    %v10122 = vunpack.c.h.b16 %v9962
    %v10123 = vunpack.c.l.b16 %v9963
    %v10124 = vunpack.c.h.b16 %v9963
    %v10125 = vunpack.c.l.b16 %v9964
    %v10126 = vunpack.c.h.b16 %v9964
    %v10127 = vunpack.c.l.b16 %v9965
    %v10128 = vunpack.c.h.b16 %v9965
    %v10129 = vunpack.c.l.b16 %v9966
    %v10130 = vunpack.c.h.b16 %v9966
    %v10131 = vunpack.c.l.b16 %v9967
    %v10132 = vunpack.c.h.b16 %v9967
    %v10133 = vunpack.c.l.b16 %v9968
    %v10134 = vunpack.c.h.b16 %v9968
    %v10135 = vunpack.c.l.b16 %v9969
    %v10136 = vunpack.c.h.b16 %v9969
    %v10137 = vunpack.c.l.b16 %v9970
    %v10138 = vunpack.c.h.b16 %v9970
    %v10139 = vunpack.c.l.b16 %v9971
    %v10140 = vunpack.c.h.b16 %v9971
    %v10141 = vunpack.c.l.b16 %v9972
    %v10142 = vunpack.c.h.b16 %v9972
    %v10143 = vunpack.c.l.b16 %v9973
    %v10144 = vunpack.c.h.b16 %v9973
    %v10145 = vunpack.c.l.b16 %v9974
    %v10146 = vunpack.c.h.b16 %v9974
    %v10147 = vunpack.c.l.b16 %v9975
    %v10148 = vunpack.c.h.b16 %v9975
    %v10149 = vunpack.c.l.b16 %v9976
    %v10150 = vunpack.c.h.b16 %v9976
    %v10151 = vunpack.c.l.b16 %v9977
    %v10152 = vunpack.c.h.b16 %v9977
    %v10153 = vunpack.c.l.b16 %v9978
    %v10154 = vunpack.c.h.b16 %v9978
    %v10155 = vunpack.c.l.b16 %v9979
    %v10156 = vunpack.c.h.b16 %v9979
    %v10157 = vunpack.c.l.b16 %v9980
    %v10158 = vunpack.c.h.b16 %v9980
    %v10159 = vunpack.c.l.b16 %v9981
    %v10160 = vunpack.c.h.b16 %v9981
    %v10161 = vunpack.c.l.b16 %v9982
    %v10162 = vunpack.c.h.b16 %v9982
    %v10163 = vunpack.c.l.b16 %v9983
    %v10164 = vunpack.c.h.b16 %v9983
    %v10165 = vunpack.c.l.b16 %v9984
    %v10166 = vunpack.c.h.b16 %v9984
    %v10167 = vunpack.c.l.b16 %v9985
    %v10168 = vunpack.c.h.b16 %v9985
    %v10169 = vunpack.c.l.b16 %v9986
    %v10170 = vunpack.c.h.b16 %v9986
    %v10171 = vunpack.c.l.b16 %v9987
    %v10172 = vunpack.c.h.b16 %v9987
    %v10173 = vunpack.c.l.b16 %v9988
    %v10174 = vunpack.c.h.b16 %v9988
    %v10175 = vunpack.c.l.b16 %v9989
    %v10176 = vunpack.c.h.b16 %v9989
    %v10177 = vunpack.c.l.b16 %v9990
    %v10178 = vunpack.c.h.b16 %v9990
    %v10179 = vunpack.c.l.b16 %v9991
    %v10180 = vunpack.c.h.b16 %v9991
    %v10181 = vunpack.c.l.b16 %v9992
    %v10182 = vunpack.c.h.b16 %v9992
    %v10183 = vunpack.c.l.b16 %v9993
    %v10184 = vunpack.c.h.b16 %v9993
    %v10185 = vunpack.c.l.b16 %v9994
    %v10186 = vunpack.c.h.b16 %v9994
    %v10187 = vunpack.c.l.b16 %v9995
    %v10188 = vunpack.c.h.b16 %v9995
    %v10189 = vunpack.c.l.b16 %v9996
    %v10190 = vunpack.c.h.b16 %v9996
    %v10191 = vunpack.c.l.b16 %v9997
    %v10192 = vunpack.c.h.b16 %v9997
    %v10193 = vunpack.c.l.b16 %v9998
    %v10194 = vunpack.c.h.b16 %v9998
    %v10195 = vunpack.c.l.b16 %v9999
    %v10196 = vunpack.c.h.b16 %v9999
    %v10197 = vunpack.c.l.b16 %v10000
    %v10198 = vunpack.c.h.b16 %v10000
    %v10199 = vpack.c.b16 %v10073, %v10071
    %v10200 = vpack.c.b16 %v10074, %v10072
    %v10201 = vpack.c.b16 %v10077, %v10075
    %v10202 = vpack.c.b16 %v10078, %v10076
    %v10203 = vpack.c.b16 %v10081, %v10079
    %v10204 = vpack.c.b16 %v10082, %v10080
    %v10205 = vpack.c.b16 %v10085, %v10083
    %v10206 = vpack.c.b16 %v10086, %v10084
    %v10207 = vpack.c.b16 %v10089, %v10087
    %v10208 = vpack.c.b16 %v10090, %v10088
    %v10209 = vpack.c.b16 %v10093, %v10091
    %v10210 = vpack.c.b16 %v10094, %v10092
    %v10211 = vpack.c.b16 %v10097, %v10095
    %v10212 = vpack.c.b16 %v10098, %v10096
    %v10213 = vpack.c.b16 %v10101, %v10099
    %v10214 = vpack.c.b16 %v10102, %v10100
    %v10215 = vpack.c.b16 %v10105, %v10103
    %v10216 = vpack.c.b16 %v10106, %v10104
    %v10217 = vpack.c.b16 %v10109, %v10107
    %v10218 = vpack.c.b16 %v10110, %v10108
    %v10219 = vpack.c.b16 %v10113, %v10111
    %v10220 = vpack.c.b16 %v10114, %v10112
    %v10221 = vpack.c.b16 %v10117, %v10115
    %v10222 = vpack.c.b16 %v10118, %v10116
    %v10223 = vpack.c.b16 %v10121, %v10119
    %v10224 = vpack.c.b16 %v10122, %v10120
    %v10225 = vpack.c.b16 %v10125, %v10123
    %v10226 = vpack.c.b16 %v10126, %v10124
    %v10227 = vpack.c.b16 %v10129, %v10127
    %v10228 = vpack.c.b16 %v10130, %v10128
    %v10229 = vpack.c.b16 %v10133, %v10131
    %v10230 = vpack.c.b16 %v10134, %v10132
    %v10231 = vpack.c.b16 %v10137, %v10135
    %v10232 = vpack.c.b16 %v10138, %v10136
    %v10233 = vpack.c.b16 %v10141, %v10139
    %v10234 = vpack.c.b16 %v10142, %v10140
    %v10235 = vpack.c.b16 %v10145, %v10143
    %v10236 = vpack.c.b16 %v10146, %v10144
    %v10237 = vpack.c.b16 %v10149, %v10147
    %v10238 = vpack.c.b16 %v10150, %v10148
    %v10239 = vpack.c.b16 %v10153, %v10151
    %v10240 = vpack.c.b16 %v10154, %v10152
    %v10241 = vpack.c.b16 %v10157, %v10155
    %v10242 = vpack.c.b16 %v10158, %v10156
    %v10243 = vpack.c.b16 %v10161, %v10159
    %v10244 = vpack.c.b16 %v10162, %v10160
    %v10245 = vpack.c.b16 %v10165, %v10163
    %v10246 = vpack.c.b16 %v10166, %v10164
    %v10247 = vpack.c.b16 %v10169, %v10167
    %v10248 = vpack.c.b16 %v10170, %v10168
    %v10249 = vpack.c.b16 %v10173, %v10171
    %v10250 = vpack.c.b16 %v10174, %v10172
    %v10251 = vpack.c.b16 %v10177, %v10175
    %v10252 = vpack.c.b16 %v10178, %v10176
    %v10253 = vpack.c.b16 %v10181, %v10179
    %v10254 = vpack.c.b16 %v10182, %v10180
    %v10255 = vpack.c.b16 %v10185, %v10183
    %v10256 = vpack.c.b16 %v10186, %v10184
    %v10257 = vpack.c.b16 %v10189, %v10187
    %v10258 = vpack.c.b16 %v10190, %v10188
    %v10259 = vpack.c.b16 %v10193, %v10191
    %v10260 = vpack.c.b16 %v10194, %v10192
    %v10261 = vpack.c.b16 %v10197, %v10195
    %v10262 = vpack.c.b16 %v10198, %v10196
    %10327 = vmatpush.bf16.msra.mxu0 %v10213
    %10328 = vmatpush.bf16.msra.mxu0 %v10211
    %10329 = vmatpush.bf16.msra.mxu0 %v10209
    %10330 = vmatpush.bf16.msra.mxu0 %v10207
    %10331 = vmatpush.bf16.msra.mxu0 %v10205
    %10332 = vmatpush.bf16.msra.mxu0 %v10203
    %10333 = vmatpush.bf16.msra.mxu0 %v10201
    %10334 = vmatpush.bf16.msra.mxu0 %v10199
    %10335 = vmatmul.bf16.gmra.mxu0 %v9933
    %v10336 = vpop.f32.mrf.mxu0
    %v10337 = vadd.f32 %v10003, %v10336
    %v10338 = vpop.f32.mrf.mxu0
    %10339 = vdwg.mxu0
    %10340 = vmatpush.bf16.msra.mxu0 %v10229
    %10341 = vmatpush.bf16.msra.mxu0 %v10227
    %10342 = vmatpush.bf16.msra.mxu0 %v10225
    %10343 = vmatpush.bf16.msra.mxu0 %v10223
    %10344 = vmatpush.bf16.msra.mxu0 %v10221
    %10345 = vmatpush.bf16.msra.mxu0 %v10219
    %10346 = vmatpush.bf16.msra.mxu0 %v10217
    %10347 = vmatpush.bf16.msra.mxu0 %v10215
    %10348 = vmatmul.bf16.gmra.mxu0 %v9934
    %v10349 = vpop.f32.mrf.mxu0
    %v10350 = vadd.f32 %v10337, %v10349
    %v10351 = vpop.f32.mrf.mxu0
    %10352 = vdwg.mxu0
    %10353 = vmatpush.bf16.msra.mxu0 %v10245
    %10354 = vmatpush.bf16.msra.mxu0 %v10243
    %10355 = vmatpush.bf16.msra.mxu0 %v10241
    %10356 = vmatpush.bf16.msra.mxu0 %v10239
    %10357 = vmatpush.bf16.msra.mxu0 %v10237
    %10358 = vmatpush.bf16.msra.mxu0 %v10235
    %10359 = vmatpush.bf16.msra.mxu0 %v10233
    %10360 = vmatpush.bf16.msra.mxu0 %v10231
    %10361 = vmatmul.bf16.gmra.mxu0 %v9935
    %v10362 = vpop.f32.mrf.mxu0
    %v10363 = vadd.f32 %v10350, %v10362
    %v10364 = vpop.f32.mrf.mxu0
    %10365 = vdwg.mxu0
    %10366 = vmatpush.bf16.msra.mxu0 %v10261
    %10367 = vmatpush.bf16.msra.mxu0 %v10259
    %10368 = vmatpush.bf16.msra.mxu0 %v10257
    %10369 = vmatpush.bf16.msra.mxu0 %v10255
    %10370 = vmatpush.bf16.msra.mxu0 %v10253
    %10371 = vmatpush.bf16.msra.mxu0 %v10251
    %10372 = vmatpush.bf16.msra.mxu0 %v10249
    %10373 = vmatpush.bf16.msra.mxu0 %v10247
    %10374 = vmatmul.bf16.gmra.mxu0 %v9936
    %v10375 = vpop.f32.mrf.mxu0
    %v10376 = vadd.f32 %v10363, %v10375
    %v10377 = vpop.f32.mrf.mxu0
    %10378 = vdwg.mxu0
    %10379 = vmatpush.bf16.msra.mxu0 %v10214
    %10380 = vmatpush.bf16.msra.mxu0 %v10212
    %10381 = vmatpush.bf16.msra.mxu0 %v10210
    %10382 = vmatpush.bf16.msra.mxu0 %v10208
    %10383 = vmatpush.bf16.msra.mxu0 %v10206
    %10384 = vmatpush.bf16.msra.mxu0 %v10204
    %10385 = vmatpush.bf16.msra.mxu0 %v10202
    %10386 = vmatpush.bf16.msra.mxu0 %v10200
    %10387 = vmatmul.bf16.gmra.mxu0 %v9933
    %v10388 = vpop.f32.mrf.mxu0
    %v10389 = vadd.f32 %v10004, %v10388
    %v10390 = vpop.f32.mrf.mxu0
    %10391 = vdwg.mxu0
    %10392 = vmatpush.bf16.msra.mxu0 %v10230
    %10393 = vmatpush.bf16.msra.mxu0 %v10228
    %10394 = vmatpush.bf16.msra.mxu0 %v10226
    %10395 = vmatpush.bf16.msra.mxu0 %v10224
    %10396 = vmatpush.bf16.msra.mxu0 %v10222
    %10397 = vmatpush.bf16.msra.mxu0 %v10220
    %10398 = vmatpush.bf16.msra.mxu0 %v10218
    %10399 = vmatpush.bf16.msra.mxu0 %v10216
    %10400 = vmatmul.bf16.gmra.mxu0 %v9934
    %v10401 = vpop.f32.mrf.mxu0
    %v10402 = vadd.f32 %v10389, %v10401
    %v10403 = vpop.f32.mrf.mxu0
    %10404 = vdwg.mxu0
    %10405 = vmatpush.bf16.msra.mxu0 %v10246
    %10406 = vmatpush.bf16.msra.mxu0 %v10244
    %10407 = vmatpush.bf16.msra.mxu0 %v10242
    %10408 = vmatpush.bf16.msra.mxu0 %v10240
    %10409 = vmatpush.bf16.msra.mxu0 %v10238
    %10410 = vmatpush.bf16.msra.mxu0 %v10236
    %10411 = vmatpush.bf16.msra.mxu0 %v10234
    %10412 = vmatpush.bf16.msra.mxu0 %v10232
    %10413 = vmatmul.bf16.gmra.mxu0 %v9935
    %v10414 = vpop.f32.mrf.mxu0
    %v10415 = vadd.f32 %v10402, %v10414
    %v10416 = vpop.f32.mrf.mxu0
    %10417 = vdwg.mxu0
    %10418 = vmatpush.bf16.msra.mxu0 %v10262
    %10419 = vmatpush.bf16.msra.mxu0 %v10260
    %10420 = vmatpush.bf16.msra.mxu0 %v10258
    %10421 = vmatpush.bf16.msra.mxu0 %v10256
    %10422 = vmatpush.bf16.msra.mxu0 %v10254
    %10423 = vmatpush.bf16.msra.mxu0 %v10252
    %10424 = vmatpush.bf16.msra.mxu0 %v10250
    %10425 = vmatpush.bf16.msra.mxu0 %v10248
    %10426 = vmatmul.bf16.gmra.mxu0 %v9936
    %v10427 = vpop.f32.mrf.mxu0
    %v10428 = vadd.f32 %v10415, %v10427
    %v10429 = vpop.f32.mrf.mxu0
    %10430 = vdwg.mxu0
    %v10431 = vlaneseq
    %v10432 = vand.u32 %v10431, 127
    %v10433 = vadd.s32 %v10432, 128
    %vm10434 = vcmp.lt.s32.totalorder %v10432, 140
    %vm10435 = vcmp.lt.s32.totalorder %v10433, 140
    %v10436 = vsel %vm10434, %v10376, -1e+30
    %v10437 = vsel %vm10435, %v10428, -1e+30
    %vm10438 = vcmask 1041408
    %v10439 = vsel %vm10438, %v10436, -inf
    %v10440 = vsel %vm10438, %v10437, -inf
    %v10441 = vmax.f32 %v10439, %v10440
    %10442 = vmax.xlane.f32.xlu0 %v10441
    %v10443 = vpop.xlane.xlu0 %10442
    %v10444 = vsub.f32 %v10436, %v10443
    %v10445 = vsub.f32 %v10437, %v10443
    %v10446 = vmul.f32 %v10444, 1.442695
    %v10447 = vpow.pop %v10446
    %v10448 = vmul.f32 %v10445, 1.442695
    %v10449 = vpow.pop %v10448
    %v10450 = vsel %vm10438, %v10447, 0.0
    %v10451 = vsel %vm10438, %v10449, 0.0
    %v10452 = vadd.f32 %v10450, %v10451
    %10453 = vadd.xlane.f32.xlu0 %v10452
    %v10454 = vpop.xlane.xlu0 %10453
    %v10455 = vlog2.pop %v10454
    %v10456 = vmul.f32 %v10455, 0.6931472
    %v10457 = vadd.f32 %v10456, %v10443
    %v10458 = vsub.f32 %v10436, %v10457
    %v10459 = vsub.f32 %v10437, %v10457
    %v10462 = vrot.slane %v10459, 6
    %v10463 = vsel %vm10438, %v10458, %v10462
    %10465 = vst [vmem:[#allocation2] sm:$0xf] %v10463
    %v10466 = vtanh.pop %v10428
    %10468 = vrot.lane.b32.xlu0 %v10466, 116
    %v10469 = vpop.permute.xlu0 %10468
    %vm10471 = vcmask 1024
    %10472 = vst.msk [vmem:[%s10] sm:$0x3] %vm10471, %v10469
    // Predicated region
    $region38: #{quoridor_forward.15} parent=1 // pred_check
      _
    $region39: #{quoridor_forward.15} parent=1 // pred_check_branch
      %10474 = sbr.rel (0) target = $region41
    $region40: #{quoridor_forward.15} parent=1 // pred_region
      %10476 = vsyncadd [#allocation3], 0
      %s10478 = sshll.u32 [#allocation2], 4
      %s10479 = int_to_ptr.vmem [resolvable:$true] %s10478
      %s10480 = sshll.u32 %s9, 4
      %s10481 = int_to_ptr.hbm [resolvable:$true] %s10480
      %10483 = dma.vmem_to_hbm [thread:$0]  %s10479, 64, %s10481, [#allocation3]
    $region41: #{quoridor_forward.15} parent=1 // pred_fallthru
      _
    // Predicated region
    $region42: #{quoridor_forward.15} parent=1 // pred_check
      _
    $region43: #{quoridor_forward.15} parent=1 // pred_check_branch
      %10485 = sbr.rel (0) target = $region45
    $region44: #{quoridor_forward.15} parent=1 // pred_region
      _
    $region45: #{quoridor_forward.15} parent=1 // pred_fallthru
      _
    // Predicated region
    $region46: #{quoridor_forward.15} parent=1 // pred_check
      _
    $region47: #{quoridor_forward.15} parent=1 // pred_check_branch
      %10487 = sbr.rel (0) target = $region49
    $region48: #{quoridor_forward.15} parent=1 // pred_region
      %10489 = dma.done [#allocation3], 64
    $region49: #{quoridor_forward.15} parent=1 // pred_fallthru
      _
    // Predicated region
    $region50: #{quoridor_forward.15} parent=1 // pred_check
      _
    $region51: #{quoridor_forward.15} parent=1 // pred_check_branch
      %10491 = sbr.rel (0) target = $region53
    $region52: #{quoridor_forward.15} parent=1 // pred_region
      _
    $region53: #{quoridor_forward.15} parent=1 // pred_fallthru
      _
    %10492 = vsyncpa [#allocation3], 1

</llo_original>
